<compile_context>
chip_gen: v5e
topology: v5e:2x2
jax: 0.10.0
libtpu: 0.0.40
codegen_flags: <defaults>
</compile_context>

<pallas_src>
import jax
import jax.numpy as jnp
import numpy as np
from jax.experimental import pallas as pl
from jax.experimental.pallas import tpu as pltpu


def dff_kernel(x_ref, w1b_ref, b1_ref, w2_ref, b2_ref, o_ref, pad_ref):
    """One batch-block (NB images) per grid step.

    x_ref   : (NB*H, W*5C)   bf16   input image rows, lane = (x, ci)
    w1b_ref : (W*5C, W*C)    bf16   block-diagonal 1x1 conv weight
    b1_ref  : (1, W*C)       f32    1x1 conv bias tiled over W
    w2_ref  : (3, W*C, W*C)  bf16   banded per-dy 3x3 conv weights
    b2_ref  : (1, W*C)       f32    3x3 conv bias tiled over W
    o_ref   : (NB*H, W*C)    f32    output image rows (lane-dense)
    pad_ref : (NB, H+2, W*C) bf16   row-halo-padded conv1 result
    """
    NB, Hp2, WC = pad_ref.shape
    H = Hp2 - 2
    NBH = NB * H

    # ---- conv1: 1x1 conv as a single block-diagonal matmul (MXU) ----
    h = jnp.dot(x_ref[...], w1b_ref[...], preferred_element_type=jnp.float32)
    h = h + b1_ref[...]                                        # (NBH, WC) f32

    # ---- stage conv2 input: zero the 2 halo rows, write the interior ----
    # Only the halo rows are zeroed (cheap, per-step, multi-core safe); the
    # left/right SAME padding is folded into the banded weights below.
    zrow = jnp.zeros((NB, 1, WC), dtype=pad_ref.dtype)
    pad_ref[:, 0:1, :] = zrow
    pad_ref[:, H + 1:H + 2, :] = zrow
    pad_ref[:, 1:H + 1, :] = h.astype(pad_ref.dtype).reshape(NB, H, WC)

    # ---- conv2: 3x3 SAME conv = 3 banded matmuls (one per dy row shift) ----
    out = b2_ref[...]                                          # (1, WC), broadcasts
    for dy in range(3):                                        # unrolled
        slab = pad_ref[:, dy:dy + H, :].reshape(NBH, WC)       # bf16 shifted rows
        out = out + jnp.dot(slab, w2_ref[dy, :, :],
                            preferred_element_type=jnp.float32)
    o_ref[...] = out.astype(o_ref.dtype)


def _conv1_block_weight(w1_mat, width):
    """kron(I_W, w1): (W*5C, W*C) block-diagonal 1x1-conv-as-matmul weight."""
    return jnp.kron(jnp.eye(width, dtype=jnp.float32), w1_mat.astype(jnp.float32))


def _conv2_banded_weights(w2_hwio, width):
    """Per-dy banded weights (3, W*C, W*C).

    W2_dy[x'*C+ci, x*C+co] = w2[dy, x'-x+1, ci, co] for |x'-x| <= 1 (else 0),
    which is exactly the 3x3 cross-correlation with SAME zero padding along x.
    """
    mats = []
    for dy in range(3):
        m = None
        for dx in range(3):
            band = jnp.eye(width, k=1 - dx, dtype=jnp.float32)
            term = jnp.kron(band, w2_hwio[dy, dx].astype(jnp.float32))
            m = term if m is None else m + term
        mats.append(m)
    return jnp.stack(mats, axis=0)


def dff_forward(x_nchw, w1_mat, b1, w2_hwio, b2, *, images_per_block=None):
    """DFF forward. x_nchw: (N, 5C, H, W) like the PyTorch module.

    w1_mat : (5C, C)      conv1 weight as matmul (PyTorch weight[:, :, 0, 0].T)
    b1     : (C,)         conv1 bias
    w2_hwio: (3, 3, C, C) conv2 weight in HWIO
    b2     : (C,)         conv2 bias
    """
    N, Cin, H, W = x_nchw.shape
    C = w1_mat.shape[1]
    assert Cin == w1_mat.shape[0] == 5 * C
    WC = W * C

    if images_per_block is None:
        # >=2 grid steps when possible (keeps both v7x TensorCores busy);
        # the extra step is negligible (~0.35 us) on single-core v5e/v6e.
        images_per_block = N // 2 if (N >= 2 and N % 2 == 0) else N
    NB = images_per_block
    assert N % NB == 0
    num_blocks = N // NB
    assert num_blocks == 1 or (NB * H) % 8 == 0, "block rows must be 8-aligned"

    # NCHW -> NHWC -> row-lane layout (N*H, W*5C); cast to bf16 (halved DMA).
    x_rows = (jnp.transpose(x_nchw, (0, 2, 3, 1))
              .reshape(N * H, W * Cin).astype(jnp.bfloat16))

    w1_block = _conv1_block_weight(w1_mat, W).astype(jnp.bfloat16)     # (W*5C, WC)
    w2_banded = _conv2_banded_weights(w2_hwio, W).astype(jnp.bfloat16)  # (3, WC, WC)
    b1_row = jnp.tile(b1.astype(jnp.float32), W).reshape(1, WC)
    b2_row = jnp.tile(b2.astype(jnp.float32), W).reshape(1, WC)

    out_rows = pl.pallas_call(
        dff_kernel,
        out_shape=jax.ShapeDtypeStruct((N * H, WC), jnp.float32),
        grid_spec=pltpu.PrefetchScalarGridSpec(
            num_scalar_prefetch=0,
            grid=(num_blocks,),
            in_specs=[
                pl.BlockSpec((NB * H, W * Cin), lambda i: (i, 0)),   # x rows
                pl.BlockSpec((W * Cin, WC), lambda i: (0, 0)),       # conv1 weight (resident)
                pl.BlockSpec((1, WC), lambda i: (0, 0)),             # conv1 bias
                pl.BlockSpec((3, WC, WC), lambda i: (0, 0, 0)),      # conv2 weights (resident)
                pl.BlockSpec((1, WC), lambda i: (0, 0)),             # conv2 bias
            ],
            out_specs=pl.BlockSpec((NB * H, WC), lambda i: (i, 0)),
            scratch_shapes=[
                pltpu.VMEM((NB, H + 2, WC), jnp.bfloat16),           # row-halo buffer
            ],
        ),
        compiler_params=pltpu.CompilerParams(dimension_semantics=("parallel",)),
    )(x_rows, w1_block, b1_row, w2_banded, b2_row)

    out = out_rows.reshape(N, H, W, C)          # row-major identical bytes
    return jnp.transpose(out, (0, 3, 1, 2))     # -> NCHW


def dff_reference(x_nchw, w1_mat, b1, w2_hwio, b2):
    """Pure-JAX f32 reference (mirrors the PyTorch module)."""
    x = jnp.transpose(x_nchw, (0, 2, 3, 1))                     # NHWC
    h = jnp.einsum('nhwc,cd->nhwd', x, w1_mat) + b1             # 1x1 conv + bias
    out = jax.lax.conv_general_dilated(
        h, w2_hwio, window_strides=(1, 1), padding='SAME',
        dimension_numbers=('NHWC', 'HWIO', 'NHWC')) + b2        # 3x3 conv + bias
    return jnp.transpose(out, (0, 3, 1, 2))                     # -> NCHW


if __name__ == "__main__":
    # DFF(in_channels=32): input has 5*32 = 160 channels, output 32 channels.
    N, C, H, W = 2, 32, 16, 16
    Cin = 5 * C

    key = jax.random.PRNGKey(0)
    kx, k1, kb1, k2, kb2 = jax.random.split(key, 5)

    x = jax.random.normal(kx, (N, Cin, H, W), dtype=jnp.float32)
    w1 = jax.random.normal(k1, (Cin, C), dtype=jnp.float32) / np.sqrt(Cin)
    b1 = 0.1 * jax.random.normal(kb1, (C,), dtype=jnp.float32)
    w2 = jax.random.normal(k2, (3, 3, C, C), dtype=jnp.float32) / np.sqrt(9 * C)
    b2 = 0.1 * jax.random.normal(kb2, (C,), dtype=jnp.float32)

    out = jax.block_until_ready(dff_forward(x, w1, b1, w2, b2))
    ref = jax.block_until_ready(dff_reference(x, w1, b1, w2, b2))

    # bf16 MXU operands with f32 accumulation -> loosened tolerance vs f32 ref.
    np.testing.assert_allclose(np.asarray(out), np.asarray(ref), atol=8e-2, rtol=8e-2)

    print("KERNEL_OK")
</pallas_src>

<mosaic_0001>
module attributes {stable_mosaic.version = 11 : i64} {
  func.func @dff_kernel(%arg0: i32, %arg1: memref<16x2560xbf16, #tpu.memory_space<vmem>>, %arg2: memref<2560x512xbf16, #tpu.memory_space<vmem>>, %arg3: memref<1x512xf32, #tpu.memory_space<vmem>>, %arg4: memref<3x512x512xbf16, #tpu.memory_space<vmem>>, %arg5: memref<1x512xf32, #tpu.memory_space<vmem>>, %arg6: memref<16x512xf32, #tpu.memory_space<vmem>>, %arg7: memref<1x18x512xbf16, #tpu.memory_space<vmem>>) attributes {dimension_semantics = [#tpu.dimension_semantics<parallel>], iteration_bounds = array<i64: 2>, scalar_prefetch = 0 : i64, scratch_operands = 1 : i64, tpu.core_type = #tpu.core_type<tc>, window_params = [{transform_indices = @transform_0, window_bounds = array<i64: 16, 2560>}, {pipeline_mode = #tpu.pipeline_mode<synchronous>, transform_indices = @transform_1, window_bounds = array<i64: 2560, 512>}, {pipeline_mode = #tpu.pipeline_mode<synchronous>, transform_indices = @transform_2, window_bounds = array<i64: 1, 512>}, {pipeline_mode = #tpu.pipeline_mode<synchronous>, transform_indices = @transform_3, window_bounds = array<i64: 3, 512, 512>}, {pipeline_mode = #tpu.pipeline_mode<synchronous>, transform_indices = @transform_4, window_bounds = array<i64: 1, 512>}, {transform_indices = @transform_5, window_bounds = array<i64: 16, 512>}]} {
    %c0 = arith.constant 0 : index
    %c0_0 = arith.constant 0 : index
    %0 = vector.load %arg1[%c0, %c0_0] : memref<16x2560xbf16, #tpu.memory_space<vmem>>, vector<16x2560xbf16>
    %c0_1 = arith.constant 0 : index
    %c0_2 = arith.constant 0 : index
    %1 = vector.load %arg2[%c0_1, %c0_2] : memref<2560x512xbf16, #tpu.memory_space<vmem>>, vector<2560x512xbf16>
    %cst = arith.constant dense<0.000000e+00> : vector<16x512xf32>
    %2 = tpu.matmul %0, %1, %cst {dimension_numbers = #tpu.dot_dimension_numbers<[1], [0], [0], [1], [0, 0, 1, 1], [], []>} : vector<16x2560xbf16>, vector<2560x512xbf16>, vector<16x512xf32> -> vector<16x512xf32>
    %c0_3 = arith.constant 0 : index
    %c0_4 = arith.constant 0 : index
    %3 = vector.load %arg3[%c0_3, %c0_4] : memref<1x512xf32, #tpu.memory_space<vmem>>, vector<1x512xf32>
    %4 = vector.broadcast %3 : vector<1x512xf32> to vector<16x512xf32>
    %5 = arith.addf %2, %4 : vector<16x512xf32>
    %cst_5 = arith.constant 0.000000e+00 : bf16
    %6 = vector.broadcast %cst_5 : bf16 to vector<1x1x512xbf16>
    %c0_6 = arith.constant 0 : index
    %c0_7 = arith.constant 0 : index
    %c0_8 = arith.constant 0 : index
    %7 = vector.load %arg7[%c0_6, %c0_7, %c0_8] : memref<1x18x512xbf16, #tpu.memory_space<vmem>>, vector<1x1x512xbf16>
    tpu.vector_store %arg7[%c0_6, %c0_7, %c0_8], %6 {strides = array<i32>} : memref<1x18x512xbf16, #tpu.memory_space<vmem>>, vector<1x1x512xbf16>,
    %c0_9 = arith.constant 0 : index
    %c17 = arith.constant 17 : index
    %c0_10 = arith.constant 0 : index
    %8 = vector.load %arg7[%c0_9, %c17, %c0_10] : memref<1x18x512xbf16, #tpu.memory_space<vmem>>, vector<1x1x512xbf16>
    tpu.vector_store %arg7[%c0_9, %c17, %c0_10], %6 {strides = array<i32>} : memref<1x18x512xbf16, #tpu.memory_space<vmem>>, vector<1x1x512xbf16>,
    %9 = arith.truncf %5 : vector<16x512xf32> to vector<16x512xbf16>
    %10 = vector.shape_cast %9 : vector<16x512xbf16> to vector<1x16x512xbf16>
    %c0_11 = arith.constant 0 : index
    %c1 = arith.constant 1 : index
    %c0_12 = arith.constant 0 : index
    %11 = vector.load %arg7[%c0_11, %c1, %c0_12] : memref<1x18x512xbf16, #tpu.memory_space<vmem>>, vector<1x16x512xbf16>
    tpu.vector_store %arg7[%c0_11, %c1, %c0_12], %10 {strides = array<i32>} : memref<1x18x512xbf16, #tpu.memory_space<vmem>>, vector<1x16x512xbf16>,
    %c0_13 = arith.constant 0 : index
    %c0_14 = arith.constant 0 : index
    %12 = vector.load %arg5[%c0_13, %c0_14] : memref<1x512xf32, #tpu.memory_space<vmem>>, vector<1x512xf32>
    %c0_15 = arith.constant 0 : index
    %c0_16 = arith.constant 0 : index
    %c0_17 = arith.constant 0 : index
    %13 = vector.load %arg7[%c0_15, %c0_16, %c0_17] : memref<1x18x512xbf16, #tpu.memory_space<vmem>>, vector<1x16x512xbf16>
    %14 = vector.shape_cast %13 : vector<1x16x512xbf16> to vector<16x512xbf16>
    %c0_18 = arith.constant 0 : index
    %c0_19 = arith.constant 0 : index
    %c0_20 = arith.constant 0 : index
    %15 = vector.load %arg4[%c0_18, %c0_19, %c0_20] : memref<3x512x512xbf16, #tpu.memory_space<vmem>>, vector<1x512x512xbf16>
    %16 = vector.shape_cast %15 : vector<1x512x512xbf16> to vector<512x512xbf16>
    %cst_21 = arith.constant dense<0.000000e+00> : vector<16x512xf32>
    %17 = tpu.matmul %14, %16, %cst_21 {dimension_numbers = #tpu.dot_dimension_numbers<[1], [0], [0], [1], [0, 0, 1, 1], [], []>} : vector<16x512xbf16>, vector<512x512xbf16>, vector<16x512xf32> -> vector<16x512xf32>
    %18 = vector.broadcast %12 : vector<1x512xf32> to vector<16x512xf32>
    %19 = arith.addf %18, %17 : vector<16x512xf32>
    %c0_22 = arith.constant 0 : index
    %c1_23 = arith.constant 1 : index
    %c0_24 = arith.constant 0 : index
    %20 = vector.load %arg7[%c0_22, %c1_23, %c0_24] : memref<1x18x512xbf16, #tpu.memory_space<vmem>>, vector<1x16x512xbf16>
    %21 = vector.shape_cast %20 : vector<1x16x512xbf16> to vector<16x512xbf16>
    %c1_25 = arith.constant 1 : index
    %c0_26 = arith.constant 0 : index
    %c0_27 = arith.constant 0 : index
    %22 = vector.load %arg4[%c1_25, %c0_26, %c0_27] : memref<3x512x512xbf16, #tpu.memory_space<vmem>>, vector<1x512x512xbf16>
    %23 = vector.shape_cast %22 : vector<1x512x512xbf16> to vector<512x512xbf16>
    %cst_28 = arith.constant dense<0.000000e+00> : vector<16x512xf32>
    %24 = tpu.matmul %21, %23, %cst_28 {dimension_numbers = #tpu.dot_dimension_numbers<[1], [0], [0], [1], [0, 0, 1, 1], [], []>} : vector<16x512xbf16>, vector<512x512xbf16>, vector<16x512xf32> -> vector<16x512xf32>
    %25 = arith.addf %19, %24 : vector<16x512xf32>
    %c0_29 = arith.constant 0 : index
    %c2 = arith.constant 2 : index
    %c0_30 = arith.constant 0 : index
    %26 = vector.load %arg7[%c0_29, %c2, %c0_30] : memref<1x18x512xbf16, #tpu.memory_space<vmem>>, vector<1x16x512xbf16>
    %27 = vector.shape_cast %26 : vector<1x16x512xbf16> to vector<16x512xbf16>
    %c2_31 = arith.constant 2 : index
    %c0_32 = arith.constant 0 : index
    %c0_33 = arith.constant 0 : index
    %28 = vector.load %arg4[%c2_31, %c0_32, %c0_33] : memref<3x512x512xbf16, #tpu.memory_space<vmem>>, vector<1x512x512xbf16>
    %29 = vector.shape_cast %28 : vector<1x512x512xbf16> to vector<512x512xbf16>
    %cst_34 = arith.constant dense<0.000000e+00> : vector<16x512xf32>
    %30 = tpu.matmul %27, %29, %cst_34 {dimension_numbers = #tpu.dot_dimension_numbers<[1], [0], [0], [1], [0, 0, 1, 1], [], []>} : vector<16x512xbf16>, vector<512x512xbf16>, vector<16x512xf32> -> vector<16x512xf32>
    %31 = arith.addf %25, %30 : vector<16x512xf32>
    %c0_35 = arith.constant 0 : index
    %c0_36 = arith.constant 0 : index
    %32 = vector.load %arg6[%c0_35, %c0_36] : memref<16x512xf32, #tpu.memory_space<vmem>>, vector<16x512xf32>
    tpu.vector_store %arg6[%c0_35, %c0_36], %31 {strides = array<i32>} : memref<16x512xf32, #tpu.memory_space<vmem>>, vector<16x512xf32>,
    return
  }
  func.func @transform_0(%arg0: i32) -> (i32, i32) {
    %c0_i32 = arith.constant 0 : i32
    %c0_i32_0 = arith.constant 0 : i32
    return %arg0, %c0_i32 : i32, i32
  }
  func.func @transform_1(%arg0: i32) -> (i32, i32) {
    %c0_i32 = arith.constant 0 : i32
    %c0_i32_0 = arith.constant 0 : i32
    %c0_i32_1 = arith.constant 0 : i32
    return %c0_i32, %c0_i32_0 : i32, i32
  }
  func.func @transform_2(%arg0: i32) -> (i32, i32) {
    %c0_i32 = arith.constant 0 : i32
    %c0_i32_0 = arith.constant 0 : i32
    %c0_i32_1 = arith.constant 0 : i32
    return %c0_i32, %c0_i32_0 : i32, i32
  }
  func.func @transform_3(%arg0: i32) -> (i32, i32, i32) {
    %c0_i32 = arith.constant 0 : i32
    %c0_i32_0 = arith.constant 0 : i32
    %c0_i32_1 = arith.constant 0 : i32
    %c0_i32_2 = arith.constant 0 : i32
    return %c0_i32, %c0_i32_0, %c0_i32_1 : i32, i32, i32
  }
  func.func @transform_4(%arg0: i32) -> (i32, i32) {
    %c0_i32 = arith.constant 0 : i32
    %c0_i32_0 = arith.constant 0 : i32
    %c0_i32_1 = arith.constant 0 : i32
    return %c0_i32, %c0_i32_0 : i32, i32
  }
  func.func @transform_5(%arg0: i32) -> (i32, i32) {
    %c0_i32 = arith.constant 0 : i32
    %c0_i32_0 = arith.constant 0 : i32
    return %arg0, %c0_i32 : i32, i32
  }
}

</mosaic_0001>

<llo_original>
// kernel: tpu_custom_call.1
$region0: #{tpu_custom_call.1}
  #allocation0 [shape = 'u32[]', space=smem, size = 0x4, offset = 0x4, fixed_abs, tag = 'smem constant byte address 0x4 - core index']
  #allocation1 [shape = 'u32[72,128]{1,0:T(1,128)}', space=vmem, size = 0x9000, scoped, tag = 'internal scratch']
  #allocation2 [shape = 'bf16[1,18,512]{2,1,0:T(8,128)(2,1)}', space=vmem, size = 0x6000, scoped, tag = 'scratch operand']
  %s0 = inlined_call_operand.hbm [shape: bf16[32,2560], index: 0, kind: input, shape index: {}]
  %s1 = inlined_call_operand.hbm [shape: bf16[2560,512], index: 1, kind: input, shape index: {}]
  %s2 = inlined_call_operand.hbm [shape: f32[1,512], index: 2, kind: input, shape index: {}]
  %s3 = inlined_call_operand.hbm [shape: bf16[3,512,512], index: 3, kind: input, shape index: {}]
  %s4 = inlined_call_operand.hbm [shape: f32[1,512], index: 4, kind: input, shape index: {}]
  %s5 = inlined_call_operand.hbm [shape: f32[32,512], index: 5, kind: output, shape index: {}]
  %s6 = sld [smem:[#allocation0]]
  $region73: #{tpu_custom_call.1} parent=0
    _
  %s8 = ssub.s32 1, %s6
  %s9 = scalar_select 0, %s8, %s6
  $region1: #{tpu_custom_call.1} parent=0
    #allocation3 [shape = 'u8[163840]{0}', space=vmem, size = 0x28000, scoped, tag = 'input window, operand 0']
    #allocation4 [shape = 's32[2]{0}', space=sflag, size = 0x8, scoped, tag = 'scoped memory for tpu_custom_call.1']
    #allocation5 [shape = 's32[2]{0}', space=sflag, size = 0x8, scoped, tag = 'scoped memory for tpu_custom_call.1']
    #allocation6 [shape = 'u8[2621440]{0}', space=vmem, size = 0x280000, scoped, tag = 'input window, operand 1, single buffered']
    #allocation7 [shape = 's32[1]{0}', space=sflag, size = 0x4, scoped, tag = 'scoped memory for tpu_custom_call.1']
    #allocation8 [shape = 'u8[2048]{0}', space=vmem, size = 0x800, scoped, tag = 'input window, operand 2, single buffered']
    #allocation9 [shape = 'u8[1572864]{0}', space=vmem, size = 0x180000, scoped, tag = 'input window, operand 3, single buffered']
    #allocation10 [shape = 's32[1]{0}', space=sflag, size = 0x4, scoped, tag = 'scoped memory for tpu_custom_call.1']
    #allocation11 [shape = 'u8[2048]{0}', space=vmem, size = 0x800, scoped, tag = 'input window, operand 4, single buffered']
    #allocation12 [shape = 'u8[65536]{0}', space=vmem, size = 0x10000, scoped, tag = 'output window, operand 0']
    %10 = vsyncpa [#allocation4], 0
    %s11 = scalar_lea.sflag [#allocation4], 1
    %12 = vsyncpa %s11, 0
    %13 = vsyncpa [#allocation7], 0
    %14 = vsyncpa [#allocation10], 0
    %15 = vsyncpa [#allocation5], 0
    %s16 = scalar_lea.sflag [#allocation5], 1
    %17 = vsyncpa %s16, 0
    loop: start=0, step=1, limit=4
    $region2: #{tpu_custom_call.1} parent=1 // loop_pre_header
      _
    $region3: #{tpu_custom_call.1} parent=1 // loop_header
      %s19 = sphi 0, %s23
      %p20 = scmp.ge.s32.totalorder %s19, 4
      %s29 = sphi 0, %s31
      %s32 = sphi 0, %s29
      %s33 = sphi 0, %s32
      %s49 = sphi 0, %s33
      %s53 = sphi 0, %s53
      %s55 = sphi 0, %s53
      %s56 = sphi 0, %s55
      %s70 = sphi 0, %s56
      %s74 = sphi 0, %s74
      %s76 = sphi 0, %s74
      %s77 = sphi 0, %s76
      %s91 = sphi 0, %s77
      %s95 = sphi 0, %s95
      %s97 = sphi 0, %s95
      %s98 = sphi 0, %s97
      %s112 = sphi 0, %s98
      %s116 = sphi 0, %s116
      %s118 = sphi 0, %s116
      %s119 = sphi 0, %s118
      %s133 = sphi 0, %s119
      %s139 = sphi 0, %s141
      %s142 = sphi 0, %s139
      %s143 = sphi 0, %s142
      %s159 = sphi 0, %s143
    $region4: #{tpu_custom_call.1} parent=1 // loop_header_branch
      %22 = sbr.rel (%p20) target = $region8
    $region5: #{tpu_custom_call.1} parent=1 // loop_body
      %s24 = ssub.s32 %s19, 1
      %s25 = ssub.s32 %s19, 2
      %s26 = sadd.s32 %s19, 1
      %s27 = ssub.s32 %s19, %s26
      %p28 = scmp.eq.s32.totalorder %s27, 0
      %s30 = sadd.s32 %s29, 1
      %s31 = scalar_select %p28, %s29, %s30
      %p34 = pneg %p28
      %p35 = scmp.eq.s32.totalorder %s19, 1
      %p36 = por %p34, %p35
      %p37 = scmp.ne.s32.totalorder %s29, %s32
      %p38 = scmp.eq.s32.totalorder %s19, 0
      %p39 = por %p37, %p38
      %p40 = scmp.ne.s32.totalorder %s29, %s32
      %p41 = scmp.eq.s32.totalorder %s24, 1
      %p42 = por %p40, %p41
      %p43 = scmp.ne.s32.totalorder %s32, %s33
      %p44 = scmp.eq.s32.totalorder %s24, 0
      %p45 = por %p43, %p44
      %p46 = scmp.ne.s32.totalorder %s32, %s33
      %p47 = scmp.eq.s32.totalorder %s25, 1
      %p48 = por %p46, %p47
      %p50 = scmp.ne.s32.totalorder %s33, %s49
      %p51 = scmp.eq.s32.totalorder %s25, 0
      %p52 = por %p50, %p51
      %s54 = sadd.s32 %s53, 1
      %p57 = scmp.eq.s32.totalorder %s19, 1
      %p58 = scmp.ne.s32.totalorder %s53, %s55
      %p59 = scmp.eq.s32.totalorder %s19, 0
      %p60 = por %p58, %p59
      %p61 = scmp.ne.s32.totalorder %s53, %s55
      %p62 = scmp.eq.s32.totalorder %s24, 1
      %p63 = por %p61, %p62
      %p64 = scmp.ne.s32.totalorder %s55, %s56
      %p65 = scmp.eq.s32.totalorder %s24, 0
      %p66 = por %p64, %p65
      %p67 = scmp.ne.s32.totalorder %s55, %s56
      %p68 = scmp.eq.s32.totalorder %s25, 1
      %p69 = por %p67, %p68
      %p71 = scmp.ne.s32.totalorder %s56, %s70
      %p72 = scmp.eq.s32.totalorder %s25, 0
      %p73 = por %p71, %p72
      %s75 = sadd.s32 %s74, 1
      %p78 = scmp.eq.s32.totalorder %s19, 1
      %p79 = scmp.ne.s32.totalorder %s74, %s76
      %p80 = scmp.eq.s32.totalorder %s19, 0
      %p81 = por %p79, %p80
      %p82 = scmp.ne.s32.totalorder %s74, %s76
      %p83 = scmp.eq.s32.totalorder %s24, 1
      %p84 = por %p82, %p83
      %p85 = scmp.ne.s32.totalorder %s76, %s77
      %p86 = scmp.eq.s32.totalorder %s24, 0
      %p87 = por %p85, %p86
      %p88 = scmp.ne.s32.totalorder %s76, %s77
      %p89 = scmp.eq.s32.totalorder %s25, 1
      %p90 = por %p88, %p89
      %p92 = scmp.ne.s32.totalorder %s77, %s91
      %p93 = scmp.eq.s32.totalorder %s25, 0
      %p94 = por %p92, %p93
      %s96 = sadd.s32 %s95, 1
      %p99 = scmp.eq.s32.totalorder %s19, 1
      %p100 = scmp.ne.s32.totalorder %s95, %s97
      %p101 = scmp.eq.s32.totalorder %s19, 0
      %p102 = por %p100, %p101
      %p103 = scmp.ne.s32.totalorder %s95, %s97
      %p104 = scmp.eq.s32.totalorder %s24, 1
      %p105 = por %p103, %p104
      %p106 = scmp.ne.s32.totalorder %s97, %s98
      %p107 = scmp.eq.s32.totalorder %s24, 0
      %p108 = por %p106, %p107
      %p109 = scmp.ne.s32.totalorder %s97, %s98
      %p110 = scmp.eq.s32.totalorder %s25, 1
      %p111 = por %p109, %p110
      %p113 = scmp.ne.s32.totalorder %s98, %s112
      %p114 = scmp.eq.s32.totalorder %s25, 0
      %p115 = por %p113, %p114
      %s117 = sadd.s32 %s116, 1
      %p120 = scmp.eq.s32.totalorder %s19, 1
      %p121 = scmp.ne.s32.totalorder %s116, %s118
      %p122 = scmp.eq.s32.totalorder %s19, 0
      %p123 = por %p121, %p122
      %p124 = scmp.ne.s32.totalorder %s116, %s118
      %p125 = scmp.eq.s32.totalorder %s24, 1
      %p126 = por %p124, %p125
      %p127 = scmp.ne.s32.totalorder %s118, %s119
      %p128 = scmp.eq.s32.totalorder %s24, 0
      %p129 = por %p127, %p128
      %p130 = scmp.ne.s32.totalorder %s118, %s119
      %p131 = scmp.eq.s32.totalorder %s25, 1
      %p132 = por %p130, %p131
      %p134 = scmp.ne.s32.totalorder %s119, %s133
      %p135 = scmp.eq.s32.totalorder %s25, 0
      %p136 = por %p134, %p135
      %s137 = ssub.s32 %s19, %s26
      %p138 = scmp.eq.s32.totalorder %s137, 0
      %s140 = sadd.s32 %s139, 1
      %s141 = scalar_select %p138, %s139, %s140
      %p144 = pneg %p138
      %p145 = scmp.eq.s32.totalorder %s19, 1
      %p146 = por %p144, %p145
      %p147 = scmp.ne.s32.totalorder %s139, %s142
      %p148 = scmp.eq.s32.totalorder %s19, 0
      %p149 = por %p147, %p148
      %p150 = scmp.ne.s32.totalorder %s139, %s142
      %p151 = scmp.eq.s32.totalorder %s24, 1
      %p152 = por %p150, %p151
      %p153 = scmp.ne.s32.totalorder %s142, %s143
      %p154 = scmp.eq.s32.totalorder %s24, 0
      %p155 = por %p153, %p154
      %p156 = scmp.ne.s32.totalorder %s142, %s143
      %p157 = scmp.eq.s32.totalorder %s25, 1
      %p158 = por %p156, %p157
      %p160 = scmp.ne.s32.totalorder %s143, %s159
      %p161 = scmp.eq.s32.totalorder %s25, 0
      %p162 = por %p160, %p161
      %p163 = scmp.le.s32.totalorder 1, %s19
      %p164 = scmp.lt.s32.totalorder %s19, 3
      %p165 = pnand %p163, %p164
      %p166 = pneg %p165
      // Predicated region
      $region9: #{tpu_custom_call.1} parent=5 // pred_check
        _
      $region10: #{tpu_custom_call.1} parent=5 // pred_check_branch
        %168 = sbr.rel (%p165) target = $region12
      $region11: #{tpu_custom_call.1} parent=5 // pred_region
        %s169 = ssub.s32 %s19, 1
        // Predicated region
        $region13: #{tpu_custom_call.1} parent=11 // pred_check
          %p170 = pneg %p66
        $region14: #{tpu_custom_call.1} parent=11 // pred_check_branch
          %172 = sbr.rel (%p170) target = $region16
        $region15: #{tpu_custom_call.1} parent=11 // pred_region
          %174 = vsyncadd [#allocation7], 0
          %s175 = sshll.u32 %s1, 4
          %s176 = int_to_ptr.hbm [resolvable:$true] %s175
          %s177 = sshll.u32 [#allocation6], 4
          %s178 = int_to_ptr.vmem [resolvable:$true] %s177
          %183 = dma.hbm_to_vmem [thread:$0]  %s176, 81920, %s178, [#allocation7], 256, 256, 16
        $region16: #{tpu_custom_call.1} parent=11 // pred_fallthru
          _
        // Predicated region
        $region17: #{tpu_custom_call.1} parent=11 // pred_check
          %p184 = pneg %p87
        $region18: #{tpu_custom_call.1} parent=11 // pred_check_branch
          %186 = sbr.rel (%p184) target = $region20
        $region19: #{tpu_custom_call.1} parent=11 // pred_region
          %188 = vsyncadd [#allocation7], 0
          %s190 = sshll.u32 %s2, 4
          %s191 = int_to_ptr.hbm [resolvable:$true] %s190
          %s192 = sshll.u32 [#allocation8], 4
          %s193 = int_to_ptr.vmem [resolvable:$true] %s192
          %195 = dma.hbm_to_vmem [thread:$0]  %s191, 64, %s193, [#allocation7]
        $region20: #{tpu_custom_call.1} parent=11 // pred_fallthru
          _
        // Predicated region
        $region21: #{tpu_custom_call.1} parent=11 // pred_check
          %p196 = pneg %p108
        $region22: #{tpu_custom_call.1} parent=11 // pred_check_branch
          %198 = sbr.rel (%p196) target = $region24
        $region23: #{tpu_custom_call.1} parent=11 // pred_region
          %200 = vsyncadd [#allocation10], 0
          %s201 = sshll.u32 %s3, 4
          %s202 = int_to_ptr.hbm [resolvable:$true] %s201
          %s203 = sshll.u32 [#allocation9], 4
          %s204 = int_to_ptr.vmem [resolvable:$true] %s203
          %209 = dma.hbm_to_vmem [thread:$0]  %s202, 49152, %s204, [#allocation10], 256, 256, 16
        $region24: #{tpu_custom_call.1} parent=11 // pred_fallthru
          _
        // Predicated region
        $region25: #{tpu_custom_call.1} parent=11 // pred_check
          %p210 = pneg %p129
        $region26: #{tpu_custom_call.1} parent=11 // pred_check_branch
          %212 = sbr.rel (%p210) target = $region28
        $region27: #{tpu_custom_call.1} parent=11 // pred_region
          %214 = vsyncadd [#allocation10], 0
          %s216 = sshll.u32 %s4, 4
          %s217 = int_to_ptr.hbm [resolvable:$true] %s216
          %s218 = sshll.u32 [#allocation11], 4
          %s219 = int_to_ptr.vmem [resolvable:$true] %s218
          %221 = dma.hbm_to_vmem [thread:$0]  %s217, 64, %s219, [#allocation10]
        $region28: #{tpu_custom_call.1} parent=11 // pred_fallthru
          _
      $region12: #{tpu_custom_call.1} parent=5 // pred_fallthru
        _
      %p222 = scmp.lt.s32.totalorder %s19, 2
      // Predicated region
      $region29: #{tpu_custom_call.1} parent=5 // pred_check
        %p223 = pneg %p222
      $region30: #{tpu_custom_call.1} parent=5 // pred_check_branch
        %225 = sbr.rel (%p223) target = $region32
      $region31: #{tpu_custom_call.1} parent=5 // pred_region
        // Predicated region
        $region33: #{tpu_custom_call.1} parent=31 // pred_check
          %p226 = pneg %p39
        $region34: #{tpu_custom_call.1} parent=31 // pred_check_branch
          %228 = sbr.rel (%p226) target = $region36
        $region35: #{tpu_custom_call.1} parent=31 // pred_region
          %s229 = sand.u32 %s29, 1
          %s230 = scalar_lea.sflag [#allocation4], %s229
          %s231 = sand.u32 %s29, 1
          %s232 = smul.addr %s231, 160
          %s233 = scalar_lea.vmem [#allocation3], %s232
          %s234 = smul.u32 2, %s19
          %236 = vsyncadd %s230, 0
          %s237 = smul.addr %s234, 20
          %s238 = smul.addr %s237, 4
          %s239 = scalar_lea.hbm %s0, %s238
          %s240 = sshll.u32 %s239, 4
          %s241 = int_to_ptr.hbm [resolvable:$true] %s240
          %s242 = sshll.u32 %s233, 4
          %s243 = int_to_ptr.vmem [resolvable:$true] %s242
          %248 = dma.hbm_to_vmem [thread:$0]  %s241, 2560, %s243, %s230, 1280, 1280, 80
        $region36: #{tpu_custom_call.1} parent=31 // pred_fallthru
          _
      $region32: #{tpu_custom_call.1} parent=5 // pred_fallthru
        _
      %p249 = scmp.le.s32.totalorder 1, %s19
      %p250 = scmp.lt.s32.totalorder %s19, 3
      %p251 = pnand %p249, %p250
      %p252 = pneg %p251
      // Predicated region
      $region37: #{tpu_custom_call.1} parent=5 // pred_check
        _
      $region38: #{tpu_custom_call.1} parent=5 // pred_check_branch
        %254 = sbr.rel (%p251) target = $region40
      $region39: #{tpu_custom_call.1} parent=5 // pred_region
        %s255 = ssub.s32 %s19, 1
        %s256 = sand.u32 %s32, 1
        %s257 = scalar_lea.sflag [#allocation4], %s256
        %s258 = sand.u32 %s32, 1
        %s259 = smul.addr %s258, 160
        %s260 = scalar_lea.vmem [#allocation3], %s259
        // Predicated region
        $region41: #{tpu_custom_call.1} parent=39 // pred_check
          %p261 = pneg %p45
        $region42: #{tpu_custom_call.1} parent=39 // pred_check_branch
          %263 = sbr.rel (%p261) target = $region44
        $region43: #{tpu_custom_call.1} parent=39 // pred_region
          %265 = dma.done %s257, 2560
        $region44: #{tpu_custom_call.1} parent=39 // pred_fallthru
          _
        // Predicated region
        $region45: #{tpu_custom_call.1} parent=39 // pred_check
          %p266 = pneg %p66
        $region46: #{tpu_custom_call.1} parent=39 // pred_check_branch
          %268 = sbr.rel (%p266) target = $region48
        $region47: #{tpu_custom_call.1} parent=39 // pred_region
          %270 = dma.done [#allocation7], 81920
        $region48: #{tpu_custom_call.1} parent=39 // pred_fallthru
          _
        // Predicated region
        $region49: #{tpu_custom_call.1} parent=39 // pred_check
          %p271 = pneg %p87
        $region50: #{tpu_custom_call.1} parent=39 // pred_check_branch
          %273 = sbr.rel (%p271) target = $region52
        $region51: #{tpu_custom_call.1} parent=39 // pred_region
          %275 = dma.done [#allocation7], 64
        $region52: #{tpu_custom_call.1} parent=39 // pred_fallthru
          _
        // Predicated region
        $region53: #{tpu_custom_call.1} parent=39 // pred_check
          %p276 = pneg %p108
        $region54: #{tpu_custom_call.1} parent=39 // pred_check_branch
          %278 = sbr.rel (%p276) target = $region56
        $region55: #{tpu_custom_call.1} parent=39 // pred_region
          %280 = dma.done [#allocation10], 49152
        $region56: #{tpu_custom_call.1} parent=39 // pred_fallthru
          _
        // Predicated region
        $region57: #{tpu_custom_call.1} parent=39 // pred_check
          %p281 = pneg %p129
        $region58: #{tpu_custom_call.1} parent=39 // pred_check_branch
          %283 = sbr.rel (%p281) target = $region60
        $region59: #{tpu_custom_call.1} parent=39 // pred_region
          %285 = dma.done [#allocation10], 64
        $region60: #{tpu_custom_call.1} parent=39 // pred_fallthru
          _
        %s286 = sand.u32 %s32, 1
        %s287 = scalar_lea.sflag [#allocation4], %s286
        %s288 = sand.u32 %s32, 1
        %s289 = smul.addr %s288, 160
        %s290 = scalar_lea.vmem [#allocation3], %s289
        %p291 = pneg %p45
        %p292 = pneg %p42
        %p293 = pneg %p66
        %p294 = pneg %p63
        %p295 = pneg %p87
        %p296 = pneg %p84
        %p297 = pneg %p108
        %p298 = pneg %p105
        %p299 = pneg %p129
        %p300 = pneg %p126
        %p301 = pneg %p155
        %p302 = pneg %p152
        %s303 = sand.u32 %s142, 1
        %s304 = scalar_lea.sflag [#allocation5], %s303
        %s305 = sand.u32 %s142, 1
        %s306 = smul.addr %s305, 64
        %s307 = scalar_lea.vmem [#allocation12], %s306
        %s308 = smul.u32 2, %s24
        %s309 = smul.u32 2, %s24
        %v311 = vld [vmem:[%s260] sm:$0xff]
        %v312 = vld [vmem:[%s260 + $0x8] sm:$0xff]
        %v313 = vld [vmem:[%s260 + $0x10] sm:$0xff]
        %v314 = vld [vmem:[%s260 + $0x18] sm:$0xff]
        %v315 = vld [vmem:[%s260 + $0x20] sm:$0xff]
        %v316 = vld [vmem:[%s260 + $0x28] sm:$0xff]
        %v317 = vld [vmem:[%s260 + $0x30] sm:$0xff]
        %v318 = vld [vmem:[%s260 + $0x38] sm:$0xff]
        %v319 = vld [vmem:[%s260 + $0x40] sm:$0xff]
        %v320 = vld [vmem:[%s260 + $0x48] sm:$0xff]
        %v321 = vld [vmem:[%s260 + $0x50] sm:$0xff]
        %v322 = vld [vmem:[%s260 + $0x58] sm:$0xff]
        %v323 = vld [vmem:[%s260 + $0x60] sm:$0xff]
        %v324 = vld [vmem:[%s260 + $0x68] sm:$0xff]
        %v325 = vld [vmem:[%s260 + $0x70] sm:$0xff]
        %v326 = vld [vmem:[%s260 + $0x78] sm:$0xff]
        %v327 = vld [vmem:[%s260 + $0x80] sm:$0xff]
        %v328 = vld [vmem:[%s260 + $0x88] sm:$0xff]
        %v329 = vld [vmem:[%s260 + $0x90] sm:$0xff]
        %v330 = vld [vmem:[%s260 + $0x98] sm:$0xff]
        %v331 = vld [vmem:[#allocation6] sm:$0xff]
        %v332 = vld [vmem:[#allocation6 + $0x8] sm:$0xff]
        %v333 = vld [vmem:[#allocation6 + $0x10] sm:$0xff]
        %v334 = vld [vmem:[#allocation6 + $0x18] sm:$0xff]
        %v335 = vld [vmem:[#allocation6 + $0x20] sm:$0xff]
        %v336 = vld [vmem:[#allocation6 + $0x28] sm:$0xff]
        %v337 = vld [vmem:[#allocation6 + $0x30] sm:$0xff]
        %v338 = vld [vmem:[#allocation6 + $0x38] sm:$0xff]
        %v339 = vld [vmem:[#allocation6 + $0x40] sm:$0xff]
        %v340 = vld [vmem:[#allocation6 + $0x48] sm:$0xff]
        %v341 = vld [vmem:[#allocation6 + $0x50] sm:$0xff]
        %v342 = vld [vmem:[#allocation6 + $0x58] sm:$0xff]
        %v343 = vld [vmem:[#allocation6 + $0x60] sm:$0xff]
        %v344 = vld [vmem:[#allocation6 + $0x68] sm:$0xff]
        %v345 = vld [vmem:[#allocation6 + $0x70] sm:$0xff]
        %v346 = vld [vmem:[#allocation6 + $0x78] sm:$0xff]
        %v347 = vld [vmem:[#allocation6 + $0x80] sm:$0xff]
        %v348 = vld [vmem:[#allocation6 + $0x88] sm:$0xff]
        %v349 = vld [vmem:[#allocation6 + $0x90] sm:$0xff]
        %v350 = vld [vmem:[#allocation6 + $0x98] sm:$0xff]
        %v351 = vld [vmem:[#allocation6 + $0xa0] sm:$0xff]
        %v352 = vld [vmem:[#allocation6 + $0xa8] sm:$0xff]
        %v353 = vld [vmem:[#allocation6 + $0xb0] sm:$0xff]
        %v354 = vld [vmem:[#allocation6 + $0xb8] sm:$0xff]
        %v355 = vld [vmem:[#allocation6 + $0xc0] sm:$0xff]
        %v356 = vld [vmem:[#allocation6 + $0xc8] sm:$0xff]
        %v357 = vld [vmem:[#allocation6 + $0xd0] sm:$0xff]
        %v358 = vld [vmem:[#allocation6 + $0xd8] sm:$0xff]
        %v359 = vld [vmem:[#allocation6 + $0xe0] sm:$0xff]
        %v360 = vld [vmem:[#allocation6 + $0xe8] sm:$0xff]
        %v361 = vld [vmem:[#allocation6 + $0xf0] sm:$0xff]
        %v362 = vld [vmem:[#allocation6 + $0xf8] sm:$0xff]
        %v363 = vld [vmem:[#allocation6 + $0x100] sm:$0xff]
        %v364 = vld [vmem:[#allocation6 + $0x108] sm:$0xff]
        %v365 = vld [vmem:[#allocation6 + $0x110] sm:$0xff]
        %v366 = vld [vmem:[#allocation6 + $0x118] sm:$0xff]
        %v367 = vld [vmem:[#allocation6 + $0x120] sm:$0xff]
        %v368 = vld [vmem:[#allocation6 + $0x128] sm:$0xff]
        %v369 = vld [vmem:[#allocation6 + $0x130] sm:$0xff]
        %v370 = vld [vmem:[#allocation6 + $0x138] sm:$0xff]
        %v371 = vld [vmem:[#allocation6 + $0x140] sm:$0xff]
        %v372 = vld [vmem:[#allocation6 + $0x148] sm:$0xff]
        %v373 = vld [vmem:[#allocation6 + $0x150] sm:$0xff]
        %v374 = vld [vmem:[#allocation6 + $0x158] sm:$0xff]
        %v375 = vld [vmem:[#allocation6 + $0x160] sm:$0xff]
        %v376 = vld [vmem:[#allocation6 + $0x168] sm:$0xff]
        %v377 = vld [vmem:[#allocation6 + $0x170] sm:$0xff]
        %v378 = vld [vmem:[#allocation6 + $0x178] sm:$0xff]
        %v379 = vld [vmem:[#allocation6 + $0x180] sm:$0xff]
        %v380 = vld [vmem:[#allocation6 + $0x188] sm:$0xff]
        %v381 = vld [vmem:[#allocation6 + $0x190] sm:$0xff]
        %v382 = vld [vmem:[#allocation6 + $0x198] sm:$0xff]
        %v383 = vld [vmem:[#allocation6 + $0x1a0] sm:$0xff]
        %v384 = vld [vmem:[#allocation6 + $0x1a8] sm:$0xff]
        %v385 = vld [vmem:[#allocation6 + $0x1b0] sm:$0xff]
        %v386 = vld [vmem:[#allocation6 + $0x1b8] sm:$0xff]
        %v387 = vld [vmem:[#allocation6 + $0x1c0] sm:$0xff]
        %v388 = vld [vmem:[#allocation6 + $0x1c8] sm:$0xff]
        %v389 = vld [vmem:[#allocation6 + $0x1d0] sm:$0xff]
        %v390 = vld [vmem:[#allocation6 + $0x1d8] sm:$0xff]
        %v391 = vld [vmem:[#allocation6 + $0x1e0] sm:$0xff]
        %v392 = vld [vmem:[#allocation6 + $0x1e8] sm:$0xff]
        %v393 = vld [vmem:[#allocation6 + $0x1f0] sm:$0xff]
        %v394 = vld [vmem:[#allocation6 + $0x1f8] sm:$0xff]
        %v395 = vld [vmem:[#allocation6 + $0x200] sm:$0xff]
        %v396 = vld [vmem:[#allocation6 + $0x208] sm:$0xff]
        %v397 = vld [vmem:[#allocation6 + $0x210] sm:$0xff]
        %v398 = vld [vmem:[#allocation6 + $0x218] sm:$0xff]
        %v399 = vld [vmem:[#allocation6 + $0x220] sm:$0xff]
        %v400 = vld [vmem:[#allocation6 + $0x228] sm:$0xff]
        %v401 = vld [vmem:[#allocation6 + $0x230] sm:$0xff]
        %v402 = vld [vmem:[#allocation6 + $0x238] sm:$0xff]
        %v403 = vld [vmem:[#allocation6 + $0x240] sm:$0xff]
        %v404 = vld [vmem:[#allocation6 + $0x248] sm:$0xff]
        %v405 = vld [vmem:[#allocation6 + $0x250] sm:$0xff]
        %v406 = vld [vmem:[#allocation6 + $0x258] sm:$0xff]
        %v407 = vld [vmem:[#allocation6 + $0x260] sm:$0xff]
        %v408 = vld [vmem:[#allocation6 + $0x268] sm:$0xff]
        %v409 = vld [vmem:[#allocation6 + $0x270] sm:$0xff]
        %v410 = vld [vmem:[#allocation6 + $0x278] sm:$0xff]
        %v411 = vld [vmem:[#allocation6 + $0x280] sm:$0xff]
        %v412 = vld [vmem:[#allocation6 + $0x288] sm:$0xff]
        %v413 = vld [vmem:[#allocation6 + $0x290] sm:$0xff]
        %v414 = vld [vmem:[#allocation6 + $0x298] sm:$0xff]
        %v415 = vld [vmem:[#allocation6 + $0x2a0] sm:$0xff]
        %v416 = vld [vmem:[#allocation6 + $0x2a8] sm:$0xff]
        %v417 = vld [vmem:[#allocation6 + $0x2b0] sm:$0xff]
        %v418 = vld [vmem:[#allocation6 + $0x2b8] sm:$0xff]
        %v419 = vld [vmem:[#allocation6 + $0x2c0] sm:$0xff]
        %v420 = vld [vmem:[#allocation6 + $0x2c8] sm:$0xff]
        %v421 = vld [vmem:[#allocation6 + $0x2d0] sm:$0xff]
        %v422 = vld [vmem:[#allocation6 + $0x2d8] sm:$0xff]
        %v423 = vld [vmem:[#allocation6 + $0x2e0] sm:$0xff]
        %v424 = vld [vmem:[#allocation6 + $0x2e8] sm:$0xff]
        %v425 = vld [vmem:[#allocation6 + $0x2f0] sm:$0xff]
        %v426 = vld [vmem:[#allocation6 + $0x2f8] sm:$0xff]
        %v427 = vld [vmem:[#allocation6 + $0x300] sm:$0xff]
        %v428 = vld [vmem:[#allocation6 + $0x308] sm:$0xff]
        %v429 = vld [vmem:[#allocation6 + $0x310] sm:$0xff]
        %v430 = vld [vmem:[#allocation6 + $0x318] sm:$0xff]
        %v431 = vld [vmem:[#allocation6 + $0x320] sm:$0xff]
        %v432 = vld [vmem:[#allocation6 + $0x328] sm:$0xff]
        %v433 = vld [vmem:[#allocation6 + $0x330] sm:$0xff]
        %v434 = vld [vmem:[#allocation6 + $0x338] sm:$0xff]
        %v435 = vld [vmem:[#allocation6 + $0x340] sm:$0xff]
        %v436 = vld [vmem:[#allocation6 + $0x348] sm:$0xff]
        %v437 = vld [vmem:[#allocation6 + $0x350] sm:$0xff]
        %v438 = vld [vmem:[#allocation6 + $0x358] sm:$0xff]
        %v439 = vld [vmem:[#allocation6 + $0x360] sm:$0xff]
        %v440 = vld [vmem:[#allocation6 + $0x368] sm:$0xff]
        %v441 = vld [vmem:[#allocation6 + $0x370] sm:$0xff]
        %v442 = vld [vmem:[#allocation6 + $0x378] sm:$0xff]
        %v443 = vld [vmem:[#allocation6 + $0x380] sm:$0xff]
        %v444 = vld [vmem:[#allocation6 + $0x388] sm:$0xff]
        %v445 = vld [vmem:[#allocation6 + $0x390] sm:$0xff]
        %v446 = vld [vmem:[#allocation6 + $0x398] sm:$0xff]
        %v447 = vld [vmem:[#allocation6 + $0x3a0] sm:$0xff]
        %v448 = vld [vmem:[#allocation6 + $0x3a8] sm:$0xff]
        %v449 = vld [vmem:[#allocation6 + $0x3b0] sm:$0xff]
        %v450 = vld [vmem:[#allocation6 + $0x3b8] sm:$0xff]
        %v451 = vld [vmem:[#allocation6 + $0x3c0] sm:$0xff]
        %v452 = vld [vmem:[#allocation6 + $0x3c8] sm:$0xff]
        %v453 = vld [vmem:[#allocation6 + $0x3d0] sm:$0xff]
        %v454 = vld [vmem:[#allocation6 + $0x3d8] sm:$0xff]
        %v455 = vld [vmem:[#allocation6 + $0x3e0] sm:$0xff]
        %v456 = vld [vmem:[#allocation6 + $0x3e8] sm:$0xff]
        %v457 = vld [vmem:[#allocation6 + $0x3f0] sm:$0xff]
        %v458 = vld [vmem:[#allocation6 + $0x3f8] sm:$0xff]
        %v459 = vld [vmem:[#allocation6 + $0x400] sm:$0xff]
        %v460 = vld [vmem:[#allocation6 + $0x408] sm:$0xff]
        %v461 = vld [vmem:[#allocation6 + $0x410] sm:$0xff]
        %v462 = vld [vmem:[#allocation6 + $0x418] sm:$0xff]
        %v463 = vld [vmem:[#allocation6 + $0x420] sm:$0xff]
        %v464 = vld [vmem:[#allocation6 + $0x428] sm:$0xff]
        %v465 = vld [vmem:[#allocation6 + $0x430] sm:$0xff]
        %v466 = vld [vmem:[#allocation6 + $0x438] sm:$0xff]
        %v467 = vld [vmem:[#allocation6 + $0x440] sm:$0xff]
        %v468 = vld [vmem:[#allocation6 + $0x448] sm:$0xff]
        %v469 = vld [vmem:[#allocation6 + $0x450] sm:$0xff]
        %v470 = vld [vmem:[#allocation6 + $0x458] sm:$0xff]
        %v471 = vld [vmem:[#allocation6 + $0x460] sm:$0xff]
        %v472 = vld [vmem:[#allocation6 + $0x468] sm:$0xff]
        %v473 = vld [vmem:[#allocation6 + $0x470] sm:$0xff]
        %v474 = vld [vmem:[#allocation6 + $0x478] sm:$0xff]
        %v475 = vld [vmem:[#allocation6 + $0x480] sm:$0xff]
        %v476 = vld [vmem:[#allocation6 + $0x488] sm:$0xff]
        %v477 = vld [vmem:[#allocation6 + $0x490] sm:$0xff]
        %v478 = vld [vmem:[#allocation6 + $0x498] sm:$0xff]
        %v479 = vld [vmem:[#allocation6 + $0x4a0] sm:$0xff]
        %v480 = vld [vmem:[#allocation6 + $0x4a8] sm:$0xff]
        %v481 = vld [vmem:[#allocation6 + $0x4b0] sm:$0xff]
        %v482 = vld [vmem:[#allocation6 + $0x4b8] sm:$0xff]
        %v483 = vld [vmem:[#allocation6 + $0x4c0] sm:$0xff]
        %v484 = vld [vmem:[#allocation6 + $0x4c8] sm:$0xff]
        %v485 = vld [vmem:[#allocation6 + $0x4d0] sm:$0xff]
        %v486 = vld [vmem:[#allocation6 + $0x4d8] sm:$0xff]
        %v487 = vld [vmem:[#allocation6 + $0x4e0] sm:$0xff]
        %v488 = vld [vmem:[#allocation6 + $0x4e8] sm:$0xff]
        %v489 = vld [vmem:[#allocation6 + $0x4f0] sm:$0xff]
        %v490 = vld [vmem:[#allocation6 + $0x4f8] sm:$0xff]
        %v491 = vld [vmem:[#allocation6 + $0x500] sm:$0xff]
        %v492 = vld [vmem:[#allocation6 + $0x508] sm:$0xff]
        %v493 = vld [vmem:[#allocation6 + $0x510] sm:$0xff]
        %v494 = vld [vmem:[#allocation6 + $0x518] sm:$0xff]
        %v495 = vld [vmem:[#allocation6 + $0x520] sm:$0xff]
        %v496 = vld [vmem:[#allocation6 + $0x528] sm:$0xff]
        %v497 = vld [vmem:[#allocation6 + $0x530] sm:$0xff]
        %v498 = vld [vmem:[#allocation6 + $0x538] sm:$0xff]
        %v499 = vld [vmem:[#allocation6 + $0x540] sm:$0xff]
        %v500 = vld [vmem:[#allocation6 + $0x548] sm:$0xff]
        %v501 = vld [vmem:[#allocation6 + $0x550] sm:$0xff]
        %v502 = vld [vmem:[#allocation6 + $0x558] sm:$0xff]
        %v503 = vld [vmem:[#allocation6 + $0x560] sm:$0xff]
        %v504 = vld [vmem:[#allocation6 + $0x568] sm:$0xff]
        %v505 = vld [vmem:[#allocation6 + $0x570] sm:$0xff]
        %v506 = vld [vmem:[#allocation6 + $0x578] sm:$0xff]
        %v507 = vld [vmem:[#allocation6 + $0x580] sm:$0xff]
        %v508 = vld [vmem:[#allocation6 + $0x588] sm:$0xff]
        %v509 = vld [vmem:[#allocation6 + $0x590] sm:$0xff]
        %v510 = vld [vmem:[#allocation6 + $0x598] sm:$0xff]
        %v511 = vld [vmem:[#allocation6 + $0x5a0] sm:$0xff]
        %v512 = vld [vmem:[#allocation6 + $0x5a8] sm:$0xff]
        %v513 = vld [vmem:[#allocation6 + $0x5b0] sm:$0xff]
        %v514 = vld [vmem:[#allocation6 + $0x5b8] sm:$0xff]
        %v515 = vld [vmem:[#allocation6 + $0x5c0] sm:$0xff]
        %v516 = vld [vmem:[#allocation6 + $0x5c8] sm:$0xff]
        %v517 = vld [vmem:[#allocation6 + $0x5d0] sm:$0xff]
        %v518 = vld [vmem:[#allocation6 + $0x5d8] sm:$0xff]
        %v519 = vld [vmem:[#allocation6 + $0x5e0] sm:$0xff]
        %v520 = vld [vmem:[#allocation6 + $0x5e8] sm:$0xff]
        %v521 = vld [vmem:[#allocation6 + $0x5f0] sm:$0xff]
        %v522 = vld [vmem:[#allocation6 + $0x5f8] sm:$0xff]
        %v523 = vld [vmem:[#allocation6 + $0x600] sm:$0xff]
        %v524 = vld [vmem:[#allocation6 + $0x608] sm:$0xff]
        %v525 = vld [vmem:[#allocation6 + $0x610] sm:$0xff]
        %v526 = vld [vmem:[#allocation6 + $0x618] sm:$0xff]
        %v527 = vld [vmem:[#allocation6 + $0x620] sm:$0xff]
        %v528 = vld [vmem:[#allocation6 + $0x628] sm:$0xff]
        %v529 = vld [vmem:[#allocation6 + $0x630] sm:$0xff]
        %v530 = vld [vmem:[#allocation6 + $0x638] sm:$0xff]
        %v531 = vld [vmem:[#allocation6 + $0x640] sm:$0xff]
        %v532 = vld [vmem:[#allocation6 + $0x648] sm:$0xff]
        %v533 = vld [vmem:[#allocation6 + $0x650] sm:$0xff]
        %v534 = vld [vmem:[#allocation6 + $0x658] sm:$0xff]
        %v535 = vld [vmem:[#allocation6 + $0x660] sm:$0xff]
        %v536 = vld [vmem:[#allocation6 + $0x668] sm:$0xff]
        %v537 = vld [vmem:[#allocation6 + $0x670] sm:$0xff]
        %v538 = vld [vmem:[#allocation6 + $0x678] sm:$0xff]
        %v539 = vld [vmem:[#allocation6 + $0x680] sm:$0xff]
        %v540 = vld [vmem:[#allocation6 + $0x688] sm:$0xff]
        %v541 = vld [vmem:[#allocation6 + $0x690] sm:$0xff]
        %v542 = vld [vmem:[#allocation6 + $0x698] sm:$0xff]
        %v543 = vld [vmem:[#allocation6 + $0x6a0] sm:$0xff]
        %v544 = vld [vmem:[#allocation6 + $0x6a8] sm:$0xff]
        %v545 = vld [vmem:[#allocation6 + $0x6b0] sm:$0xff]
        %v546 = vld [vmem:[#allocation6 + $0x6b8] sm:$0xff]
        %v547 = vld [vmem:[#allocation6 + $0x6c0] sm:$0xff]
        %v548 = vld [vmem:[#allocation6 + $0x6c8] sm:$0xff]
        %v549 = vld [vmem:[#allocation6 + $0x6d0] sm:$0xff]
        %v550 = vld [vmem:[#allocation6 + $0x6d8] sm:$0xff]
        %v551 = vld [vmem:[#allocation6 + $0x6e0] sm:$0xff]
        %v552 = vld [vmem:[#allocation6 + $0x6e8] sm:$0xff]
        %v553 = vld [vmem:[#allocation6 + $0x6f0] sm:$0xff]
        %v554 = vld [vmem:[#allocation6 + $0x6f8] sm:$0xff]
        %v555 = vld [vmem:[#allocation6 + $0x700] sm:$0xff]
        %v556 = vld [vmem:[#allocation6 + $0x708] sm:$0xff]
        %v557 = vld [vmem:[#allocation6 + $0x710] sm:$0xff]
        %v558 = vld [vmem:[#allocation6 + $0x718] sm:$0xff]
        %v559 = vld [vmem:[#allocation6 + $0x720] sm:$0xff]
        %v560 = vld [vmem:[#allocation6 + $0x728] sm:$0xff]
        %v561 = vld [vmem:[#allocation6 + $0x730] sm:$0xff]
        %v562 = vld [vmem:[#allocation6 + $0x738] sm:$0xff]
        %v563 = vld [vmem:[#allocation6 + $0x740] sm:$0xff]
        %v564 = vld [vmem:[#allocation6 + $0x748] sm:$0xff]
        %v565 = vld [vmem:[#allocation6 + $0x750] sm:$0xff]
        %v566 = vld [vmem:[#allocation6 + $0x758] sm:$0xff]
        %v567 = vld [vmem:[#allocation6 + $0x760] sm:$0xff]
        %v568 = vld [vmem:[#allocation6 + $0x768] sm:$0xff]
        %v569 = vld [vmem:[#allocation6 + $0x770] sm:$0xff]
        %v570 = vld [vmem:[#allocation6 + $0x778] sm:$0xff]
        %v571 = vld [vmem:[#allocation6 + $0x780] sm:$0xff]
        %v572 = vld [vmem:[#allocation6 + $0x788] sm:$0xff]
        %v573 = vld [vmem:[#allocation6 + $0x790] sm:$0xff]
        %v574 = vld [vmem:[#allocation6 + $0x798] sm:$0xff]
        %v575 = vld [vmem:[#allocation6 + $0x7a0] sm:$0xff]
        %v576 = vld [vmem:[#allocation6 + $0x7a8] sm:$0xff]
        %v577 = vld [vmem:[#allocation6 + $0x7b0] sm:$0xff]
        %v578 = vld [vmem:[#allocation6 + $0x7b8] sm:$0xff]
        %v579 = vld [vmem:[#allocation6 + $0x7c0] sm:$0xff]
        %v580 = vld [vmem:[#allocation6 + $0x7c8] sm:$0xff]
        %v581 = vld [vmem:[#allocation6 + $0x7d0] sm:$0xff]
        %v582 = vld [vmem:[#allocation6 + $0x7d8] sm:$0xff]
        %v583 = vld [vmem:[#allocation6 + $0x7e0] sm:$0xff]
        %v584 = vld [vmem:[#allocation6 + $0x7e8] sm:$0xff]
        %v585 = vld [vmem:[#allocation6 + $0x7f0] sm:$0xff]
        %v586 = vld [vmem:[#allocation6 + $0x7f8] sm:$0xff]
        %v587 = vld [vmem:[#allocation6 + $0x800] sm:$0xff]
        %v588 = vld [vmem:[#allocation6 + $0x808] sm:$0xff]
        %v589 = vld [vmem:[#allocation6 + $0x810] sm:$0xff]
        %v590 = vld [vmem:[#allocation6 + $0x818] sm:$0xff]
        %v591 = vld [vmem:[#allocation6 + $0x820] sm:$0xff]
        %v592 = vld [vmem:[#allocation6 + $0x828] sm:$0xff]
        %v593 = vld [vmem:[#allocation6 + $0x830] sm:$0xff]
        %v594 = vld [vmem:[#allocation6 + $0x838] sm:$0xff]
        %v595 = vld [vmem:[#allocation6 + $0x840] sm:$0xff]
        %v596 = vld [vmem:[#allocation6 + $0x848] sm:$0xff]
        %v597 = vld [vmem:[#allocation6 + $0x850] sm:$0xff]
        %v598 = vld [vmem:[#allocation6 + $0x858] sm:$0xff]
        %v599 = vld [vmem:[#allocation6 + $0x860] sm:$0xff]
        %v600 = vld [vmem:[#allocation6 + $0x868] sm:$0xff]
        %v601 = vld [vmem:[#allocation6 + $0x870] sm:$0xff]
        %v602 = vld [vmem:[#allocation6 + $0x878] sm:$0xff]
        %v603 = vld [vmem:[#allocation6 + $0x880] sm:$0xff]
        %v604 = vld [vmem:[#allocation6 + $0x888] sm:$0xff]
        %v605 = vld [vmem:[#allocation6 + $0x890] sm:$0xff]
        %v606 = vld [vmem:[#allocation6 + $0x898] sm:$0xff]
        %v607 = vld [vmem:[#allocation6 + $0x8a0] sm:$0xff]
        %v608 = vld [vmem:[#allocation6 + $0x8a8] sm:$0xff]
        %v609 = vld [vmem:[#allocation6 + $0x8b0] sm:$0xff]
        %v610 = vld [vmem:[#allocation6 + $0x8b8] sm:$0xff]
        %v611 = vld [vmem:[#allocation6 + $0x8c0] sm:$0xff]
        %v612 = vld [vmem:[#allocation6 + $0x8c8] sm:$0xff]
        %v613 = vld [vmem:[#allocation6 + $0x8d0] sm:$0xff]
        %v614 = vld [vmem:[#allocation6 + $0x8d8] sm:$0xff]
        %v615 = vld [vmem:[#allocation6 + $0x8e0] sm:$0xff]
        %v616 = vld [vmem:[#allocation6 + $0x8e8] sm:$0xff]
        %v617 = vld [vmem:[#allocation6 + $0x8f0] sm:$0xff]
        %v618 = vld [vmem:[#allocation6 + $0x8f8] sm:$0xff]
        %v619 = vld [vmem:[#allocation6 + $0x900] sm:$0xff]
        %v620 = vld [vmem:[#allocation6 + $0x908] sm:$0xff]
        %v621 = vld [vmem:[#allocation6 + $0x910] sm:$0xff]
        %v622 = vld [vmem:[#allocation6 + $0x918] sm:$0xff]
        %v623 = vld [vmem:[#allocation6 + $0x920] sm:$0xff]
        %v624 = vld [vmem:[#allocation6 + $0x928] sm:$0xff]
        %v625 = vld [vmem:[#allocation6 + $0x930] sm:$0xff]
        %v626 = vld [vmem:[#allocation6 + $0x938] sm:$0xff]
        %v627 = vld [vmem:[#allocation6 + $0x940] sm:$0xff]
        %v628 = vld [vmem:[#allocation6 + $0x948] sm:$0xff]
        %v629 = vld [vmem:[#allocation6 + $0x950] sm:$0xff]
        %v630 = vld [vmem:[#allocation6 + $0x958] sm:$0xff]
        %v631 = vld [vmem:[#allocation6 + $0x960] sm:$0xff]
        %v632 = vld [vmem:[#allocation6 + $0x968] sm:$0xff]
        %v633 = vld [vmem:[#allocation6 + $0x970] sm:$0xff]
        %v634 = vld [vmem:[#allocation6 + $0x978] sm:$0xff]
        %v635 = vld [vmem:[#allocation6 + $0x980] sm:$0xff]
        %v636 = vld [vmem:[#allocation6 + $0x988] sm:$0xff]
        %v637 = vld [vmem:[#allocation6 + $0x990] sm:$0xff]
        %v638 = vld [vmem:[#allocation6 + $0x998] sm:$0xff]
        %v639 = vld [vmem:[#allocation6 + $0x9a0] sm:$0xff]
        %v640 = vld [vmem:[#allocation6 + $0x9a8] sm:$0xff]
        %v641 = vld [vmem:[#allocation6 + $0x9b0] sm:$0xff]
        %v642 = vld [vmem:[#allocation6 + $0x9b8] sm:$0xff]
        %v643 = vld [vmem:[#allocation6 + $0x9c0] sm:$0xff]
        %v644 = vld [vmem:[#allocation6 + $0x9c8] sm:$0xff]
        %v645 = vld [vmem:[#allocation6 + $0x9d0] sm:$0xff]
        %v646 = vld [vmem:[#allocation6 + $0x9d8] sm:$0xff]
        %v647 = vld [vmem:[#allocation6 + $0x9e0] sm:$0xff]
        %v648 = vld [vmem:[#allocation6 + $0x9e8] sm:$0xff]
        %v649 = vld [vmem:[#allocation6 + $0x9f0] sm:$0xff]
        %v650 = vld [vmem:[#allocation6 + $0x9f8] sm:$0xff]
        %v651 = vld [vmem:[#allocation6 + $0xa00] sm:$0xff]
        %v652 = vld [vmem:[#allocation6 + $0xa08] sm:$0xff]
        %v653 = vld [vmem:[#allocation6 + $0xa10] sm:$0xff]
        %v654 = vld [vmem:[#allocation6 + $0xa18] sm:$0xff]
        %v655 = vld [vmem:[#allocation6 + $0xa20] sm:$0xff]
        %v656 = vld [vmem:[#allocation6 + $0xa28] sm:$0xff]
        %v657 = vld [vmem:[#allocation6 + $0xa30] sm:$0xff]
        %v658 = vld [vmem:[#allocation6 + $0xa38] sm:$0xff]
        %v659 = vld [vmem:[#allocation6 + $0xa40] sm:$0xff]
        %v660 = vld [vmem:[#allocation6 + $0xa48] sm:$0xff]
        %v661 = vld [vmem:[#allocation6 + $0xa50] sm:$0xff]
        %v662 = vld [vmem:[#allocation6 + $0xa58] sm:$0xff]
        %v663 = vld [vmem:[#allocation6 + $0xa60] sm:$0xff]
        %v664 = vld [vmem:[#allocation6 + $0xa68] sm:$0xff]
        %v665 = vld [vmem:[#allocation6 + $0xa70] sm:$0xff]
        %v666 = vld [vmem:[#allocation6 + $0xa78] sm:$0xff]
        %v667 = vld [vmem:[#allocation6 + $0xa80] sm:$0xff]
        %v668 = vld [vmem:[#allocation6 + $0xa88] sm:$0xff]
        %v669 = vld [vmem:[#allocation6 + $0xa90] sm:$0xff]
        %v670 = vld [vmem:[#allocation6 + $0xa98] sm:$0xff]
        %v671 = vld [vmem:[#allocation6 + $0xaa0] sm:$0xff]
        %v672 = vld [vmem:[#allocation6 + $0xaa8] sm:$0xff]
        %v673 = vld [vmem:[#allocation6 + $0xab0] sm:$0xff]
        %v674 = vld [vmem:[#allocation6 + $0xab8] sm:$0xff]
        %v675 = vld [vmem:[#allocation6 + $0xac0] sm:$0xff]
        %v676 = vld [vmem:[#allocation6 + $0xac8] sm:$0xff]
        %v677 = vld [vmem:[#allocation6 + $0xad0] sm:$0xff]
        %v678 = vld [vmem:[#allocation6 + $0xad8] sm:$0xff]
        %v679 = vld [vmem:[#allocation6 + $0xae0] sm:$0xff]
        %v680 = vld [vmem:[#allocation6 + $0xae8] sm:$0xff]
        %v681 = vld [vmem:[#allocation6 + $0xaf0] sm:$0xff]
        %v682 = vld [vmem:[#allocation6 + $0xaf8] sm:$0xff]
        %v683 = vld [vmem:[#allocation6 + $0xb00] sm:$0xff]
        %v684 = vld [vmem:[#allocation6 + $0xb08] sm:$0xff]
        %v685 = vld [vmem:[#allocation6 + $0xb10] sm:$0xff]
        %v686 = vld [vmem:[#allocation6 + $0xb18] sm:$0xff]
        %v687 = vld [vmem:[#allocation6 + $0xb20] sm:$0xff]
        %v688 = vld [vmem:[#allocation6 + $0xb28] sm:$0xff]
        %v689 = vld [vmem:[#allocation6 + $0xb30] sm:$0xff]
        %v690 = vld [vmem:[#allocation6 + $0xb38] sm:$0xff]
        %v691 = vld [vmem:[#allocation6 + $0xb40] sm:$0xff]
        %v692 = vld [vmem:[#allocation6 + $0xb48] sm:$0xff]
        %v693 = vld [vmem:[#allocation6 + $0xb50] sm:$0xff]
        %v694 = vld [vmem:[#allocation6 + $0xb58] sm:$0xff]
        %v695 = vld [vmem:[#allocation6 + $0xb60] sm:$0xff]
        %v696 = vld [vmem:[#allocation6 + $0xb68] sm:$0xff]
        %v697 = vld [vmem:[#allocation6 + $0xb70] sm:$0xff]
        %v698 = vld [vmem:[#allocation6 + $0xb78] sm:$0xff]
        %v699 = vld [vmem:[#allocation6 + $0xb80] sm:$0xff]
        %v700 = vld [vmem:[#allocation6 + $0xb88] sm:$0xff]
        %v701 = vld [vmem:[#allocation6 + $0xb90] sm:$0xff]
        %v702 = vld [vmem:[#allocation6 + $0xb98] sm:$0xff]
        %v703 = vld [vmem:[#allocation6 + $0xba0] sm:$0xff]
        %v704 = vld [vmem:[#allocation6 + $0xba8] sm:$0xff]
        %v705 = vld [vmem:[#allocation6 + $0xbb0] sm:$0xff]
        %v706 = vld [vmem:[#allocation6 + $0xbb8] sm:$0xff]
        %v707 = vld [vmem:[#allocation6 + $0xbc0] sm:$0xff]
        %v708 = vld [vmem:[#allocation6 + $0xbc8] sm:$0xff]
        %v709 = vld [vmem:[#allocation6 + $0xbd0] sm:$0xff]
        %v710 = vld [vmem:[#allocation6 + $0xbd8] sm:$0xff]
        %v711 = vld [vmem:[#allocation6 + $0xbe0] sm:$0xff]
        %v712 = vld [vmem:[#allocation6 + $0xbe8] sm:$0xff]
        %v713 = vld [vmem:[#allocation6 + $0xbf0] sm:$0xff]
        %v714 = vld [vmem:[#allocation6 + $0xbf8] sm:$0xff]
        %v715 = vld [vmem:[#allocation6 + $0xc00] sm:$0xff]
        %v716 = vld [vmem:[#allocation6 + $0xc08] sm:$0xff]
        %v717 = vld [vmem:[#allocation6 + $0xc10] sm:$0xff]
        %v718 = vld [vmem:[#allocation6 + $0xc18] sm:$0xff]
        %v719 = vld [vmem:[#allocation6 + $0xc20] sm:$0xff]
        %v720 = vld [vmem:[#allocation6 + $0xc28] sm:$0xff]
        %v721 = vld [vmem:[#allocation6 + $0xc30] sm:$0xff]
        %v722 = vld [vmem:[#allocation6 + $0xc38] sm:$0xff]
        %v723 = vld [vmem:[#allocation6 + $0xc40] sm:$0xff]
        %v724 = vld [vmem:[#allocation6 + $0xc48] sm:$0xff]
        %v725 = vld [vmem:[#allocation6 + $0xc50] sm:$0xff]
        %v726 = vld [vmem:[#allocation6 + $0xc58] sm:$0xff]
        %v727 = vld [vmem:[#allocation6 + $0xc60] sm:$0xff]
        %v728 = vld [vmem:[#allocation6 + $0xc68] sm:$0xff]
        %v729 = vld [vmem:[#allocation6 + $0xc70] sm:$0xff]
        %v730 = vld [vmem:[#allocation6 + $0xc78] sm:$0xff]
        %v731 = vld [vmem:[#allocation6 + $0xc80] sm:$0xff]
        %v732 = vld [vmem:[#allocation6 + $0xc88] sm:$0xff]
        %v733 = vld [vmem:[#allocation6 + $0xc90] sm:$0xff]
        %v734 = vld [vmem:[#allocation6 + $0xc98] sm:$0xff]
        %v735 = vld [vmem:[#allocation6 + $0xca0] sm:$0xff]
        %v736 = vld [vmem:[#allocation6 + $0xca8] sm:$0xff]
        %v737 = vld [vmem:[#allocation6 + $0xcb0] sm:$0xff]
        %v738 = vld [vmem:[#allocation6 + $0xcb8] sm:$0xff]
        %v739 = vld [vmem:[#allocation6 + $0xcc0] sm:$0xff]
        %v740 = vld [vmem:[#allocation6 + $0xcc8] sm:$0xff]
        %v741 = vld [vmem:[#allocation6 + $0xcd0] sm:$0xff]
        %v742 = vld [vmem:[#allocation6 + $0xcd8] sm:$0xff]
        %v743 = vld [vmem:[#allocation6 + $0xce0] sm:$0xff]
        %v744 = vld [vmem:[#allocation6 + $0xce8] sm:$0xff]
        %v745 = vld [vmem:[#allocation6 + $0xcf0] sm:$0xff]
        %v746 = vld [vmem:[#allocation6 + $0xcf8] sm:$0xff]
        %v747 = vld [vmem:[#allocation6 + $0xd00] sm:$0xff]
        %v748 = vld [vmem:[#allocation6 + $0xd08] sm:$0xff]
        %v749 = vld [vmem:[#allocation6 + $0xd10] sm:$0xff]
        %v750 = vld [vmem:[#allocation6 + $0xd18] sm:$0xff]
        %v751 = vld [vmem:[#allocation6 + $0xd20] sm:$0xff]
        %v752 = vld [vmem:[#allocation6 + $0xd28] sm:$0xff]
        %v753 = vld [vmem:[#allocation6 + $0xd30] sm:$0xff]
        %v754 = vld [vmem:[#allocation6 + $0xd38] sm:$0xff]
        %v755 = vld [vmem:[#allocation6 + $0xd40] sm:$0xff]
        %v756 = vld [vmem:[#allocation6 + $0xd48] sm:$0xff]
        %v757 = vld [vmem:[#allocation6 + $0xd50] sm:$0xff]
        %v758 = vld [vmem:[#allocation6 + $0xd58] sm:$0xff]
        %v759 = vld [vmem:[#allocation6 + $0xd60] sm:$0xff]
        %v760 = vld [vmem:[#allocation6 + $0xd68] sm:$0xff]
        %v761 = vld [vmem:[#allocation6 + $0xd70] sm:$0xff]
        %v762 = vld [vmem:[#allocation6 + $0xd78] sm:$0xff]
        %v763 = vld [vmem:[#allocation6 + $0xd80] sm:$0xff]
        %v764 = vld [vmem:[#allocation6 + $0xd88] sm:$0xff]
        %v765 = vld [vmem:[#allocation6 + $0xd90] sm:$0xff]
        %v766 = vld [vmem:[#allocation6 + $0xd98] sm:$0xff]
        %v767 = vld [vmem:[#allocation6 + $0xda0] sm:$0xff]
        %v768 = vld [vmem:[#allocation6 + $0xda8] sm:$0xff]
        %v769 = vld [vmem:[#allocation6 + $0xdb0] sm:$0xff]
        %v770 = vld [vmem:[#allocation6 + $0xdb8] sm:$0xff]
        %v771 = vld [vmem:[#allocation6 + $0xdc0] sm:$0xff]
        %v772 = vld [vmem:[#allocation6 + $0xdc8] sm:$0xff]
        %v773 = vld [vmem:[#allocation6 + $0xdd0] sm:$0xff]
        %v774 = vld [vmem:[#allocation6 + $0xdd8] sm:$0xff]
        %v775 = vld [vmem:[#allocation6 + $0xde0] sm:$0xff]
        %v776 = vld [vmem:[#allocation6 + $0xde8] sm:$0xff]
        %v777 = vld [vmem:[#allocation6 + $0xdf0] sm:$0xff]
        %v778 = vld [vmem:[#allocation6 + $0xdf8] sm:$0xff]
        %v779 = vld [vmem:[#allocation6 + $0xe00] sm:$0xff]
        %v780 = vld [vmem:[#allocation6 + $0xe08] sm:$0xff]
        %v781 = vld [vmem:[#allocation6 + $0xe10] sm:$0xff]
        %v782 = vld [vmem:[#allocation6 + $0xe18] sm:$0xff]
        %v783 = vld [vmem:[#allocation6 + $0xe20] sm:$0xff]
        %v784 = vld [vmem:[#allocation6 + $0xe28] sm:$0xff]
        %v785 = vld [vmem:[#allocation6 + $0xe30] sm:$0xff]
        %v786 = vld [vmem:[#allocation6 + $0xe38] sm:$0xff]
        %v787 = vld [vmem:[#allocation6 + $0xe40] sm:$0xff]
        %v788 = vld [vmem:[#allocation6 + $0xe48] sm:$0xff]
        %v789 = vld [vmem:[#allocation6 + $0xe50] sm:$0xff]
        %v790 = vld [vmem:[#allocation6 + $0xe58] sm:$0xff]
        %v791 = vld [vmem:[#allocation6 + $0xe60] sm:$0xff]
        %v792 = vld [vmem:[#allocation6 + $0xe68] sm:$0xff]
        %v793 = vld [vmem:[#allocation6 + $0xe70] sm:$0xff]
        %v794 = vld [vmem:[#allocation6 + $0xe78] sm:$0xff]
        %v795 = vld [vmem:[#allocation6 + $0xe80] sm:$0xff]
        %v796 = vld [vmem:[#allocation6 + $0xe88] sm:$0xff]
        %v797 = vld [vmem:[#allocation6 + $0xe90] sm:$0xff]
        %v798 = vld [vmem:[#allocation6 + $0xe98] sm:$0xff]
        %v799 = vld [vmem:[#allocation6 + $0xea0] sm:$0xff]
        %v800 = vld [vmem:[#allocation6 + $0xea8] sm:$0xff]
        %v801 = vld [vmem:[#allocation6 + $0xeb0] sm:$0xff]
        %v802 = vld [vmem:[#allocation6 + $0xeb8] sm:$0xff]
        %v803 = vld [vmem:[#allocation6 + $0xec0] sm:$0xff]
        %v804 = vld [vmem:[#allocation6 + $0xec8] sm:$0xff]
        %v805 = vld [vmem:[#allocation6 + $0xed0] sm:$0xff]
        %v806 = vld [vmem:[#allocation6 + $0xed8] sm:$0xff]
        %v807 = vld [vmem:[#allocation6 + $0xee0] sm:$0xff]
        %v808 = vld [vmem:[#allocation6 + $0xee8] sm:$0xff]
        %v809 = vld [vmem:[#allocation6 + $0xef0] sm:$0xff]
        %v810 = vld [vmem:[#allocation6 + $0xef8] sm:$0xff]
        %v811 = vld [vmem:[#allocation6 + $0xf00] sm:$0xff]
        %v812 = vld [vmem:[#allocation6 + $0xf08] sm:$0xff]
        %v813 = vld [vmem:[#allocation6 + $0xf10] sm:$0xff]
        %v814 = vld [vmem:[#allocation6 + $0xf18] sm:$0xff]
        %v815 = vld [vmem:[#allocation6 + $0xf20] sm:$0xff]
        %v816 = vld [vmem:[#allocation6 + $0xf28] sm:$0xff]
        %v817 = vld [vmem:[#allocation6 + $0xf30] sm:$0xff]
        %v818 = vld [vmem:[#allocation6 + $0xf38] sm:$0xff]
        %v819 = vld [vmem:[#allocation6 + $0xf40] sm:$0xff]
        %v820 = vld [vmem:[#allocation6 + $0xf48] sm:$0xff]
        %v821 = vld [vmem:[#allocation6 + $0xf50] sm:$0xff]
        %v822 = vld [vmem:[#allocation6 + $0xf58] sm:$0xff]
        %v823 = vld [vmem:[#allocation6 + $0xf60] sm:$0xff]
        %v824 = vld [vmem:[#allocation6 + $0xf68] sm:$0xff]
        %v825 = vld [vmem:[#allocation6 + $0xf70] sm:$0xff]
        %v826 = vld [vmem:[#allocation6 + $0xf78] sm:$0xff]
        %v827 = vld [vmem:[#allocation6 + $0xf80] sm:$0xff]
        %v828 = vld [vmem:[#allocation6 + $0xf88] sm:$0xff]
        %v829 = vld [vmem:[#allocation6 + $0xf90] sm:$0xff]
        %v830 = vld [vmem:[#allocation6 + $0xf98] sm:$0xff]
        %v831 = vld [vmem:[#allocation6 + $0xfa0] sm:$0xff]
        %v832 = vld [vmem:[#allocation6 + $0xfa8] sm:$0xff]
        %v833 = vld [vmem:[#allocation6 + $0xfb0] sm:$0xff]
        %v834 = vld [vmem:[#allocation6 + $0xfb8] sm:$0xff]
        %v835 = vld [vmem:[#allocation6 + $0xfc0] sm:$0xff]
        %v836 = vld [vmem:[#allocation6 + $0xfc8] sm:$0xff]
        %v837 = vld [vmem:[#allocation6 + $0xfd0] sm:$0xff]
        %v838 = vld [vmem:[#allocation6 + $0xfd8] sm:$0xff]
        %v839 = vld [vmem:[#allocation6 + $0xfe0] sm:$0xff]
        %v840 = vld [vmem:[#allocation6 + $0xfe8] sm:$0xff]
        %v841 = vld [vmem:[#allocation6 + $0xff0] sm:$0xff]
        %v842 = vld [vmem:[#allocation6 + $0xff8] sm:$0xff]
        %v843 = vld [vmem:[#allocation6 + $0x1000] sm:$0xff]
        %v844 = vld [vmem:[#allocation6 + $0x1008] sm:$0xff]
        %v845 = vld [vmem:[#allocation6 + $0x1010] sm:$0xff]
        %v846 = vld [vmem:[#allocation6 + $0x1018] sm:$0xff]
        %v847 = vld [vmem:[#allocation6 + $0x1020] sm:$0xff]
        %v848 = vld [vmem:[#allocation6 + $0x1028] sm:$0xff]
        %v849 = vld [vmem:[#allocation6 + $0x1030] sm:$0xff]
        %v850 = vld [vmem:[#allocation6 + $0x1038] sm:$0xff]
        %v851 = vld [vmem:[#allocation6 + $0x1040] sm:$0xff]
        %v852 = vld [vmem:[#allocation6 + $0x1048] sm:$0xff]
        %v853 = vld [vmem:[#allocation6 + $0x1050] sm:$0xff]
        %v854 = vld [vmem:[#allocation6 + $0x1058] sm:$0xff]
        %v855 = vld [vmem:[#allocation6 + $0x1060] sm:$0xff]
        %v856 = vld [vmem:[#allocation6 + $0x1068] sm:$0xff]
        %v857 = vld [vmem:[#allocation6 + $0x1070] sm:$0xff]
        %v858 = vld [vmem:[#allocation6 + $0x1078] sm:$0xff]
        %v859 = vld [vmem:[#allocation6 + $0x1080] sm:$0xff]
        %v860 = vld [vmem:[#allocation6 + $0x1088] sm:$0xff]
        %v861 = vld [vmem:[#allocation6 + $0x1090] sm:$0xff]
        %v862 = vld [vmem:[#allocation6 + $0x1098] sm:$0xff]
        %v863 = vld [vmem:[#allocation6 + $0x10a0] sm:$0xff]
        %v864 = vld [vmem:[#allocation6 + $0x10a8] sm:$0xff]
        %v865 = vld [vmem:[#allocation6 + $0x10b0] sm:$0xff]
        %v866 = vld [vmem:[#allocation6 + $0x10b8] sm:$0xff]
        %v867 = vld [vmem:[#allocation6 + $0x10c0] sm:$0xff]
        %v868 = vld [vmem:[#allocation6 + $0x10c8] sm:$0xff]
        %v869 = vld [vmem:[#allocation6 + $0x10d0] sm:$0xff]
        %v870 = vld [vmem:[#allocation6 + $0x10d8] sm:$0xff]
        %v871 = vld [vmem:[#allocation6 + $0x10e0] sm:$0xff]
        %v872 = vld [vmem:[#allocation6 + $0x10e8] sm:$0xff]
        %v873 = vld [vmem:[#allocation6 + $0x10f0] sm:$0xff]
        %v874 = vld [vmem:[#allocation6 + $0x10f8] sm:$0xff]
        %v875 = vld [vmem:[#allocation6 + $0x1100] sm:$0xff]
        %v876 = vld [vmem:[#allocation6 + $0x1108] sm:$0xff]
        %v877 = vld [vmem:[#allocation6 + $0x1110] sm:$0xff]
        %v878 = vld [vmem:[#allocation6 + $0x1118] sm:$0xff]
        %v879 = vld [vmem:[#allocation6 + $0x1120] sm:$0xff]
        %v880 = vld [vmem:[#allocation6 + $0x1128] sm:$0xff]
        %v881 = vld [vmem:[#allocation6 + $0x1130] sm:$0xff]
        %v882 = vld [vmem:[#allocation6 + $0x1138] sm:$0xff]
        %v883 = vld [vmem:[#allocation6 + $0x1140] sm:$0xff]
        %v884 = vld [vmem:[#allocation6 + $0x1148] sm:$0xff]
        %v885 = vld [vmem:[#allocation6 + $0x1150] sm:$0xff]
        %v886 = vld [vmem:[#allocation6 + $0x1158] sm:$0xff]
        %v887 = vld [vmem:[#allocation6 + $0x1160] sm:$0xff]
        %v888 = vld [vmem:[#allocation6 + $0x1168] sm:$0xff]
        %v889 = vld [vmem:[#allocation6 + $0x1170] sm:$0xff]
        %v890 = vld [vmem:[#allocation6 + $0x1178] sm:$0xff]
        %v891 = vld [vmem:[#allocation6 + $0x1180] sm:$0xff]
        %v892 = vld [vmem:[#allocation6 + $0x1188] sm:$0xff]
        %v893 = vld [vmem:[#allocation6 + $0x1190] sm:$0xff]
        %v894 = vld [vmem:[#allocation6 + $0x1198] sm:$0xff]
        %v895 = vld [vmem:[#allocation6 + $0x11a0] sm:$0xff]
        %v896 = vld [vmem:[#allocation6 + $0x11a8] sm:$0xff]
        %v897 = vld [vmem:[#allocation6 + $0x11b0] sm:$0xff]
        %v898 = vld [vmem:[#allocation6 + $0x11b8] sm:$0xff]
        %v899 = vld [vmem:[#allocation6 + $0x11c0] sm:$0xff]
        %v900 = vld [vmem:[#allocation6 + $0x11c8] sm:$0xff]
        %v901 = vld [vmem:[#allocation6 + $0x11d0] sm:$0xff]
        %v902 = vld [vmem:[#allocation6 + $0x11d8] sm:$0xff]
        %v903 = vld [vmem:[#allocation6 + $0x11e0] sm:$0xff]
        %v904 = vld [vmem:[#allocation6 + $0x11e8] sm:$0xff]
        %v905 = vld [vmem:[#allocation6 + $0x11f0] sm:$0xff]
        %v906 = vld [vmem:[#allocation6 + $0x11f8] sm:$0xff]
        %v907 = vld [vmem:[#allocation6 + $0x1200] sm:$0xff]
        %v908 = vld [vmem:[#allocation6 + $0x1208] sm:$0xff]
        %v909 = vld [vmem:[#allocation6 + $0x1210] sm:$0xff]
        %v910 = vld [vmem:[#allocation6 + $0x1218] sm:$0xff]
        %v911 = vld [vmem:[#allocation6 + $0x1220] sm:$0xff]
        %v912 = vld [vmem:[#allocation6 + $0x1228] sm:$0xff]
        %v913 = vld [vmem:[#allocation6 + $0x1230] sm:$0xff]
        %v914 = vld [vmem:[#allocation6 + $0x1238] sm:$0xff]
        %v915 = vld [vmem:[#allocation6 + $0x1240] sm:$0xff]
        %v916 = vld [vmem:[#allocation6 + $0x1248] sm:$0xff]
        %v917 = vld [vmem:[#allocation6 + $0x1250] sm:$0xff]
        %v918 = vld [vmem:[#allocation6 + $0x1258] sm:$0xff]
        %v919 = vld [vmem:[#allocation6 + $0x1260] sm:$0xff]
        %v920 = vld [vmem:[#allocation6 + $0x1268] sm:$0xff]
        %v921 = vld [vmem:[#allocation6 + $0x1270] sm:$0xff]
        %v922 = vld [vmem:[#allocation6 + $0x1278] sm:$0xff]
        %v923 = vld [vmem:[#allocation6 + $0x1280] sm:$0xff]
        %v924 = vld [vmem:[#allocation6 + $0x1288] sm:$0xff]
        %v925 = vld [vmem:[#allocation6 + $0x1290] sm:$0xff]
        %v926 = vld [vmem:[#allocation6 + $0x1298] sm:$0xff]
        %v927 = vld [vmem:[#allocation6 + $0x12a0] sm:$0xff]
        %v928 = vld [vmem:[#allocation6 + $0x12a8] sm:$0xff]
        %v929 = vld [vmem:[#allocation6 + $0x12b0] sm:$0xff]
        %v930 = vld [vmem:[#allocation6 + $0x12b8] sm:$0xff]
        %v931 = vld [vmem:[#allocation6 + $0x12c0] sm:$0xff]
        %v932 = vld [vmem:[#allocation6 + $0x12c8] sm:$0xff]
        %v933 = vld [vmem:[#allocation6 + $0x12d0] sm:$0xff]
        %v934 = vld [vmem:[#allocation6 + $0x12d8] sm:$0xff]
        %v935 = vld [vmem:[#allocation6 + $0x12e0] sm:$0xff]
        %v936 = vld [vmem:[#allocation6 + $0x12e8] sm:$0xff]
        %v937 = vld [vmem:[#allocation6 + $0x12f0] sm:$0xff]
        %v938 = vld [vmem:[#allocation6 + $0x12f8] sm:$0xff]
        %v939 = vld [vmem:[#allocation6 + $0x1300] sm:$0xff]
        %v940 = vld [vmem:[#allocation6 + $0x1308] sm:$0xff]
        %v941 = vld [vmem:[#allocation6 + $0x1310] sm:$0xff]
        %v942 = vld [vmem:[#allocation6 + $0x1318] sm:$0xff]
        %v943 = vld [vmem:[#allocation6 + $0x1320] sm:$0xff]
        %v944 = vld [vmem:[#allocation6 + $0x1328] sm:$0xff]
        %v945 = vld [vmem:[#allocation6 + $0x1330] sm:$0xff]
        %v946 = vld [vmem:[#allocation6 + $0x1338] sm:$0xff]
        %v947 = vld [vmem:[#allocation6 + $0x1340] sm:$0xff]
        %v948 = vld [vmem:[#allocation6 + $0x1348] sm:$0xff]
        %v949 = vld [vmem:[#allocation6 + $0x1350] sm:$0xff]
        %v950 = vld [vmem:[#allocation6 + $0x1358] sm:$0xff]
        %v951 = vld [vmem:[#allocation6 + $0x1360] sm:$0xff]
        %v952 = vld [vmem:[#allocation6 + $0x1368] sm:$0xff]
        %v953 = vld [vmem:[#allocation6 + $0x1370] sm:$0xff]
        %v954 = vld [vmem:[#allocation6 + $0x1378] sm:$0xff]
        %v955 = vld [vmem:[#allocation6 + $0x1380] sm:$0xff]
        %v956 = vld [vmem:[#allocation6 + $0x1388] sm:$0xff]
        %v957 = vld [vmem:[#allocation6 + $0x1390] sm:$0xff]
        %v958 = vld [vmem:[#allocation6 + $0x1398] sm:$0xff]
        %v959 = vld [vmem:[#allocation6 + $0x13a0] sm:$0xff]
        %v960 = vld [vmem:[#allocation6 + $0x13a8] sm:$0xff]
        %v961 = vld [vmem:[#allocation6 + $0x13b0] sm:$0xff]
        %v962 = vld [vmem:[#allocation6 + $0x13b8] sm:$0xff]
        %v963 = vld [vmem:[#allocation6 + $0x13c0] sm:$0xff]
        %v964 = vld [vmem:[#allocation6 + $0x13c8] sm:$0xff]
        %v965 = vld [vmem:[#allocation6 + $0x13d0] sm:$0xff]
        %v966 = vld [vmem:[#allocation6 + $0x13d8] sm:$0xff]
        %v967 = vld [vmem:[#allocation6 + $0x13e0] sm:$0xff]
        %v968 = vld [vmem:[#allocation6 + $0x13e8] sm:$0xff]
        %v969 = vld [vmem:[#allocation6 + $0x13f0] sm:$0xff]
        %v970 = vld [vmem:[#allocation6 + $0x13f8] sm:$0xff]
        %v971 = vld [vmem:[#allocation8] sm:$0xf]
        %v973 = vperm.slane %v971, 0
        %v974 = vperm.slane %v971, 1
        %v975 = vperm.slane %v971, 2
        %v976 = vperm.slane %v971, 3
        %v1001 = vunpack.c.l.b16 %v311
        %v1002 = vunpack.c.h.b16 %v311
        %v1003 = vunpack.c.l.b16 %v312
        %v1004 = vunpack.c.h.b16 %v312
        %v1005 = vunpack.c.l.b16 %v313
        %v1006 = vunpack.c.h.b16 %v313
        %v1007 = vunpack.c.l.b16 %v314
        %v1008 = vunpack.c.h.b16 %v314
        %v1009 = vunpack.c.l.b16 %v315
        %v1010 = vunpack.c.h.b16 %v315
        %v1011 = vunpack.c.l.b16 %v316
        %v1012 = vunpack.c.h.b16 %v316
        %v1013 = vunpack.c.l.b16 %v317
        %v1014 = vunpack.c.h.b16 %v317
        %v1015 = vunpack.c.l.b16 %v318
        %v1016 = vunpack.c.h.b16 %v318
        %v1017 = vunpack.c.l.b16 %v319
        %v1018 = vunpack.c.h.b16 %v319
        %v1019 = vunpack.c.l.b16 %v320
        %v1020 = vunpack.c.h.b16 %v320
        %v1021 = vunpack.c.l.b16 %v321
        %v1022 = vunpack.c.h.b16 %v321
        %v1023 = vunpack.c.l.b16 %v322
        %v1024 = vunpack.c.h.b16 %v322
        %v1025 = vunpack.c.l.b16 %v323
        %v1026 = vunpack.c.h.b16 %v323
        %v1027 = vunpack.c.l.b16 %v324
        %v1028 = vunpack.c.h.b16 %v324
        %v1029 = vunpack.c.l.b16 %v325
        %v1030 = vunpack.c.h.b16 %v325
        %v1031 = vunpack.c.l.b16 %v326
        %v1032 = vunpack.c.h.b16 %v326
        %v1033 = vunpack.c.l.b16 %v327
        %v1034 = vunpack.c.h.b16 %v327
        %v1035 = vunpack.c.l.b16 %v328
        %v1036 = vunpack.c.h.b16 %v328
        %v1037 = vunpack.c.l.b16 %v329
        %v1038 = vunpack.c.h.b16 %v329
        %v1039 = vunpack.c.l.b16 %v330
        %v1040 = vunpack.c.h.b16 %v330
        %v1041 = vpack.c.b16 %v1021, %v1001
        %v1042 = vpack.c.b16 %v1022, %v1002
        %v1043 = vpack.c.b16 %v1023, %v1003
        %v1044 = vpack.c.b16 %v1024, %v1004
        %v1045 = vpack.c.b16 %v1025, %v1005
        %v1046 = vpack.c.b16 %v1026, %v1006
        %v1047 = vpack.c.b16 %v1027, %v1007
        %v1048 = vpack.c.b16 %v1028, %v1008
        %v1049 = vpack.c.b16 %v1029, %v1009
        %v1050 = vpack.c.b16 %v1030, %v1010
        %v1051 = vpack.c.b16 %v1031, %v1011
        %v1052 = vpack.c.b16 %v1032, %v1012
        %v1053 = vpack.c.b16 %v1033, %v1013
        %v1054 = vpack.c.b16 %v1034, %v1014
        %v1055 = vpack.c.b16 %v1035, %v1015
        %v1056 = vpack.c.b16 %v1036, %v1016
        %v1057 = vpack.c.b16 %v1037, %v1017
        %v1058 = vpack.c.b16 %v1038, %v1018
        %v1059 = vpack.c.b16 %v1039, %v1019
        %v1060 = vpack.c.b16 %v1040, %v1020
        %v1721 = vunpack.c.l.b16 %v331
        %v1722 = vunpack.c.h.b16 %v331
        %v1723 = vunpack.c.l.b16 %v332
        %v1724 = vunpack.c.h.b16 %v332
        %v1725 = vunpack.c.l.b16 %v333
        %v1726 = vunpack.c.h.b16 %v333
        %v1727 = vunpack.c.l.b16 %v334
        %v1728 = vunpack.c.h.b16 %v334
        %v1729 = vunpack.c.l.b16 %v335
        %v1730 = vunpack.c.h.b16 %v335
        %v1731 = vunpack.c.l.b16 %v336
        %v1732 = vunpack.c.h.b16 %v336
        %v1733 = vunpack.c.l.b16 %v337
        %v1734 = vunpack.c.h.b16 %v337
        %v1735 = vunpack.c.l.b16 %v338
        %v1736 = vunpack.c.h.b16 %v338
        %v1737 = vunpack.c.l.b16 %v339
        %v1738 = vunpack.c.h.b16 %v339
        %v1739 = vunpack.c.l.b16 %v340
        %v1740 = vunpack.c.h.b16 %v340
        %v1741 = vunpack.c.l.b16 %v341
        %v1742 = vunpack.c.h.b16 %v341
        %v1743 = vunpack.c.l.b16 %v342
        %v1744 = vunpack.c.h.b16 %v342
        %v1745 = vunpack.c.l.b16 %v343
        %v1746 = vunpack.c.h.b16 %v343
        %v1747 = vunpack.c.l.b16 %v344
        %v1748 = vunpack.c.h.b16 %v344
        %v1749 = vunpack.c.l.b16 %v345
        %v1750 = vunpack.c.h.b16 %v345
        %v1751 = vunpack.c.l.b16 %v346
        %v1752 = vunpack.c.h.b16 %v346
        %v1753 = vunpack.c.l.b16 %v347
        %v1754 = vunpack.c.h.b16 %v347
        %v1755 = vunpack.c.l.b16 %v348
        %v1756 = vunpack.c.h.b16 %v348
        %v1757 = vunpack.c.l.b16 %v349
        %v1758 = vunpack.c.h.b16 %v349
        %v1759 = vunpack.c.l.b16 %v350
        %v1760 = vunpack.c.h.b16 %v350
        %v1761 = vunpack.c.l.b16 %v351
        %v1762 = vunpack.c.h.b16 %v351
        %v1763 = vunpack.c.l.b16 %v352
        %v1764 = vunpack.c.h.b16 %v352
        %v1765 = vunpack.c.l.b16 %v353
        %v1766 = vunpack.c.h.b16 %v353
        %v1767 = vunpack.c.l.b16 %v354
        %v1768 = vunpack.c.h.b16 %v354
        %v1769 = vunpack.c.l.b16 %v355
        %v1770 = vunpack.c.h.b16 %v355
        %v1771 = vunpack.c.l.b16 %v356
        %v1772 = vunpack.c.h.b16 %v356
        %v1773 = vunpack.c.l.b16 %v357
        %v1774 = vunpack.c.h.b16 %v357
        %v1775 = vunpack.c.l.b16 %v358
        %v1776 = vunpack.c.h.b16 %v358
        %v1777 = vunpack.c.l.b16 %v359
        %v1778 = vunpack.c.h.b16 %v359
        %v1779 = vunpack.c.l.b16 %v360
        %v1780 = vunpack.c.h.b16 %v360
        %v1781 = vunpack.c.l.b16 %v361
        %v1782 = vunpack.c.h.b16 %v361
        %v1783 = vunpack.c.l.b16 %v362
        %v1784 = vunpack.c.h.b16 %v362
        %v1785 = vunpack.c.l.b16 %v363
        %v1786 = vunpack.c.h.b16 %v363
        %v1787 = vunpack.c.l.b16 %v364
        %v1788 = vunpack.c.h.b16 %v364
        %v1789 = vunpack.c.l.b16 %v365
        %v1790 = vunpack.c.h.b16 %v365
        %v1791 = vunpack.c.l.b16 %v366
        %v1792 = vunpack.c.h.b16 %v366
        %v1793 = vunpack.c.l.b16 %v367
        %v1794 = vunpack.c.h.b16 %v367
        %v1795 = vunpack.c.l.b16 %v368
        %v1796 = vunpack.c.h.b16 %v368
        %v1797 = vunpack.c.l.b16 %v369
        %v1798 = vunpack.c.h.b16 %v369
        %v1799 = vunpack.c.l.b16 %v370
        %v1800 = vunpack.c.h.b16 %v370
        %v1801 = vunpack.c.l.b16 %v371
        %v1802 = vunpack.c.h.b16 %v371
        %v1803 = vunpack.c.l.b16 %v372
        %v1804 = vunpack.c.h.b16 %v372
        %v1805 = vunpack.c.l.b16 %v373
        %v1806 = vunpack.c.h.b16 %v373
        %v1807 = vunpack.c.l.b16 %v374
        %v1808 = vunpack.c.h.b16 %v374
        %v1809 = vunpack.c.l.b16 %v375
        %v1810 = vunpack.c.h.b16 %v375
        %v1811 = vunpack.c.l.b16 %v376
        %v1812 = vunpack.c.h.b16 %v376
        %v1813 = vunpack.c.l.b16 %v377
        %v1814 = vunpack.c.h.b16 %v377
        %v1815 = vunpack.c.l.b16 %v378
        %v1816 = vunpack.c.h.b16 %v378
        %v1817 = vunpack.c.l.b16 %v379
        %v1818 = vunpack.c.h.b16 %v379
        %v1819 = vunpack.c.l.b16 %v380
        %v1820 = vunpack.c.h.b16 %v380
        %v1821 = vunpack.c.l.b16 %v381
        %v1822 = vunpack.c.h.b16 %v381
        %v1823 = vunpack.c.l.b16 %v382
        %v1824 = vunpack.c.h.b16 %v382
        %v1825 = vunpack.c.l.b16 %v383
        %v1826 = vunpack.c.h.b16 %v383
        %v1827 = vunpack.c.l.b16 %v384
        %v1828 = vunpack.c.h.b16 %v384
        %v1829 = vunpack.c.l.b16 %v385
        %v1830 = vunpack.c.h.b16 %v385
        %v1831 = vunpack.c.l.b16 %v386
        %v1832 = vunpack.c.h.b16 %v386
        %v1833 = vunpack.c.l.b16 %v387
        %v1834 = vunpack.c.h.b16 %v387
        %v1835 = vunpack.c.l.b16 %v388
        %v1836 = vunpack.c.h.b16 %v388
        %v1837 = vunpack.c.l.b16 %v389
        %v1838 = vunpack.c.h.b16 %v389
        %v1839 = vunpack.c.l.b16 %v390
        %v1840 = vunpack.c.h.b16 %v390
        %v1841 = vunpack.c.l.b16 %v391
        %v1842 = vunpack.c.h.b16 %v391
        %v1843 = vunpack.c.l.b16 %v392
        %v1844 = vunpack.c.h.b16 %v392
        %v1845 = vunpack.c.l.b16 %v393
        %v1846 = vunpack.c.h.b16 %v393
        %v1847 = vunpack.c.l.b16 %v394
        %v1848 = vunpack.c.h.b16 %v394
        %v1849 = vunpack.c.l.b16 %v395
        %v1850 = vunpack.c.h.b16 %v395
        %v1851 = vunpack.c.l.b16 %v396
        %v1852 = vunpack.c.h.b16 %v396
        %v1853 = vunpack.c.l.b16 %v397
        %v1854 = vunpack.c.h.b16 %v397
        %v1855 = vunpack.c.l.b16 %v398
        %v1856 = vunpack.c.h.b16 %v398
        %v1857 = vunpack.c.l.b16 %v399
        %v1858 = vunpack.c.h.b16 %v399
        %v1859 = vunpack.c.l.b16 %v400
        %v1860 = vunpack.c.h.b16 %v400
        %v1861 = vunpack.c.l.b16 %v401
        %v1862 = vunpack.c.h.b16 %v401
        %v1863 = vunpack.c.l.b16 %v402
        %v1864 = vunpack.c.h.b16 %v402
        %v1865 = vunpack.c.l.b16 %v403
        %v1866 = vunpack.c.h.b16 %v403
        %v1867 = vunpack.c.l.b16 %v404
        %v1868 = vunpack.c.h.b16 %v404
        %v1869 = vunpack.c.l.b16 %v405
        %v1870 = vunpack.c.h.b16 %v405
        %v1871 = vunpack.c.l.b16 %v406
        %v1872 = vunpack.c.h.b16 %v406
        %v1873 = vunpack.c.l.b16 %v407
        %v1874 = vunpack.c.h.b16 %v407
        %v1875 = vunpack.c.l.b16 %v408
        %v1876 = vunpack.c.h.b16 %v408
        %v1877 = vunpack.c.l.b16 %v409
        %v1878 = vunpack.c.h.b16 %v409
        %v1879 = vunpack.c.l.b16 %v410
        %v1880 = vunpack.c.h.b16 %v410
        %v1881 = vunpack.c.l.b16 %v411
        %v1882 = vunpack.c.h.b16 %v411
        %v1883 = vunpack.c.l.b16 %v412
        %v1884 = vunpack.c.h.b16 %v412
        %v1885 = vunpack.c.l.b16 %v413
        %v1886 = vunpack.c.h.b16 %v413
        %v1887 = vunpack.c.l.b16 %v414
        %v1888 = vunpack.c.h.b16 %v414
        %v1889 = vunpack.c.l.b16 %v415
        %v1890 = vunpack.c.h.b16 %v415
        %v1891 = vunpack.c.l.b16 %v416
        %v1892 = vunpack.c.h.b16 %v416
        %v1893 = vunpack.c.l.b16 %v417
        %v1894 = vunpack.c.h.b16 %v417
        %v1895 = vunpack.c.l.b16 %v418
        %v1896 = vunpack.c.h.b16 %v418
        %v1897 = vunpack.c.l.b16 %v419
        %v1898 = vunpack.c.h.b16 %v419
        %v1899 = vunpack.c.l.b16 %v420
        %v1900 = vunpack.c.h.b16 %v420
        %v1901 = vunpack.c.l.b16 %v421
        %v1902 = vunpack.c.h.b16 %v421
        %v1903 = vunpack.c.l.b16 %v422
        %v1904 = vunpack.c.h.b16 %v422
        %v1905 = vunpack.c.l.b16 %v423
        %v1906 = vunpack.c.h.b16 %v423
        %v1907 = vunpack.c.l.b16 %v424
        %v1908 = vunpack.c.h.b16 %v424
        %v1909 = vunpack.c.l.b16 %v425
        %v1910 = vunpack.c.h.b16 %v425
        %v1911 = vunpack.c.l.b16 %v426
        %v1912 = vunpack.c.h.b16 %v426
        %v1913 = vunpack.c.l.b16 %v427
        %v1914 = vunpack.c.h.b16 %v427
        %v1915 = vunpack.c.l.b16 %v428
        %v1916 = vunpack.c.h.b16 %v428
        %v1917 = vunpack.c.l.b16 %v429
        %v1918 = vunpack.c.h.b16 %v429
        %v1919 = vunpack.c.l.b16 %v430
        %v1920 = vunpack.c.h.b16 %v430
        %v1921 = vunpack.c.l.b16 %v431
        %v1922 = vunpack.c.h.b16 %v431
        %v1923 = vunpack.c.l.b16 %v432
        %v1924 = vunpack.c.h.b16 %v432
        %v1925 = vunpack.c.l.b16 %v433
        %v1926 = vunpack.c.h.b16 %v433
        %v1927 = vunpack.c.l.b16 %v434
        %v1928 = vunpack.c.h.b16 %v434
        %v1929 = vunpack.c.l.b16 %v435
        %v1930 = vunpack.c.h.b16 %v435
        %v1931 = vunpack.c.l.b16 %v436
        %v1932 = vunpack.c.h.b16 %v436
        %v1933 = vunpack.c.l.b16 %v437
        %v1934 = vunpack.c.h.b16 %v437
        %v1935 = vunpack.c.l.b16 %v438
        %v1936 = vunpack.c.h.b16 %v438
        %v1937 = vunpack.c.l.b16 %v439
        %v1938 = vunpack.c.h.b16 %v439
        %v1939 = vunpack.c.l.b16 %v440
        %v1940 = vunpack.c.h.b16 %v440
        %v1941 = vunpack.c.l.b16 %v441
        %v1942 = vunpack.c.h.b16 %v441
        %v1943 = vunpack.c.l.b16 %v442
        %v1944 = vunpack.c.h.b16 %v442
        %v1945 = vunpack.c.l.b16 %v443
        %v1946 = vunpack.c.h.b16 %v443
        %v1947 = vunpack.c.l.b16 %v444
        %v1948 = vunpack.c.h.b16 %v444
        %v1949 = vunpack.c.l.b16 %v445
        %v1950 = vunpack.c.h.b16 %v445
        %v1951 = vunpack.c.l.b16 %v446
        %v1952 = vunpack.c.h.b16 %v446
        %v1953 = vunpack.c.l.b16 %v447
        %v1954 = vunpack.c.h.b16 %v447
        %v1955 = vunpack.c.l.b16 %v448
        %v1956 = vunpack.c.h.b16 %v448
        %v1957 = vunpack.c.l.b16 %v449
        %v1958 = vunpack.c.h.b16 %v449
        %v1959 = vunpack.c.l.b16 %v450
        %v1960 = vunpack.c.h.b16 %v450
        %v1961 = vunpack.c.l.b16 %v451
        %v1962 = vunpack.c.h.b16 %v451
        %v1963 = vunpack.c.l.b16 %v452
        %v1964 = vunpack.c.h.b16 %v452
        %v1965 = vunpack.c.l.b16 %v453
        %v1966 = vunpack.c.h.b16 %v453
        %v1967 = vunpack.c.l.b16 %v454
        %v1968 = vunpack.c.h.b16 %v454
        %v1969 = vunpack.c.l.b16 %v455
        %v1970 = vunpack.c.h.b16 %v455
        %v1971 = vunpack.c.l.b16 %v456
        %v1972 = vunpack.c.h.b16 %v456
        %v1973 = vunpack.c.l.b16 %v457
        %v1974 = vunpack.c.h.b16 %v457
        %v1975 = vunpack.c.l.b16 %v458
        %v1976 = vunpack.c.h.b16 %v458
        %v1977 = vunpack.c.l.b16 %v459
        %v1978 = vunpack.c.h.b16 %v459
        %v1979 = vunpack.c.l.b16 %v460
        %v1980 = vunpack.c.h.b16 %v460
        %v1981 = vunpack.c.l.b16 %v461
        %v1982 = vunpack.c.h.b16 %v461
        %v1983 = vunpack.c.l.b16 %v462
        %v1984 = vunpack.c.h.b16 %v462
        %v1985 = vunpack.c.l.b16 %v463
        %v1986 = vunpack.c.h.b16 %v463
        %v1987 = vunpack.c.l.b16 %v464
        %v1988 = vunpack.c.h.b16 %v464
        %v1989 = vunpack.c.l.b16 %v465
        %v1990 = vunpack.c.h.b16 %v465
        %v1991 = vunpack.c.l.b16 %v466
        %v1992 = vunpack.c.h.b16 %v466
        %v1993 = vunpack.c.l.b16 %v467
        %v1994 = vunpack.c.h.b16 %v467
        %v1995 = vunpack.c.l.b16 %v468
        %v1996 = vunpack.c.h.b16 %v468
        %v1997 = vunpack.c.l.b16 %v469
        %v1998 = vunpack.c.h.b16 %v469
        %v1999 = vunpack.c.l.b16 %v470
        %v2000 = vunpack.c.h.b16 %v470
        %v2001 = vunpack.c.l.b16 %v471
        %v2002 = vunpack.c.h.b16 %v471
        %v2003 = vunpack.c.l.b16 %v472
        %v2004 = vunpack.c.h.b16 %v472
        %v2005 = vunpack.c.l.b16 %v473
        %v2006 = vunpack.c.h.b16 %v473
        %v2007 = vunpack.c.l.b16 %v474
        %v2008 = vunpack.c.h.b16 %v474
        %v2009 = vunpack.c.l.b16 %v475
        %v2010 = vunpack.c.h.b16 %v475
        %v2011 = vunpack.c.l.b16 %v476
        %v2012 = vunpack.c.h.b16 %v476
        %v2013 = vunpack.c.l.b16 %v477
        %v2014 = vunpack.c.h.b16 %v477
        %v2015 = vunpack.c.l.b16 %v478
        %v2016 = vunpack.c.h.b16 %v478
        %v2017 = vunpack.c.l.b16 %v479
        %v2018 = vunpack.c.h.b16 %v479
        %v2019 = vunpack.c.l.b16 %v480
        %v2020 = vunpack.c.h.b16 %v480
        %v2021 = vunpack.c.l.b16 %v481
        %v2022 = vunpack.c.h.b16 %v481
        %v2023 = vunpack.c.l.b16 %v482
        %v2024 = vunpack.c.h.b16 %v482
        %v2025 = vunpack.c.l.b16 %v483
        %v2026 = vunpack.c.h.b16 %v483
        %v2027 = vunpack.c.l.b16 %v484
        %v2028 = vunpack.c.h.b16 %v484
        %v2029 = vunpack.c.l.b16 %v485
        %v2030 = vunpack.c.h.b16 %v485
        %v2031 = vunpack.c.l.b16 %v486
        %v2032 = vunpack.c.h.b16 %v486
        %v2033 = vunpack.c.l.b16 %v487
        %v2034 = vunpack.c.h.b16 %v487
        %v2035 = vunpack.c.l.b16 %v488
        %v2036 = vunpack.c.h.b16 %v488
        %v2037 = vunpack.c.l.b16 %v489
        %v2038 = vunpack.c.h.b16 %v489
        %v2039 = vunpack.c.l.b16 %v490
        %v2040 = vunpack.c.h.b16 %v490
        %v2041 = vunpack.c.l.b16 %v491
        %v2042 = vunpack.c.h.b16 %v491
        %v2043 = vunpack.c.l.b16 %v492
        %v2044 = vunpack.c.h.b16 %v492
        %v2045 = vunpack.c.l.b16 %v493
        %v2046 = vunpack.c.h.b16 %v493
        %v2047 = vunpack.c.l.b16 %v494
        %v2048 = vunpack.c.h.b16 %v494
        %v2049 = vunpack.c.l.b16 %v495
        %v2050 = vunpack.c.h.b16 %v495
        %v2051 = vunpack.c.l.b16 %v496
        %v2052 = vunpack.c.h.b16 %v496
        %v2053 = vunpack.c.l.b16 %v497
        %v2054 = vunpack.c.h.b16 %v497
        %v2055 = vunpack.c.l.b16 %v498
        %v2056 = vunpack.c.h.b16 %v498
        %v2057 = vunpack.c.l.b16 %v499
        %v2058 = vunpack.c.h.b16 %v499
        %v2059 = vunpack.c.l.b16 %v500
        %v2060 = vunpack.c.h.b16 %v500
        %v2061 = vunpack.c.l.b16 %v501
        %v2062 = vunpack.c.h.b16 %v501
        %v2063 = vunpack.c.l.b16 %v502
        %v2064 = vunpack.c.h.b16 %v502
        %v2065 = vunpack.c.l.b16 %v503
        %v2066 = vunpack.c.h.b16 %v503
        %v2067 = vunpack.c.l.b16 %v504
        %v2068 = vunpack.c.h.b16 %v504
        %v2069 = vunpack.c.l.b16 %v505
        %v2070 = vunpack.c.h.b16 %v505
        %v2071 = vunpack.c.l.b16 %v506
        %v2072 = vunpack.c.h.b16 %v506
        %v2073 = vunpack.c.l.b16 %v507
        %v2074 = vunpack.c.h.b16 %v507
        %v2075 = vunpack.c.l.b16 %v508
        %v2076 = vunpack.c.h.b16 %v508
        %v2077 = vunpack.c.l.b16 %v509
        %v2078 = vunpack.c.h.b16 %v509
        %v2079 = vunpack.c.l.b16 %v510
        %v2080 = vunpack.c.h.b16 %v510
        %v2081 = vunpack.c.l.b16 %v511
        %v2082 = vunpack.c.h.b16 %v511
        %v2083 = vunpack.c.l.b16 %v512
        %v2084 = vunpack.c.h.b16 %v512
        %v2085 = vunpack.c.l.b16 %v513
        %v2086 = vunpack.c.h.b16 %v513
        %v2087 = vunpack.c.l.b16 %v514
        %v2088 = vunpack.c.h.b16 %v514
        %v2089 = vunpack.c.l.b16 %v515
        %v2090 = vunpack.c.h.b16 %v515
        %v2091 = vunpack.c.l.b16 %v516
        %v2092 = vunpack.c.h.b16 %v516
        %v2093 = vunpack.c.l.b16 %v517
        %v2094 = vunpack.c.h.b16 %v517
        %v2095 = vunpack.c.l.b16 %v518
        %v2096 = vunpack.c.h.b16 %v518
        %v2097 = vunpack.c.l.b16 %v519
        %v2098 = vunpack.c.h.b16 %v519
        %v2099 = vunpack.c.l.b16 %v520
        %v2100 = vunpack.c.h.b16 %v520
        %v2101 = vunpack.c.l.b16 %v521
        %v2102 = vunpack.c.h.b16 %v521
        %v2103 = vunpack.c.l.b16 %v522
        %v2104 = vunpack.c.h.b16 %v522
        %v2105 = vunpack.c.l.b16 %v523
        %v2106 = vunpack.c.h.b16 %v523
        %v2107 = vunpack.c.l.b16 %v524
        %v2108 = vunpack.c.h.b16 %v524
        %v2109 = vunpack.c.l.b16 %v525
        %v2110 = vunpack.c.h.b16 %v525
        %v2111 = vunpack.c.l.b16 %v526
        %v2112 = vunpack.c.h.b16 %v526
        %v2113 = vunpack.c.l.b16 %v527
        %v2114 = vunpack.c.h.b16 %v527
        %v2115 = vunpack.c.l.b16 %v528
        %v2116 = vunpack.c.h.b16 %v528
        %v2117 = vunpack.c.l.b16 %v529
        %v2118 = vunpack.c.h.b16 %v529
        %v2119 = vunpack.c.l.b16 %v530
        %v2120 = vunpack.c.h.b16 %v530
        %v2121 = vunpack.c.l.b16 %v531
        %v2122 = vunpack.c.h.b16 %v531
        %v2123 = vunpack.c.l.b16 %v532
        %v2124 = vunpack.c.h.b16 %v532
        %v2125 = vunpack.c.l.b16 %v533
        %v2126 = vunpack.c.h.b16 %v533
        %v2127 = vunpack.c.l.b16 %v534
        %v2128 = vunpack.c.h.b16 %v534
        %v2129 = vunpack.c.l.b16 %v535
        %v2130 = vunpack.c.h.b16 %v535
        %v2131 = vunpack.c.l.b16 %v536
        %v2132 = vunpack.c.h.b16 %v536
        %v2133 = vunpack.c.l.b16 %v537
        %v2134 = vunpack.c.h.b16 %v537
        %v2135 = vunpack.c.l.b16 %v538
        %v2136 = vunpack.c.h.b16 %v538
        %v2137 = vunpack.c.l.b16 %v539
        %v2138 = vunpack.c.h.b16 %v539
        %v2139 = vunpack.c.l.b16 %v540
        %v2140 = vunpack.c.h.b16 %v540
        %v2141 = vunpack.c.l.b16 %v541
        %v2142 = vunpack.c.h.b16 %v541
        %v2143 = vunpack.c.l.b16 %v542
        %v2144 = vunpack.c.h.b16 %v542
        %v2145 = vunpack.c.l.b16 %v543
        %v2146 = vunpack.c.h.b16 %v543
        %v2147 = vunpack.c.l.b16 %v544
        %v2148 = vunpack.c.h.b16 %v544
        %v2149 = vunpack.c.l.b16 %v545
        %v2150 = vunpack.c.h.b16 %v545
        %v2151 = vunpack.c.l.b16 %v546
        %v2152 = vunpack.c.h.b16 %v546
        %v2153 = vunpack.c.l.b16 %v547
        %v2154 = vunpack.c.h.b16 %v547
        %v2155 = vunpack.c.l.b16 %v548
        %v2156 = vunpack.c.h.b16 %v548
        %v2157 = vunpack.c.l.b16 %v549
        %v2158 = vunpack.c.h.b16 %v549
        %v2159 = vunpack.c.l.b16 %v550
        %v2160 = vunpack.c.h.b16 %v550
        %v2161 = vunpack.c.l.b16 %v551
        %v2162 = vunpack.c.h.b16 %v551
        %v2163 = vunpack.c.l.b16 %v552
        %v2164 = vunpack.c.h.b16 %v552
        %v2165 = vunpack.c.l.b16 %v553
        %v2166 = vunpack.c.h.b16 %v553
        %v2167 = vunpack.c.l.b16 %v554
        %v2168 = vunpack.c.h.b16 %v554
        %v2169 = vunpack.c.l.b16 %v555
        %v2170 = vunpack.c.h.b16 %v555
        %v2171 = vunpack.c.l.b16 %v556
        %v2172 = vunpack.c.h.b16 %v556
        %v2173 = vunpack.c.l.b16 %v557
        %v2174 = vunpack.c.h.b16 %v557
        %v2175 = vunpack.c.l.b16 %v558
        %v2176 = vunpack.c.h.b16 %v558
        %v2177 = vunpack.c.l.b16 %v559
        %v2178 = vunpack.c.h.b16 %v559
        %v2179 = vunpack.c.l.b16 %v560
        %v2180 = vunpack.c.h.b16 %v560
        %v2181 = vunpack.c.l.b16 %v561
        %v2182 = vunpack.c.h.b16 %v561
        %v2183 = vunpack.c.l.b16 %v562
        %v2184 = vunpack.c.h.b16 %v562
        %v2185 = vunpack.c.l.b16 %v563
        %v2186 = vunpack.c.h.b16 %v563
        %v2187 = vunpack.c.l.b16 %v564
        %v2188 = vunpack.c.h.b16 %v564
        %v2189 = vunpack.c.l.b16 %v565
        %v2190 = vunpack.c.h.b16 %v565
        %v2191 = vunpack.c.l.b16 %v566
        %v2192 = vunpack.c.h.b16 %v566
        %v2193 = vunpack.c.l.b16 %v567
        %v2194 = vunpack.c.h.b16 %v567
        %v2195 = vunpack.c.l.b16 %v568
        %v2196 = vunpack.c.h.b16 %v568
        %v2197 = vunpack.c.l.b16 %v569
        %v2198 = vunpack.c.h.b16 %v569
        %v2199 = vunpack.c.l.b16 %v570
        %v2200 = vunpack.c.h.b16 %v570
        %v2201 = vunpack.c.l.b16 %v571
        %v2202 = vunpack.c.h.b16 %v571
        %v2203 = vunpack.c.l.b16 %v572
        %v2204 = vunpack.c.h.b16 %v572
        %v2205 = vunpack.c.l.b16 %v573
        %v2206 = vunpack.c.h.b16 %v573
        %v2207 = vunpack.c.l.b16 %v574
        %v2208 = vunpack.c.h.b16 %v574
        %v2209 = vunpack.c.l.b16 %v575
        %v2210 = vunpack.c.h.b16 %v575
        %v2211 = vunpack.c.l.b16 %v576
        %v2212 = vunpack.c.h.b16 %v576
        %v2213 = vunpack.c.l.b16 %v577
        %v2214 = vunpack.c.h.b16 %v577
        %v2215 = vunpack.c.l.b16 %v578
        %v2216 = vunpack.c.h.b16 %v578
        %v2217 = vunpack.c.l.b16 %v579
        %v2218 = vunpack.c.h.b16 %v579
        %v2219 = vunpack.c.l.b16 %v580
        %v2220 = vunpack.c.h.b16 %v580
        %v2221 = vunpack.c.l.b16 %v581
        %v2222 = vunpack.c.h.b16 %v581
        %v2223 = vunpack.c.l.b16 %v582
        %v2224 = vunpack.c.h.b16 %v582
        %v2225 = vunpack.c.l.b16 %v583
        %v2226 = vunpack.c.h.b16 %v583
        %v2227 = vunpack.c.l.b16 %v584
        %v2228 = vunpack.c.h.b16 %v584
        %v2229 = vunpack.c.l.b16 %v585
        %v2230 = vunpack.c.h.b16 %v585
        %v2231 = vunpack.c.l.b16 %v586
        %v2232 = vunpack.c.h.b16 %v586
        %v2233 = vunpack.c.l.b16 %v587
        %v2234 = vunpack.c.h.b16 %v587
        %v2235 = vunpack.c.l.b16 %v588
        %v2236 = vunpack.c.h.b16 %v588
        %v2237 = vunpack.c.l.b16 %v589
        %v2238 = vunpack.c.h.b16 %v589
        %v2239 = vunpack.c.l.b16 %v590
        %v2240 = vunpack.c.h.b16 %v590
        %v2241 = vunpack.c.l.b16 %v591
        %v2242 = vunpack.c.h.b16 %v591
        %v2243 = vunpack.c.l.b16 %v592
        %v2244 = vunpack.c.h.b16 %v592
        %v2245 = vunpack.c.l.b16 %v593
        %v2246 = vunpack.c.h.b16 %v593
        %v2247 = vunpack.c.l.b16 %v594
        %v2248 = vunpack.c.h.b16 %v594
        %v2249 = vunpack.c.l.b16 %v595
        %v2250 = vunpack.c.h.b16 %v595
        %v2251 = vunpack.c.l.b16 %v596
        %v2252 = vunpack.c.h.b16 %v596
        %v2253 = vunpack.c.l.b16 %v597
        %v2254 = vunpack.c.h.b16 %v597
        %v2255 = vunpack.c.l.b16 %v598
        %v2256 = vunpack.c.h.b16 %v598
        %v2257 = vunpack.c.l.b16 %v599
        %v2258 = vunpack.c.h.b16 %v599
        %v2259 = vunpack.c.l.b16 %v600
        %v2260 = vunpack.c.h.b16 %v600
        %v2261 = vunpack.c.l.b16 %v601
        %v2262 = vunpack.c.h.b16 %v601
        %v2263 = vunpack.c.l.b16 %v602
        %v2264 = vunpack.c.h.b16 %v602
        %v2265 = vunpack.c.l.b16 %v603
        %v2266 = vunpack.c.h.b16 %v603
        %v2267 = vunpack.c.l.b16 %v604
        %v2268 = vunpack.c.h.b16 %v604
        %v2269 = vunpack.c.l.b16 %v605
        %v2270 = vunpack.c.h.b16 %v605
        %v2271 = vunpack.c.l.b16 %v606
        %v2272 = vunpack.c.h.b16 %v606
        %v2273 = vunpack.c.l.b16 %v607
        %v2274 = vunpack.c.h.b16 %v607
        %v2275 = vunpack.c.l.b16 %v608
        %v2276 = vunpack.c.h.b16 %v608
        %v2277 = vunpack.c.l.b16 %v609
        %v2278 = vunpack.c.h.b16 %v609
        %v2279 = vunpack.c.l.b16 %v610
        %v2280 = vunpack.c.h.b16 %v610
        %v2281 = vunpack.c.l.b16 %v611
        %v2282 = vunpack.c.h.b16 %v611
        %v2283 = vunpack.c.l.b16 %v612
        %v2284 = vunpack.c.h.b16 %v612
        %v2285 = vunpack.c.l.b16 %v613
        %v2286 = vunpack.c.h.b16 %v613
        %v2287 = vunpack.c.l.b16 %v614
        %v2288 = vunpack.c.h.b16 %v614
        %v2289 = vunpack.c.l.b16 %v615
        %v2290 = vunpack.c.h.b16 %v615
        %v2291 = vunpack.c.l.b16 %v616
        %v2292 = vunpack.c.h.b16 %v616
        %v2293 = vunpack.c.l.b16 %v617
        %v2294 = vunpack.c.h.b16 %v617
        %v2295 = vunpack.c.l.b16 %v618
        %v2296 = vunpack.c.h.b16 %v618
        %v2297 = vunpack.c.l.b16 %v619
        %v2298 = vunpack.c.h.b16 %v619
        %v2299 = vunpack.c.l.b16 %v620
        %v2300 = vunpack.c.h.b16 %v620
        %v2301 = vunpack.c.l.b16 %v621
        %v2302 = vunpack.c.h.b16 %v621
        %v2303 = vunpack.c.l.b16 %v622
        %v2304 = vunpack.c.h.b16 %v622
        %v2305 = vunpack.c.l.b16 %v623
        %v2306 = vunpack.c.h.b16 %v623
        %v2307 = vunpack.c.l.b16 %v624
        %v2308 = vunpack.c.h.b16 %v624
        %v2309 = vunpack.c.l.b16 %v625
        %v2310 = vunpack.c.h.b16 %v625
        %v2311 = vunpack.c.l.b16 %v626
        %v2312 = vunpack.c.h.b16 %v626
        %v2313 = vunpack.c.l.b16 %v627
        %v2314 = vunpack.c.h.b16 %v627
        %v2315 = vunpack.c.l.b16 %v628
        %v2316 = vunpack.c.h.b16 %v628
        %v2317 = vunpack.c.l.b16 %v629
        %v2318 = vunpack.c.h.b16 %v629
        %v2319 = vunpack.c.l.b16 %v630
        %v2320 = vunpack.c.h.b16 %v630
        %v2321 = vunpack.c.l.b16 %v631
        %v2322 = vunpack.c.h.b16 %v631
        %v2323 = vunpack.c.l.b16 %v632
        %v2324 = vunpack.c.h.b16 %v632
        %v2325 = vunpack.c.l.b16 %v633
        %v2326 = vunpack.c.h.b16 %v633
        %v2327 = vunpack.c.l.b16 %v634
        %v2328 = vunpack.c.h.b16 %v634
        %v2329 = vunpack.c.l.b16 %v635
        %v2330 = vunpack.c.h.b16 %v635
        %v2331 = vunpack.c.l.b16 %v636
        %v2332 = vunpack.c.h.b16 %v636
        %v2333 = vunpack.c.l.b16 %v637
        %v2334 = vunpack.c.h.b16 %v637
        %v2335 = vunpack.c.l.b16 %v638
        %v2336 = vunpack.c.h.b16 %v638
        %v2337 = vunpack.c.l.b16 %v639
        %v2338 = vunpack.c.h.b16 %v639
        %v2339 = vunpack.c.l.b16 %v640
        %v2340 = vunpack.c.h.b16 %v640
        %v2341 = vunpack.c.l.b16 %v641
        %v2342 = vunpack.c.h.b16 %v641
        %v2343 = vunpack.c.l.b16 %v642
        %v2344 = vunpack.c.h.b16 %v642
        %v2345 = vunpack.c.l.b16 %v643
        %v2346 = vunpack.c.h.b16 %v643
        %v2347 = vunpack.c.l.b16 %v644
        %v2348 = vunpack.c.h.b16 %v644
        %v2349 = vunpack.c.l.b16 %v645
        %v2350 = vunpack.c.h.b16 %v645
        %v2351 = vunpack.c.l.b16 %v646
        %v2352 = vunpack.c.h.b16 %v646
        %v2353 = vunpack.c.l.b16 %v647
        %v2354 = vunpack.c.h.b16 %v647
        %v2355 = vunpack.c.l.b16 %v648
        %v2356 = vunpack.c.h.b16 %v648
        %v2357 = vunpack.c.l.b16 %v649
        %v2358 = vunpack.c.h.b16 %v649
        %v2359 = vunpack.c.l.b16 %v650
        %v2360 = vunpack.c.h.b16 %v650
        %v2361 = vunpack.c.l.b16 %v651
        %v2362 = vunpack.c.h.b16 %v651
        %v2363 = vunpack.c.l.b16 %v652
        %v2364 = vunpack.c.h.b16 %v652
        %v2365 = vunpack.c.l.b16 %v653
        %v2366 = vunpack.c.h.b16 %v653
        %v2367 = vunpack.c.l.b16 %v654
        %v2368 = vunpack.c.h.b16 %v654
        %v2369 = vunpack.c.l.b16 %v655
        %v2370 = vunpack.c.h.b16 %v655
        %v2371 = vunpack.c.l.b16 %v656
        %v2372 = vunpack.c.h.b16 %v656
        %v2373 = vunpack.c.l.b16 %v657
        %v2374 = vunpack.c.h.b16 %v657
        %v2375 = vunpack.c.l.b16 %v658
        %v2376 = vunpack.c.h.b16 %v658
        %v2377 = vunpack.c.l.b16 %v659
        %v2378 = vunpack.c.h.b16 %v659
        %v2379 = vunpack.c.l.b16 %v660
        %v2380 = vunpack.c.h.b16 %v660
        %v2381 = vunpack.c.l.b16 %v661
        %v2382 = vunpack.c.h.b16 %v661
        %v2383 = vunpack.c.l.b16 %v662
        %v2384 = vunpack.c.h.b16 %v662
        %v2385 = vunpack.c.l.b16 %v663
        %v2386 = vunpack.c.h.b16 %v663
        %v2387 = vunpack.c.l.b16 %v664
        %v2388 = vunpack.c.h.b16 %v664
        %v2389 = vunpack.c.l.b16 %v665
        %v2390 = vunpack.c.h.b16 %v665
        %v2391 = vunpack.c.l.b16 %v666
        %v2392 = vunpack.c.h.b16 %v666
        %v2393 = vunpack.c.l.b16 %v667
        %v2394 = vunpack.c.h.b16 %v667
        %v2395 = vunpack.c.l.b16 %v668
        %v2396 = vunpack.c.h.b16 %v668
        %v2397 = vunpack.c.l.b16 %v669
        %v2398 = vunpack.c.h.b16 %v669
        %v2399 = vunpack.c.l.b16 %v670
        %v2400 = vunpack.c.h.b16 %v670
        %v2401 = vunpack.c.l.b16 %v671
        %v2402 = vunpack.c.h.b16 %v671
        %v2403 = vunpack.c.l.b16 %v672
        %v2404 = vunpack.c.h.b16 %v672
        %v2405 = vunpack.c.l.b16 %v673
        %v2406 = vunpack.c.h.b16 %v673
        %v2407 = vunpack.c.l.b16 %v674
        %v2408 = vunpack.c.h.b16 %v674
        %v2409 = vunpack.c.l.b16 %v675
        %v2410 = vunpack.c.h.b16 %v675
        %v2411 = vunpack.c.l.b16 %v676
        %v2412 = vunpack.c.h.b16 %v676
        %v2413 = vunpack.c.l.b16 %v677
        %v2414 = vunpack.c.h.b16 %v677
        %v2415 = vunpack.c.l.b16 %v678
        %v2416 = vunpack.c.h.b16 %v678
        %v2417 = vunpack.c.l.b16 %v679
        %v2418 = vunpack.c.h.b16 %v679
        %v2419 = vunpack.c.l.b16 %v680
        %v2420 = vunpack.c.h.b16 %v680
        %v2421 = vunpack.c.l.b16 %v681
        %v2422 = vunpack.c.h.b16 %v681
        %v2423 = vunpack.c.l.b16 %v682
        %v2424 = vunpack.c.h.b16 %v682
        %v2425 = vunpack.c.l.b16 %v683
        %v2426 = vunpack.c.h.b16 %v683
        %v2427 = vunpack.c.l.b16 %v684
        %v2428 = vunpack.c.h.b16 %v684
        %v2429 = vunpack.c.l.b16 %v685
        %v2430 = vunpack.c.h.b16 %v685
        %v2431 = vunpack.c.l.b16 %v686
        %v2432 = vunpack.c.h.b16 %v686
        %v2433 = vunpack.c.l.b16 %v687
        %v2434 = vunpack.c.h.b16 %v687
        %v2435 = vunpack.c.l.b16 %v688
        %v2436 = vunpack.c.h.b16 %v688
        %v2437 = vunpack.c.l.b16 %v689
        %v2438 = vunpack.c.h.b16 %v689
        %v2439 = vunpack.c.l.b16 %v690
        %v2440 = vunpack.c.h.b16 %v690
        %v2441 = vunpack.c.l.b16 %v691
        %v2442 = vunpack.c.h.b16 %v691
        %v2443 = vunpack.c.l.b16 %v692
        %v2444 = vunpack.c.h.b16 %v692
        %v2445 = vunpack.c.l.b16 %v693
        %v2446 = vunpack.c.h.b16 %v693
        %v2447 = vunpack.c.l.b16 %v694
        %v2448 = vunpack.c.h.b16 %v694
        %v2449 = vunpack.c.l.b16 %v695
        %v2450 = vunpack.c.h.b16 %v695
        %v2451 = vunpack.c.l.b16 %v696
        %v2452 = vunpack.c.h.b16 %v696
        %v2453 = vunpack.c.l.b16 %v697
        %v2454 = vunpack.c.h.b16 %v697
        %v2455 = vunpack.c.l.b16 %v698
        %v2456 = vunpack.c.h.b16 %v698
        %v2457 = vunpack.c.l.b16 %v699
        %v2458 = vunpack.c.h.b16 %v699
        %v2459 = vunpack.c.l.b16 %v700
        %v2460 = vunpack.c.h.b16 %v700
        %v2461 = vunpack.c.l.b16 %v701
        %v2462 = vunpack.c.h.b16 %v701
        %v2463 = vunpack.c.l.b16 %v702
        %v2464 = vunpack.c.h.b16 %v702
        %v2465 = vunpack.c.l.b16 %v703
        %v2466 = vunpack.c.h.b16 %v703
        %v2467 = vunpack.c.l.b16 %v704
        %v2468 = vunpack.c.h.b16 %v704
        %v2469 = vunpack.c.l.b16 %v705
        %v2470 = vunpack.c.h.b16 %v705
        %v2471 = vunpack.c.l.b16 %v706
        %v2472 = vunpack.c.h.b16 %v706
        %v2473 = vunpack.c.l.b16 %v707
        %v2474 = vunpack.c.h.b16 %v707
        %v2475 = vunpack.c.l.b16 %v708
        %v2476 = vunpack.c.h.b16 %v708
        %v2477 = vunpack.c.l.b16 %v709
        %v2478 = vunpack.c.h.b16 %v709
        %v2479 = vunpack.c.l.b16 %v710
        %v2480 = vunpack.c.h.b16 %v710
        %v2481 = vunpack.c.l.b16 %v711
        %v2482 = vunpack.c.h.b16 %v711
        %v2483 = vunpack.c.l.b16 %v712
        %v2484 = vunpack.c.h.b16 %v712
        %v2485 = vunpack.c.l.b16 %v713
        %v2486 = vunpack.c.h.b16 %v713
        %v2487 = vunpack.c.l.b16 %v714
        %v2488 = vunpack.c.h.b16 %v714
        %v2489 = vunpack.c.l.b16 %v715
        %v2490 = vunpack.c.h.b16 %v715
        %v2491 = vunpack.c.l.b16 %v716
        %v2492 = vunpack.c.h.b16 %v716
        %v2493 = vunpack.c.l.b16 %v717
        %v2494 = vunpack.c.h.b16 %v717
        %v2495 = vunpack.c.l.b16 %v718
        %v2496 = vunpack.c.h.b16 %v718
        %v2497 = vunpack.c.l.b16 %v719
        %v2498 = vunpack.c.h.b16 %v719
        %v2499 = vunpack.c.l.b16 %v720
        %v2500 = vunpack.c.h.b16 %v720
        %v2501 = vunpack.c.l.b16 %v721
        %v2502 = vunpack.c.h.b16 %v721
        %v2503 = vunpack.c.l.b16 %v722
        %v2504 = vunpack.c.h.b16 %v722
        %v2505 = vunpack.c.l.b16 %v723
        %v2506 = vunpack.c.h.b16 %v723
        %v2507 = vunpack.c.l.b16 %v724
        %v2508 = vunpack.c.h.b16 %v724
        %v2509 = vunpack.c.l.b16 %v725
        %v2510 = vunpack.c.h.b16 %v725
        %v2511 = vunpack.c.l.b16 %v726
        %v2512 = vunpack.c.h.b16 %v726
        %v2513 = vunpack.c.l.b16 %v727
        %v2514 = vunpack.c.h.b16 %v727
        %v2515 = vunpack.c.l.b16 %v728
        %v2516 = vunpack.c.h.b16 %v728
        %v2517 = vunpack.c.l.b16 %v729
        %v2518 = vunpack.c.h.b16 %v729
        %v2519 = vunpack.c.l.b16 %v730
        %v2520 = vunpack.c.h.b16 %v730
        %v2521 = vunpack.c.l.b16 %v731
        %v2522 = vunpack.c.h.b16 %v731
        %v2523 = vunpack.c.l.b16 %v732
        %v2524 = vunpack.c.h.b16 %v732
        %v2525 = vunpack.c.l.b16 %v733
        %v2526 = vunpack.c.h.b16 %v733
        %v2527 = vunpack.c.l.b16 %v734
        %v2528 = vunpack.c.h.b16 %v734
        %v2529 = vunpack.c.l.b16 %v735
        %v2530 = vunpack.c.h.b16 %v735
        %v2531 = vunpack.c.l.b16 %v736
        %v2532 = vunpack.c.h.b16 %v736
        %v2533 = vunpack.c.l.b16 %v737
        %v2534 = vunpack.c.h.b16 %v737
        %v2535 = vunpack.c.l.b16 %v738
        %v2536 = vunpack.c.h.b16 %v738
        %v2537 = vunpack.c.l.b16 %v739
        %v2538 = vunpack.c.h.b16 %v739
        %v2539 = vunpack.c.l.b16 %v740
        %v2540 = vunpack.c.h.b16 %v740
        %v2541 = vunpack.c.l.b16 %v741
        %v2542 = vunpack.c.h.b16 %v741
        %v2543 = vunpack.c.l.b16 %v742
        %v2544 = vunpack.c.h.b16 %v742
        %v2545 = vunpack.c.l.b16 %v743
        %v2546 = vunpack.c.h.b16 %v743
        %v2547 = vunpack.c.l.b16 %v744
        %v2548 = vunpack.c.h.b16 %v744
        %v2549 = vunpack.c.l.b16 %v745
        %v2550 = vunpack.c.h.b16 %v745
        %v2551 = vunpack.c.l.b16 %v746
        %v2552 = vunpack.c.h.b16 %v746
        %v2553 = vunpack.c.l.b16 %v747
        %v2554 = vunpack.c.h.b16 %v747
        %v2555 = vunpack.c.l.b16 %v748
        %v2556 = vunpack.c.h.b16 %v748
        %v2557 = vunpack.c.l.b16 %v749
        %v2558 = vunpack.c.h.b16 %v749
        %v2559 = vunpack.c.l.b16 %v750
        %v2560 = vunpack.c.h.b16 %v750
        %v2561 = vunpack.c.l.b16 %v751
        %v2562 = vunpack.c.h.b16 %v751
        %v2563 = vunpack.c.l.b16 %v752
        %v2564 = vunpack.c.h.b16 %v752
        %v2565 = vunpack.c.l.b16 %v753
        %v2566 = vunpack.c.h.b16 %v753
        %v2567 = vunpack.c.l.b16 %v754
        %v2568 = vunpack.c.h.b16 %v754
        %v2569 = vunpack.c.l.b16 %v755
        %v2570 = vunpack.c.h.b16 %v755
        %v2571 = vunpack.c.l.b16 %v756
        %v2572 = vunpack.c.h.b16 %v756
        %v2573 = vunpack.c.l.b16 %v757
        %v2574 = vunpack.c.h.b16 %v757
        %v2575 = vunpack.c.l.b16 %v758
        %v2576 = vunpack.c.h.b16 %v758
        %v2577 = vunpack.c.l.b16 %v759
        %v2578 = vunpack.c.h.b16 %v759
        %v2579 = vunpack.c.l.b16 %v760
        %v2580 = vunpack.c.h.b16 %v760
        %v2581 = vunpack.c.l.b16 %v761
        %v2582 = vunpack.c.h.b16 %v761
        %v2583 = vunpack.c.l.b16 %v762
        %v2584 = vunpack.c.h.b16 %v762
        %v2585 = vunpack.c.l.b16 %v763
        %v2586 = vunpack.c.h.b16 %v763
        %v2587 = vunpack.c.l.b16 %v764
        %v2588 = vunpack.c.h.b16 %v764
        %v2589 = vunpack.c.l.b16 %v765
        %v2590 = vunpack.c.h.b16 %v765
        %v2591 = vunpack.c.l.b16 %v766
        %v2592 = vunpack.c.h.b16 %v766
        %v2593 = vunpack.c.l.b16 %v767
        %v2594 = vunpack.c.h.b16 %v767
        %v2595 = vunpack.c.l.b16 %v768
        %v2596 = vunpack.c.h.b16 %v768
        %v2597 = vunpack.c.l.b16 %v769
        %v2598 = vunpack.c.h.b16 %v769
        %v2599 = vunpack.c.l.b16 %v770
        %v2600 = vunpack.c.h.b16 %v770
        %v2601 = vunpack.c.l.b16 %v771
        %v2602 = vunpack.c.h.b16 %v771
        %v2603 = vunpack.c.l.b16 %v772
        %v2604 = vunpack.c.h.b16 %v772
        %v2605 = vunpack.c.l.b16 %v773
        %v2606 = vunpack.c.h.b16 %v773
        %v2607 = vunpack.c.l.b16 %v774
        %v2608 = vunpack.c.h.b16 %v774
        %v2609 = vunpack.c.l.b16 %v775
        %v2610 = vunpack.c.h.b16 %v775
        %v2611 = vunpack.c.l.b16 %v776
        %v2612 = vunpack.c.h.b16 %v776
        %v2613 = vunpack.c.l.b16 %v777
        %v2614 = vunpack.c.h.b16 %v777
        %v2615 = vunpack.c.l.b16 %v778
        %v2616 = vunpack.c.h.b16 %v778
        %v2617 = vunpack.c.l.b16 %v779
        %v2618 = vunpack.c.h.b16 %v779
        %v2619 = vunpack.c.l.b16 %v780
        %v2620 = vunpack.c.h.b16 %v780
        %v2621 = vunpack.c.l.b16 %v781
        %v2622 = vunpack.c.h.b16 %v781
        %v2623 = vunpack.c.l.b16 %v782
        %v2624 = vunpack.c.h.b16 %v782
        %v2625 = vunpack.c.l.b16 %v783
        %v2626 = vunpack.c.h.b16 %v783
        %v2627 = vunpack.c.l.b16 %v784
        %v2628 = vunpack.c.h.b16 %v784
        %v2629 = vunpack.c.l.b16 %v785
        %v2630 = vunpack.c.h.b16 %v785
        %v2631 = vunpack.c.l.b16 %v786
        %v2632 = vunpack.c.h.b16 %v786
        %v2633 = vunpack.c.l.b16 %v787
        %v2634 = vunpack.c.h.b16 %v787
        %v2635 = vunpack.c.l.b16 %v788
        %v2636 = vunpack.c.h.b16 %v788
        %v2637 = vunpack.c.l.b16 %v789
        %v2638 = vunpack.c.h.b16 %v789
        %v2639 = vunpack.c.l.b16 %v790
        %v2640 = vunpack.c.h.b16 %v790
        %v2641 = vunpack.c.l.b16 %v791
        %v2642 = vunpack.c.h.b16 %v791
        %v2643 = vunpack.c.l.b16 %v792
        %v2644 = vunpack.c.h.b16 %v792
        %v2645 = vunpack.c.l.b16 %v793
        %v2646 = vunpack.c.h.b16 %v793
        %v2647 = vunpack.c.l.b16 %v794
        %v2648 = vunpack.c.h.b16 %v794
        %v2649 = vunpack.c.l.b16 %v795
        %v2650 = vunpack.c.h.b16 %v795
        %v2651 = vunpack.c.l.b16 %v796
        %v2652 = vunpack.c.h.b16 %v796
        %v2653 = vunpack.c.l.b16 %v797
        %v2654 = vunpack.c.h.b16 %v797
        %v2655 = vunpack.c.l.b16 %v798
        %v2656 = vunpack.c.h.b16 %v798
        %v2657 = vunpack.c.l.b16 %v799
        %v2658 = vunpack.c.h.b16 %v799
        %v2659 = vunpack.c.l.b16 %v800
        %v2660 = vunpack.c.h.b16 %v800
        %v2661 = vunpack.c.l.b16 %v801
        %v2662 = vunpack.c.h.b16 %v801
        %v2663 = vunpack.c.l.b16 %v802
        %v2664 = vunpack.c.h.b16 %v802
        %v2665 = vunpack.c.l.b16 %v803
        %v2666 = vunpack.c.h.b16 %v803
        %v2667 = vunpack.c.l.b16 %v804
        %v2668 = vunpack.c.h.b16 %v804
        %v2669 = vunpack.c.l.b16 %v805
        %v2670 = vunpack.c.h.b16 %v805
        %v2671 = vunpack.c.l.b16 %v806
        %v2672 = vunpack.c.h.b16 %v806
        %v2673 = vunpack.c.l.b16 %v807
        %v2674 = vunpack.c.h.b16 %v807
        %v2675 = vunpack.c.l.b16 %v808
        %v2676 = vunpack.c.h.b16 %v808
        %v2677 = vunpack.c.l.b16 %v809
        %v2678 = vunpack.c.h.b16 %v809
        %v2679 = vunpack.c.l.b16 %v810
        %v2680 = vunpack.c.h.b16 %v810
        %v2681 = vunpack.c.l.b16 %v811
        %v2682 = vunpack.c.h.b16 %v811
        %v2683 = vunpack.c.l.b16 %v812
        %v2684 = vunpack.c.h.b16 %v812
        %v2685 = vunpack.c.l.b16 %v813
        %v2686 = vunpack.c.h.b16 %v813
        %v2687 = vunpack.c.l.b16 %v814
        %v2688 = vunpack.c.h.b16 %v814
        %v2689 = vunpack.c.l.b16 %v815
        %v2690 = vunpack.c.h.b16 %v815
        %v2691 = vunpack.c.l.b16 %v816
        %v2692 = vunpack.c.h.b16 %v816
        %v2693 = vunpack.c.l.b16 %v817
        %v2694 = vunpack.c.h.b16 %v817
        %v2695 = vunpack.c.l.b16 %v818
        %v2696 = vunpack.c.h.b16 %v818
        %v2697 = vunpack.c.l.b16 %v819
        %v2698 = vunpack.c.h.b16 %v819
        %v2699 = vunpack.c.l.b16 %v820
        %v2700 = vunpack.c.h.b16 %v820
        %v2701 = vunpack.c.l.b16 %v821
        %v2702 = vunpack.c.h.b16 %v821
        %v2703 = vunpack.c.l.b16 %v822
        %v2704 = vunpack.c.h.b16 %v822
        %v2705 = vunpack.c.l.b16 %v823
        %v2706 = vunpack.c.h.b16 %v823
        %v2707 = vunpack.c.l.b16 %v824
        %v2708 = vunpack.c.h.b16 %v824
        %v2709 = vunpack.c.l.b16 %v825
        %v2710 = vunpack.c.h.b16 %v825
        %v2711 = vunpack.c.l.b16 %v826
        %v2712 = vunpack.c.h.b16 %v826
        %v2713 = vunpack.c.l.b16 %v827
        %v2714 = vunpack.c.h.b16 %v827
        %v2715 = vunpack.c.l.b16 %v828
        %v2716 = vunpack.c.h.b16 %v828
        %v2717 = vunpack.c.l.b16 %v829
        %v2718 = vunpack.c.h.b16 %v829
        %v2719 = vunpack.c.l.b16 %v830
        %v2720 = vunpack.c.h.b16 %v830
        %v2721 = vunpack.c.l.b16 %v831
        %v2722 = vunpack.c.h.b16 %v831
        %v2723 = vunpack.c.l.b16 %v832
        %v2724 = vunpack.c.h.b16 %v832
        %v2725 = vunpack.c.l.b16 %v833
        %v2726 = vunpack.c.h.b16 %v833
        %v2727 = vunpack.c.l.b16 %v834
        %v2728 = vunpack.c.h.b16 %v834
        %v2729 = vunpack.c.l.b16 %v835
        %v2730 = vunpack.c.h.b16 %v835
        %v2731 = vunpack.c.l.b16 %v836
        %v2732 = vunpack.c.h.b16 %v836
        %v2733 = vunpack.c.l.b16 %v837
        %v2734 = vunpack.c.h.b16 %v837
        %v2735 = vunpack.c.l.b16 %v838
        %v2736 = vunpack.c.h.b16 %v838
        %v2737 = vunpack.c.l.b16 %v839
        %v2738 = vunpack.c.h.b16 %v839
        %v2739 = vunpack.c.l.b16 %v840
        %v2740 = vunpack.c.h.b16 %v840
        %v2741 = vunpack.c.l.b16 %v841
        %v2742 = vunpack.c.h.b16 %v841
        %v2743 = vunpack.c.l.b16 %v842
        %v2744 = vunpack.c.h.b16 %v842
        %v2745 = vunpack.c.l.b16 %v843
        %v2746 = vunpack.c.h.b16 %v843
        %v2747 = vunpack.c.l.b16 %v844
        %v2748 = vunpack.c.h.b16 %v844
        %v2749 = vunpack.c.l.b16 %v845
        %v2750 = vunpack.c.h.b16 %v845
        %v2751 = vunpack.c.l.b16 %v846
        %v2752 = vunpack.c.h.b16 %v846
        %v2753 = vunpack.c.l.b16 %v847
        %v2754 = vunpack.c.h.b16 %v847
        %v2755 = vunpack.c.l.b16 %v848
        %v2756 = vunpack.c.h.b16 %v848
        %v2757 = vunpack.c.l.b16 %v849
        %v2758 = vunpack.c.h.b16 %v849
        %v2759 = vunpack.c.l.b16 %v850
        %v2760 = vunpack.c.h.b16 %v850
        %v2761 = vunpack.c.l.b16 %v851
        %v2762 = vunpack.c.h.b16 %v851
        %v2763 = vunpack.c.l.b16 %v852
        %v2764 = vunpack.c.h.b16 %v852
        %v2765 = vunpack.c.l.b16 %v853
        %v2766 = vunpack.c.h.b16 %v853
        %v2767 = vunpack.c.l.b16 %v854
        %v2768 = vunpack.c.h.b16 %v854
        %v2769 = vunpack.c.l.b16 %v855
        %v2770 = vunpack.c.h.b16 %v855
        %v2771 = vunpack.c.l.b16 %v856
        %v2772 = vunpack.c.h.b16 %v856
        %v2773 = vunpack.c.l.b16 %v857
        %v2774 = vunpack.c.h.b16 %v857
        %v2775 = vunpack.c.l.b16 %v858
        %v2776 = vunpack.c.h.b16 %v858
        %v2777 = vunpack.c.l.b16 %v859
        %v2778 = vunpack.c.h.b16 %v859
        %v2779 = vunpack.c.l.b16 %v860
        %v2780 = vunpack.c.h.b16 %v860
        %v2781 = vunpack.c.l.b16 %v861
        %v2782 = vunpack.c.h.b16 %v861
        %v2783 = vunpack.c.l.b16 %v862
        %v2784 = vunpack.c.h.b16 %v862
        %v2785 = vunpack.c.l.b16 %v863
        %v2786 = vunpack.c.h.b16 %v863
        %v2787 = vunpack.c.l.b16 %v864
        %v2788 = vunpack.c.h.b16 %v864
        %v2789 = vunpack.c.l.b16 %v865
        %v2790 = vunpack.c.h.b16 %v865
        %v2791 = vunpack.c.l.b16 %v866
        %v2792 = vunpack.c.h.b16 %v866
        %v2793 = vunpack.c.l.b16 %v867
        %v2794 = vunpack.c.h.b16 %v867
        %v2795 = vunpack.c.l.b16 %v868
        %v2796 = vunpack.c.h.b16 %v868
        %v2797 = vunpack.c.l.b16 %v869
        %v2798 = vunpack.c.h.b16 %v869
        %v2799 = vunpack.c.l.b16 %v870
        %v2800 = vunpack.c.h.b16 %v870
        %v2801 = vunpack.c.l.b16 %v871
        %v2802 = vunpack.c.h.b16 %v871
        %v2803 = vunpack.c.l.b16 %v872
        %v2804 = vunpack.c.h.b16 %v872
        %v2805 = vunpack.c.l.b16 %v873
        %v2806 = vunpack.c.h.b16 %v873
        %v2807 = vunpack.c.l.b16 %v874
        %v2808 = vunpack.c.h.b16 %v874
        %v2809 = vunpack.c.l.b16 %v875
        %v2810 = vunpack.c.h.b16 %v875
        %v2811 = vunpack.c.l.b16 %v876
        %v2812 = vunpack.c.h.b16 %v876
        %v2813 = vunpack.c.l.b16 %v877
        %v2814 = vunpack.c.h.b16 %v877
        %v2815 = vunpack.c.l.b16 %v878
        %v2816 = vunpack.c.h.b16 %v878
        %v2817 = vunpack.c.l.b16 %v879
        %v2818 = vunpack.c.h.b16 %v879
        %v2819 = vunpack.c.l.b16 %v880
        %v2820 = vunpack.c.h.b16 %v880
        %v2821 = vunpack.c.l.b16 %v881
        %v2822 = vunpack.c.h.b16 %v881
        %v2823 = vunpack.c.l.b16 %v882
        %v2824 = vunpack.c.h.b16 %v882
        %v2825 = vunpack.c.l.b16 %v883
        %v2826 = vunpack.c.h.b16 %v883
        %v2827 = vunpack.c.l.b16 %v884
        %v2828 = vunpack.c.h.b16 %v884
        %v2829 = vunpack.c.l.b16 %v885
        %v2830 = vunpack.c.h.b16 %v885
        %v2831 = vunpack.c.l.b16 %v886
        %v2832 = vunpack.c.h.b16 %v886
        %v2833 = vunpack.c.l.b16 %v887
        %v2834 = vunpack.c.h.b16 %v887
        %v2835 = vunpack.c.l.b16 %v888
        %v2836 = vunpack.c.h.b16 %v888
        %v2837 = vunpack.c.l.b16 %v889
        %v2838 = vunpack.c.h.b16 %v889
        %v2839 = vunpack.c.l.b16 %v890
        %v2840 = vunpack.c.h.b16 %v890
        %v2841 = vunpack.c.l.b16 %v891
        %v2842 = vunpack.c.h.b16 %v891
        %v2843 = vunpack.c.l.b16 %v892
        %v2844 = vunpack.c.h.b16 %v892
        %v2845 = vunpack.c.l.b16 %v893
        %v2846 = vunpack.c.h.b16 %v893
        %v2847 = vunpack.c.l.b16 %v894
        %v2848 = vunpack.c.h.b16 %v894
        %v2849 = vunpack.c.l.b16 %v895
        %v2850 = vunpack.c.h.b16 %v895
        %v2851 = vunpack.c.l.b16 %v896
        %v2852 = vunpack.c.h.b16 %v896
        %v2853 = vunpack.c.l.b16 %v897
        %v2854 = vunpack.c.h.b16 %v897
        %v2855 = vunpack.c.l.b16 %v898
        %v2856 = vunpack.c.h.b16 %v898
        %v2857 = vunpack.c.l.b16 %v899
        %v2858 = vunpack.c.h.b16 %v899
        %v2859 = vunpack.c.l.b16 %v900
        %v2860 = vunpack.c.h.b16 %v900
        %v2861 = vunpack.c.l.b16 %v901
        %v2862 = vunpack.c.h.b16 %v901
        %v2863 = vunpack.c.l.b16 %v902
        %v2864 = vunpack.c.h.b16 %v902
        %v2865 = vunpack.c.l.b16 %v903
        %v2866 = vunpack.c.h.b16 %v903
        %v2867 = vunpack.c.l.b16 %v904
        %v2868 = vunpack.c.h.b16 %v904
        %v2869 = vunpack.c.l.b16 %v905
        %v2870 = vunpack.c.h.b16 %v905
        %v2871 = vunpack.c.l.b16 %v906
        %v2872 = vunpack.c.h.b16 %v906
        %v2873 = vunpack.c.l.b16 %v907
        %v2874 = vunpack.c.h.b16 %v907
        %v2875 = vunpack.c.l.b16 %v908
        %v2876 = vunpack.c.h.b16 %v908
        %v2877 = vunpack.c.l.b16 %v909
        %v2878 = vunpack.c.h.b16 %v909
        %v2879 = vunpack.c.l.b16 %v910
        %v2880 = vunpack.c.h.b16 %v910
        %v2881 = vunpack.c.l.b16 %v911
        %v2882 = vunpack.c.h.b16 %v911
        %v2883 = vunpack.c.l.b16 %v912
        %v2884 = vunpack.c.h.b16 %v912
        %v2885 = vunpack.c.l.b16 %v913
        %v2886 = vunpack.c.h.b16 %v913
        %v2887 = vunpack.c.l.b16 %v914
        %v2888 = vunpack.c.h.b16 %v914
        %v2889 = vunpack.c.l.b16 %v915
        %v2890 = vunpack.c.h.b16 %v915
        %v2891 = vunpack.c.l.b16 %v916
        %v2892 = vunpack.c.h.b16 %v916
        %v2893 = vunpack.c.l.b16 %v917
        %v2894 = vunpack.c.h.b16 %v917
        %v2895 = vunpack.c.l.b16 %v918
        %v2896 = vunpack.c.h.b16 %v918
        %v2897 = vunpack.c.l.b16 %v919
        %v2898 = vunpack.c.h.b16 %v919
        %v2899 = vunpack.c.l.b16 %v920
        %v2900 = vunpack.c.h.b16 %v920
        %v2901 = vunpack.c.l.b16 %v921
        %v2902 = vunpack.c.h.b16 %v921
        %v2903 = vunpack.c.l.b16 %v922
        %v2904 = vunpack.c.h.b16 %v922
        %v2905 = vunpack.c.l.b16 %v923
        %v2906 = vunpack.c.h.b16 %v923
        %v2907 = vunpack.c.l.b16 %v924
        %v2908 = vunpack.c.h.b16 %v924
        %v2909 = vunpack.c.l.b16 %v925
        %v2910 = vunpack.c.h.b16 %v925
        %v2911 = vunpack.c.l.b16 %v926
        %v2912 = vunpack.c.h.b16 %v926
        %v2913 = vunpack.c.l.b16 %v927
        %v2914 = vunpack.c.h.b16 %v927
        %v2915 = vunpack.c.l.b16 %v928
        %v2916 = vunpack.c.h.b16 %v928
        %v2917 = vunpack.c.l.b16 %v929
        %v2918 = vunpack.c.h.b16 %v929
        %v2919 = vunpack.c.l.b16 %v930
        %v2920 = vunpack.c.h.b16 %v930
        %v2921 = vunpack.c.l.b16 %v931
        %v2922 = vunpack.c.h.b16 %v931
        %v2923 = vunpack.c.l.b16 %v932
        %v2924 = vunpack.c.h.b16 %v932
        %v2925 = vunpack.c.l.b16 %v933
        %v2926 = vunpack.c.h.b16 %v933
        %v2927 = vunpack.c.l.b16 %v934
        %v2928 = vunpack.c.h.b16 %v934
        %v2929 = vunpack.c.l.b16 %v935
        %v2930 = vunpack.c.h.b16 %v935
        %v2931 = vunpack.c.l.b16 %v936
        %v2932 = vunpack.c.h.b16 %v936
        %v2933 = vunpack.c.l.b16 %v937
        %v2934 = vunpack.c.h.b16 %v937
        %v2935 = vunpack.c.l.b16 %v938
        %v2936 = vunpack.c.h.b16 %v938
        %v2937 = vunpack.c.l.b16 %v939
        %v2938 = vunpack.c.h.b16 %v939
        %v2939 = vunpack.c.l.b16 %v940
        %v2940 = vunpack.c.h.b16 %v940
        %v2941 = vunpack.c.l.b16 %v941
        %v2942 = vunpack.c.h.b16 %v941
        %v2943 = vunpack.c.l.b16 %v942
        %v2944 = vunpack.c.h.b16 %v942
        %v2945 = vunpack.c.l.b16 %v943
        %v2946 = vunpack.c.h.b16 %v943
        %v2947 = vunpack.c.l.b16 %v944
        %v2948 = vunpack.c.h.b16 %v944
        %v2949 = vunpack.c.l.b16 %v945
        %v2950 = vunpack.c.h.b16 %v945
        %v2951 = vunpack.c.l.b16 %v946
        %v2952 = vunpack.c.h.b16 %v946
        %v2953 = vunpack.c.l.b16 %v947
        %v2954 = vunpack.c.h.b16 %v947
        %v2955 = vunpack.c.l.b16 %v948
        %v2956 = vunpack.c.h.b16 %v948
        %v2957 = vunpack.c.l.b16 %v949
        %v2958 = vunpack.c.h.b16 %v949
        %v2959 = vunpack.c.l.b16 %v950
        %v2960 = vunpack.c.h.b16 %v950
        %v2961 = vunpack.c.l.b16 %v951
        %v2962 = vunpack.c.h.b16 %v951
        %v2963 = vunpack.c.l.b16 %v952
        %v2964 = vunpack.c.h.b16 %v952
        %v2965 = vunpack.c.l.b16 %v953
        %v2966 = vunpack.c.h.b16 %v953
        %v2967 = vunpack.c.l.b16 %v954
        %v2968 = vunpack.c.h.b16 %v954
        %v2969 = vunpack.c.l.b16 %v955
        %v2970 = vunpack.c.h.b16 %v955
        %v2971 = vunpack.c.l.b16 %v956
        %v2972 = vunpack.c.h.b16 %v956
        %v2973 = vunpack.c.l.b16 %v957
        %v2974 = vunpack.c.h.b16 %v957
        %v2975 = vunpack.c.l.b16 %v958
        %v2976 = vunpack.c.h.b16 %v958
        %v2977 = vunpack.c.l.b16 %v959
        %v2978 = vunpack.c.h.b16 %v959
        %v2979 = vunpack.c.l.b16 %v960
        %v2980 = vunpack.c.h.b16 %v960
        %v2981 = vunpack.c.l.b16 %v961
        %v2982 = vunpack.c.h.b16 %v961
        %v2983 = vunpack.c.l.b16 %v962
        %v2984 = vunpack.c.h.b16 %v962
        %v2985 = vunpack.c.l.b16 %v963
        %v2986 = vunpack.c.h.b16 %v963
        %v2987 = vunpack.c.l.b16 %v964
        %v2988 = vunpack.c.h.b16 %v964
        %v2989 = vunpack.c.l.b16 %v965
        %v2990 = vunpack.c.h.b16 %v965
        %v2991 = vunpack.c.l.b16 %v966
        %v2992 = vunpack.c.h.b16 %v966
        %v2993 = vunpack.c.l.b16 %v967
        %v2994 = vunpack.c.h.b16 %v967
        %v2995 = vunpack.c.l.b16 %v968
        %v2996 = vunpack.c.h.b16 %v968
        %v2997 = vunpack.c.l.b16 %v969
        %v2998 = vunpack.c.h.b16 %v969
        %v2999 = vunpack.c.l.b16 %v970
        %v3000 = vunpack.c.h.b16 %v970
        %v3001 = vpack.c.b16 %v1725, %v1721
        %v3002 = vpack.c.b16 %v1726, %v1722
        %v3003 = vpack.c.b16 %v1727, %v1723
        %v3004 = vpack.c.b16 %v1728, %v1724
        %v3005 = vpack.c.b16 %v1733, %v1729
        %v3006 = vpack.c.b16 %v1734, %v1730
        %v3007 = vpack.c.b16 %v1735, %v1731
        %v3008 = vpack.c.b16 %v1736, %v1732
        %v3009 = vpack.c.b16 %v1741, %v1737
        %v3010 = vpack.c.b16 %v1742, %v1738
        %v3011 = vpack.c.b16 %v1743, %v1739
        %v3012 = vpack.c.b16 %v1744, %v1740
        %v3013 = vpack.c.b16 %v1749, %v1745
        %v3014 = vpack.c.b16 %v1750, %v1746
        %v3015 = vpack.c.b16 %v1751, %v1747
        %v3016 = vpack.c.b16 %v1752, %v1748
        %v3017 = vpack.c.b16 %v1757, %v1753
        %v3018 = vpack.c.b16 %v1758, %v1754
        %v3019 = vpack.c.b16 %v1759, %v1755
        %v3020 = vpack.c.b16 %v1760, %v1756
        %v3021 = vpack.c.b16 %v1765, %v1761
        %v3022 = vpack.c.b16 %v1766, %v1762
        %v3023 = vpack.c.b16 %v1767, %v1763
        %v3024 = vpack.c.b16 %v1768, %v1764
        %v3025 = vpack.c.b16 %v1773, %v1769
        %v3026 = vpack.c.b16 %v1774, %v1770
        %v3027 = vpack.c.b16 %v1775, %v1771
        %v3028 = vpack.c.b16 %v1776, %v1772
        %v3029 = vpack.c.b16 %v1781, %v1777
        %v3030 = vpack.c.b16 %v1782, %v1778
        %v3031 = vpack.c.b16 %v1783, %v1779
        %v3032 = vpack.c.b16 %v1784, %v1780
        %v3033 = vpack.c.b16 %v1789, %v1785
        %v3034 = vpack.c.b16 %v1790, %v1786
        %v3035 = vpack.c.b16 %v1791, %v1787
        %v3036 = vpack.c.b16 %v1792, %v1788
        %v3037 = vpack.c.b16 %v1797, %v1793
        %v3038 = vpack.c.b16 %v1798, %v1794
        %v3039 = vpack.c.b16 %v1799, %v1795
        %v3040 = vpack.c.b16 %v1800, %v1796
        %v3041 = vpack.c.b16 %v1805, %v1801
        %v3042 = vpack.c.b16 %v1806, %v1802
        %v3043 = vpack.c.b16 %v1807, %v1803
        %v3044 = vpack.c.b16 %v1808, %v1804
        %v3045 = vpack.c.b16 %v1813, %v1809
        %v3046 = vpack.c.b16 %v1814, %v1810
        %v3047 = vpack.c.b16 %v1815, %v1811
        %v3048 = vpack.c.b16 %v1816, %v1812
        %v3049 = vpack.c.b16 %v1821, %v1817
        %v3050 = vpack.c.b16 %v1822, %v1818
        %v3051 = vpack.c.b16 %v1823, %v1819
        %v3052 = vpack.c.b16 %v1824, %v1820
        %v3053 = vpack.c.b16 %v1829, %v1825
        %v3054 = vpack.c.b16 %v1830, %v1826
        %v3055 = vpack.c.b16 %v1831, %v1827
        %v3056 = vpack.c.b16 %v1832, %v1828
        %v3057 = vpack.c.b16 %v1837, %v1833
        %v3058 = vpack.c.b16 %v1838, %v1834
        %v3059 = vpack.c.b16 %v1839, %v1835
        %v3060 = vpack.c.b16 %v1840, %v1836
        %v3061 = vpack.c.b16 %v1845, %v1841
        %v3062 = vpack.c.b16 %v1846, %v1842
        %v3063 = vpack.c.b16 %v1847, %v1843
        %v3064 = vpack.c.b16 %v1848, %v1844
        %v3065 = vpack.c.b16 %v1853, %v1849
        %v3066 = vpack.c.b16 %v1854, %v1850
        %v3067 = vpack.c.b16 %v1855, %v1851
        %v3068 = vpack.c.b16 %v1856, %v1852
        %v3069 = vpack.c.b16 %v1861, %v1857
        %v3070 = vpack.c.b16 %v1862, %v1858
        %v3071 = vpack.c.b16 %v1863, %v1859
        %v3072 = vpack.c.b16 %v1864, %v1860
        %v3073 = vpack.c.b16 %v1869, %v1865
        %v3074 = vpack.c.b16 %v1870, %v1866
        %v3075 = vpack.c.b16 %v1871, %v1867
        %v3076 = vpack.c.b16 %v1872, %v1868
        %v3077 = vpack.c.b16 %v1877, %v1873
        %v3078 = vpack.c.b16 %v1878, %v1874
        %v3079 = vpack.c.b16 %v1879, %v1875
        %v3080 = vpack.c.b16 %v1880, %v1876
        %v3081 = vpack.c.b16 %v1885, %v1881
        %v3082 = vpack.c.b16 %v1886, %v1882
        %v3083 = vpack.c.b16 %v1887, %v1883
        %v3084 = vpack.c.b16 %v1888, %v1884
        %v3085 = vpack.c.b16 %v1893, %v1889
        %v3086 = vpack.c.b16 %v1894, %v1890
        %v3087 = vpack.c.b16 %v1895, %v1891
        %v3088 = vpack.c.b16 %v1896, %v1892
        %v3089 = vpack.c.b16 %v1901, %v1897
        %v3090 = vpack.c.b16 %v1902, %v1898
        %v3091 = vpack.c.b16 %v1903, %v1899
        %v3092 = vpack.c.b16 %v1904, %v1900
        %v3093 = vpack.c.b16 %v1909, %v1905
        %v3094 = vpack.c.b16 %v1910, %v1906
        %v3095 = vpack.c.b16 %v1911, %v1907
        %v3096 = vpack.c.b16 %v1912, %v1908
        %v3097 = vpack.c.b16 %v1917, %v1913
        %v3098 = vpack.c.b16 %v1918, %v1914
        %v3099 = vpack.c.b16 %v1919, %v1915
        %v3100 = vpack.c.b16 %v1920, %v1916
        %v3101 = vpack.c.b16 %v1925, %v1921
        %v3102 = vpack.c.b16 %v1926, %v1922
        %v3103 = vpack.c.b16 %v1927, %v1923
        %v3104 = vpack.c.b16 %v1928, %v1924
        %v3105 = vpack.c.b16 %v1933, %v1929
        %v3106 = vpack.c.b16 %v1934, %v1930
        %v3107 = vpack.c.b16 %v1935, %v1931
        %v3108 = vpack.c.b16 %v1936, %v1932
        %v3109 = vpack.c.b16 %v1941, %v1937
        %v3110 = vpack.c.b16 %v1942, %v1938
        %v3111 = vpack.c.b16 %v1943, %v1939
        %v3112 = vpack.c.b16 %v1944, %v1940
        %v3113 = vpack.c.b16 %v1949, %v1945
        %v3114 = vpack.c.b16 %v1950, %v1946
        %v3115 = vpack.c.b16 %v1951, %v1947
        %v3116 = vpack.c.b16 %v1952, %v1948
        %v3117 = vpack.c.b16 %v1957, %v1953
        %v3118 = vpack.c.b16 %v1958, %v1954
        %v3119 = vpack.c.b16 %v1959, %v1955
        %v3120 = vpack.c.b16 %v1960, %v1956
        %v3121 = vpack.c.b16 %v1965, %v1961
        %v3122 = vpack.c.b16 %v1966, %v1962
        %v3123 = vpack.c.b16 %v1967, %v1963
        %v3124 = vpack.c.b16 %v1968, %v1964
        %v3125 = vpack.c.b16 %v1973, %v1969
        %v3126 = vpack.c.b16 %v1974, %v1970
        %v3127 = vpack.c.b16 %v1975, %v1971
        %v3128 = vpack.c.b16 %v1976, %v1972
        %v3129 = vpack.c.b16 %v1981, %v1977
        %v3130 = vpack.c.b16 %v1982, %v1978
        %v3131 = vpack.c.b16 %v1983, %v1979
        %v3132 = vpack.c.b16 %v1984, %v1980
        %v3133 = vpack.c.b16 %v1989, %v1985
        %v3134 = vpack.c.b16 %v1990, %v1986
        %v3135 = vpack.c.b16 %v1991, %v1987
        %v3136 = vpack.c.b16 %v1992, %v1988
        %v3137 = vpack.c.b16 %v1997, %v1993
        %v3138 = vpack.c.b16 %v1998, %v1994
        %v3139 = vpack.c.b16 %v1999, %v1995
        %v3140 = vpack.c.b16 %v2000, %v1996
        %v3141 = vpack.c.b16 %v2005, %v2001
        %v3142 = vpack.c.b16 %v2006, %v2002
        %v3143 = vpack.c.b16 %v2007, %v2003
        %v3144 = vpack.c.b16 %v2008, %v2004
        %v3145 = vpack.c.b16 %v2013, %v2009
        %v3146 = vpack.c.b16 %v2014, %v2010
        %v3147 = vpack.c.b16 %v2015, %v2011
        %v3148 = vpack.c.b16 %v2016, %v2012
        %v3149 = vpack.c.b16 %v2021, %v2017
        %v3150 = vpack.c.b16 %v2022, %v2018
        %v3151 = vpack.c.b16 %v2023, %v2019
        %v3152 = vpack.c.b16 %v2024, %v2020
        %v3153 = vpack.c.b16 %v2029, %v2025
        %v3154 = vpack.c.b16 %v2030, %v2026
        %v3155 = vpack.c.b16 %v2031, %v2027
        %v3156 = vpack.c.b16 %v2032, %v2028
        %v3157 = vpack.c.b16 %v2037, %v2033
        %v3158 = vpack.c.b16 %v2038, %v2034
        %v3159 = vpack.c.b16 %v2039, %v2035
        %v3160 = vpack.c.b16 %v2040, %v2036
        %v3161 = vpack.c.b16 %v2045, %v2041
        %v3162 = vpack.c.b16 %v2046, %v2042
        %v3163 = vpack.c.b16 %v2047, %v2043
        %v3164 = vpack.c.b16 %v2048, %v2044
        %v3165 = vpack.c.b16 %v2053, %v2049
        %v3166 = vpack.c.b16 %v2054, %v2050
        %v3167 = vpack.c.b16 %v2055, %v2051
        %v3168 = vpack.c.b16 %v2056, %v2052
        %v3169 = vpack.c.b16 %v2061, %v2057
        %v3170 = vpack.c.b16 %v2062, %v2058
        %v3171 = vpack.c.b16 %v2063, %v2059
        %v3172 = vpack.c.b16 %v2064, %v2060
        %v3173 = vpack.c.b16 %v2069, %v2065
        %v3174 = vpack.c.b16 %v2070, %v2066
        %v3175 = vpack.c.b16 %v2071, %v2067
        %v3176 = vpack.c.b16 %v2072, %v2068
        %v3177 = vpack.c.b16 %v2077, %v2073
        %v3178 = vpack.c.b16 %v2078, %v2074
        %v3179 = vpack.c.b16 %v2079, %v2075
        %v3180 = vpack.c.b16 %v2080, %v2076
        %v3181 = vpack.c.b16 %v2085, %v2081
        %v3182 = vpack.c.b16 %v2086, %v2082
        %v3183 = vpack.c.b16 %v2087, %v2083
        %v3184 = vpack.c.b16 %v2088, %v2084
        %v3185 = vpack.c.b16 %v2093, %v2089
        %v3186 = vpack.c.b16 %v2094, %v2090
        %v3187 = vpack.c.b16 %v2095, %v2091
        %v3188 = vpack.c.b16 %v2096, %v2092
        %v3189 = vpack.c.b16 %v2101, %v2097
        %v3190 = vpack.c.b16 %v2102, %v2098
        %v3191 = vpack.c.b16 %v2103, %v2099
        %v3192 = vpack.c.b16 %v2104, %v2100
        %v3193 = vpack.c.b16 %v2109, %v2105
        %v3194 = vpack.c.b16 %v2110, %v2106
        %v3195 = vpack.c.b16 %v2111, %v2107
        %v3196 = vpack.c.b16 %v2112, %v2108
        %v3197 = vpack.c.b16 %v2117, %v2113
        %v3198 = vpack.c.b16 %v2118, %v2114
        %v3199 = vpack.c.b16 %v2119, %v2115
        %v3200 = vpack.c.b16 %v2120, %v2116
        %v3201 = vpack.c.b16 %v2125, %v2121
        %v3202 = vpack.c.b16 %v2126, %v2122
        %v3203 = vpack.c.b16 %v2127, %v2123
        %v3204 = vpack.c.b16 %v2128, %v2124
        %v3205 = vpack.c.b16 %v2133, %v2129
        %v3206 = vpack.c.b16 %v2134, %v2130
        %v3207 = vpack.c.b16 %v2135, %v2131
        %v3208 = vpack.c.b16 %v2136, %v2132
        %v3209 = vpack.c.b16 %v2141, %v2137
        %v3210 = vpack.c.b16 %v2142, %v2138
        %v3211 = vpack.c.b16 %v2143, %v2139
        %v3212 = vpack.c.b16 %v2144, %v2140
        %v3213 = vpack.c.b16 %v2149, %v2145
        %v3214 = vpack.c.b16 %v2150, %v2146
        %v3215 = vpack.c.b16 %v2151, %v2147
        %v3216 = vpack.c.b16 %v2152, %v2148
        %v3217 = vpack.c.b16 %v2157, %v2153
        %v3218 = vpack.c.b16 %v2158, %v2154
        %v3219 = vpack.c.b16 %v2159, %v2155
        %v3220 = vpack.c.b16 %v2160, %v2156
        %v3221 = vpack.c.b16 %v2165, %v2161
        %v3222 = vpack.c.b16 %v2166, %v2162
        %v3223 = vpack.c.b16 %v2167, %v2163
        %v3224 = vpack.c.b16 %v2168, %v2164
        %v3225 = vpack.c.b16 %v2173, %v2169
        %v3226 = vpack.c.b16 %v2174, %v2170
        %v3227 = vpack.c.b16 %v2175, %v2171
        %v3228 = vpack.c.b16 %v2176, %v2172
        %v3229 = vpack.c.b16 %v2181, %v2177
        %v3230 = vpack.c.b16 %v2182, %v2178
        %v3231 = vpack.c.b16 %v2183, %v2179
        %v3232 = vpack.c.b16 %v2184, %v2180
        %v3233 = vpack.c.b16 %v2189, %v2185
        %v3234 = vpack.c.b16 %v2190, %v2186
        %v3235 = vpack.c.b16 %v2191, %v2187
        %v3236 = vpack.c.b16 %v2192, %v2188
        %v3237 = vpack.c.b16 %v2197, %v2193
        %v3238 = vpack.c.b16 %v2198, %v2194
        %v3239 = vpack.c.b16 %v2199, %v2195
        %v3240 = vpack.c.b16 %v2200, %v2196
        %v3241 = vpack.c.b16 %v2205, %v2201
        %v3242 = vpack.c.b16 %v2206, %v2202
        %v3243 = vpack.c.b16 %v2207, %v2203
        %v3244 = vpack.c.b16 %v2208, %v2204
        %v3245 = vpack.c.b16 %v2213, %v2209
        %v3246 = vpack.c.b16 %v2214, %v2210
        %v3247 = vpack.c.b16 %v2215, %v2211
        %v3248 = vpack.c.b16 %v2216, %v2212
        %v3249 = vpack.c.b16 %v2221, %v2217
        %v3250 = vpack.c.b16 %v2222, %v2218
        %v3251 = vpack.c.b16 %v2223, %v2219
        %v3252 = vpack.c.b16 %v2224, %v2220
        %v3253 = vpack.c.b16 %v2229, %v2225
        %v3254 = vpack.c.b16 %v2230, %v2226
        %v3255 = vpack.c.b16 %v2231, %v2227
        %v3256 = vpack.c.b16 %v2232, %v2228
        %v3257 = vpack.c.b16 %v2237, %v2233
        %v3258 = vpack.c.b16 %v2238, %v2234
        %v3259 = vpack.c.b16 %v2239, %v2235
        %v3260 = vpack.c.b16 %v2240, %v2236
        %v3261 = vpack.c.b16 %v2245, %v2241
        %v3262 = vpack.c.b16 %v2246, %v2242
        %v3263 = vpack.c.b16 %v2247, %v2243
        %v3264 = vpack.c.b16 %v2248, %v2244
        %v3265 = vpack.c.b16 %v2253, %v2249
        %v3266 = vpack.c.b16 %v2254, %v2250
        %v3267 = vpack.c.b16 %v2255, %v2251
        %v3268 = vpack.c.b16 %v2256, %v2252
        %v3269 = vpack.c.b16 %v2261, %v2257
        %v3270 = vpack.c.b16 %v2262, %v2258
        %v3271 = vpack.c.b16 %v2263, %v2259
        %v3272 = vpack.c.b16 %v2264, %v2260
        %v3273 = vpack.c.b16 %v2269, %v2265
        %v3274 = vpack.c.b16 %v2270, %v2266
        %v3275 = vpack.c.b16 %v2271, %v2267
        %v3276 = vpack.c.b16 %v2272, %v2268
        %v3277 = vpack.c.b16 %v2277, %v2273
        %v3278 = vpack.c.b16 %v2278, %v2274
        %v3279 = vpack.c.b16 %v2279, %v2275
        %v3280 = vpack.c.b16 %v2280, %v2276
        %v3281 = vpack.c.b16 %v2285, %v2281
        %v3282 = vpack.c.b16 %v2286, %v2282
        %v3283 = vpack.c.b16 %v2287, %v2283
        %v3284 = vpack.c.b16 %v2288, %v2284
        %v3285 = vpack.c.b16 %v2293, %v2289
        %v3286 = vpack.c.b16 %v2294, %v2290
        %v3287 = vpack.c.b16 %v2295, %v2291
        %v3288 = vpack.c.b16 %v2296, %v2292
        %v3289 = vpack.c.b16 %v2301, %v2297
        %v3290 = vpack.c.b16 %v2302, %v2298
        %v3291 = vpack.c.b16 %v2303, %v2299
        %v3292 = vpack.c.b16 %v2304, %v2300
        %v3293 = vpack.c.b16 %v2309, %v2305
        %v3294 = vpack.c.b16 %v2310, %v2306
        %v3295 = vpack.c.b16 %v2311, %v2307
        %v3296 = vpack.c.b16 %v2312, %v2308
        %v3297 = vpack.c.b16 %v2317, %v2313
        %v3298 = vpack.c.b16 %v2318, %v2314
        %v3299 = vpack.c.b16 %v2319, %v2315
        %v3300 = vpack.c.b16 %v2320, %v2316
        %v3301 = vpack.c.b16 %v2325, %v2321
        %v3302 = vpack.c.b16 %v2326, %v2322
        %v3303 = vpack.c.b16 %v2327, %v2323
        %v3304 = vpack.c.b16 %v2328, %v2324
        %v3305 = vpack.c.b16 %v2333, %v2329
        %v3306 = vpack.c.b16 %v2334, %v2330
        %v3307 = vpack.c.b16 %v2335, %v2331
        %v3308 = vpack.c.b16 %v2336, %v2332
        %v3309 = vpack.c.b16 %v2341, %v2337
        %v3310 = vpack.c.b16 %v2342, %v2338
        %v3311 = vpack.c.b16 %v2343, %v2339
        %v3312 = vpack.c.b16 %v2344, %v2340
        %v3313 = vpack.c.b16 %v2349, %v2345
        %v3314 = vpack.c.b16 %v2350, %v2346
        %v3315 = vpack.c.b16 %v2351, %v2347
        %v3316 = vpack.c.b16 %v2352, %v2348
        %v3317 = vpack.c.b16 %v2357, %v2353
        %v3318 = vpack.c.b16 %v2358, %v2354
        %v3319 = vpack.c.b16 %v2359, %v2355
        %v3320 = vpack.c.b16 %v2360, %v2356
        %v3321 = vpack.c.b16 %v2365, %v2361
        %v3322 = vpack.c.b16 %v2366, %v2362
        %v3323 = vpack.c.b16 %v2367, %v2363
        %v3324 = vpack.c.b16 %v2368, %v2364
        %v3325 = vpack.c.b16 %v2373, %v2369
        %v3326 = vpack.c.b16 %v2374, %v2370
        %v3327 = vpack.c.b16 %v2375, %v2371
        %v3328 = vpack.c.b16 %v2376, %v2372
        %v3329 = vpack.c.b16 %v2381, %v2377
        %v3330 = vpack.c.b16 %v2382, %v2378
        %v3331 = vpack.c.b16 %v2383, %v2379
        %v3332 = vpack.c.b16 %v2384, %v2380
        %v3333 = vpack.c.b16 %v2389, %v2385
        %v3334 = vpack.c.b16 %v2390, %v2386
        %v3335 = vpack.c.b16 %v2391, %v2387
        %v3336 = vpack.c.b16 %v2392, %v2388
        %v3337 = vpack.c.b16 %v2397, %v2393
        %v3338 = vpack.c.b16 %v2398, %v2394
        %v3339 = vpack.c.b16 %v2399, %v2395
        %v3340 = vpack.c.b16 %v2400, %v2396
        %v3341 = vpack.c.b16 %v2405, %v2401
        %v3342 = vpack.c.b16 %v2406, %v2402
        %v3343 = vpack.c.b16 %v2407, %v2403
        %v3344 = vpack.c.b16 %v2408, %v2404
        %v3345 = vpack.c.b16 %v2413, %v2409
        %v3346 = vpack.c.b16 %v2414, %v2410
        %v3347 = vpack.c.b16 %v2415, %v2411
        %v3348 = vpack.c.b16 %v2416, %v2412
        %v3349 = vpack.c.b16 %v2421, %v2417
        %v3350 = vpack.c.b16 %v2422, %v2418
        %v3351 = vpack.c.b16 %v2423, %v2419
        %v3352 = vpack.c.b16 %v2424, %v2420
        %v3353 = vpack.c.b16 %v2429, %v2425
        %v3354 = vpack.c.b16 %v2430, %v2426
        %v3355 = vpack.c.b16 %v2431, %v2427
        %v3356 = vpack.c.b16 %v2432, %v2428
        %v3357 = vpack.c.b16 %v2437, %v2433
        %v3358 = vpack.c.b16 %v2438, %v2434
        %v3359 = vpack.c.b16 %v2439, %v2435
        %v3360 = vpack.c.b16 %v2440, %v2436
        %v3361 = vpack.c.b16 %v2445, %v2441
        %v3362 = vpack.c.b16 %v2446, %v2442
        %v3363 = vpack.c.b16 %v2447, %v2443
        %v3364 = vpack.c.b16 %v2448, %v2444
        %v3365 = vpack.c.b16 %v2453, %v2449
        %v3366 = vpack.c.b16 %v2454, %v2450
        %v3367 = vpack.c.b16 %v2455, %v2451
        %v3368 = vpack.c.b16 %v2456, %v2452
        %v3369 = vpack.c.b16 %v2461, %v2457
        %v3370 = vpack.c.b16 %v2462, %v2458
        %v3371 = vpack.c.b16 %v2463, %v2459
        %v3372 = vpack.c.b16 %v2464, %v2460
        %v3373 = vpack.c.b16 %v2469, %v2465
        %v3374 = vpack.c.b16 %v2470, %v2466
        %v3375 = vpack.c.b16 %v2471, %v2467
        %v3376 = vpack.c.b16 %v2472, %v2468
        %v3377 = vpack.c.b16 %v2477, %v2473
        %v3378 = vpack.c.b16 %v2478, %v2474
        %v3379 = vpack.c.b16 %v2479, %v2475
        %v3380 = vpack.c.b16 %v2480, %v2476
        %v3381 = vpack.c.b16 %v2485, %v2481
        %v3382 = vpack.c.b16 %v2486, %v2482
        %v3383 = vpack.c.b16 %v2487, %v2483
        %v3384 = vpack.c.b16 %v2488, %v2484
        %v3385 = vpack.c.b16 %v2493, %v2489
        %v3386 = vpack.c.b16 %v2494, %v2490
        %v3387 = vpack.c.b16 %v2495, %v2491
        %v3388 = vpack.c.b16 %v2496, %v2492
        %v3389 = vpack.c.b16 %v2501, %v2497
        %v3390 = vpack.c.b16 %v2502, %v2498
        %v3391 = vpack.c.b16 %v2503, %v2499
        %v3392 = vpack.c.b16 %v2504, %v2500
        %v3393 = vpack.c.b16 %v2509, %v2505
        %v3394 = vpack.c.b16 %v2510, %v2506
        %v3395 = vpack.c.b16 %v2511, %v2507
        %v3396 = vpack.c.b16 %v2512, %v2508
        %v3397 = vpack.c.b16 %v2517, %v2513
        %v3398 = vpack.c.b16 %v2518, %v2514
        %v3399 = vpack.c.b16 %v2519, %v2515
        %v3400 = vpack.c.b16 %v2520, %v2516
        %v3401 = vpack.c.b16 %v2525, %v2521
        %v3402 = vpack.c.b16 %v2526, %v2522
        %v3403 = vpack.c.b16 %v2527, %v2523
        %v3404 = vpack.c.b16 %v2528, %v2524
        %v3405 = vpack.c.b16 %v2533, %v2529
        %v3406 = vpack.c.b16 %v2534, %v2530
        %v3407 = vpack.c.b16 %v2535, %v2531
        %v3408 = vpack.c.b16 %v2536, %v2532
        %v3409 = vpack.c.b16 %v2541, %v2537
        %v3410 = vpack.c.b16 %v2542, %v2538
        %v3411 = vpack.c.b16 %v2543, %v2539
        %v3412 = vpack.c.b16 %v2544, %v2540
        %v3413 = vpack.c.b16 %v2549, %v2545
        %v3414 = vpack.c.b16 %v2550, %v2546
        %v3415 = vpack.c.b16 %v2551, %v2547
        %v3416 = vpack.c.b16 %v2552, %v2548
        %v3417 = vpack.c.b16 %v2557, %v2553
        %v3418 = vpack.c.b16 %v2558, %v2554
        %v3419 = vpack.c.b16 %v2559, %v2555
        %v3420 = vpack.c.b16 %v2560, %v2556
        %v3421 = vpack.c.b16 %v2565, %v2561
        %v3422 = vpack.c.b16 %v2566, %v2562
        %v3423 = vpack.c.b16 %v2567, %v2563
        %v3424 = vpack.c.b16 %v2568, %v2564
        %v3425 = vpack.c.b16 %v2573, %v2569
        %v3426 = vpack.c.b16 %v2574, %v2570
        %v3427 = vpack.c.b16 %v2575, %v2571
        %v3428 = vpack.c.b16 %v2576, %v2572
        %v3429 = vpack.c.b16 %v2581, %v2577
        %v3430 = vpack.c.b16 %v2582, %v2578
        %v3431 = vpack.c.b16 %v2583, %v2579
        %v3432 = vpack.c.b16 %v2584, %v2580
        %v3433 = vpack.c.b16 %v2589, %v2585
        %v3434 = vpack.c.b16 %v2590, %v2586
        %v3435 = vpack.c.b16 %v2591, %v2587
        %v3436 = vpack.c.b16 %v2592, %v2588
        %v3437 = vpack.c.b16 %v2597, %v2593
        %v3438 = vpack.c.b16 %v2598, %v2594
        %v3439 = vpack.c.b16 %v2599, %v2595
        %v3440 = vpack.c.b16 %v2600, %v2596
        %v3441 = vpack.c.b16 %v2605, %v2601
        %v3442 = vpack.c.b16 %v2606, %v2602
        %v3443 = vpack.c.b16 %v2607, %v2603
        %v3444 = vpack.c.b16 %v2608, %v2604
        %v3445 = vpack.c.b16 %v2613, %v2609
        %v3446 = vpack.c.b16 %v2614, %v2610
        %v3447 = vpack.c.b16 %v2615, %v2611
        %v3448 = vpack.c.b16 %v2616, %v2612
        %v3449 = vpack.c.b16 %v2621, %v2617
        %v3450 = vpack.c.b16 %v2622, %v2618
        %v3451 = vpack.c.b16 %v2623, %v2619
        %v3452 = vpack.c.b16 %v2624, %v2620
        %v3453 = vpack.c.b16 %v2629, %v2625
        %v3454 = vpack.c.b16 %v2630, %v2626
        %v3455 = vpack.c.b16 %v2631, %v2627
        %v3456 = vpack.c.b16 %v2632, %v2628
        %v3457 = vpack.c.b16 %v2637, %v2633
        %v3458 = vpack.c.b16 %v2638, %v2634
        %v3459 = vpack.c.b16 %v2639, %v2635
        %v3460 = vpack.c.b16 %v2640, %v2636
        %v3461 = vpack.c.b16 %v2645, %v2641
        %v3462 = vpack.c.b16 %v2646, %v2642
        %v3463 = vpack.c.b16 %v2647, %v2643
        %v3464 = vpack.c.b16 %v2648, %v2644
        %v3465 = vpack.c.b16 %v2653, %v2649
        %v3466 = vpack.c.b16 %v2654, %v2650
        %v3467 = vpack.c.b16 %v2655, %v2651
        %v3468 = vpack.c.b16 %v2656, %v2652
        %v3469 = vpack.c.b16 %v2661, %v2657
        %v3470 = vpack.c.b16 %v2662, %v2658
        %v3471 = vpack.c.b16 %v2663, %v2659
        %v3472 = vpack.c.b16 %v2664, %v2660
        %v3473 = vpack.c.b16 %v2669, %v2665
        %v3474 = vpack.c.b16 %v2670, %v2666
        %v3475 = vpack.c.b16 %v2671, %v2667
        %v3476 = vpack.c.b16 %v2672, %v2668
        %v3477 = vpack.c.b16 %v2677, %v2673
        %v3478 = vpack.c.b16 %v2678, %v2674
        %v3479 = vpack.c.b16 %v2679, %v2675
        %v3480 = vpack.c.b16 %v2680, %v2676
        %v3481 = vpack.c.b16 %v2685, %v2681
        %v3482 = vpack.c.b16 %v2686, %v2682
        %v3483 = vpack.c.b16 %v2687, %v2683
        %v3484 = vpack.c.b16 %v2688, %v2684
        %v3485 = vpack.c.b16 %v2693, %v2689
        %v3486 = vpack.c.b16 %v2694, %v2690
        %v3487 = vpack.c.b16 %v2695, %v2691
        %v3488 = vpack.c.b16 %v2696, %v2692
        %v3489 = vpack.c.b16 %v2701, %v2697
        %v3490 = vpack.c.b16 %v2702, %v2698
        %v3491 = vpack.c.b16 %v2703, %v2699
        %v3492 = vpack.c.b16 %v2704, %v2700
        %v3493 = vpack.c.b16 %v2709, %v2705
        %v3494 = vpack.c.b16 %v2710, %v2706
        %v3495 = vpack.c.b16 %v2711, %v2707
        %v3496 = vpack.c.b16 %v2712, %v2708
        %v3497 = vpack.c.b16 %v2717, %v2713
        %v3498 = vpack.c.b16 %v2718, %v2714
        %v3499 = vpack.c.b16 %v2719, %v2715
        %v3500 = vpack.c.b16 %v2720, %v2716
        %v3501 = vpack.c.b16 %v2725, %v2721
        %v3502 = vpack.c.b16 %v2726, %v2722
        %v3503 = vpack.c.b16 %v2727, %v2723
        %v3504 = vpack.c.b16 %v2728, %v2724
        %v3505 = vpack.c.b16 %v2733, %v2729
        %v3506 = vpack.c.b16 %v2734, %v2730
        %v3507 = vpack.c.b16 %v2735, %v2731
        %v3508 = vpack.c.b16 %v2736, %v2732
        %v3509 = vpack.c.b16 %v2741, %v2737
        %v3510 = vpack.c.b16 %v2742, %v2738
        %v3511 = vpack.c.b16 %v2743, %v2739
        %v3512 = vpack.c.b16 %v2744, %v2740
        %v3513 = vpack.c.b16 %v2749, %v2745
        %v3514 = vpack.c.b16 %v2750, %v2746
        %v3515 = vpack.c.b16 %v2751, %v2747
        %v3516 = vpack.c.b16 %v2752, %v2748
        %v3517 = vpack.c.b16 %v2757, %v2753
        %v3518 = vpack.c.b16 %v2758, %v2754
        %v3519 = vpack.c.b16 %v2759, %v2755
        %v3520 = vpack.c.b16 %v2760, %v2756
        %v3521 = vpack.c.b16 %v2765, %v2761
        %v3522 = vpack.c.b16 %v2766, %v2762
        %v3523 = vpack.c.b16 %v2767, %v2763
        %v3524 = vpack.c.b16 %v2768, %v2764
        %v3525 = vpack.c.b16 %v2773, %v2769
        %v3526 = vpack.c.b16 %v2774, %v2770
        %v3527 = vpack.c.b16 %v2775, %v2771
        %v3528 = vpack.c.b16 %v2776, %v2772
        %v3529 = vpack.c.b16 %v2781, %v2777
        %v3530 = vpack.c.b16 %v2782, %v2778
        %v3531 = vpack.c.b16 %v2783, %v2779
        %v3532 = vpack.c.b16 %v2784, %v2780
        %v3533 = vpack.c.b16 %v2789, %v2785
        %v3534 = vpack.c.b16 %v2790, %v2786
        %v3535 = vpack.c.b16 %v2791, %v2787
        %v3536 = vpack.c.b16 %v2792, %v2788
        %v3537 = vpack.c.b16 %v2797, %v2793
        %v3538 = vpack.c.b16 %v2798, %v2794
        %v3539 = vpack.c.b16 %v2799, %v2795
        %v3540 = vpack.c.b16 %v2800, %v2796
        %v3541 = vpack.c.b16 %v2805, %v2801
        %v3542 = vpack.c.b16 %v2806, %v2802
        %v3543 = vpack.c.b16 %v2807, %v2803
        %v3544 = vpack.c.b16 %v2808, %v2804
        %v3545 = vpack.c.b16 %v2813, %v2809
        %v3546 = vpack.c.b16 %v2814, %v2810
        %v3547 = vpack.c.b16 %v2815, %v2811
        %v3548 = vpack.c.b16 %v2816, %v2812
        %v3549 = vpack.c.b16 %v2821, %v2817
        %v3550 = vpack.c.b16 %v2822, %v2818
        %v3551 = vpack.c.b16 %v2823, %v2819
        %v3552 = vpack.c.b16 %v2824, %v2820
        %v3553 = vpack.c.b16 %v2829, %v2825
        %v3554 = vpack.c.b16 %v2830, %v2826
        %v3555 = vpack.c.b16 %v2831, %v2827
        %v3556 = vpack.c.b16 %v2832, %v2828
        %v3557 = vpack.c.b16 %v2837, %v2833
        %v3558 = vpack.c.b16 %v2838, %v2834
        %v3559 = vpack.c.b16 %v2839, %v2835
        %v3560 = vpack.c.b16 %v2840, %v2836
        %v3561 = vpack.c.b16 %v2845, %v2841
        %v3562 = vpack.c.b16 %v2846, %v2842
        %v3563 = vpack.c.b16 %v2847, %v2843
        %v3564 = vpack.c.b16 %v2848, %v2844
        %v3565 = vpack.c.b16 %v2853, %v2849
        %v3566 = vpack.c.b16 %v2854, %v2850
        %v3567 = vpack.c.b16 %v2855, %v2851
        %v3568 = vpack.c.b16 %v2856, %v2852
        %v3569 = vpack.c.b16 %v2861, %v2857
        %v3570 = vpack.c.b16 %v2862, %v2858
        %v3571 = vpack.c.b16 %v2863, %v2859
        %v3572 = vpack.c.b16 %v2864, %v2860
        %v3573 = vpack.c.b16 %v2869, %v2865
        %v3574 = vpack.c.b16 %v2870, %v2866
        %v3575 = vpack.c.b16 %v2871, %v2867
        %v3576 = vpack.c.b16 %v2872, %v2868
        %v3577 = vpack.c.b16 %v2877, %v2873
        %v3578 = vpack.c.b16 %v2878, %v2874
        %v3579 = vpack.c.b16 %v2879, %v2875
        %v3580 = vpack.c.b16 %v2880, %v2876
        %v3581 = vpack.c.b16 %v2885, %v2881
        %v3582 = vpack.c.b16 %v2886, %v2882
        %v3583 = vpack.c.b16 %v2887, %v2883
        %v3584 = vpack.c.b16 %v2888, %v2884
        %v3585 = vpack.c.b16 %v2893, %v2889
        %v3586 = vpack.c.b16 %v2894, %v2890
        %v3587 = vpack.c.b16 %v2895, %v2891
        %v3588 = vpack.c.b16 %v2896, %v2892
        %v3589 = vpack.c.b16 %v2901, %v2897
        %v3590 = vpack.c.b16 %v2902, %v2898
        %v3591 = vpack.c.b16 %v2903, %v2899
        %v3592 = vpack.c.b16 %v2904, %v2900
        %v3593 = vpack.c.b16 %v2909, %v2905
        %v3594 = vpack.c.b16 %v2910, %v2906
        %v3595 = vpack.c.b16 %v2911, %v2907
        %v3596 = vpack.c.b16 %v2912, %v2908
        %v3597 = vpack.c.b16 %v2917, %v2913
        %v3598 = vpack.c.b16 %v2918, %v2914
        %v3599 = vpack.c.b16 %v2919, %v2915
        %v3600 = vpack.c.b16 %v2920, %v2916
        %v3601 = vpack.c.b16 %v2925, %v2921
        %v3602 = vpack.c.b16 %v2926, %v2922
        %v3603 = vpack.c.b16 %v2927, %v2923
        %v3604 = vpack.c.b16 %v2928, %v2924
        %v3605 = vpack.c.b16 %v2933, %v2929
        %v3606 = vpack.c.b16 %v2934, %v2930
        %v3607 = vpack.c.b16 %v2935, %v2931
        %v3608 = vpack.c.b16 %v2936, %v2932
        %v3609 = vpack.c.b16 %v2941, %v2937
        %v3610 = vpack.c.b16 %v2942, %v2938
        %v3611 = vpack.c.b16 %v2943, %v2939
        %v3612 = vpack.c.b16 %v2944, %v2940
        %v3613 = vpack.c.b16 %v2949, %v2945
        %v3614 = vpack.c.b16 %v2950, %v2946
        %v3615 = vpack.c.b16 %v2951, %v2947
        %v3616 = vpack.c.b16 %v2952, %v2948
        %v3617 = vpack.c.b16 %v2957, %v2953
        %v3618 = vpack.c.b16 %v2958, %v2954
        %v3619 = vpack.c.b16 %v2959, %v2955
        %v3620 = vpack.c.b16 %v2960, %v2956
        %v3621 = vpack.c.b16 %v2965, %v2961
        %v3622 = vpack.c.b16 %v2966, %v2962
        %v3623 = vpack.c.b16 %v2967, %v2963
        %v3624 = vpack.c.b16 %v2968, %v2964
        %v3625 = vpack.c.b16 %v2973, %v2969
        %v3626 = vpack.c.b16 %v2974, %v2970
        %v3627 = vpack.c.b16 %v2975, %v2971
        %v3628 = vpack.c.b16 %v2976, %v2972
        %v3629 = vpack.c.b16 %v2981, %v2977
        %v3630 = vpack.c.b16 %v2982, %v2978
        %v3631 = vpack.c.b16 %v2983, %v2979
        %v3632 = vpack.c.b16 %v2984, %v2980
        %v3633 = vpack.c.b16 %v2989, %v2985
        %v3634 = vpack.c.b16 %v2990, %v2986
        %v3635 = vpack.c.b16 %v2991, %v2987
        %v3636 = vpack.c.b16 %v2992, %v2988
        %v3637 = vpack.c.b16 %v2997, %v2993
        %v3638 = vpack.c.b16 %v2998, %v2994
        %v3639 = vpack.c.b16 %v2999, %v2995
        %v3640 = vpack.c.b16 %v3000, %v2996
        %4281 = vmatpush.bf16.msra.mxu0 %v3029
        %4282 = vmatpush.bf16.msra.mxu0 %v3025
        %4283 = vmatpush.bf16.msra.mxu0 %v3021
        %4284 = vmatpush.bf16.msra.mxu0 %v3017
        %4285 = vmatpush.bf16.msra.mxu0 %v3013
        %4286 = vmatpush.bf16.msra.mxu0 %v3009
        %4287 = vmatpush.bf16.msra.mxu0 %v3005
        %4288 = vmatpush.bf16.msra.mxu0 %v3001
        %4289 = vmatmul.bf16.gmra.mxu0 %v1041
        %v4290 = vpop.f32.mrf.mxu0
        %v4291 = vadd.f32 %v973, %v4290
        %v4292 = vpop.f32.mrf.mxu0
        %v4293 = vadd.f32 %v973, %v4292
        %4294 = vdwg.mxu0
        %4295 = vmatpush.bf16.msra.mxu0 %v3061
        %4296 = vmatpush.bf16.msra.mxu0 %v3057
        %4297 = vmatpush.bf16.msra.mxu0 %v3053
        %4298 = vmatpush.bf16.msra.mxu0 %v3049
        %4299 = vmatpush.bf16.msra.mxu0 %v3045
        %4300 = vmatpush.bf16.msra.mxu0 %v3041
        %4301 = vmatpush.bf16.msra.mxu0 %v3037
        %4302 = vmatpush.bf16.msra.mxu0 %v3033
        %4303 = vmatmul.bf16.gmra.mxu0 %v1042
        %v4304 = vpop.f32.mrf.mxu0
        %v4305 = vadd.f32 %v4291, %v4304
        %v4306 = vpop.f32.mrf.mxu0
        %v4307 = vadd.f32 %v4293, %v4306
        %4308 = vdwg.mxu0
        %4309 = vmatpush.bf16.msra.mxu0 %v3093
        %4310 = vmatpush.bf16.msra.mxu0 %v3089
        %4311 = vmatpush.bf16.msra.mxu0 %v3085
        %4312 = vmatpush.bf16.msra.mxu0 %v3081
        %4313 = vmatpush.bf16.msra.mxu0 %v3077
        %4314 = vmatpush.bf16.msra.mxu0 %v3073
        %4315 = vmatpush.bf16.msra.mxu0 %v3069
        %4316 = vmatpush.bf16.msra.mxu0 %v3065
        %4317 = vmatmul.bf16.gmra.mxu0 %v1043
        %v4318 = vpop.f32.mrf.mxu0
        %v4319 = vadd.f32 %v4305, %v4318
        %v4320 = vpop.f32.mrf.mxu0
        %v4321 = vadd.f32 %v4307, %v4320
        %4322 = vdwg.mxu0
        %4323 = vmatpush.bf16.msra.mxu0 %v3125
        %4324 = vmatpush.bf16.msra.mxu0 %v3121
        %4325 = vmatpush.bf16.msra.mxu0 %v3117
        %4326 = vmatpush.bf16.msra.mxu0 %v3113
        %4327 = vmatpush.bf16.msra.mxu0 %v3109
        %4328 = vmatpush.bf16.msra.mxu0 %v3105
        %4329 = vmatpush.bf16.msra.mxu0 %v3101
        %4330 = vmatpush.bf16.msra.mxu0 %v3097
        %4331 = vmatmul.bf16.gmra.mxu0 %v1044
        %v4332 = vpop.f32.mrf.mxu0
        %v4333 = vadd.f32 %v4319, %v4332
        %v4334 = vpop.f32.mrf.mxu0
        %v4335 = vadd.f32 %v4321, %v4334
        %4336 = vdwg.mxu0
        %4337 = vmatpush.bf16.msra.mxu0 %v3157
        %4338 = vmatpush.bf16.msra.mxu0 %v3153
        %4339 = vmatpush.bf16.msra.mxu0 %v3149
        %4340 = vmatpush.bf16.msra.mxu0 %v3145
        %4341 = vmatpush.bf16.msra.mxu0 %v3141
        %4342 = vmatpush.bf16.msra.mxu0 %v3137
        %4343 = vmatpush.bf16.msra.mxu0 %v3133
        %4344 = vmatpush.bf16.msra.mxu0 %v3129
        %4345 = vmatmul.bf16.gmra.mxu0 %v1045
        %v4346 = vpop.f32.mrf.mxu0
        %v4347 = vadd.f32 %v4333, %v4346
        %v4348 = vpop.f32.mrf.mxu0
        %v4349 = vadd.f32 %v4335, %v4348
        %4350 = vdwg.mxu0
        %4351 = vmatpush.bf16.msra.mxu0 %v3189
        %4352 = vmatpush.bf16.msra.mxu0 %v3185
        %4353 = vmatpush.bf16.msra.mxu0 %v3181
        %4354 = vmatpush.bf16.msra.mxu0 %v3177
        %4355 = vmatpush.bf16.msra.mxu0 %v3173
        %4356 = vmatpush.bf16.msra.mxu0 %v3169
        %4357 = vmatpush.bf16.msra.mxu0 %v3165
        %4358 = vmatpush.bf16.msra.mxu0 %v3161
        %4359 = vmatmul.bf16.gmra.mxu0 %v1046
        %v4360 = vpop.f32.mrf.mxu0
        %v4361 = vadd.f32 %v4347, %v4360
        %v4362 = vpop.f32.mrf.mxu0
        %v4363 = vadd.f32 %v4349, %v4362
        %4364 = vdwg.mxu0
        %4365 = vmatpush.bf16.msra.mxu0 %v3221
        %4366 = vmatpush.bf16.msra.mxu0 %v3217
        %4367 = vmatpush.bf16.msra.mxu0 %v3213
        %4368 = vmatpush.bf16.msra.mxu0 %v3209
        %4369 = vmatpush.bf16.msra.mxu0 %v3205
        %4370 = vmatpush.bf16.msra.mxu0 %v3201
        %4371 = vmatpush.bf16.msra.mxu0 %v3197
        %4372 = vmatpush.bf16.msra.mxu0 %v3193
        %4373 = vmatmul.bf16.gmra.mxu0 %v1047
        %v4374 = vpop.f32.mrf.mxu0
        %v4375 = vadd.f32 %v4361, %v4374
        %v4376 = vpop.f32.mrf.mxu0
        %v4377 = vadd.f32 %v4363, %v4376
        %4378 = vdwg.mxu0
        %4379 = vmatpush.bf16.msra.mxu0 %v3253
        %4380 = vmatpush.bf16.msra.mxu0 %v3249
        %4381 = vmatpush.bf16.msra.mxu0 %v3245
        %4382 = vmatpush.bf16.msra.mxu0 %v3241
        %4383 = vmatpush.bf16.msra.mxu0 %v3237
        %4384 = vmatpush.bf16.msra.mxu0 %v3233
        %4385 = vmatpush.bf16.msra.mxu0 %v3229
        %4386 = vmatpush.bf16.msra.mxu0 %v3225
        %4387 = vmatmul.bf16.gmra.mxu0 %v1048
        %v4388 = vpop.f32.mrf.mxu0
        %v4389 = vadd.f32 %v4375, %v4388
        %v4390 = vpop.f32.mrf.mxu0
        %v4391 = vadd.f32 %v4377, %v4390
        %4392 = vdwg.mxu0
        %4393 = vmatpush.bf16.msra.mxu0 %v3285
        %4394 = vmatpush.bf16.msra.mxu0 %v3281
        %4395 = vmatpush.bf16.msra.mxu0 %v3277
        %4396 = vmatpush.bf16.msra.mxu0 %v3273
        %4397 = vmatpush.bf16.msra.mxu0 %v3269
        %4398 = vmatpush.bf16.msra.mxu0 %v3265
        %4399 = vmatpush.bf16.msra.mxu0 %v3261
        %4400 = vmatpush.bf16.msra.mxu0 %v3257
        %4401 = vmatmul.bf16.gmra.mxu0 %v1049
        %v4402 = vpop.f32.mrf.mxu0
        %v4403 = vadd.f32 %v4389, %v4402
        %v4404 = vpop.f32.mrf.mxu0
        %v4405 = vadd.f32 %v4391, %v4404
        %4406 = vdwg.mxu0
        %4407 = vmatpush.bf16.msra.mxu0 %v3317
        %4408 = vmatpush.bf16.msra.mxu0 %v3313
        %4409 = vmatpush.bf16.msra.mxu0 %v3309
        %4410 = vmatpush.bf16.msra.mxu0 %v3305
        %4411 = vmatpush.bf16.msra.mxu0 %v3301
        %4412 = vmatpush.bf16.msra.mxu0 %v3297
        %4413 = vmatpush.bf16.msra.mxu0 %v3293
        %4414 = vmatpush.bf16.msra.mxu0 %v3289
        %4415 = vmatmul.bf16.gmra.mxu0 %v1050
        %v4416 = vpop.f32.mrf.mxu0
        %v4417 = vadd.f32 %v4403, %v4416
        %v4418 = vpop.f32.mrf.mxu0
        %v4419 = vadd.f32 %v4405, %v4418
        %4420 = vdwg.mxu0
        %4421 = vmatpush.bf16.msra.mxu0 %v3349
        %4422 = vmatpush.bf16.msra.mxu0 %v3345
        %4423 = vmatpush.bf16.msra.mxu0 %v3341
        %4424 = vmatpush.bf16.msra.mxu0 %v3337
        %4425 = vmatpush.bf16.msra.mxu0 %v3333
        %4426 = vmatpush.bf16.msra.mxu0 %v3329
        %4427 = vmatpush.bf16.msra.mxu0 %v3325
        %4428 = vmatpush.bf16.msra.mxu0 %v3321
        %4429 = vmatmul.bf16.gmra.mxu0 %v1051
        %v4430 = vpop.f32.mrf.mxu0
        %v4431 = vadd.f32 %v4417, %v4430
        %v4432 = vpop.f32.mrf.mxu0
        %v4433 = vadd.f32 %v4419, %v4432
        %4434 = vdwg.mxu0
        %4435 = vmatpush.bf16.msra.mxu0 %v3381
        %4436 = vmatpush.bf16.msra.mxu0 %v3377
        %4437 = vmatpush.bf16.msra.mxu0 %v3373
        %4438 = vmatpush.bf16.msra.mxu0 %v3369
        %4439 = vmatpush.bf16.msra.mxu0 %v3365
        %4440 = vmatpush.bf16.msra.mxu0 %v3361
        %4441 = vmatpush.bf16.msra.mxu0 %v3357
        %4442 = vmatpush.bf16.msra.mxu0 %v3353
        %4443 = vmatmul.bf16.gmra.mxu0 %v1052
        %v4444 = vpop.f32.mrf.mxu0
        %v4445 = vadd.f32 %v4431, %v4444
        %v4446 = vpop.f32.mrf.mxu0
        %v4447 = vadd.f32 %v4433, %v4446
        %4448 = vdwg.mxu0
        %4449 = vmatpush.bf16.msra.mxu0 %v3413
        %4450 = vmatpush.bf16.msra.mxu0 %v3409
        %4451 = vmatpush.bf16.msra.mxu0 %v3405
        %4452 = vmatpush.bf16.msra.mxu0 %v3401
        %4453 = vmatpush.bf16.msra.mxu0 %v3397
        %4454 = vmatpush.bf16.msra.mxu0 %v3393
        %4455 = vmatpush.bf16.msra.mxu0 %v3389
        %4456 = vmatpush.bf16.msra.mxu0 %v3385
        %4457 = vmatmul.bf16.gmra.mxu0 %v1053
        %v4458 = vpop.f32.mrf.mxu0
        %v4459 = vadd.f32 %v4445, %v4458
        %v4460 = vpop.f32.mrf.mxu0
        %v4461 = vadd.f32 %v4447, %v4460
        %4462 = vdwg.mxu0
        %4463 = vmatpush.bf16.msra.mxu0 %v3445
        %4464 = vmatpush.bf16.msra.mxu0 %v3441
        %4465 = vmatpush.bf16.msra.mxu0 %v3437
        %4466 = vmatpush.bf16.msra.mxu0 %v3433
        %4467 = vmatpush.bf16.msra.mxu0 %v3429
        %4468 = vmatpush.bf16.msra.mxu0 %v3425
        %4469 = vmatpush.bf16.msra.mxu0 %v3421
        %4470 = vmatpush.bf16.msra.mxu0 %v3417
        %4471 = vmatmul.bf16.gmra.mxu0 %v1054
        %v4472 = vpop.f32.mrf.mxu0
        %v4473 = vadd.f32 %v4459, %v4472
        %v4474 = vpop.f32.mrf.mxu0
        %v4475 = vadd.f32 %v4461, %v4474
        %4476 = vdwg.mxu0
        %4477 = vmatpush.bf16.msra.mxu0 %v3477
        %4478 = vmatpush.bf16.msra.mxu0 %v3473
        %4479 = vmatpush.bf16.msra.mxu0 %v3469
        %4480 = vmatpush.bf16.msra.mxu0 %v3465
        %4481 = vmatpush.bf16.msra.mxu0 %v3461
        %4482 = vmatpush.bf16.msra.mxu0 %v3457
        %4483 = vmatpush.bf16.msra.mxu0 %v3453
        %4484 = vmatpush.bf16.msra.mxu0 %v3449
        %4485 = vmatmul.bf16.gmra.mxu0 %v1055
        %v4486 = vpop.f32.mrf.mxu0
        %v4487 = vadd.f32 %v4473, %v4486
        %v4488 = vpop.f32.mrf.mxu0
        %v4489 = vadd.f32 %v4475, %v4488
        %4490 = vdwg.mxu0
        %4491 = vmatpush.bf16.msra.mxu0 %v3509
        %4492 = vmatpush.bf16.msra.mxu0 %v3505
        %4493 = vmatpush.bf16.msra.mxu0 %v3501
        %4494 = vmatpush.bf16.msra.mxu0 %v3497
        %4495 = vmatpush.bf16.msra.mxu0 %v3493
        %4496 = vmatpush.bf16.msra.mxu0 %v3489
        %4497 = vmatpush.bf16.msra.mxu0 %v3485
        %4498 = vmatpush.bf16.msra.mxu0 %v3481
        %4499 = vmatmul.bf16.gmra.mxu0 %v1056
        %v4500 = vpop.f32.mrf.mxu0
        %v4501 = vadd.f32 %v4487, %v4500
        %v4502 = vpop.f32.mrf.mxu0
        %v4503 = vadd.f32 %v4489, %v4502
        %4504 = vdwg.mxu0
        %4505 = vmatpush.bf16.msra.mxu0 %v3541
        %4506 = vmatpush.bf16.msra.mxu0 %v3537
        %4507 = vmatpush.bf16.msra.mxu0 %v3533
        %4508 = vmatpush.bf16.msra.mxu0 %v3529
        %4509 = vmatpush.bf16.msra.mxu0 %v3525
        %4510 = vmatpush.bf16.msra.mxu0 %v3521
        %4511 = vmatpush.bf16.msra.mxu0 %v3517
        %4512 = vmatpush.bf16.msra.mxu0 %v3513
        %4513 = vmatmul.bf16.gmra.mxu0 %v1057
        %v4514 = vpop.f32.mrf.mxu0
        %v4515 = vadd.f32 %v4501, %v4514
        %v4516 = vpop.f32.mrf.mxu0
        %v4517 = vadd.f32 %v4503, %v4516
        %4518 = vdwg.mxu0
        %4519 = vmatpush.bf16.msra.mxu0 %v3573
        %4520 = vmatpush.bf16.msra.mxu0 %v3569
        %4521 = vmatpush.bf16.msra.mxu0 %v3565
        %4522 = vmatpush.bf16.msra.mxu0 %v3561
        %4523 = vmatpush.bf16.msra.mxu0 %v3557
        %4524 = vmatpush.bf16.msra.mxu0 %v3553
        %4525 = vmatpush.bf16.msra.mxu0 %v3549
        %4526 = vmatpush.bf16.msra.mxu0 %v3545
        %4527 = vmatmul.bf16.gmra.mxu0 %v1058
        %v4528 = vpop.f32.mrf.mxu0
        %v4529 = vadd.f32 %v4515, %v4528
        %v4530 = vpop.f32.mrf.mxu0
        %v4531 = vadd.f32 %v4517, %v4530
        %4532 = vdwg.mxu0
        %4533 = vmatpush.bf16.msra.mxu0 %v3605
        %4534 = vmatpush.bf16.msra.mxu0 %v3601
        %4535 = vmatpush.bf16.msra.mxu0 %v3597
        %4536 = vmatpush.bf16.msra.mxu0 %v3593
        %4537 = vmatpush.bf16.msra.mxu0 %v3589
        %4538 = vmatpush.bf16.msra.mxu0 %v3585
        %4539 = vmatpush.bf16.msra.mxu0 %v3581
        %4540 = vmatpush.bf16.msra.mxu0 %v3577
        %4541 = vmatmul.bf16.gmra.mxu0 %v1059
        %v4542 = vpop.f32.mrf.mxu0
        %v4543 = vadd.f32 %v4529, %v4542
        %v4544 = vpop.f32.mrf.mxu0
        %v4545 = vadd.f32 %v4531, %v4544
        %4546 = vdwg.mxu0
        %4547 = vmatpush.bf16.msra.mxu0 %v3637
        %4548 = vmatpush.bf16.msra.mxu0 %v3633
        %4549 = vmatpush.bf16.msra.mxu0 %v3629
        %4550 = vmatpush.bf16.msra.mxu0 %v3625
        %4551 = vmatpush.bf16.msra.mxu0 %v3621
        %4552 = vmatpush.bf16.msra.mxu0 %v3617
        %4553 = vmatpush.bf16.msra.mxu0 %v3613
        %4554 = vmatpush.bf16.msra.mxu0 %v3609
        %4555 = vmatmul.bf16.gmra.mxu0 %v1060
        %v4556 = vpop.f32.mrf.mxu0
        %v4557 = vadd.f32 %v4543, %v4556
        %v4558 = vpop.f32.mrf.mxu0
        %v4559 = vadd.f32 %v4545, %v4558
        %4560 = vdwg.mxu0
        %4561 = vmatpush.bf16.msra.mxu0 %v3030
        %4562 = vmatpush.bf16.msra.mxu0 %v3026
        %4563 = vmatpush.bf16.msra.mxu0 %v3022
        %4564 = vmatpush.bf16.msra.mxu0 %v3018
        %4565 = vmatpush.bf16.msra.mxu0 %v3014
        %4566 = vmatpush.bf16.msra.mxu0 %v3010
        %4567 = vmatpush.bf16.msra.mxu0 %v3006
        %4568 = vmatpush.bf16.msra.mxu0 %v3002
        %4569 = vmatmul.bf16.gmra.mxu0 %v1041
        %v4570 = vpop.f32.mrf.mxu0
        %v4571 = vadd.f32 %v974, %v4570
        %v4572 = vpop.f32.mrf.mxu0
        %v4573 = vadd.f32 %v974, %v4572
        %4574 = vdwg.mxu0
        %4575 = vmatpush.bf16.msra.mxu0 %v3062
        %4576 = vmatpush.bf16.msra.mxu0 %v3058
        %4577 = vmatpush.bf16.msra.mxu0 %v3054
        %4578 = vmatpush.bf16.msra.mxu0 %v3050
        %4579 = vmatpush.bf16.msra.mxu0 %v3046
        %4580 = vmatpush.bf16.msra.mxu0 %v3042
        %4581 = vmatpush.bf16.msra.mxu0 %v3038
        %4582 = vmatpush.bf16.msra.mxu0 %v3034
        %4583 = vmatmul.bf16.gmra.mxu0 %v1042
        %v4584 = vpop.f32.mrf.mxu0
        %v4585 = vadd.f32 %v4571, %v4584
        %v4586 = vpop.f32.mrf.mxu0
        %v4587 = vadd.f32 %v4573, %v4586
        %4588 = vdwg.mxu0
        %4589 = vmatpush.bf16.msra.mxu0 %v3094
        %4590 = vmatpush.bf16.msra.mxu0 %v3090
        %4591 = vmatpush.bf16.msra.mxu0 %v3086
        %4592 = vmatpush.bf16.msra.mxu0 %v3082
        %4593 = vmatpush.bf16.msra.mxu0 %v3078
        %4594 = vmatpush.bf16.msra.mxu0 %v3074
        %4595 = vmatpush.bf16.msra.mxu0 %v3070
        %4596 = vmatpush.bf16.msra.mxu0 %v3066
        %4597 = vmatmul.bf16.gmra.mxu0 %v1043
        %v4598 = vpop.f32.mrf.mxu0
        %v4599 = vadd.f32 %v4585, %v4598
        %v4600 = vpop.f32.mrf.mxu0
        %v4601 = vadd.f32 %v4587, %v4600
        %4602 = vdwg.mxu0
        %4603 = vmatpush.bf16.msra.mxu0 %v3126
        %4604 = vmatpush.bf16.msra.mxu0 %v3122
        %4605 = vmatpush.bf16.msra.mxu0 %v3118
        %4606 = vmatpush.bf16.msra.mxu0 %v3114
        %4607 = vmatpush.bf16.msra.mxu0 %v3110
        %4608 = vmatpush.bf16.msra.mxu0 %v3106
        %4609 = vmatpush.bf16.msra.mxu0 %v3102
        %4610 = vmatpush.bf16.msra.mxu0 %v3098
        %4611 = vmatmul.bf16.gmra.mxu0 %v1044
        %v4612 = vpop.f32.mrf.mxu0
        %v4613 = vadd.f32 %v4599, %v4612
        %v4614 = vpop.f32.mrf.mxu0
        %v4615 = vadd.f32 %v4601, %v4614
        %4616 = vdwg.mxu0
        %4617 = vmatpush.bf16.msra.mxu0 %v3158
        %4618 = vmatpush.bf16.msra.mxu0 %v3154
        %4619 = vmatpush.bf16.msra.mxu0 %v3150
        %4620 = vmatpush.bf16.msra.mxu0 %v3146
        %4621 = vmatpush.bf16.msra.mxu0 %v3142
        %4622 = vmatpush.bf16.msra.mxu0 %v3138
        %4623 = vmatpush.bf16.msra.mxu0 %v3134
        %4624 = vmatpush.bf16.msra.mxu0 %v3130
        %4625 = vmatmul.bf16.gmra.mxu0 %v1045
        %v4626 = vpop.f32.mrf.mxu0
        %v4627 = vadd.f32 %v4613, %v4626
        %v4628 = vpop.f32.mrf.mxu0
        %v4629 = vadd.f32 %v4615, %v4628
        %4630 = vdwg.mxu0
        %4631 = vmatpush.bf16.msra.mxu0 %v3190
        %4632 = vmatpush.bf16.msra.mxu0 %v3186
        %4633 = vmatpush.bf16.msra.mxu0 %v3182
        %4634 = vmatpush.bf16.msra.mxu0 %v3178
        %4635 = vmatpush.bf16.msra.mxu0 %v3174
        %4636 = vmatpush.bf16.msra.mxu0 %v3170
        %4637 = vmatpush.bf16.msra.mxu0 %v3166
        %4638 = vmatpush.bf16.msra.mxu0 %v3162
        %4639 = vmatmul.bf16.gmra.mxu0 %v1046
        %v4640 = vpop.f32.mrf.mxu0
        %v4641 = vadd.f32 %v4627, %v4640
        %v4642 = vpop.f32.mrf.mxu0
        %v4643 = vadd.f32 %v4629, %v4642
        %4644 = vdwg.mxu0
        %4645 = vmatpush.bf16.msra.mxu0 %v3222
        %4646 = vmatpush.bf16.msra.mxu0 %v3218
        %4647 = vmatpush.bf16.msra.mxu0 %v3214
        %4648 = vmatpush.bf16.msra.mxu0 %v3210
        %4649 = vmatpush.bf16.msra.mxu0 %v3206
        %4650 = vmatpush.bf16.msra.mxu0 %v3202
        %4651 = vmatpush.bf16.msra.mxu0 %v3198
        %4652 = vmatpush.bf16.msra.mxu0 %v3194
        %4653 = vmatmul.bf16.gmra.mxu0 %v1047
        %v4654 = vpop.f32.mrf.mxu0
        %v4655 = vadd.f32 %v4641, %v4654
        %v4656 = vpop.f32.mrf.mxu0
        %v4657 = vadd.f32 %v4643, %v4656
        %4658 = vdwg.mxu0
        %4659 = vmatpush.bf16.msra.mxu0 %v3254
        %4660 = vmatpush.bf16.msra.mxu0 %v3250
        %4661 = vmatpush.bf16.msra.mxu0 %v3246
        %4662 = vmatpush.bf16.msra.mxu0 %v3242
        %4663 = vmatpush.bf16.msra.mxu0 %v3238
        %4664 = vmatpush.bf16.msra.mxu0 %v3234
        %4665 = vmatpush.bf16.msra.mxu0 %v3230
        %4666 = vmatpush.bf16.msra.mxu0 %v3226
        %4667 = vmatmul.bf16.gmra.mxu0 %v1048
        %v4668 = vpop.f32.mrf.mxu0
        %v4669 = vadd.f32 %v4655, %v4668
        %v4670 = vpop.f32.mrf.mxu0
        %v4671 = vadd.f32 %v4657, %v4670
        %4672 = vdwg.mxu0
        %4673 = vmatpush.bf16.msra.mxu0 %v3286
        %4674 = vmatpush.bf16.msra.mxu0 %v3282
        %4675 = vmatpush.bf16.msra.mxu0 %v3278
        %4676 = vmatpush.bf16.msra.mxu0 %v3274
        %4677 = vmatpush.bf16.msra.mxu0 %v3270
        %4678 = vmatpush.bf16.msra.mxu0 %v3266
        %4679 = vmatpush.bf16.msra.mxu0 %v3262
        %4680 = vmatpush.bf16.msra.mxu0 %v3258
        %4681 = vmatmul.bf16.gmra.mxu0 %v1049
        %v4682 = vpop.f32.mrf.mxu0
        %v4683 = vadd.f32 %v4669, %v4682
        %v4684 = vpop.f32.mrf.mxu0
        %v4685 = vadd.f32 %v4671, %v4684
        %4686 = vdwg.mxu0
        %4687 = vmatpush.bf16.msra.mxu0 %v3318
        %4688 = vmatpush.bf16.msra.mxu0 %v3314
        %4689 = vmatpush.bf16.msra.mxu0 %v3310
        %4690 = vmatpush.bf16.msra.mxu0 %v3306
        %4691 = vmatpush.bf16.msra.mxu0 %v3302
        %4692 = vmatpush.bf16.msra.mxu0 %v3298
        %4693 = vmatpush.bf16.msra.mxu0 %v3294
        %4694 = vmatpush.bf16.msra.mxu0 %v3290
        %4695 = vmatmul.bf16.gmra.mxu0 %v1050
        %v4696 = vpop.f32.mrf.mxu0
        %v4697 = vadd.f32 %v4683, %v4696
        %v4698 = vpop.f32.mrf.mxu0
        %v4699 = vadd.f32 %v4685, %v4698
        %4700 = vdwg.mxu0
        %4701 = vmatpush.bf16.msra.mxu0 %v3350
        %4702 = vmatpush.bf16.msra.mxu0 %v3346
        %4703 = vmatpush.bf16.msra.mxu0 %v3342
        %4704 = vmatpush.bf16.msra.mxu0 %v3338
        %4705 = vmatpush.bf16.msra.mxu0 %v3334
        %4706 = vmatpush.bf16.msra.mxu0 %v3330
        %4707 = vmatpush.bf16.msra.mxu0 %v3326
        %4708 = vmatpush.bf16.msra.mxu0 %v3322
        %4709 = vmatmul.bf16.gmra.mxu0 %v1051
        %v4710 = vpop.f32.mrf.mxu0
        %v4711 = vadd.f32 %v4697, %v4710
        %v4712 = vpop.f32.mrf.mxu0
        %v4713 = vadd.f32 %v4699, %v4712
        %4714 = vdwg.mxu0
        %4715 = vmatpush.bf16.msra.mxu0 %v3382
        %4716 = vmatpush.bf16.msra.mxu0 %v3378
        %4717 = vmatpush.bf16.msra.mxu0 %v3374
        %4718 = vmatpush.bf16.msra.mxu0 %v3370
        %4719 = vmatpush.bf16.msra.mxu0 %v3366
        %4720 = vmatpush.bf16.msra.mxu0 %v3362
        %4721 = vmatpush.bf16.msra.mxu0 %v3358
        %4722 = vmatpush.bf16.msra.mxu0 %v3354
        %4723 = vmatmul.bf16.gmra.mxu0 %v1052
        %v4724 = vpop.f32.mrf.mxu0
        %v4725 = vadd.f32 %v4711, %v4724
        %v4726 = vpop.f32.mrf.mxu0
        %v4727 = vadd.f32 %v4713, %v4726
        %4728 = vdwg.mxu0
        %4729 = vmatpush.bf16.msra.mxu0 %v3414
        %4730 = vmatpush.bf16.msra.mxu0 %v3410
        %4731 = vmatpush.bf16.msra.mxu0 %v3406
        %4732 = vmatpush.bf16.msra.mxu0 %v3402
        %4733 = vmatpush.bf16.msra.mxu0 %v3398
        %4734 = vmatpush.bf16.msra.mxu0 %v3394
        %4735 = vmatpush.bf16.msra.mxu0 %v3390
        %4736 = vmatpush.bf16.msra.mxu0 %v3386
        %4737 = vmatmul.bf16.gmra.mxu0 %v1053
        %v4738 = vpop.f32.mrf.mxu0
        %v4739 = vadd.f32 %v4725, %v4738
        %v4740 = vpop.f32.mrf.mxu0
        %v4741 = vadd.f32 %v4727, %v4740
        %4742 = vdwg.mxu0
        %4743 = vmatpush.bf16.msra.mxu0 %v3446
        %4744 = vmatpush.bf16.msra.mxu0 %v3442
        %4745 = vmatpush.bf16.msra.mxu0 %v3438
        %4746 = vmatpush.bf16.msra.mxu0 %v3434
        %4747 = vmatpush.bf16.msra.mxu0 %v3430
        %4748 = vmatpush.bf16.msra.mxu0 %v3426
        %4749 = vmatpush.bf16.msra.mxu0 %v3422
        %4750 = vmatpush.bf16.msra.mxu0 %v3418
        %4751 = vmatmul.bf16.gmra.mxu0 %v1054
        %v4752 = vpop.f32.mrf.mxu0
        %v4753 = vadd.f32 %v4739, %v4752
        %v4754 = vpop.f32.mrf.mxu0
        %v4755 = vadd.f32 %v4741, %v4754
        %4756 = vdwg.mxu0
        %4757 = vmatpush.bf16.msra.mxu0 %v3478
        %4758 = vmatpush.bf16.msra.mxu0 %v3474
        %4759 = vmatpush.bf16.msra.mxu0 %v3470
        %4760 = vmatpush.bf16.msra.mxu0 %v3466
        %4761 = vmatpush.bf16.msra.mxu0 %v3462
        %4762 = vmatpush.bf16.msra.mxu0 %v3458
        %4763 = vmatpush.bf16.msra.mxu0 %v3454
        %4764 = vmatpush.bf16.msra.mxu0 %v3450
        %4765 = vmatmul.bf16.gmra.mxu0 %v1055
        %v4766 = vpop.f32.mrf.mxu0
        %v4767 = vadd.f32 %v4753, %v4766
        %v4768 = vpop.f32.mrf.mxu0
        %v4769 = vadd.f32 %v4755, %v4768
        %4770 = vdwg.mxu0
        %4771 = vmatpush.bf16.msra.mxu0 %v3510
        %4772 = vmatpush.bf16.msra.mxu0 %v3506
        %4773 = vmatpush.bf16.msra.mxu0 %v3502
        %4774 = vmatpush.bf16.msra.mxu0 %v3498
        %4775 = vmatpush.bf16.msra.mxu0 %v3494
        %4776 = vmatpush.bf16.msra.mxu0 %v3490
        %4777 = vmatpush.bf16.msra.mxu0 %v3486
        %4778 = vmatpush.bf16.msra.mxu0 %v3482
        %4779 = vmatmul.bf16.gmra.mxu0 %v1056
        %v4780 = vpop.f32.mrf.mxu0
        %v4781 = vadd.f32 %v4767, %v4780
        %v4782 = vpop.f32.mrf.mxu0
        %v4783 = vadd.f32 %v4769, %v4782
        %4784 = vdwg.mxu0
        %4785 = vmatpush.bf16.msra.mxu0 %v3542
        %4786 = vmatpush.bf16.msra.mxu0 %v3538
        %4787 = vmatpush.bf16.msra.mxu0 %v3534
        %4788 = vmatpush.bf16.msra.mxu0 %v3530
        %4789 = vmatpush.bf16.msra.mxu0 %v3526
        %4790 = vmatpush.bf16.msra.mxu0 %v3522
        %4791 = vmatpush.bf16.msra.mxu0 %v3518
        %4792 = vmatpush.bf16.msra.mxu0 %v3514
        %4793 = vmatmul.bf16.gmra.mxu0 %v1057
        %v4794 = vpop.f32.mrf.mxu0
        %v4795 = vadd.f32 %v4781, %v4794
        %v4796 = vpop.f32.mrf.mxu0
        %v4797 = vadd.f32 %v4783, %v4796
        %4798 = vdwg.mxu0
        %4799 = vmatpush.bf16.msra.mxu0 %v3574
        %4800 = vmatpush.bf16.msra.mxu0 %v3570
        %4801 = vmatpush.bf16.msra.mxu0 %v3566
        %4802 = vmatpush.bf16.msra.mxu0 %v3562
        %4803 = vmatpush.bf16.msra.mxu0 %v3558
        %4804 = vmatpush.bf16.msra.mxu0 %v3554
        %4805 = vmatpush.bf16.msra.mxu0 %v3550
        %4806 = vmatpush.bf16.msra.mxu0 %v3546
        %4807 = vmatmul.bf16.gmra.mxu0 %v1058
        %v4808 = vpop.f32.mrf.mxu0
        %v4809 = vadd.f32 %v4795, %v4808
        %v4810 = vpop.f32.mrf.mxu0
        %v4811 = vadd.f32 %v4797, %v4810
        %4812 = vdwg.mxu0
        %4813 = vmatpush.bf16.msra.mxu0 %v3606
        %4814 = vmatpush.bf16.msra.mxu0 %v3602
        %4815 = vmatpush.bf16.msra.mxu0 %v3598
        %4816 = vmatpush.bf16.msra.mxu0 %v3594
        %4817 = vmatpush.bf16.msra.mxu0 %v3590
        %4818 = vmatpush.bf16.msra.mxu0 %v3586
        %4819 = vmatpush.bf16.msra.mxu0 %v3582
        %4820 = vmatpush.bf16.msra.mxu0 %v3578
        %4821 = vmatmul.bf16.gmra.mxu0 %v1059
        %v4822 = vpop.f32.mrf.mxu0
        %v4823 = vadd.f32 %v4809, %v4822
        %v4824 = vpop.f32.mrf.mxu0
        %v4825 = vadd.f32 %v4811, %v4824
        %4826 = vdwg.mxu0
        %4827 = vmatpush.bf16.msra.mxu0 %v3638
        %4828 = vmatpush.bf16.msra.mxu0 %v3634
        %4829 = vmatpush.bf16.msra.mxu0 %v3630
        %4830 = vmatpush.bf16.msra.mxu0 %v3626
        %4831 = vmatpush.bf16.msra.mxu0 %v3622
        %4832 = vmatpush.bf16.msra.mxu0 %v3618
        %4833 = vmatpush.bf16.msra.mxu0 %v3614
        %4834 = vmatpush.bf16.msra.mxu0 %v3610
        %4835 = vmatmul.bf16.gmra.mxu0 %v1060
        %v4836 = vpop.f32.mrf.mxu0
        %v4837 = vadd.f32 %v4823, %v4836
        %v4838 = vpop.f32.mrf.mxu0
        %v4839 = vadd.f32 %v4825, %v4838
        %4840 = vdwg.mxu0
        %4841 = vmatpush.bf16.msra.mxu0 %v3031
        %4842 = vmatpush.bf16.msra.mxu0 %v3027
        %4843 = vmatpush.bf16.msra.mxu0 %v3023
        %4844 = vmatpush.bf16.msra.mxu0 %v3019
        %4845 = vmatpush.bf16.msra.mxu0 %v3015
        %4846 = vmatpush.bf16.msra.mxu0 %v3011
        %4847 = vmatpush.bf16.msra.mxu0 %v3007
        %4848 = vmatpush.bf16.msra.mxu0 %v3003
        %4849 = vmatmul.bf16.gmra.mxu0 %v1041
        %v4850 = vpop.f32.mrf.mxu0
        %v4851 = vadd.f32 %v975, %v4850
        %v4852 = vpop.f32.mrf.mxu0
        %v4853 = vadd.f32 %v975, %v4852
        %4854 = vdwg.mxu0
        %4855 = vmatpush.bf16.msra.mxu0 %v3063
        %4856 = vmatpush.bf16.msra.mxu0 %v3059
        %4857 = vmatpush.bf16.msra.mxu0 %v3055
        %4858 = vmatpush.bf16.msra.mxu0 %v3051
        %4859 = vmatpush.bf16.msra.mxu0 %v3047
        %4860 = vmatpush.bf16.msra.mxu0 %v3043
        %4861 = vmatpush.bf16.msra.mxu0 %v3039
        %4862 = vmatpush.bf16.msra.mxu0 %v3035
        %4863 = vmatmul.bf16.gmra.mxu0 %v1042
        %v4864 = vpop.f32.mrf.mxu0
        %v4865 = vadd.f32 %v4851, %v4864
        %v4866 = vpop.f32.mrf.mxu0
        %v4867 = vadd.f32 %v4853, %v4866
        %4868 = vdwg.mxu0
        %4869 = vmatpush.bf16.msra.mxu0 %v3095
        %4870 = vmatpush.bf16.msra.mxu0 %v3091
        %4871 = vmatpush.bf16.msra.mxu0 %v3087
        %4872 = vmatpush.bf16.msra.mxu0 %v3083
        %4873 = vmatpush.bf16.msra.mxu0 %v3079
        %4874 = vmatpush.bf16.msra.mxu0 %v3075
        %4875 = vmatpush.bf16.msra.mxu0 %v3071
        %4876 = vmatpush.bf16.msra.mxu0 %v3067
        %4877 = vmatmul.bf16.gmra.mxu0 %v1043
        %v4878 = vpop.f32.mrf.mxu0
        %v4879 = vadd.f32 %v4865, %v4878
        %v4880 = vpop.f32.mrf.mxu0
        %v4881 = vadd.f32 %v4867, %v4880
        %4882 = vdwg.mxu0
        %4883 = vmatpush.bf16.msra.mxu0 %v3127
        %4884 = vmatpush.bf16.msra.mxu0 %v3123
        %4885 = vmatpush.bf16.msra.mxu0 %v3119
        %4886 = vmatpush.bf16.msra.mxu0 %v3115
        %4887 = vmatpush.bf16.msra.mxu0 %v3111
        %4888 = vmatpush.bf16.msra.mxu0 %v3107
        %4889 = vmatpush.bf16.msra.mxu0 %v3103
        %4890 = vmatpush.bf16.msra.mxu0 %v3099
        %4891 = vmatmul.bf16.gmra.mxu0 %v1044
        %v4892 = vpop.f32.mrf.mxu0
        %v4893 = vadd.f32 %v4879, %v4892
        %v4894 = vpop.f32.mrf.mxu0
        %v4895 = vadd.f32 %v4881, %v4894
        %4896 = vdwg.mxu0
        %4897 = vmatpush.bf16.msra.mxu0 %v3159
        %4898 = vmatpush.bf16.msra.mxu0 %v3155
        %4899 = vmatpush.bf16.msra.mxu0 %v3151
        %4900 = vmatpush.bf16.msra.mxu0 %v3147
        %4901 = vmatpush.bf16.msra.mxu0 %v3143
        %4902 = vmatpush.bf16.msra.mxu0 %v3139
        %4903 = vmatpush.bf16.msra.mxu0 %v3135
        %4904 = vmatpush.bf16.msra.mxu0 %v3131
        %4905 = vmatmul.bf16.gmra.mxu0 %v1045
        %v4906 = vpop.f32.mrf.mxu0
        %v4907 = vadd.f32 %v4893, %v4906
        %v4908 = vpop.f32.mrf.mxu0
        %v4909 = vadd.f32 %v4895, %v4908
        %4910 = vdwg.mxu0
        %4911 = vmatpush.bf16.msra.mxu0 %v3191
        %4912 = vmatpush.bf16.msra.mxu0 %v3187
        %4913 = vmatpush.bf16.msra.mxu0 %v3183
        %4914 = vmatpush.bf16.msra.mxu0 %v3179
        %4915 = vmatpush.bf16.msra.mxu0 %v3175
        %4916 = vmatpush.bf16.msra.mxu0 %v3171
        %4917 = vmatpush.bf16.msra.mxu0 %v3167
        %4918 = vmatpush.bf16.msra.mxu0 %v3163
        %4919 = vmatmul.bf16.gmra.mxu0 %v1046
        %v4920 = vpop.f32.mrf.mxu0
        %v4921 = vadd.f32 %v4907, %v4920
        %v4922 = vpop.f32.mrf.mxu0
        %v4923 = vadd.f32 %v4909, %v4922
        %4924 = vdwg.mxu0
        %4925 = vmatpush.bf16.msra.mxu0 %v3223
        %4926 = vmatpush.bf16.msra.mxu0 %v3219
        %4927 = vmatpush.bf16.msra.mxu0 %v3215
        %4928 = vmatpush.bf16.msra.mxu0 %v3211
        %4929 = vmatpush.bf16.msra.mxu0 %v3207
        %4930 = vmatpush.bf16.msra.mxu0 %v3203
        %4931 = vmatpush.bf16.msra.mxu0 %v3199
        %4932 = vmatpush.bf16.msra.mxu0 %v3195
        %4933 = vmatmul.bf16.gmra.mxu0 %v1047
        %v4934 = vpop.f32.mrf.mxu0
        %v4935 = vadd.f32 %v4921, %v4934
        %v4936 = vpop.f32.mrf.mxu0
        %v4937 = vadd.f32 %v4923, %v4936
        %4938 = vdwg.mxu0
        %4939 = vmatpush.bf16.msra.mxu0 %v3255
        %4940 = vmatpush.bf16.msra.mxu0 %v3251
        %4941 = vmatpush.bf16.msra.mxu0 %v3247
        %4942 = vmatpush.bf16.msra.mxu0 %v3243
        %4943 = vmatpush.bf16.msra.mxu0 %v3239
        %4944 = vmatpush.bf16.msra.mxu0 %v3235
        %4945 = vmatpush.bf16.msra.mxu0 %v3231
        %4946 = vmatpush.bf16.msra.mxu0 %v3227
        %4947 = vmatmul.bf16.gmra.mxu0 %v1048
        %v4948 = vpop.f32.mrf.mxu0
        %v4949 = vadd.f32 %v4935, %v4948
        %v4950 = vpop.f32.mrf.mxu0
        %v4951 = vadd.f32 %v4937, %v4950
        %4952 = vdwg.mxu0
        %4953 = vmatpush.bf16.msra.mxu0 %v3287
        %4954 = vmatpush.bf16.msra.mxu0 %v3283
        %4955 = vmatpush.bf16.msra.mxu0 %v3279
        %4956 = vmatpush.bf16.msra.mxu0 %v3275
        %4957 = vmatpush.bf16.msra.mxu0 %v3271
        %4958 = vmatpush.bf16.msra.mxu0 %v3267
        %4959 = vmatpush.bf16.msra.mxu0 %v3263
        %4960 = vmatpush.bf16.msra.mxu0 %v3259
        %4961 = vmatmul.bf16.gmra.mxu0 %v1049
        %v4962 = vpop.f32.mrf.mxu0
        %v4963 = vadd.f32 %v4949, %v4962
        %v4964 = vpop.f32.mrf.mxu0
        %v4965 = vadd.f32 %v4951, %v4964
        %4966 = vdwg.mxu0
        %4967 = vmatpush.bf16.msra.mxu0 %v3319
        %4968 = vmatpush.bf16.msra.mxu0 %v3315
        %4969 = vmatpush.bf16.msra.mxu0 %v3311
        %4970 = vmatpush.bf16.msra.mxu0 %v3307
        %4971 = vmatpush.bf16.msra.mxu0 %v3303
        %4972 = vmatpush.bf16.msra.mxu0 %v3299
        %4973 = vmatpush.bf16.msra.mxu0 %v3295
        %4974 = vmatpush.bf16.msra.mxu0 %v3291
        %4975 = vmatmul.bf16.gmra.mxu0 %v1050
        %v4976 = vpop.f32.mrf.mxu0
        %v4977 = vadd.f32 %v4963, %v4976
        %v4978 = vpop.f32.mrf.mxu0
        %v4979 = vadd.f32 %v4965, %v4978
        %4980 = vdwg.mxu0
        %4981 = vmatpush.bf16.msra.mxu0 %v3351
        %4982 = vmatpush.bf16.msra.mxu0 %v3347
        %4983 = vmatpush.bf16.msra.mxu0 %v3343
        %4984 = vmatpush.bf16.msra.mxu0 %v3339
        %4985 = vmatpush.bf16.msra.mxu0 %v3335
        %4986 = vmatpush.bf16.msra.mxu0 %v3331
        %4987 = vmatpush.bf16.msra.mxu0 %v3327
        %4988 = vmatpush.bf16.msra.mxu0 %v3323
        %4989 = vmatmul.bf16.gmra.mxu0 %v1051
        %v4990 = vpop.f32.mrf.mxu0
        %v4991 = vadd.f32 %v4977, %v4990
        %v4992 = vpop.f32.mrf.mxu0
        %v4993 = vadd.f32 %v4979, %v4992
        %4994 = vdwg.mxu0
        %4995 = vmatpush.bf16.msra.mxu0 %v3383
        %4996 = vmatpush.bf16.msra.mxu0 %v3379
        %4997 = vmatpush.bf16.msra.mxu0 %v3375
        %4998 = vmatpush.bf16.msra.mxu0 %v3371
        %4999 = vmatpush.bf16.msra.mxu0 %v3367
        %5000 = vmatpush.bf16.msra.mxu0 %v3363
        %5001 = vmatpush.bf16.msra.mxu0 %v3359
        %5002 = vmatpush.bf16.msra.mxu0 %v3355
        %5003 = vmatmul.bf16.gmra.mxu0 %v1052
        %v5004 = vpop.f32.mrf.mxu0
        %v5005 = vadd.f32 %v4991, %v5004
        %v5006 = vpop.f32.mrf.mxu0
        %v5007 = vadd.f32 %v4993, %v5006
        %5008 = vdwg.mxu0
        %5009 = vmatpush.bf16.msra.mxu0 %v3415
        %5010 = vmatpush.bf16.msra.mxu0 %v3411
        %5011 = vmatpush.bf16.msra.mxu0 %v3407
        %5012 = vmatpush.bf16.msra.mxu0 %v3403
        %5013 = vmatpush.bf16.msra.mxu0 %v3399
        %5014 = vmatpush.bf16.msra.mxu0 %v3395
        %5015 = vmatpush.bf16.msra.mxu0 %v3391
        %5016 = vmatpush.bf16.msra.mxu0 %v3387
        %5017 = vmatmul.bf16.gmra.mxu0 %v1053
        %v5018 = vpop.f32.mrf.mxu0
        %v5019 = vadd.f32 %v5005, %v5018
        %v5020 = vpop.f32.mrf.mxu0
        %v5021 = vadd.f32 %v5007, %v5020
        %5022 = vdwg.mxu0
        %5023 = vmatpush.bf16.msra.mxu0 %v3447
        %5024 = vmatpush.bf16.msra.mxu0 %v3443
        %5025 = vmatpush.bf16.msra.mxu0 %v3439
        %5026 = vmatpush.bf16.msra.mxu0 %v3435
        %5027 = vmatpush.bf16.msra.mxu0 %v3431
        %5028 = vmatpush.bf16.msra.mxu0 %v3427
        %5029 = vmatpush.bf16.msra.mxu0 %v3423
        %5030 = vmatpush.bf16.msra.mxu0 %v3419
        %5031 = vmatmul.bf16.gmra.mxu0 %v1054
        %v5032 = vpop.f32.mrf.mxu0
        %v5033 = vadd.f32 %v5019, %v5032
        %v5034 = vpop.f32.mrf.mxu0
        %v5035 = vadd.f32 %v5021, %v5034
        %5036 = vdwg.mxu0
        %5037 = vmatpush.bf16.msra.mxu0 %v3479
        %5038 = vmatpush.bf16.msra.mxu0 %v3475
        %5039 = vmatpush.bf16.msra.mxu0 %v3471
        %5040 = vmatpush.bf16.msra.mxu0 %v3467
        %5041 = vmatpush.bf16.msra.mxu0 %v3463
        %5042 = vmatpush.bf16.msra.mxu0 %v3459
        %5043 = vmatpush.bf16.msra.mxu0 %v3455
        %5044 = vmatpush.bf16.msra.mxu0 %v3451
        %5045 = vmatmul.bf16.gmra.mxu0 %v1055
        %v5046 = vpop.f32.mrf.mxu0
        %v5047 = vadd.f32 %v5033, %v5046
        %v5048 = vpop.f32.mrf.mxu0
        %v5049 = vadd.f32 %v5035, %v5048
        %5050 = vdwg.mxu0
        %5051 = vmatpush.bf16.msra.mxu0 %v3511
        %5052 = vmatpush.bf16.msra.mxu0 %v3507
        %5053 = vmatpush.bf16.msra.mxu0 %v3503
        %5054 = vmatpush.bf16.msra.mxu0 %v3499
        %5055 = vmatpush.bf16.msra.mxu0 %v3495
        %5056 = vmatpush.bf16.msra.mxu0 %v3491
        %5057 = vmatpush.bf16.msra.mxu0 %v3487
        %5058 = vmatpush.bf16.msra.mxu0 %v3483
        %5059 = vmatmul.bf16.gmra.mxu0 %v1056
        %v5060 = vpop.f32.mrf.mxu0
        %v5061 = vadd.f32 %v5047, %v5060
        %v5062 = vpop.f32.mrf.mxu0
        %v5063 = vadd.f32 %v5049, %v5062
        %5064 = vdwg.mxu0
        %5065 = vmatpush.bf16.msra.mxu0 %v3543
        %5066 = vmatpush.bf16.msra.mxu0 %v3539
        %5067 = vmatpush.bf16.msra.mxu0 %v3535
        %5068 = vmatpush.bf16.msra.mxu0 %v3531
        %5069 = vmatpush.bf16.msra.mxu0 %v3527
        %5070 = vmatpush.bf16.msra.mxu0 %v3523
        %5071 = vmatpush.bf16.msra.mxu0 %v3519
        %5072 = vmatpush.bf16.msra.mxu0 %v3515
        %5073 = vmatmul.bf16.gmra.mxu0 %v1057
        %v5074 = vpop.f32.mrf.mxu0
        %v5075 = vadd.f32 %v5061, %v5074
        %v5076 = vpop.f32.mrf.mxu0
        %v5077 = vadd.f32 %v5063, %v5076
        %5078 = vdwg.mxu0
        %5079 = vmatpush.bf16.msra.mxu0 %v3575
        %5080 = vmatpush.bf16.msra.mxu0 %v3571
        %5081 = vmatpush.bf16.msra.mxu0 %v3567
        %5082 = vmatpush.bf16.msra.mxu0 %v3563
        %5083 = vmatpush.bf16.msra.mxu0 %v3559
        %5084 = vmatpush.bf16.msra.mxu0 %v3555
        %5085 = vmatpush.bf16.msra.mxu0 %v3551
        %5086 = vmatpush.bf16.msra.mxu0 %v3547
        %5087 = vmatmul.bf16.gmra.mxu0 %v1058
        %v5088 = vpop.f32.mrf.mxu0
        %v5089 = vadd.f32 %v5075, %v5088
        %v5090 = vpop.f32.mrf.mxu0
        %v5091 = vadd.f32 %v5077, %v5090
        %5092 = vdwg.mxu0
        %5093 = vmatpush.bf16.msra.mxu0 %v3607
        %5094 = vmatpush.bf16.msra.mxu0 %v3603
        %5095 = vmatpush.bf16.msra.mxu0 %v3599
        %5096 = vmatpush.bf16.msra.mxu0 %v3595
        %5097 = vmatpush.bf16.msra.mxu0 %v3591
        %5098 = vmatpush.bf16.msra.mxu0 %v3587
        %5099 = vmatpush.bf16.msra.mxu0 %v3583
        %5100 = vmatpush.bf16.msra.mxu0 %v3579
        %5101 = vmatmul.bf16.gmra.mxu0 %v1059
        %v5102 = vpop.f32.mrf.mxu0
        %v5103 = vadd.f32 %v5089, %v5102
        %v5104 = vpop.f32.mrf.mxu0
        %v5105 = vadd.f32 %v5091, %v5104
        %5106 = vdwg.mxu0
        %5107 = vmatpush.bf16.msra.mxu0 %v3639
        %5108 = vmatpush.bf16.msra.mxu0 %v3635
        %5109 = vmatpush.bf16.msra.mxu0 %v3631
        %5110 = vmatpush.bf16.msra.mxu0 %v3627
        %5111 = vmatpush.bf16.msra.mxu0 %v3623
        %5112 = vmatpush.bf16.msra.mxu0 %v3619
        %5113 = vmatpush.bf16.msra.mxu0 %v3615
        %5114 = vmatpush.bf16.msra.mxu0 %v3611
        %5115 = vmatmul.bf16.gmra.mxu0 %v1060
        %v5116 = vpop.f32.mrf.mxu0
        %v5117 = vadd.f32 %v5103, %v5116
        %v5118 = vpop.f32.mrf.mxu0
        %v5119 = vadd.f32 %v5105, %v5118
        %5120 = vdwg.mxu0
        %5121 = vmatpush.bf16.msra.mxu0 %v3032
        %5122 = vmatpush.bf16.msra.mxu0 %v3028
        %5123 = vmatpush.bf16.msra.mxu0 %v3024
        %5124 = vmatpush.bf16.msra.mxu0 %v3020
        %5125 = vmatpush.bf16.msra.mxu0 %v3016
        %5126 = vmatpush.bf16.msra.mxu0 %v3012
        %5127 = vmatpush.bf16.msra.mxu0 %v3008
        %5128 = vmatpush.bf16.msra.mxu0 %v3004
        %5129 = vmatmul.bf16.gmra.mxu0 %v1041
        %v5130 = vpop.f32.mrf.mxu0
        %v5131 = vadd.f32 %v976, %v5130
        %v5132 = vpop.f32.mrf.mxu0
        %v5133 = vadd.f32 %v976, %v5132
        %5134 = vdwg.mxu0
        %5135 = vmatpush.bf16.msra.mxu0 %v3064
        %5136 = vmatpush.bf16.msra.mxu0 %v3060
        %5137 = vmatpush.bf16.msra.mxu0 %v3056
        %5138 = vmatpush.bf16.msra.mxu0 %v3052
        %5139 = vmatpush.bf16.msra.mxu0 %v3048
        %5140 = vmatpush.bf16.msra.mxu0 %v3044
        %5141 = vmatpush.bf16.msra.mxu0 %v3040
        %5142 = vmatpush.bf16.msra.mxu0 %v3036
        %5143 = vmatmul.bf16.gmra.mxu0 %v1042
        %v5144 = vpop.f32.mrf.mxu0
        %v5145 = vadd.f32 %v5131, %v5144
        %v5146 = vpop.f32.mrf.mxu0
        %v5147 = vadd.f32 %v5133, %v5146
        %5148 = vdwg.mxu0
        %5149 = vmatpush.bf16.msra.mxu0 %v3096
        %5150 = vmatpush.bf16.msra.mxu0 %v3092
        %5151 = vmatpush.bf16.msra.mxu0 %v3088
        %5152 = vmatpush.bf16.msra.mxu0 %v3084
        %5153 = vmatpush.bf16.msra.mxu0 %v3080
        %5154 = vmatpush.bf16.msra.mxu0 %v3076
        %5155 = vmatpush.bf16.msra.mxu0 %v3072
        %5156 = vmatpush.bf16.msra.mxu0 %v3068
        %5157 = vmatmul.bf16.gmra.mxu0 %v1043
        %v5158 = vpop.f32.mrf.mxu0
        %v5159 = vadd.f32 %v5145, %v5158
        %v5160 = vpop.f32.mrf.mxu0
        %v5161 = vadd.f32 %v5147, %v5160
        %5162 = vdwg.mxu0
        %5163 = vmatpush.bf16.msra.mxu0 %v3128
        %5164 = vmatpush.bf16.msra.mxu0 %v3124
        %5165 = vmatpush.bf16.msra.mxu0 %v3120
        %5166 = vmatpush.bf16.msra.mxu0 %v3116
        %5167 = vmatpush.bf16.msra.mxu0 %v3112
        %5168 = vmatpush.bf16.msra.mxu0 %v3108
        %5169 = vmatpush.bf16.msra.mxu0 %v3104
        %5170 = vmatpush.bf16.msra.mxu0 %v3100
        %5171 = vmatmul.bf16.gmra.mxu0 %v1044
        %v5172 = vpop.f32.mrf.mxu0
        %v5173 = vadd.f32 %v5159, %v5172
        %v5174 = vpop.f32.mrf.mxu0
        %v5175 = vadd.f32 %v5161, %v5174
        %5176 = vdwg.mxu0
        %5177 = vmatpush.bf16.msra.mxu0 %v3160
        %5178 = vmatpush.bf16.msra.mxu0 %v3156
        %5179 = vmatpush.bf16.msra.mxu0 %v3152
        %5180 = vmatpush.bf16.msra.mxu0 %v3148
        %5181 = vmatpush.bf16.msra.mxu0 %v3144
        %5182 = vmatpush.bf16.msra.mxu0 %v3140
        %5183 = vmatpush.bf16.msra.mxu0 %v3136
        %5184 = vmatpush.bf16.msra.mxu0 %v3132
        %5185 = vmatmul.bf16.gmra.mxu0 %v1045
        %v5186 = vpop.f32.mrf.mxu0
        %v5187 = vadd.f32 %v5173, %v5186
        %v5188 = vpop.f32.mrf.mxu0
        %v5189 = vadd.f32 %v5175, %v5188
        %5190 = vdwg.mxu0
        %5191 = vmatpush.bf16.msra.mxu0 %v3192
        %5192 = vmatpush.bf16.msra.mxu0 %v3188
        %5193 = vmatpush.bf16.msra.mxu0 %v3184
        %5194 = vmatpush.bf16.msra.mxu0 %v3180
        %5195 = vmatpush.bf16.msra.mxu0 %v3176
        %5196 = vmatpush.bf16.msra.mxu0 %v3172
        %5197 = vmatpush.bf16.msra.mxu0 %v3168
        %5198 = vmatpush.bf16.msra.mxu0 %v3164
        %5199 = vmatmul.bf16.gmra.mxu0 %v1046
        %v5200 = vpop.f32.mrf.mxu0
        %v5201 = vadd.f32 %v5187, %v5200
        %v5202 = vpop.f32.mrf.mxu0
        %v5203 = vadd.f32 %v5189, %v5202
        %5204 = vdwg.mxu0
        %5205 = vmatpush.bf16.msra.mxu0 %v3224
        %5206 = vmatpush.bf16.msra.mxu0 %v3220
        %5207 = vmatpush.bf16.msra.mxu0 %v3216
        %5208 = vmatpush.bf16.msra.mxu0 %v3212
        %5209 = vmatpush.bf16.msra.mxu0 %v3208
        %5210 = vmatpush.bf16.msra.mxu0 %v3204
        %5211 = vmatpush.bf16.msra.mxu0 %v3200
        %5212 = vmatpush.bf16.msra.mxu0 %v3196
        %5213 = vmatmul.bf16.gmra.mxu0 %v1047
        %v5214 = vpop.f32.mrf.mxu0
        %v5215 = vadd.f32 %v5201, %v5214
        %v5216 = vpop.f32.mrf.mxu0
        %v5217 = vadd.f32 %v5203, %v5216
        %5218 = vdwg.mxu0
        %5219 = vmatpush.bf16.msra.mxu0 %v3256
        %5220 = vmatpush.bf16.msra.mxu0 %v3252
        %5221 = vmatpush.bf16.msra.mxu0 %v3248
        %5222 = vmatpush.bf16.msra.mxu0 %v3244
        %5223 = vmatpush.bf16.msra.mxu0 %v3240
        %5224 = vmatpush.bf16.msra.mxu0 %v3236
        %5225 = vmatpush.bf16.msra.mxu0 %v3232
        %5226 = vmatpush.bf16.msra.mxu0 %v3228
        %5227 = vmatmul.bf16.gmra.mxu0 %v1048
        %v5228 = vpop.f32.mrf.mxu0
        %v5229 = vadd.f32 %v5215, %v5228
        %v5230 = vpop.f32.mrf.mxu0
        %v5231 = vadd.f32 %v5217, %v5230
        %5232 = vdwg.mxu0
        %5233 = vmatpush.bf16.msra.mxu0 %v3288
        %5234 = vmatpush.bf16.msra.mxu0 %v3284
        %5235 = vmatpush.bf16.msra.mxu0 %v3280
        %5236 = vmatpush.bf16.msra.mxu0 %v3276
        %5237 = vmatpush.bf16.msra.mxu0 %v3272
        %5238 = vmatpush.bf16.msra.mxu0 %v3268
        %5239 = vmatpush.bf16.msra.mxu0 %v3264
        %5240 = vmatpush.bf16.msra.mxu0 %v3260
        %5241 = vmatmul.bf16.gmra.mxu0 %v1049
        %v5242 = vpop.f32.mrf.mxu0
        %v5243 = vadd.f32 %v5229, %v5242
        %v5244 = vpop.f32.mrf.mxu0
        %v5245 = vadd.f32 %v5231, %v5244
        %5246 = vdwg.mxu0
        %5247 = vmatpush.bf16.msra.mxu0 %v3320
        %5248 = vmatpush.bf16.msra.mxu0 %v3316
        %5249 = vmatpush.bf16.msra.mxu0 %v3312
        %5250 = vmatpush.bf16.msra.mxu0 %v3308
        %5251 = vmatpush.bf16.msra.mxu0 %v3304
        %5252 = vmatpush.bf16.msra.mxu0 %v3300
        %5253 = vmatpush.bf16.msra.mxu0 %v3296
        %5254 = vmatpush.bf16.msra.mxu0 %v3292
        %5255 = vmatmul.bf16.gmra.mxu0 %v1050
        %v5256 = vpop.f32.mrf.mxu0
        %v5257 = vadd.f32 %v5243, %v5256
        %v5258 = vpop.f32.mrf.mxu0
        %v5259 = vadd.f32 %v5245, %v5258
        %5260 = vdwg.mxu0
        %5261 = vmatpush.bf16.msra.mxu0 %v3352
        %5262 = vmatpush.bf16.msra.mxu0 %v3348
        %5263 = vmatpush.bf16.msra.mxu0 %v3344
        %5264 = vmatpush.bf16.msra.mxu0 %v3340
        %5265 = vmatpush.bf16.msra.mxu0 %v3336
        %5266 = vmatpush.bf16.msra.mxu0 %v3332
        %5267 = vmatpush.bf16.msra.mxu0 %v3328
        %5268 = vmatpush.bf16.msra.mxu0 %v3324
        %5269 = vmatmul.bf16.gmra.mxu0 %v1051
        %v5270 = vpop.f32.mrf.mxu0
        %v5271 = vadd.f32 %v5257, %v5270
        %v5272 = vpop.f32.mrf.mxu0
        %v5273 = vadd.f32 %v5259, %v5272
        %5274 = vdwg.mxu0
        %5275 = vmatpush.bf16.msra.mxu0 %v3384
        %5276 = vmatpush.bf16.msra.mxu0 %v3380
        %5277 = vmatpush.bf16.msra.mxu0 %v3376
        %5278 = vmatpush.bf16.msra.mxu0 %v3372
        %5279 = vmatpush.bf16.msra.mxu0 %v3368
        %5280 = vmatpush.bf16.msra.mxu0 %v3364
        %5281 = vmatpush.bf16.msra.mxu0 %v3360
        %5282 = vmatpush.bf16.msra.mxu0 %v3356
        %5283 = vmatmul.bf16.gmra.mxu0 %v1052
        %v5284 = vpop.f32.mrf.mxu0
        %v5285 = vadd.f32 %v5271, %v5284
        %v5286 = vpop.f32.mrf.mxu0
        %v5287 = vadd.f32 %v5273, %v5286
        %5288 = vdwg.mxu0
        %5289 = vmatpush.bf16.msra.mxu0 %v3416
        %5290 = vmatpush.bf16.msra.mxu0 %v3412
        %5291 = vmatpush.bf16.msra.mxu0 %v3408
        %5292 = vmatpush.bf16.msra.mxu0 %v3404
        %5293 = vmatpush.bf16.msra.mxu0 %v3400
        %5294 = vmatpush.bf16.msra.mxu0 %v3396
        %5295 = vmatpush.bf16.msra.mxu0 %v3392
        %5296 = vmatpush.bf16.msra.mxu0 %v3388
        %5297 = vmatmul.bf16.gmra.mxu0 %v1053
        %v5298 = vpop.f32.mrf.mxu0
        %v5299 = vadd.f32 %v5285, %v5298
        %v5300 = vpop.f32.mrf.mxu0
        %v5301 = vadd.f32 %v5287, %v5300
        %5302 = vdwg.mxu0
        %5303 = vmatpush.bf16.msra.mxu0 %v3448
        %5304 = vmatpush.bf16.msra.mxu0 %v3444
        %5305 = vmatpush.bf16.msra.mxu0 %v3440
        %5306 = vmatpush.bf16.msra.mxu0 %v3436
        %5307 = vmatpush.bf16.msra.mxu0 %v3432
        %5308 = vmatpush.bf16.msra.mxu0 %v3428
        %5309 = vmatpush.bf16.msra.mxu0 %v3424
        %5310 = vmatpush.bf16.msra.mxu0 %v3420
        %5311 = vmatmul.bf16.gmra.mxu0 %v1054
        %v5312 = vpop.f32.mrf.mxu0
        %v5313 = vadd.f32 %v5299, %v5312
        %v5314 = vpop.f32.mrf.mxu0
        %v5315 = vadd.f32 %v5301, %v5314
        %5316 = vdwg.mxu0
        %5317 = vmatpush.bf16.msra.mxu0 %v3480
        %5318 = vmatpush.bf16.msra.mxu0 %v3476
        %5319 = vmatpush.bf16.msra.mxu0 %v3472
        %5320 = vmatpush.bf16.msra.mxu0 %v3468
        %5321 = vmatpush.bf16.msra.mxu0 %v3464
        %5322 = vmatpush.bf16.msra.mxu0 %v3460
        %5323 = vmatpush.bf16.msra.mxu0 %v3456
        %5324 = vmatpush.bf16.msra.mxu0 %v3452
        %5325 = vmatmul.bf16.gmra.mxu0 %v1055
        %v5326 = vpop.f32.mrf.mxu0
        %v5327 = vadd.f32 %v5313, %v5326
        %v5328 = vpop.f32.mrf.mxu0
        %v5329 = vadd.f32 %v5315, %v5328
        %5330 = vdwg.mxu0
        %5331 = vmatpush.bf16.msra.mxu0 %v3512
        %5332 = vmatpush.bf16.msra.mxu0 %v3508
        %5333 = vmatpush.bf16.msra.mxu0 %v3504
        %5334 = vmatpush.bf16.msra.mxu0 %v3500
        %5335 = vmatpush.bf16.msra.mxu0 %v3496
        %5336 = vmatpush.bf16.msra.mxu0 %v3492
        %5337 = vmatpush.bf16.msra.mxu0 %v3488
        %5338 = vmatpush.bf16.msra.mxu0 %v3484
        %5339 = vmatmul.bf16.gmra.mxu0 %v1056
        %v5340 = vpop.f32.mrf.mxu0
        %v5341 = vadd.f32 %v5327, %v5340
        %v5342 = vpop.f32.mrf.mxu0
        %v5343 = vadd.f32 %v5329, %v5342
        %5344 = vdwg.mxu0
        %5345 = vmatpush.bf16.msra.mxu0 %v3544
        %5346 = vmatpush.bf16.msra.mxu0 %v3540
        %5347 = vmatpush.bf16.msra.mxu0 %v3536
        %5348 = vmatpush.bf16.msra.mxu0 %v3532
        %5349 = vmatpush.bf16.msra.mxu0 %v3528
        %5350 = vmatpush.bf16.msra.mxu0 %v3524
        %5351 = vmatpush.bf16.msra.mxu0 %v3520
        %5352 = vmatpush.bf16.msra.mxu0 %v3516
        %5353 = vmatmul.bf16.gmra.mxu0 %v1057
        %v5354 = vpop.f32.mrf.mxu0
        %v5355 = vadd.f32 %v5341, %v5354
        %v5356 = vpop.f32.mrf.mxu0
        %v5357 = vadd.f32 %v5343, %v5356
        %5358 = vdwg.mxu0
        %5359 = vmatpush.bf16.msra.mxu0 %v3576
        %5360 = vmatpush.bf16.msra.mxu0 %v3572
        %5361 = vmatpush.bf16.msra.mxu0 %v3568
        %5362 = vmatpush.bf16.msra.mxu0 %v3564
        %5363 = vmatpush.bf16.msra.mxu0 %v3560
        %5364 = vmatpush.bf16.msra.mxu0 %v3556
        %5365 = vmatpush.bf16.msra.mxu0 %v3552
        %5366 = vmatpush.bf16.msra.mxu0 %v3548
        %5367 = vmatmul.bf16.gmra.mxu0 %v1058
        %v5368 = vpop.f32.mrf.mxu0
        %v5369 = vadd.f32 %v5355, %v5368
        %v5370 = vpop.f32.mrf.mxu0
        %v5371 = vadd.f32 %v5357, %v5370
        %5372 = vdwg.mxu0
        %5373 = vmatpush.bf16.msra.mxu0 %v3608
        %5374 = vmatpush.bf16.msra.mxu0 %v3604
        %5375 = vmatpush.bf16.msra.mxu0 %v3600
        %5376 = vmatpush.bf16.msra.mxu0 %v3596
        %5377 = vmatpush.bf16.msra.mxu0 %v3592
        %5378 = vmatpush.bf16.msra.mxu0 %v3588
        %5379 = vmatpush.bf16.msra.mxu0 %v3584
        %5380 = vmatpush.bf16.msra.mxu0 %v3580
        %5381 = vmatmul.bf16.gmra.mxu0 %v1059
        %v5382 = vpop.f32.mrf.mxu0
        %v5383 = vadd.f32 %v5369, %v5382
        %v5384 = vpop.f32.mrf.mxu0
        %v5385 = vadd.f32 %v5371, %v5384
        %5386 = vdwg.mxu0
        %5387 = vmatpush.bf16.msra.mxu0 %v3640
        %5388 = vmatpush.bf16.msra.mxu0 %v3636
        %5389 = vmatpush.bf16.msra.mxu0 %v3632
        %5390 = vmatpush.bf16.msra.mxu0 %v3628
        %5391 = vmatpush.bf16.msra.mxu0 %v3624
        %5392 = vmatpush.bf16.msra.mxu0 %v3620
        %5393 = vmatpush.bf16.msra.mxu0 %v3616
        %5394 = vmatpush.bf16.msra.mxu0 %v3612
        %5395 = vmatmul.bf16.gmra.mxu0 %v1060
        %v5396 = vpop.f32.mrf.mxu0
        %v5397 = vadd.f32 %v5383, %v5396
        %v5398 = vpop.f32.mrf.mxu0
        %v5399 = vadd.f32 %v5385, %v5398
        %5400 = vdwg.mxu0
        %vm5401 = vcmask 1040384
        %vm5402 = vsmask.f32 256
        %vm5403 = vmand %vm5401, %vm5402
        %vm5404 = vcmask 1044484
        %vm5405 = vsmask.f32 4352
        %vm5406 = vmand %vm5404, %vm5405
        %vm5407 = vmor %vm5406, %vm5403
        %v5408 = vld [vmem:[#allocation2] sm:$0x11]
        %v5409 = vsel %vm5407, 0, %v5408
        %5410 = vst [vmem:[#allocation2] sm:$0x11] %v5409
        %v5411 = vld [vmem:[#allocation2 + $0x8] sm:$0x11]
        %v5412 = vsel %vm5407, 0, %v5411
        %5413 = vst [vmem:[#allocation2 + $0x8] sm:$0x11] %v5412
        %vm5414 = vsmask.f32 7938
        %vm5415 = vmand %vm5401, %vm5414
        %vm5416 = vsmask.f32 7954
        %vm5417 = vmand %vm5404, %vm5416
        %vm5418 = vmor %vm5417, %vm5415
        %v5419 = vld [vmem:[#allocation2 + $0x20] sm:$0x11]
        %v5420 = vsel %vm5418, 0, %v5419
        %5421 = vst [vmem:[#allocation2 + $0x20] sm:$0x11] %v5420
        %v5422 = vld [vmem:[#allocation2 + $0x28] sm:$0x11]
        %v5423 = vsel %vm5418, 0, %v5422
        %5424 = vst [vmem:[#allocation2 + $0x28] sm:$0x11] %v5423
        %v5425 = vpack.c.bf16 %v4837, %v4557
        %v5426 = vpack.c.bf16 %v5397, %v5117
        %v5427 = vpack.c.bf16 %v4839, %v4559
        %v5428 = vpack.c.bf16 %v5399, %v5119
        %vm5429 = vsmask.f32 4368
        %vm5430 = vmor %vm5402, %vm5429
        %v5432 = vshrl.u32 %v5425, 16
        %v5434 = vrot.slane %v5432, 7
        %v5435 = vshll.u32 %v5425, 16
        %v5437 = vor.u32 %v5434, %v5435
        %v5439 = vshrl.u32 %v5426, 16
        %v5441 = vrot.slane %v5439, 7
        %v5442 = vshll.u32 %v5426, 16
        %v5444 = vor.u32 %v5441, %v5442
        %v5445 = vrot.slane %v5434, 4
        %v5447 = vshrl.u32 %v5427, 16
        %v5449 = vrot.slane %v5447, 7
        %v5450 = vshll.u32 %v5427, 16
        %v5452 = vor.u32 %v5449, %v5450
        %v5453 = vsel %vm5430, %v5445, %v5452
        %v5454 = vrot.slane %v5441, 4
        %v5456 = vshrl.u32 %v5428, 16
        %v5458 = vrot.slane %v5456, 7
        %v5459 = vshll.u32 %v5428, 16
        %v5461 = vor.u32 %v5458, %v5459
        %v5462 = vsel %vm5430, %v5454, %v5461
        %v5463 = vrot.slane %v5449, 4
        %v5464 = vrot.slane %v5458, 4
        %vm5471 = vcmask 1043456
        %vm5472 = vmand %vm5471, %vm5414
        %vm5473 = vcmask 1047556
        %vm5474 = vmand %vm5473, %vm5416
        %vm5475 = vmor %vm5474, %vm5472
        %v5476 = vld [vmem:[#allocation2] sm:$0xff]
        %v5477 = vsel %vm5475, %v5437, %v5476
        %5478 = vst [vmem:[#allocation2] sm:$0xff] %v5477
        %v5479 = vld [vmem:[#allocation2 + $0x8] sm:$0xff]
        %v5480 = vsel %vm5475, %v5444, %v5479
        %5481 = vst [vmem:[#allocation2 + $0x8] sm:$0xff] %v5480
        %5482 = vst [vmem:[#allocation2 + $0x10] sm:$0xff] %v5453
        %5483 = vst [vmem:[#allocation2 + $0x18] sm:$0xff] %v5462
        %v5484 = vld [vmem:[#allocation2 + $0x20] sm:$0x11]
        %v5485 = vsel %vm5407, %v5463, %v5484
        %5486 = vst [vmem:[#allocation2 + $0x20] sm:$0x11] %v5485
        %v5487 = vld [vmem:[#allocation2 + $0x28] sm:$0x11]
        %v5488 = vsel %vm5407, %v5464, %v5487
        %5489 = vst [vmem:[#allocation2 + $0x28] sm:$0x11] %v5488
        %v5490 = vld [vmem:[#allocation11] sm:$0xf]
        %v5491 = vld [vmem:[#allocation2] sm:$0xff]
        %v5492 = vld [vmem:[#allocation2 + $0x8] sm:$0xff]
        %v5493 = vld [vmem:[#allocation2 + $0x10] sm:$0xff]
        %v5494 = vld [vmem:[#allocation2 + $0x18] sm:$0xff]
        %v5495 = vld [vmem:[#allocation9] sm:$0xff]
        %v5496 = vld [vmem:[#allocation9 + $0x8] sm:$0xff]
        %v5497 = vld [vmem:[#allocation9 + $0x10] sm:$0xff]
        %v5498 = vld [vmem:[#allocation9 + $0x18] sm:$0xff]
        %v5499 = vld [vmem:[#allocation9 + $0x20] sm:$0xff]
        %v5500 = vld [vmem:[#allocation9 + $0x28] sm:$0xff]
        %v5501 = vld [vmem:[#allocation9 + $0x30] sm:$0xff]
        %v5502 = vld [vmem:[#allocation9 + $0x38] sm:$0xff]
        %v5503 = vld [vmem:[#allocation9 + $0x40] sm:$0xff]
        %v5504 = vld [vmem:[#allocation9 + $0x48] sm:$0xff]
        %v5505 = vld [vmem:[#allocation9 + $0x50] sm:$0xff]
        %v5506 = vld [vmem:[#allocation9 + $0x58] sm:$0xff]
        %v5507 = vld [vmem:[#allocation9 + $0x60] sm:$0xff]
        %v5508 = vld [vmem:[#allocation9 + $0x68] sm:$0xff]
        %v5509 = vld [vmem:[#allocation9 + $0x70] sm:$0xff]
        %v5510 = vld [vmem:[#allocation9 + $0x78] sm:$0xff]
        %v5511 = vld [vmem:[#allocation9 + $0x80] sm:$0xff]
        %v5512 = vld [vmem:[#allocation9 + $0x88] sm:$0xff]
        %v5513 = vld [vmem:[#allocation9 + $0x90] sm:$0xff]
        %v5514 = vld [vmem:[#allocation9 + $0x98] sm:$0xff]
        %v5515 = vld [vmem:[#allocation9 + $0xa0] sm:$0xff]
        %v5516 = vld [vmem:[#allocation9 + $0xa8] sm:$0xff]
        %v5517 = vld [vmem:[#allocation9 + $0xb0] sm:$0xff]
        %v5518 = vld [vmem:[#allocation9 + $0xb8] sm:$0xff]
        %v5519 = vld [vmem:[#allocation9 + $0xc0] sm:$0xff]
        %v5520 = vld [vmem:[#allocation9 + $0xc8] sm:$0xff]
        %v5521 = vld [vmem:[#allocation9 + $0xd0] sm:$0xff]
        %v5522 = vld [vmem:[#allocation9 + $0xd8] sm:$0xff]
        %v5523 = vld [vmem:[#allocation9 + $0xe0] sm:$0xff]
        %v5524 = vld [vmem:[#allocation9 + $0xe8] sm:$0xff]
        %v5525 = vld [vmem:[#allocation9 + $0xf0] sm:$0xff]
        %v5526 = vld [vmem:[#allocation9 + $0xf8] sm:$0xff]
        %v5527 = vld [vmem:[#allocation9 + $0x100] sm:$0xff]
        %v5528 = vld [vmem:[#allocation9 + $0x108] sm:$0xff]
        %v5529 = vld [vmem:[#allocation9 + $0x110] sm:$0xff]
        %v5530 = vld [vmem:[#allocation9 + $0x118] sm:$0xff]
        %v5531 = vld [vmem:[#allocation9 + $0x120] sm:$0xff]
        %v5532 = vld [vmem:[#allocation9 + $0x128] sm:$0xff]
        %v5533 = vld [vmem:[#allocation9 + $0x130] sm:$0xff]
        %v5534 = vld [vmem:[#allocation9 + $0x138] sm:$0xff]
        %v5535 = vld [vmem:[#allocation9 + $0x140] sm:$0xff]
        %v5536 = vld [vmem:[#allocation9 + $0x148] sm:$0xff]
        %v5537 = vld [vmem:[#allocation9 + $0x150] sm:$0xff]
        %v5538 = vld [vmem:[#allocation9 + $0x158] sm:$0xff]
        %v5539 = vld [vmem:[#allocation9 + $0x160] sm:$0xff]
        %v5540 = vld [vmem:[#allocation9 + $0x168] sm:$0xff]
        %v5541 = vld [vmem:[#allocation9 + $0x170] sm:$0xff]
        %v5542 = vld [vmem:[#allocation9 + $0x178] sm:$0xff]
        %v5543 = vld [vmem:[#allocation9 + $0x180] sm:$0xff]
        %v5544 = vld [vmem:[#allocation9 + $0x188] sm:$0xff]
        %v5545 = vld [vmem:[#allocation9 + $0x190] sm:$0xff]
        %v5546 = vld [vmem:[#allocation9 + $0x198] sm:$0xff]
        %v5547 = vld [vmem:[#allocation9 + $0x1a0] sm:$0xff]
        %v5548 = vld [vmem:[#allocation9 + $0x1a8] sm:$0xff]
        %v5549 = vld [vmem:[#allocation9 + $0x1b0] sm:$0xff]
        %v5550 = vld [vmem:[#allocation9 + $0x1b8] sm:$0xff]
        %v5551 = vld [vmem:[#allocation9 + $0x1c0] sm:$0xff]
        %v5552 = vld [vmem:[#allocation9 + $0x1c8] sm:$0xff]
        %v5553 = vld [vmem:[#allocation9 + $0x1d0] sm:$0xff]
        %v5554 = vld [vmem:[#allocation9 + $0x1d8] sm:$0xff]
        %v5555 = vld [vmem:[#allocation9 + $0x1e0] sm:$0xff]
        %v5556 = vld [vmem:[#allocation9 + $0x1e8] sm:$0xff]
        %v5557 = vld [vmem:[#allocation9 + $0x1f0] sm:$0xff]
        %v5558 = vld [vmem:[#allocation9 + $0x1f8] sm:$0xff]
        %v5559 = vld [vmem:[#allocation9 + $0x200] sm:$0xff]
        %v5560 = vld [vmem:[#allocation9 + $0x208] sm:$0xff]
        %v5561 = vld [vmem:[#allocation9 + $0x210] sm:$0xff]
        %v5562 = vld [vmem:[#allocation9 + $0x218] sm:$0xff]
        %v5563 = vld [vmem:[#allocation9 + $0x220] sm:$0xff]
        %v5564 = vld [vmem:[#allocation9 + $0x228] sm:$0xff]
        %v5565 = vld [vmem:[#allocation9 + $0x230] sm:$0xff]
        %v5566 = vld [vmem:[#allocation9 + $0x238] sm:$0xff]
        %v5567 = vld [vmem:[#allocation9 + $0x240] sm:$0xff]
        %v5568 = vld [vmem:[#allocation9 + $0x248] sm:$0xff]
        %v5569 = vld [vmem:[#allocation9 + $0x250] sm:$0xff]
        %v5570 = vld [vmem:[#allocation9 + $0x258] sm:$0xff]
        %v5571 = vld [vmem:[#allocation9 + $0x260] sm:$0xff]
        %v5572 = vld [vmem:[#allocation9 + $0x268] sm:$0xff]
        %v5573 = vld [vmem:[#allocation9 + $0x270] sm:$0xff]
        %v5574 = vld [vmem:[#allocation9 + $0x278] sm:$0xff]
        %v5575 = vld [vmem:[#allocation9 + $0x280] sm:$0xff]
        %v5576 = vld [vmem:[#allocation9 + $0x288] sm:$0xff]
        %v5577 = vld [vmem:[#allocation9 + $0x290] sm:$0xff]
        %v5578 = vld [vmem:[#allocation9 + $0x298] sm:$0xff]
        %v5579 = vld [vmem:[#allocation9 + $0x2a0] sm:$0xff]
        %v5580 = vld [vmem:[#allocation9 + $0x2a8] sm:$0xff]
        %v5581 = vld [vmem:[#allocation9 + $0x2b0] sm:$0xff]
        %v5582 = vld [vmem:[#allocation9 + $0x2b8] sm:$0xff]
        %v5583 = vld [vmem:[#allocation9 + $0x2c0] sm:$0xff]
        %v5584 = vld [vmem:[#allocation9 + $0x2c8] sm:$0xff]
        %v5585 = vld [vmem:[#allocation9 + $0x2d0] sm:$0xff]
        %v5586 = vld [vmem:[#allocation9 + $0x2d8] sm:$0xff]
        %v5587 = vld [vmem:[#allocation9 + $0x2e0] sm:$0xff]
        %v5588 = vld [vmem:[#allocation9 + $0x2e8] sm:$0xff]
        %v5589 = vld [vmem:[#allocation9 + $0x2f0] sm:$0xff]
        %v5590 = vld [vmem:[#allocation9 + $0x2f8] sm:$0xff]
        %v5591 = vld [vmem:[#allocation9 + $0x300] sm:$0xff]
        %v5592 = vld [vmem:[#allocation9 + $0x308] sm:$0xff]
        %v5593 = vld [vmem:[#allocation9 + $0x310] sm:$0xff]
        %v5594 = vld [vmem:[#allocation9 + $0x318] sm:$0xff]
        %v5595 = vld [vmem:[#allocation9 + $0x320] sm:$0xff]
        %v5596 = vld [vmem:[#allocation9 + $0x328] sm:$0xff]
        %v5597 = vld [vmem:[#allocation9 + $0x330] sm:$0xff]
        %v5598 = vld [vmem:[#allocation9 + $0x338] sm:$0xff]
        %v5599 = vld [vmem:[#allocation9 + $0x340] sm:$0xff]
        %v5600 = vld [vmem:[#allocation9 + $0x348] sm:$0xff]
        %v5601 = vld [vmem:[#allocation9 + $0x350] sm:$0xff]
        %v5602 = vld [vmem:[#allocation9 + $0x358] sm:$0xff]
        %v5603 = vld [vmem:[#allocation9 + $0x360] sm:$0xff]
        %v5604 = vld [vmem:[#allocation9 + $0x368] sm:$0xff]
        %v5605 = vld [vmem:[#allocation9 + $0x370] sm:$0xff]
        %v5606 = vld [vmem:[#allocation9 + $0x378] sm:$0xff]
        %v5607 = vld [vmem:[#allocation9 + $0x380] sm:$0xff]
        %v5608 = vld [vmem:[#allocation9 + $0x388] sm:$0xff]
        %v5609 = vld [vmem:[#allocation9 + $0x390] sm:$0xff]
        %v5610 = vld [vmem:[#allocation9 + $0x398] sm:$0xff]
        %v5611 = vld [vmem:[#allocation9 + $0x3a0] sm:$0xff]
        %v5612 = vld [vmem:[#allocation9 + $0x3a8] sm:$0xff]
        %v5613 = vld [vmem:[#allocation9 + $0x3b0] sm:$0xff]
        %v5614 = vld [vmem:[#allocation9 + $0x3b8] sm:$0xff]
        %v5615 = vld [vmem:[#allocation9 + $0x3c0] sm:$0xff]
        %v5616 = vld [vmem:[#allocation9 + $0x3c8] sm:$0xff]
        %v5617 = vld [vmem:[#allocation9 + $0x3d0] sm:$0xff]
        %v5618 = vld [vmem:[#allocation9 + $0x3d8] sm:$0xff]
        %v5619 = vld [vmem:[#allocation9 + $0x3e0] sm:$0xff]
        %v5620 = vld [vmem:[#allocation9 + $0x3e8] sm:$0xff]
        %v5621 = vld [vmem:[#allocation9 + $0x3f0] sm:$0xff]
        %v5622 = vld [vmem:[#allocation9 + $0x3f8] sm:$0xff]
        %v5627 = vunpack.c.l.b16 %v5491
        %v5628 = vunpack.c.h.b16 %v5491
        %v5629 = vunpack.c.l.b16 %v5492
        %v5630 = vunpack.c.h.b16 %v5492
        %v5631 = vunpack.c.l.b16 %v5493
        %v5632 = vunpack.c.h.b16 %v5493
        %v5633 = vunpack.c.l.b16 %v5494
        %v5634 = vunpack.c.h.b16 %v5494
        %v5635 = vpack.c.b16 %v5631, %v5627
        %v5636 = vpack.c.b16 %v5632, %v5628
        %v5637 = vpack.c.b16 %v5633, %v5629
        %v5638 = vpack.c.b16 %v5634, %v5630
        %v5771 = vunpack.c.l.b16 %v5495
        %v5772 = vunpack.c.h.b16 %v5495
        %v5773 = vunpack.c.l.b16 %v5496
        %v5774 = vunpack.c.h.b16 %v5496
        %v5775 = vunpack.c.l.b16 %v5497
        %v5776 = vunpack.c.h.b16 %v5497
        %v5777 = vunpack.c.l.b16 %v5498
        %v5778 = vunpack.c.h.b16 %v5498
        %v5779 = vunpack.c.l.b16 %v5499
        %v5780 = vunpack.c.h.b16 %v5499
        %v5781 = vunpack.c.l.b16 %v5500
        %v5782 = vunpack.c.h.b16 %v5500
        %v5783 = vunpack.c.l.b16 %v5501
        %v5784 = vunpack.c.h.b16 %v5501
        %v5785 = vunpack.c.l.b16 %v5502
        %v5786 = vunpack.c.h.b16 %v5502
        %v5787 = vunpack.c.l.b16 %v5503
        %v5788 = vunpack.c.h.b16 %v5503
        %v5789 = vunpack.c.l.b16 %v5504
        %v5790 = vunpack.c.h.b16 %v5504
        %v5791 = vunpack.c.l.b16 %v5505
        %v5792 = vunpack.c.h.b16 %v5505
        %v5793 = vunpack.c.l.b16 %v5506
        %v5794 = vunpack.c.h.b16 %v5506
        %v5795 = vunpack.c.l.b16 %v5507
        %v5796 = vunpack.c.h.b16 %v5507
        %v5797 = vunpack.c.l.b16 %v5508
        %v5798 = vunpack.c.h.b16 %v5508
        %v5799 = vunpack.c.l.b16 %v5509
        %v5800 = vunpack.c.h.b16 %v5509
        %v5801 = vunpack.c.l.b16 %v5510
        %v5802 = vunpack.c.h.b16 %v5510
        %v5803 = vunpack.c.l.b16 %v5511
        %v5804 = vunpack.c.h.b16 %v5511
        %v5805 = vunpack.c.l.b16 %v5512
        %v5806 = vunpack.c.h.b16 %v5512
        %v5807 = vunpack.c.l.b16 %v5513
        %v5808 = vunpack.c.h.b16 %v5513
        %v5809 = vunpack.c.l.b16 %v5514
        %v5810 = vunpack.c.h.b16 %v5514
        %v5811 = vunpack.c.l.b16 %v5515
        %v5812 = vunpack.c.h.b16 %v5515
        %v5813 = vunpack.c.l.b16 %v5516
        %v5814 = vunpack.c.h.b16 %v5516
        %v5815 = vunpack.c.l.b16 %v5517
        %v5816 = vunpack.c.h.b16 %v5517
        %v5817 = vunpack.c.l.b16 %v5518
        %v5818 = vunpack.c.h.b16 %v5518
        %v5819 = vunpack.c.l.b16 %v5519
        %v5820 = vunpack.c.h.b16 %v5519
        %v5821 = vunpack.c.l.b16 %v5520
        %v5822 = vunpack.c.h.b16 %v5520
        %v5823 = vunpack.c.l.b16 %v5521
        %v5824 = vunpack.c.h.b16 %v5521
        %v5825 = vunpack.c.l.b16 %v5522
        %v5826 = vunpack.c.h.b16 %v5522
        %v5827 = vunpack.c.l.b16 %v5523
        %v5828 = vunpack.c.h.b16 %v5523
        %v5829 = vunpack.c.l.b16 %v5524
        %v5830 = vunpack.c.h.b16 %v5524
        %v5831 = vunpack.c.l.b16 %v5525
        %v5832 = vunpack.c.h.b16 %v5525
        %v5833 = vunpack.c.l.b16 %v5526
        %v5834 = vunpack.c.h.b16 %v5526
        %v5835 = vunpack.c.l.b16 %v5527
        %v5836 = vunpack.c.h.b16 %v5527
        %v5837 = vunpack.c.l.b16 %v5528
        %v5838 = vunpack.c.h.b16 %v5528
        %v5839 = vunpack.c.l.b16 %v5529
        %v5840 = vunpack.c.h.b16 %v5529
        %v5841 = vunpack.c.l.b16 %v5530
        %v5842 = vunpack.c.h.b16 %v5530
        %v5843 = vunpack.c.l.b16 %v5531
        %v5844 = vunpack.c.h.b16 %v5531
        %v5845 = vunpack.c.l.b16 %v5532
        %v5846 = vunpack.c.h.b16 %v5532
        %v5847 = vunpack.c.l.b16 %v5533
        %v5848 = vunpack.c.h.b16 %v5533
        %v5849 = vunpack.c.l.b16 %v5534
        %v5850 = vunpack.c.h.b16 %v5534
        %v5851 = vunpack.c.l.b16 %v5535
        %v5852 = vunpack.c.h.b16 %v5535
        %v5853 = vunpack.c.l.b16 %v5536
        %v5854 = vunpack.c.h.b16 %v5536
        %v5855 = vunpack.c.l.b16 %v5537
        %v5856 = vunpack.c.h.b16 %v5537
        %v5857 = vunpack.c.l.b16 %v5538
        %v5858 = vunpack.c.h.b16 %v5538
        %v5859 = vunpack.c.l.b16 %v5539
        %v5860 = vunpack.c.h.b16 %v5539
        %v5861 = vunpack.c.l.b16 %v5540
        %v5862 = vunpack.c.h.b16 %v5540
        %v5863 = vunpack.c.l.b16 %v5541
        %v5864 = vunpack.c.h.b16 %v5541
        %v5865 = vunpack.c.l.b16 %v5542
        %v5866 = vunpack.c.h.b16 %v5542
        %v5867 = vunpack.c.l.b16 %v5543
        %v5868 = vunpack.c.h.b16 %v5543
        %v5869 = vunpack.c.l.b16 %v5544
        %v5870 = vunpack.c.h.b16 %v5544
        %v5871 = vunpack.c.l.b16 %v5545
        %v5872 = vunpack.c.h.b16 %v5545
        %v5873 = vunpack.c.l.b16 %v5546
        %v5874 = vunpack.c.h.b16 %v5546
        %v5875 = vunpack.c.l.b16 %v5547
        %v5876 = vunpack.c.h.b16 %v5547
        %v5877 = vunpack.c.l.b16 %v5548
        %v5878 = vunpack.c.h.b16 %v5548
        %v5879 = vunpack.c.l.b16 %v5549
        %v5880 = vunpack.c.h.b16 %v5549
        %v5881 = vunpack.c.l.b16 %v5550
        %v5882 = vunpack.c.h.b16 %v5550
        %v5883 = vunpack.c.l.b16 %v5551
        %v5884 = vunpack.c.h.b16 %v5551
        %v5885 = vunpack.c.l.b16 %v5552
        %v5886 = vunpack.c.h.b16 %v5552
        %v5887 = vunpack.c.l.b16 %v5553
        %v5888 = vunpack.c.h.b16 %v5553
        %v5889 = vunpack.c.l.b16 %v5554
        %v5890 = vunpack.c.h.b16 %v5554
        %v5891 = vunpack.c.l.b16 %v5555
        %v5892 = vunpack.c.h.b16 %v5555
        %v5893 = vunpack.c.l.b16 %v5556
        %v5894 = vunpack.c.h.b16 %v5556
        %v5895 = vunpack.c.l.b16 %v5557
        %v5896 = vunpack.c.h.b16 %v5557
        %v5897 = vunpack.c.l.b16 %v5558
        %v5898 = vunpack.c.h.b16 %v5558
        %v5899 = vunpack.c.l.b16 %v5559
        %v5900 = vunpack.c.h.b16 %v5559
        %v5901 = vunpack.c.l.b16 %v5560
        %v5902 = vunpack.c.h.b16 %v5560
        %v5903 = vunpack.c.l.b16 %v5561
        %v5904 = vunpack.c.h.b16 %v5561
        %v5905 = vunpack.c.l.b16 %v5562
        %v5906 = vunpack.c.h.b16 %v5562
        %v5907 = vunpack.c.l.b16 %v5563
        %v5908 = vunpack.c.h.b16 %v5563
        %v5909 = vunpack.c.l.b16 %v5564
        %v5910 = vunpack.c.h.b16 %v5564
        %v5911 = vunpack.c.l.b16 %v5565
        %v5912 = vunpack.c.h.b16 %v5565
        %v5913 = vunpack.c.l.b16 %v5566
        %v5914 = vunpack.c.h.b16 %v5566
        %v5915 = vunpack.c.l.b16 %v5567
        %v5916 = vunpack.c.h.b16 %v5567
        %v5917 = vunpack.c.l.b16 %v5568
        %v5918 = vunpack.c.h.b16 %v5568
        %v5919 = vunpack.c.l.b16 %v5569
        %v5920 = vunpack.c.h.b16 %v5569
        %v5921 = vunpack.c.l.b16 %v5570
        %v5922 = vunpack.c.h.b16 %v5570
        %v5923 = vunpack.c.l.b16 %v5571
        %v5924 = vunpack.c.h.b16 %v5571
        %v5925 = vunpack.c.l.b16 %v5572
        %v5926 = vunpack.c.h.b16 %v5572
        %v5927 = vunpack.c.l.b16 %v5573
        %v5928 = vunpack.c.h.b16 %v5573
        %v5929 = vunpack.c.l.b16 %v5574
        %v5930 = vunpack.c.h.b16 %v5574
        %v5931 = vunpack.c.l.b16 %v5575
        %v5932 = vunpack.c.h.b16 %v5575
        %v5933 = vunpack.c.l.b16 %v5576
        %v5934 = vunpack.c.h.b16 %v5576
        %v5935 = vunpack.c.l.b16 %v5577
        %v5936 = vunpack.c.h.b16 %v5577
        %v5937 = vunpack.c.l.b16 %v5578
        %v5938 = vunpack.c.h.b16 %v5578
        %v5939 = vunpack.c.l.b16 %v5579
        %v5940 = vunpack.c.h.b16 %v5579
        %v5941 = vunpack.c.l.b16 %v5580
        %v5942 = vunpack.c.h.b16 %v5580
        %v5943 = vunpack.c.l.b16 %v5581
        %v5944 = vunpack.c.h.b16 %v5581
        %v5945 = vunpack.c.l.b16 %v5582
        %v5946 = vunpack.c.h.b16 %v5582
        %v5947 = vunpack.c.l.b16 %v5583
        %v5948 = vunpack.c.h.b16 %v5583
        %v5949 = vunpack.c.l.b16 %v5584
        %v5950 = vunpack.c.h.b16 %v5584
        %v5951 = vunpack.c.l.b16 %v5585
        %v5952 = vunpack.c.h.b16 %v5585
        %v5953 = vunpack.c.l.b16 %v5586
        %v5954 = vunpack.c.h.b16 %v5586
        %v5955 = vunpack.c.l.b16 %v5587
        %v5956 = vunpack.c.h.b16 %v5587
        %v5957 = vunpack.c.l.b16 %v5588
        %v5958 = vunpack.c.h.b16 %v5588
        %v5959 = vunpack.c.l.b16 %v5589
        %v5960 = vunpack.c.h.b16 %v5589
        %v5961 = vunpack.c.l.b16 %v5590
        %v5962 = vunpack.c.h.b16 %v5590
        %v5963 = vunpack.c.l.b16 %v5591
        %v5964 = vunpack.c.h.b16 %v5591
        %v5965 = vunpack.c.l.b16 %v5592
        %v5966 = vunpack.c.h.b16 %v5592
        %v5967 = vunpack.c.l.b16 %v5593
        %v5968 = vunpack.c.h.b16 %v5593
        %v5969 = vunpack.c.l.b16 %v5594
        %v5970 = vunpack.c.h.b16 %v5594
        %v5971 = vunpack.c.l.b16 %v5595
        %v5972 = vunpack.c.h.b16 %v5595
        %v5973 = vunpack.c.l.b16 %v5596
        %v5974 = vunpack.c.h.b16 %v5596
        %v5975 = vunpack.c.l.b16 %v5597
        %v5976 = vunpack.c.h.b16 %v5597
        %v5977 = vunpack.c.l.b16 %v5598
        %v5978 = vunpack.c.h.b16 %v5598
        %v5979 = vunpack.c.l.b16 %v5599
        %v5980 = vunpack.c.h.b16 %v5599
        %v5981 = vunpack.c.l.b16 %v5600
        %v5982 = vunpack.c.h.b16 %v5600
        %v5983 = vunpack.c.l.b16 %v5601
        %v5984 = vunpack.c.h.b16 %v5601
        %v5985 = vunpack.c.l.b16 %v5602
        %v5986 = vunpack.c.h.b16 %v5602
        %v5987 = vunpack.c.l.b16 %v5603
        %v5988 = vunpack.c.h.b16 %v5603
        %v5989 = vunpack.c.l.b16 %v5604
        %v5990 = vunpack.c.h.b16 %v5604
        %v5991 = vunpack.c.l.b16 %v5605
        %v5992 = vunpack.c.h.b16 %v5605
        %v5993 = vunpack.c.l.b16 %v5606
        %v5994 = vunpack.c.h.b16 %v5606
        %v5995 = vunpack.c.l.b16 %v5607
        %v5996 = vunpack.c.h.b16 %v5607
        %v5997 = vunpack.c.l.b16 %v5608
        %v5998 = vunpack.c.h.b16 %v5608
        %v5999 = vunpack.c.l.b16 %v5609
        %v6000 = vunpack.c.h.b16 %v5609
        %v6001 = vunpack.c.l.b16 %v5610
        %v6002 = vunpack.c.h.b16 %v5610
        %v6003 = vunpack.c.l.b16 %v5611
        %v6004 = vunpack.c.h.b16 %v5611
        %v6005 = vunpack.c.l.b16 %v5612
        %v6006 = vunpack.c.h.b16 %v5612
        %v6007 = vunpack.c.l.b16 %v5613
        %v6008 = vunpack.c.h.b16 %v5613
        %v6009 = vunpack.c.l.b16 %v5614
        %v6010 = vunpack.c.h.b16 %v5614
        %v6011 = vunpack.c.l.b16 %v5615
        %v6012 = vunpack.c.h.b16 %v5615
        %v6013 = vunpack.c.l.b16 %v5616
        %v6014 = vunpack.c.h.b16 %v5616
        %v6015 = vunpack.c.l.b16 %v5617
        %v6016 = vunpack.c.h.b16 %v5617
        %v6017 = vunpack.c.l.b16 %v5618
        %v6018 = vunpack.c.h.b16 %v5618
        %v6019 = vunpack.c.l.b16 %v5619
        %v6020 = vunpack.c.h.b16 %v5619
        %v6021 = vunpack.c.l.b16 %v5620
        %v6022 = vunpack.c.h.b16 %v5620
        %v6023 = vunpack.c.l.b16 %v5621
        %v6024 = vunpack.c.h.b16 %v5621
        %v6025 = vunpack.c.l.b16 %v5622
        %v6026 = vunpack.c.h.b16 %v5622
        %v6027 = vpack.c.b16 %v5775, %v5771
        %v6028 = vpack.c.b16 %v5776, %v5772
        %v6029 = vpack.c.b16 %v5777, %v5773
        %v6030 = vpack.c.b16 %v5778, %v5774
        %v6031 = vpack.c.b16 %v5783, %v5779
        %v6032 = vpack.c.b16 %v5784, %v5780
        %v6033 = vpack.c.b16 %v5785, %v5781
        %v6034 = vpack.c.b16 %v5786, %v5782
        %v6035 = vpack.c.b16 %v5791, %v5787
        %v6036 = vpack.c.b16 %v5792, %v5788
        %v6037 = vpack.c.b16 %v5793, %v5789
        %v6038 = vpack.c.b16 %v5794, %v5790
        %v6039 = vpack.c.b16 %v5799, %v5795
        %v6040 = vpack.c.b16 %v5800, %v5796
        %v6041 = vpack.c.b16 %v5801, %v5797
        %v6042 = vpack.c.b16 %v5802, %v5798
        %v6043 = vpack.c.b16 %v5807, %v5803
        %v6044 = vpack.c.b16 %v5808, %v5804
        %v6045 = vpack.c.b16 %v5809, %v5805
        %v6046 = vpack.c.b16 %v5810, %v5806
        %v6047 = vpack.c.b16 %v5815, %v5811
        %v6048 = vpack.c.b16 %v5816, %v5812
        %v6049 = vpack.c.b16 %v5817, %v5813
        %v6050 = vpack.c.b16 %v5818, %v5814
        %v6051 = vpack.c.b16 %v5823, %v5819
        %v6052 = vpack.c.b16 %v5824, %v5820
        %v6053 = vpack.c.b16 %v5825, %v5821
        %v6054 = vpack.c.b16 %v5826, %v5822
        %v6055 = vpack.c.b16 %v5831, %v5827
        %v6056 = vpack.c.b16 %v5832, %v5828
        %v6057 = vpack.c.b16 %v5833, %v5829
        %v6058 = vpack.c.b16 %v5834, %v5830
        %v6059 = vpack.c.b16 %v5839, %v5835
        %v6060 = vpack.c.b16 %v5840, %v5836
        %v6061 = vpack.c.b16 %v5841, %v5837
        %v6062 = vpack.c.b16 %v5842, %v5838
        %v6063 = vpack.c.b16 %v5847, %v5843
        %v6064 = vpack.c.b16 %v5848, %v5844
        %v6065 = vpack.c.b16 %v5849, %v5845
        %v6066 = vpack.c.b16 %v5850, %v5846
        %v6067 = vpack.c.b16 %v5855, %v5851
        %v6068 = vpack.c.b16 %v5856, %v5852
        %v6069 = vpack.c.b16 %v5857, %v5853
        %v6070 = vpack.c.b16 %v5858, %v5854
        %v6071 = vpack.c.b16 %v5863, %v5859
        %v6072 = vpack.c.b16 %v5864, %v5860
        %v6073 = vpack.c.b16 %v5865, %v5861
        %v6074 = vpack.c.b16 %v5866, %v5862
        %v6075 = vpack.c.b16 %v5871, %v5867
        %v6076 = vpack.c.b16 %v5872, %v5868
        %v6077 = vpack.c.b16 %v5873, %v5869
        %v6078 = vpack.c.b16 %v5874, %v5870
        %v6079 = vpack.c.b16 %v5879, %v5875
        %v6080 = vpack.c.b16 %v5880, %v5876
        %v6081 = vpack.c.b16 %v5881, %v5877
        %v6082 = vpack.c.b16 %v5882, %v5878
        %v6083 = vpack.c.b16 %v5887, %v5883
        %v6084 = vpack.c.b16 %v5888, %v5884
        %v6085 = vpack.c.b16 %v5889, %v5885
        %v6086 = vpack.c.b16 %v5890, %v5886
        %v6087 = vpack.c.b16 %v5895, %v5891
        %v6088 = vpack.c.b16 %v5896, %v5892
        %v6089 = vpack.c.b16 %v5897, %v5893
        %v6090 = vpack.c.b16 %v5898, %v5894
        %v6091 = vpack.c.b16 %v5903, %v5899
        %v6092 = vpack.c.b16 %v5904, %v5900
        %v6093 = vpack.c.b16 %v5905, %v5901
        %v6094 = vpack.c.b16 %v5906, %v5902
        %v6095 = vpack.c.b16 %v5911, %v5907
        %v6096 = vpack.c.b16 %v5912, %v5908
        %v6097 = vpack.c.b16 %v5913, %v5909
        %v6098 = vpack.c.b16 %v5914, %v5910
        %v6099 = vpack.c.b16 %v5919, %v5915
        %v6100 = vpack.c.b16 %v5920, %v5916
        %v6101 = vpack.c.b16 %v5921, %v5917
        %v6102 = vpack.c.b16 %v5922, %v5918
        %v6103 = vpack.c.b16 %v5927, %v5923
        %v6104 = vpack.c.b16 %v5928, %v5924
        %v6105 = vpack.c.b16 %v5929, %v5925
        %v6106 = vpack.c.b16 %v5930, %v5926
        %v6107 = vpack.c.b16 %v5935, %v5931
        %v6108 = vpack.c.b16 %v5936, %v5932
        %v6109 = vpack.c.b16 %v5937, %v5933
        %v6110 = vpack.c.b16 %v5938, %v5934
        %v6111 = vpack.c.b16 %v5943, %v5939
        %v6112 = vpack.c.b16 %v5944, %v5940
        %v6113 = vpack.c.b16 %v5945, %v5941
        %v6114 = vpack.c.b16 %v5946, %v5942
        %v6115 = vpack.c.b16 %v5951, %v5947
        %v6116 = vpack.c.b16 %v5952, %v5948
        %v6117 = vpack.c.b16 %v5953, %v5949
        %v6118 = vpack.c.b16 %v5954, %v5950
        %v6119 = vpack.c.b16 %v5959, %v5955
        %v6120 = vpack.c.b16 %v5960, %v5956
        %v6121 = vpack.c.b16 %v5961, %v5957
        %v6122 = vpack.c.b16 %v5962, %v5958
        %v6123 = vpack.c.b16 %v5967, %v5963
        %v6124 = vpack.c.b16 %v5968, %v5964
        %v6125 = vpack.c.b16 %v5969, %v5965
        %v6126 = vpack.c.b16 %v5970, %v5966
        %v6127 = vpack.c.b16 %v5975, %v5971
        %v6128 = vpack.c.b16 %v5976, %v5972
        %v6129 = vpack.c.b16 %v5977, %v5973
        %v6130 = vpack.c.b16 %v5978, %v5974
        %v6131 = vpack.c.b16 %v5983, %v5979
        %v6132 = vpack.c.b16 %v5984, %v5980
        %v6133 = vpack.c.b16 %v5985, %v5981
        %v6134 = vpack.c.b16 %v5986, %v5982
        %v6135 = vpack.c.b16 %v5991, %v5987
        %v6136 = vpack.c.b16 %v5992, %v5988
        %v6137 = vpack.c.b16 %v5993, %v5989
        %v6138 = vpack.c.b16 %v5994, %v5990
        %v6139 = vpack.c.b16 %v5999, %v5995
        %v6140 = vpack.c.b16 %v6000, %v5996
        %v6141 = vpack.c.b16 %v6001, %v5997
        %v6142 = vpack.c.b16 %v6002, %v5998
        %v6143 = vpack.c.b16 %v6007, %v6003
        %v6144 = vpack.c.b16 %v6008, %v6004
        %v6145 = vpack.c.b16 %v6009, %v6005
        %v6146 = vpack.c.b16 %v6010, %v6006
        %v6147 = vpack.c.b16 %v6015, %v6011
        %v6148 = vpack.c.b16 %v6016, %v6012
        %v6149 = vpack.c.b16 %v6017, %v6013
        %v6150 = vpack.c.b16 %v6018, %v6014
        %v6151 = vpack.c.b16 %v6023, %v6019
        %v6152 = vpack.c.b16 %v6024, %v6020
        %v6153 = vpack.c.b16 %v6025, %v6021
        %v6154 = vpack.c.b16 %v6026, %v6022
        %6283 = vmatpush.bf16.msra.mxu0 %v6055
        %6284 = vmatpush.bf16.msra.mxu0 %v6051
        %6285 = vmatpush.bf16.msra.mxu0 %v6047
        %6286 = vmatpush.bf16.msra.mxu0 %v6043
        %6287 = vmatpush.bf16.msra.mxu0 %v6039
        %6288 = vmatpush.bf16.msra.mxu0 %v6035
        %6289 = vmatpush.bf16.msra.mxu0 %v6031
        %6290 = vmatpush.bf16.msra.mxu0 %v6027
        %6291 = vmatmul.bf16.gmra.mxu0 %v5635
        %v6292 = vpop.f32.mrf.mxu0
        %v6293 = vadd.f32 0.0, %v6292
        %v6294 = vpop.f32.mrf.mxu0
        %v6295 = vadd.f32 0.0, %v6294
        %6296 = vdwg.mxu0
        %6297 = vmatpush.bf16.msra.mxu0 %v6087
        %6298 = vmatpush.bf16.msra.mxu0 %v6083
        %6299 = vmatpush.bf16.msra.mxu0 %v6079
        %6300 = vmatpush.bf16.msra.mxu0 %v6075
        %6301 = vmatpush.bf16.msra.mxu0 %v6071
        %6302 = vmatpush.bf16.msra.mxu0 %v6067
        %6303 = vmatpush.bf16.msra.mxu0 %v6063
        %6304 = vmatpush.bf16.msra.mxu0 %v6059
        %6305 = vmatmul.bf16.gmra.mxu0 %v5636
        %v6306 = vpop.f32.mrf.mxu0
        %v6307 = vadd.f32 %v6293, %v6306
        %v6308 = vpop.f32.mrf.mxu0
        %v6309 = vadd.f32 %v6295, %v6308
        %6310 = vdwg.mxu0
        %6311 = vmatpush.bf16.msra.mxu0 %v6119
        %6312 = vmatpush.bf16.msra.mxu0 %v6115
        %6313 = vmatpush.bf16.msra.mxu0 %v6111
        %6314 = vmatpush.bf16.msra.mxu0 %v6107
        %6315 = vmatpush.bf16.msra.mxu0 %v6103
        %6316 = vmatpush.bf16.msra.mxu0 %v6099
        %6317 = vmatpush.bf16.msra.mxu0 %v6095
        %6318 = vmatpush.bf16.msra.mxu0 %v6091
        %6319 = vmatmul.bf16.gmra.mxu0 %v5637
        %v6320 = vpop.f32.mrf.mxu0
        %v6321 = vadd.f32 %v6307, %v6320
        %v6322 = vpop.f32.mrf.mxu0
        %v6323 = vadd.f32 %v6309, %v6322
        %6324 = vdwg.mxu0
        %6325 = vmatpush.bf16.msra.mxu0 %v6151
        %6326 = vmatpush.bf16.msra.mxu0 %v6147
        %6327 = vmatpush.bf16.msra.mxu0 %v6143
        %6328 = vmatpush.bf16.msra.mxu0 %v6139
        %6329 = vmatpush.bf16.msra.mxu0 %v6135
        %6330 = vmatpush.bf16.msra.mxu0 %v6131
        %6331 = vmatpush.bf16.msra.mxu0 %v6127
        %6332 = vmatpush.bf16.msra.mxu0 %v6123
        %6333 = vmatmul.bf16.gmra.mxu0 %v5638
        %v6334 = vpop.f32.mrf.mxu0
        %v6335 = vadd.f32 %v6321, %v6334
        %v6336 = vpop.f32.mrf.mxu0
        %v6337 = vadd.f32 %v6323, %v6336
        %6338 = vdwg.mxu0
        %6339 = vmatpush.bf16.msra.mxu0 %v6056
        %6340 = vmatpush.bf16.msra.mxu0 %v6052
        %6341 = vmatpush.bf16.msra.mxu0 %v6048
        %6342 = vmatpush.bf16.msra.mxu0 %v6044
        %6343 = vmatpush.bf16.msra.mxu0 %v6040
        %6344 = vmatpush.bf16.msra.mxu0 %v6036
        %6345 = vmatpush.bf16.msra.mxu0 %v6032
        %6346 = vmatpush.bf16.msra.mxu0 %v6028
        %6347 = vmatmul.bf16.gmra.mxu0 %v5635
        %v6348 = vpop.f32.mrf.mxu0
        %v6349 = vadd.f32 0.0, %v6348
        %v6350 = vpop.f32.mrf.mxu0
        %v6351 = vadd.f32 0.0, %v6350
        %6352 = vdwg.mxu0
        %6353 = vmatpush.bf16.msra.mxu0 %v6088
        %6354 = vmatpush.bf16.msra.mxu0 %v6084
        %6355 = vmatpush.bf16.msra.mxu0 %v6080
        %6356 = vmatpush.bf16.msra.mxu0 %v6076
        %6357 = vmatpush.bf16.msra.mxu0 %v6072
        %6358 = vmatpush.bf16.msra.mxu0 %v6068
        %6359 = vmatpush.bf16.msra.mxu0 %v6064
        %6360 = vmatpush.bf16.msra.mxu0 %v6060
        %6361 = vmatmul.bf16.gmra.mxu0 %v5636
        %v6362 = vpop.f32.mrf.mxu0
        %v6363 = vadd.f32 %v6349, %v6362
        %v6364 = vpop.f32.mrf.mxu0
        %v6365 = vadd.f32 %v6351, %v6364
        %6366 = vdwg.mxu0
        %6367 = vmatpush.bf16.msra.mxu0 %v6120
        %6368 = vmatpush.bf16.msra.mxu0 %v6116
        %6369 = vmatpush.bf16.msra.mxu0 %v6112
        %6370 = vmatpush.bf16.msra.mxu0 %v6108
        %6371 = vmatpush.bf16.msra.mxu0 %v6104
        %6372 = vmatpush.bf16.msra.mxu0 %v6100
        %6373 = vmatpush.bf16.msra.mxu0 %v6096
        %6374 = vmatpush.bf16.msra.mxu0 %v6092
        %6375 = vmatmul.bf16.gmra.mxu0 %v5637
        %v6376 = vpop.f32.mrf.mxu0
        %v6377 = vadd.f32 %v6363, %v6376
        %v6378 = vpop.f32.mrf.mxu0
        %v6379 = vadd.f32 %v6365, %v6378
        %6380 = vdwg.mxu0
        %6381 = vmatpush.bf16.msra.mxu0 %v6152
        %6382 = vmatpush.bf16.msra.mxu0 %v6148
        %6383 = vmatpush.bf16.msra.mxu0 %v6144
        %6384 = vmatpush.bf16.msra.mxu0 %v6140
        %6385 = vmatpush.bf16.msra.mxu0 %v6136
        %6386 = vmatpush.bf16.msra.mxu0 %v6132
        %6387 = vmatpush.bf16.msra.mxu0 %v6128
        %6388 = vmatpush.bf16.msra.mxu0 %v6124
        %6389 = vmatmul.bf16.gmra.mxu0 %v5638
        %v6390 = vpop.f32.mrf.mxu0
        %v6391 = vadd.f32 %v6377, %v6390
        %v6392 = vpop.f32.mrf.mxu0
        %v6393 = vadd.f32 %v6379, %v6392
        %6394 = vdwg.mxu0
        %6395 = vmatpush.bf16.msra.mxu0 %v6057
        %6396 = vmatpush.bf16.msra.mxu0 %v6053
        %6397 = vmatpush.bf16.msra.mxu0 %v6049
        %6398 = vmatpush.bf16.msra.mxu0 %v6045
        %6399 = vmatpush.bf16.msra.mxu0 %v6041
        %6400 = vmatpush.bf16.msra.mxu0 %v6037
        %6401 = vmatpush.bf16.msra.mxu0 %v6033
        %6402 = vmatpush.bf16.msra.mxu0 %v6029
        %6403 = vmatmul.bf16.gmra.mxu0 %v5635
        %v6404 = vpop.f32.mrf.mxu0
        %v6405 = vadd.f32 0.0, %v6404
        %v6406 = vpop.f32.mrf.mxu0
        %v6407 = vadd.f32 0.0, %v6406
        %6408 = vdwg.mxu0
        %6409 = vmatpush.bf16.msra.mxu0 %v6089
        %6410 = vmatpush.bf16.msra.mxu0 %v6085
        %6411 = vmatpush.bf16.msra.mxu0 %v6081
        %6412 = vmatpush.bf16.msra.mxu0 %v6077
        %6413 = vmatpush.bf16.msra.mxu0 %v6073
        %6414 = vmatpush.bf16.msra.mxu0 %v6069
        %6415 = vmatpush.bf16.msra.mxu0 %v6065
        %6416 = vmatpush.bf16.msra.mxu0 %v6061
        %6417 = vmatmul.bf16.gmra.mxu0 %v5636
        %v6418 = vpop.f32.mrf.mxu0
        %v6419 = vadd.f32 %v6405, %v6418
        %v6420 = vpop.f32.mrf.mxu0
        %v6421 = vadd.f32 %v6407, %v6420
        %6422 = vdwg.mxu0
        %6423 = vmatpush.bf16.msra.mxu0 %v6121
        %6424 = vmatpush.bf16.msra.mxu0 %v6117
        %6425 = vmatpush.bf16.msra.mxu0 %v6113
        %6426 = vmatpush.bf16.msra.mxu0 %v6109
        %6427 = vmatpush.bf16.msra.mxu0 %v6105
        %6428 = vmatpush.bf16.msra.mxu0 %v6101
        %6429 = vmatpush.bf16.msra.mxu0 %v6097
        %6430 = vmatpush.bf16.msra.mxu0 %v6093
        %6431 = vmatmul.bf16.gmra.mxu0 %v5637
        %v6432 = vpop.f32.mrf.mxu0
        %v6433 = vadd.f32 %v6419, %v6432
        %v6434 = vpop.f32.mrf.mxu0
        %v6435 = vadd.f32 %v6421, %v6434
        %6436 = vdwg.mxu0
        %6437 = vmatpush.bf16.msra.mxu0 %v6153
        %6438 = vmatpush.bf16.msra.mxu0 %v6149
        %6439 = vmatpush.bf16.msra.mxu0 %v6145
        %6440 = vmatpush.bf16.msra.mxu0 %v6141
        %6441 = vmatpush.bf16.msra.mxu0 %v6137
        %6442 = vmatpush.bf16.msra.mxu0 %v6133
        %6443 = vmatpush.bf16.msra.mxu0 %v6129
        %6444 = vmatpush.bf16.msra.mxu0 %v6125
        %6445 = vmatmul.bf16.gmra.mxu0 %v5638
        %v6446 = vpop.f32.mrf.mxu0
        %v6447 = vadd.f32 %v6433, %v6446
        %v6448 = vpop.f32.mrf.mxu0
        %v6449 = vadd.f32 %v6435, %v6448
        %6450 = vdwg.mxu0
        %6451 = vmatpush.bf16.msra.mxu0 %v6058
        %6452 = vmatpush.bf16.msra.mxu0 %v6054
        %6453 = vmatpush.bf16.msra.mxu0 %v6050
        %6454 = vmatpush.bf16.msra.mxu0 %v6046
        %6455 = vmatpush.bf16.msra.mxu0 %v6042
        %6456 = vmatpush.bf16.msra.mxu0 %v6038
        %6457 = vmatpush.bf16.msra.mxu0 %v6034
        %6458 = vmatpush.bf16.msra.mxu0 %v6030
        %6459 = vmatmul.bf16.gmra.mxu0 %v5635
        %v6460 = vpop.f32.mrf.mxu0
        %v6461 = vadd.f32 0.0, %v6460
        %v6462 = vpop.f32.mrf.mxu0
        %v6463 = vadd.f32 0.0, %v6462
        %6464 = vdwg.mxu0
        %6465 = vmatpush.bf16.msra.mxu0 %v6090
        %6466 = vmatpush.bf16.msra.mxu0 %v6086
        %6467 = vmatpush.bf16.msra.mxu0 %v6082
        %6468 = vmatpush.bf16.msra.mxu0 %v6078
        %6469 = vmatpush.bf16.msra.mxu0 %v6074
        %6470 = vmatpush.bf16.msra.mxu0 %v6070
        %6471 = vmatpush.bf16.msra.mxu0 %v6066
        %6472 = vmatpush.bf16.msra.mxu0 %v6062
        %6473 = vmatmul.bf16.gmra.mxu0 %v5636
        %v6474 = vpop.f32.mrf.mxu0
        %v6475 = vadd.f32 %v6461, %v6474
        %v6476 = vpop.f32.mrf.mxu0
        %v6477 = vadd.f32 %v6463, %v6476
        %6478 = vdwg.mxu0
        %6479 = vmatpush.bf16.msra.mxu0 %v6122
        %6480 = vmatpush.bf16.msra.mxu0 %v6118
        %6481 = vmatpush.bf16.msra.mxu0 %v6114
        %6482 = vmatpush.bf16.msra.mxu0 %v6110
        %6483 = vmatpush.bf16.msra.mxu0 %v6106
        %6484 = vmatpush.bf16.msra.mxu0 %v6102
        %6485 = vmatpush.bf16.msra.mxu0 %v6098
        %6486 = vmatpush.bf16.msra.mxu0 %v6094
        %6487 = vmatmul.bf16.gmra.mxu0 %v5637
        %v6488 = vpop.f32.mrf.mxu0
        %v6489 = vadd.f32 %v6475, %v6488
        %v6490 = vpop.f32.mrf.mxu0
        %v6491 = vadd.f32 %v6477, %v6490
        %6492 = vdwg.mxu0
        %6493 = vmatpush.bf16.msra.mxu0 %v6154
        %6494 = vmatpush.bf16.msra.mxu0 %v6150
        %6495 = vmatpush.bf16.msra.mxu0 %v6146
        %6496 = vmatpush.bf16.msra.mxu0 %v6142
        %6497 = vmatpush.bf16.msra.mxu0 %v6138
        %6498 = vmatpush.bf16.msra.mxu0 %v6134
        %6499 = vmatpush.bf16.msra.mxu0 %v6130
        %6500 = vmatpush.bf16.msra.mxu0 %v6126
        %6501 = vmatmul.bf16.gmra.mxu0 %v5638
        %v6502 = vpop.f32.mrf.mxu0
        %v6503 = vadd.f32 %v6489, %v6502
        %v6504 = vpop.f32.mrf.mxu0
        %v6505 = vadd.f32 %v6491, %v6504
        %6506 = vdwg.mxu0
        %v6508 = vperm.slane %v5490, 0
        %v6509 = vperm.slane %v5490, 1
        %v6510 = vperm.slane %v5490, 2
        %v6511 = vperm.slane %v5490, 3
        %v6516 = vadd.f32 %v6508, %v6335
        %v6517 = vadd.f32 %v6509, %v6391
        %v6518 = vadd.f32 %v6510, %v6447
        %v6519 = vadd.f32 %v6511, %v6503
        %v6520 = vadd.f32 %v6508, %v6337
        %v6521 = vadd.f32 %v6509, %v6393
        %v6522 = vadd.f32 %v6510, %v6449
        %v6523 = vadd.f32 %v6511, %v6505
        %v6524 = vld [vmem:[#allocation2] sm:$0xff]
        %v6525 = vld [vmem:[#allocation2 + $0x8] sm:$0xff]
        %v6526 = vld [vmem:[#allocation2 + $0x10] sm:$0xff]
        %v6527 = vld [vmem:[#allocation2 + $0x18] sm:$0xff]
        %v6528 = vld [vmem:[#allocation2 + $0x20] sm:$0x11]
        %v6529 = vld [vmem:[#allocation2 + $0x28] sm:$0x11]
        %s6530 = scalar_lea.vmem [#allocation9], 1024
        %v6531 = vld [vmem:[%s6530] sm:$0xff]
        %v6532 = vld [vmem:[%s6530 + $0x8] sm:$0xff]
        %v6533 = vld [vmem:[%s6530 + $0x10] sm:$0xff]
        %v6534 = vld [vmem:[%s6530 + $0x18] sm:$0xff]
        %v6535 = vld [vmem:[%s6530 + $0x20] sm:$0xff]
        %v6536 = vld [vmem:[%s6530 + $0x28] sm:$0xff]
        %v6537 = vld [vmem:[%s6530 + $0x30] sm:$0xff]
        %v6538 = vld [vmem:[%s6530 + $0x38] sm:$0xff]
        %v6539 = vld [vmem:[%s6530 + $0x40] sm:$0xff]
        %v6540 = vld [vmem:[%s6530 + $0x48] sm:$0xff]
        %v6541 = vld [vmem:[%s6530 + $0x50] sm:$0xff]
        %v6542 = vld [vmem:[%s6530 + $0x58] sm:$0xff]
        %v6543 = vld [vmem:[%s6530 + $0x60] sm:$0xff]
        %v6544 = vld [vmem:[%s6530 + $0x68] sm:$0xff]
        %v6545 = vld [vmem:[%s6530 + $0x70] sm:$0xff]
        %v6546 = vld [vmem:[%s6530 + $0x78] sm:$0xff]
        %v6547 = vld [vmem:[%s6530 + $0x80] sm:$0xff]
        %v6548 = vld [vmem:[%s6530 + $0x88] sm:$0xff]
        %v6549 = vld [vmem:[%s6530 + $0x90] sm:$0xff]
        %v6550 = vld [vmem:[%s6530 + $0x98] sm:$0xff]
        %v6551 = vld [vmem:[%s6530 + $0xa0] sm:$0xff]
        %v6552 = vld [vmem:[%s6530 + $0xa8] sm:$0xff]
        %v6553 = vld [vmem:[%s6530 + $0xb0] sm:$0xff]
        %v6554 = vld [vmem:[%s6530 + $0xb8] sm:$0xff]
        %v6555 = vld [vmem:[%s6530 + $0xc0] sm:$0xff]
        %v6556 = vld [vmem:[%s6530 + $0xc8] sm:$0xff]
        %v6557 = vld [vmem:[%s6530 + $0xd0] sm:$0xff]
        %v6558 = vld [vmem:[%s6530 + $0xd8] sm:$0xff]
        %v6559 = vld [vmem:[%s6530 + $0xe0] sm:$0xff]
        %v6560 = vld [vmem:[%s6530 + $0xe8] sm:$0xff]
        %v6561 = vld [vmem:[%s6530 + $0xf0] sm:$0xff]
        %v6562 = vld [vmem:[%s6530 + $0xf8] sm:$0xff]
        %v6563 = vld [vmem:[%s6530 + $0x100] sm:$0xff]
        %v6564 = vld [vmem:[%s6530 + $0x108] sm:$0xff]
        %v6565 = vld [vmem:[%s6530 + $0x110] sm:$0xff]
        %v6566 = vld [vmem:[%s6530 + $0x118] sm:$0xff]
        %v6567 = vld [vmem:[%s6530 + $0x120] sm:$0xff]
        %v6568 = vld [vmem:[%s6530 + $0x128] sm:$0xff]
        %v6569 = vld [vmem:[%s6530 + $0x130] sm:$0xff]
        %v6570 = vld [vmem:[%s6530 + $0x138] sm:$0xff]
        %v6571 = vld [vmem:[%s6530 + $0x140] sm:$0xff]
        %v6572 = vld [vmem:[%s6530 + $0x148] sm:$0xff]
        %v6573 = vld [vmem:[%s6530 + $0x150] sm:$0xff]
        %v6574 = vld [vmem:[%s6530 + $0x158] sm:$0xff]
        %v6575 = vld [vmem:[%s6530 + $0x160] sm:$0xff]
        %v6576 = vld [vmem:[%s6530 + $0x168] sm:$0xff]
        %v6577 = vld [vmem:[%s6530 + $0x170] sm:$0xff]
        %v6578 = vld [vmem:[%s6530 + $0x178] sm:$0xff]
        %v6579 = vld [vmem:[%s6530 + $0x180] sm:$0xff]
        %v6580 = vld [vmem:[%s6530 + $0x188] sm:$0xff]
        %v6581 = vld [vmem:[%s6530 + $0x190] sm:$0xff]
        %v6582 = vld [vmem:[%s6530 + $0x198] sm:$0xff]
        %v6583 = vld [vmem:[%s6530 + $0x1a0] sm:$0xff]
        %v6584 = vld [vmem:[%s6530 + $0x1a8] sm:$0xff]
        %v6585 = vld [vmem:[%s6530 + $0x1b0] sm:$0xff]
        %v6586 = vld [vmem:[%s6530 + $0x1b8] sm:$0xff]
        %v6587 = vld [vmem:[%s6530 + $0x1c0] sm:$0xff]
        %v6588 = vld [vmem:[%s6530 + $0x1c8] sm:$0xff]
        %v6589 = vld [vmem:[%s6530 + $0x1d0] sm:$0xff]
        %v6590 = vld [vmem:[%s6530 + $0x1d8] sm:$0xff]
        %v6591 = vld [vmem:[%s6530 + $0x1e0] sm:$0xff]
        %v6592 = vld [vmem:[%s6530 + $0x1e8] sm:$0xff]
        %v6593 = vld [vmem:[%s6530 + $0x1f0] sm:$0xff]
        %v6594 = vld [vmem:[%s6530 + $0x1f8] sm:$0xff]
        %v6595 = vld [vmem:[%s6530 + $0x200] sm:$0xff]
        %v6596 = vld [vmem:[%s6530 + $0x208] sm:$0xff]
        %v6597 = vld [vmem:[%s6530 + $0x210] sm:$0xff]
        %v6598 = vld [vmem:[%s6530 + $0x218] sm:$0xff]
        %v6599 = vld [vmem:[%s6530 + $0x220] sm:$0xff]
        %v6600 = vld [vmem:[%s6530 + $0x228] sm:$0xff]
        %v6601 = vld [vmem:[%s6530 + $0x230] sm:$0xff]
        %v6602 = vld [vmem:[%s6530 + $0x238] sm:$0xff]
        %v6603 = vld [vmem:[%s6530 + $0x240] sm:$0xff]
        %v6604 = vld [vmem:[%s6530 + $0x248] sm:$0xff]
        %v6605 = vld [vmem:[%s6530 + $0x250] sm:$0xff]
        %v6606 = vld [vmem:[%s6530 + $0x258] sm:$0xff]
        %v6607 = vld [vmem:[%s6530 + $0x260] sm:$0xff]
        %v6608 = vld [vmem:[%s6530 + $0x268] sm:$0xff]
        %v6609 = vld [vmem:[%s6530 + $0x270] sm:$0xff]
        %v6610 = vld [vmem:[%s6530 + $0x278] sm:$0xff]
        %v6611 = vld [vmem:[%s6530 + $0x280] sm:$0xff]
        %v6612 = vld [vmem:[%s6530 + $0x288] sm:$0xff]
        %v6613 = vld [vmem:[%s6530 + $0x290] sm:$0xff]
        %v6614 = vld [vmem:[%s6530 + $0x298] sm:$0xff]
        %v6615 = vld [vmem:[%s6530 + $0x2a0] sm:$0xff]
        %v6616 = vld [vmem:[%s6530 + $0x2a8] sm:$0xff]
        %v6617 = vld [vmem:[%s6530 + $0x2b0] sm:$0xff]
        %v6618 = vld [vmem:[%s6530 + $0x2b8] sm:$0xff]
        %v6619 = vld [vmem:[%s6530 + $0x2c0] sm:$0xff]
        %v6620 = vld [vmem:[%s6530 + $0x2c8] sm:$0xff]
        %v6621 = vld [vmem:[%s6530 + $0x2d0] sm:$0xff]
        %v6622 = vld [vmem:[%s6530 + $0x2d8] sm:$0xff]
        %v6623 = vld [vmem:[%s6530 + $0x2e0] sm:$0xff]
        %v6624 = vld [vmem:[%s6530 + $0x2e8] sm:$0xff]
        %v6625 = vld [vmem:[%s6530 + $0x2f0] sm:$0xff]
        %v6626 = vld [vmem:[%s6530 + $0x2f8] sm:$0xff]
        %v6627 = vld [vmem:[%s6530 + $0x300] sm:$0xff]
        %v6628 = vld [vmem:[%s6530 + $0x308] sm:$0xff]
        %v6629 = vld [vmem:[%s6530 + $0x310] sm:$0xff]
        %v6630 = vld [vmem:[%s6530 + $0x318] sm:$0xff]
        %v6631 = vld [vmem:[%s6530 + $0x320] sm:$0xff]
        %v6632 = vld [vmem:[%s6530 + $0x328] sm:$0xff]
        %v6633 = vld [vmem:[%s6530 + $0x330] sm:$0xff]
        %v6634 = vld [vmem:[%s6530 + $0x338] sm:$0xff]
        %v6635 = vld [vmem:[%s6530 + $0x340] sm:$0xff]
        %v6636 = vld [vmem:[%s6530 + $0x348] sm:$0xff]
        %v6637 = vld [vmem:[%s6530 + $0x350] sm:$0xff]
        %v6638 = vld [vmem:[%s6530 + $0x358] sm:$0xff]
        %v6639 = vld [vmem:[%s6530 + $0x360] sm:$0xff]
        %v6640 = vld [vmem:[%s6530 + $0x368] sm:$0xff]
        %v6641 = vld [vmem:[%s6530 + $0x370] sm:$0xff]
        %v6642 = vld [vmem:[%s6530 + $0x378] sm:$0xff]
        %v6643 = vld [vmem:[%s6530 + $0x380] sm:$0xff]
        %v6644 = vld [vmem:[%s6530 + $0x388] sm:$0xff]
        %v6645 = vld [vmem:[%s6530 + $0x390] sm:$0xff]
        %v6646 = vld [vmem:[%s6530 + $0x398] sm:$0xff]
        %v6647 = vld [vmem:[%s6530 + $0x3a0] sm:$0xff]
        %v6648 = vld [vmem:[%s6530 + $0x3a8] sm:$0xff]
        %v6649 = vld [vmem:[%s6530 + $0x3b0] sm:$0xff]
        %v6650 = vld [vmem:[%s6530 + $0x3b8] sm:$0xff]
        %v6651 = vld [vmem:[%s6530 + $0x3c0] sm:$0xff]
        %v6652 = vld [vmem:[%s6530 + $0x3c8] sm:$0xff]
        %v6653 = vld [vmem:[%s6530 + $0x3d0] sm:$0xff]
        %v6654 = vld [vmem:[%s6530 + $0x3d8] sm:$0xff]
        %v6655 = vld [vmem:[%s6530 + $0x3e0] sm:$0xff]
        %v6656 = vld [vmem:[%s6530 + $0x3e8] sm:$0xff]
        %v6657 = vld [vmem:[%s6530 + $0x3f0] sm:$0xff]
        %v6658 = vld [vmem:[%s6530 + $0x3f8] sm:$0xff]
        %v6665 = vunpack.c.l.b16 %v6524
        %v6666 = vunpack.c.h.b16 %v6524
        %v6667 = vunpack.c.l.b16 %v6525
        %v6668 = vunpack.c.h.b16 %v6525
        %v6669 = vunpack.c.l.b16 %v6526
        %v6670 = vunpack.c.h.b16 %v6526
        %v6671 = vunpack.c.l.b16 %v6527
        %v6672 = vunpack.c.h.b16 %v6527
        %v6673 = vunpack.c.l.b16 %v6528
        %v6674 = vunpack.c.h.b16 %v6528
        %v6675 = vunpack.c.l.b16 %v6529
        %v6676 = vunpack.c.h.b16 %v6529
        %v6677 = vpack.c.b16 %v6669, %v6665
        %v6678 = vpack.c.b16 %v6670, %v6666
        %v6679 = vpack.c.b16 %v6671, %v6667
        %v6680 = vpack.c.b16 %v6672, %v6668
        %v6681 = vpack.c.b16 %v6673, %v6673
        %v6682 = vpack.c.b16 %v6674, %v6674
        %v6683 = vpack.c.b16 %v6675, %v6675
        %v6684 = vpack.c.b16 %v6676, %v6676
        %vm6685 = vsmask.f32 7424
        %v6687 = vshrl.u32 %v6677, 16
        %v6689 = vshll.u32 %v6677, 16
        %v6691 = vrot.slane %v6689, 1
        %v6692 = vor.u32 %v6687, %v6691
        %v6694 = vshll.u32 %v6681, 16
        %v6696 = vrot.slane %v6694, 1
        %v6697 = vsel %vm6685, %v6692, %v6696
        %v6699 = vshrl.u32 %v6678, 16
        %v6701 = vshll.u32 %v6678, 16
        %v6703 = vrot.slane %v6701, 1
        %v6704 = vor.u32 %v6699, %v6703
        %v6706 = vshll.u32 %v6682, 16
        %v6708 = vrot.slane %v6706, 1
        %v6709 = vsel %vm6685, %v6704, %v6708
        %v6711 = vshrl.u32 %v6679, 16
        %v6713 = vshll.u32 %v6679, 16
        %v6715 = vrot.slane %v6713, 1
        %v6716 = vor.u32 %v6711, %v6715
        %v6718 = vshll.u32 %v6683, 16
        %v6720 = vrot.slane %v6718, 1
        %v6721 = vsel %vm6685, %v6716, %v6720
        %v6723 = vshrl.u32 %v6680, 16
        %v6725 = vshll.u32 %v6680, 16
        %v6727 = vrot.slane %v6725, 1
        %v6728 = vor.u32 %v6723, %v6727
        %v6730 = vshll.u32 %v6684, 16
        %v6732 = vrot.slane %v6730, 1
        %v6733 = vsel %vm6685, %v6728, %v6732
        %v6866 = vunpack.c.l.b16 %v6531
        %v6867 = vunpack.c.h.b16 %v6531
        %v6868 = vunpack.c.l.b16 %v6532
        %v6869 = vunpack.c.h.b16 %v6532
        %v6870 = vunpack.c.l.b16 %v6533
        %v6871 = vunpack.c.h.b16 %v6533
        %v6872 = vunpack.c.l.b16 %v6534
        %v6873 = vunpack.c.h.b16 %v6534
        %v6874 = vunpack.c.l.b16 %v6535
        %v6875 = vunpack.c.h.b16 %v6535
        %v6876 = vunpack.c.l.b16 %v6536
        %v6877 = vunpack.c.h.b16 %v6536
        %v6878 = vunpack.c.l.b16 %v6537
        %v6879 = vunpack.c.h.b16 %v6537
        %v6880 = vunpack.c.l.b16 %v6538
        %v6881 = vunpack.c.h.b16 %v6538
        %v6882 = vunpack.c.l.b16 %v6539
        %v6883 = vunpack.c.h.b16 %v6539
        %v6884 = vunpack.c.l.b16 %v6540
        %v6885 = vunpack.c.h.b16 %v6540
        %v6886 = vunpack.c.l.b16 %v6541
        %v6887 = vunpack.c.h.b16 %v6541
        %v6888 = vunpack.c.l.b16 %v6542
        %v6889 = vunpack.c.h.b16 %v6542
        %v6890 = vunpack.c.l.b16 %v6543
        %v6891 = vunpack.c.h.b16 %v6543
        %v6892 = vunpack.c.l.b16 %v6544
        %v6893 = vunpack.c.h.b16 %v6544
        %v6894 = vunpack.c.l.b16 %v6545
        %v6895 = vunpack.c.h.b16 %v6545
        %v6896 = vunpack.c.l.b16 %v6546
        %v6897 = vunpack.c.h.b16 %v6546
        %v6898 = vunpack.c.l.b16 %v6547
        %v6899 = vunpack.c.h.b16 %v6547
        %v6900 = vunpack.c.l.b16 %v6548
        %v6901 = vunpack.c.h.b16 %v6548
        %v6902 = vunpack.c.l.b16 %v6549
        %v6903 = vunpack.c.h.b16 %v6549
        %v6904 = vunpack.c.l.b16 %v6550
        %v6905 = vunpack.c.h.b16 %v6550
        %v6906 = vunpack.c.l.b16 %v6551
        %v6907 = vunpack.c.h.b16 %v6551
        %v6908 = vunpack.c.l.b16 %v6552
        %v6909 = vunpack.c.h.b16 %v6552
        %v6910 = vunpack.c.l.b16 %v6553
        %v6911 = vunpack.c.h.b16 %v6553
        %v6912 = vunpack.c.l.b16 %v6554
        %v6913 = vunpack.c.h.b16 %v6554
        %v6914 = vunpack.c.l.b16 %v6555
        %v6915 = vunpack.c.h.b16 %v6555
        %v6916 = vunpack.c.l.b16 %v6556
        %v6917 = vunpack.c.h.b16 %v6556
        %v6918 = vunpack.c.l.b16 %v6557
        %v6919 = vunpack.c.h.b16 %v6557
        %v6920 = vunpack.c.l.b16 %v6558
        %v6921 = vunpack.c.h.b16 %v6558
        %v6922 = vunpack.c.l.b16 %v6559
        %v6923 = vunpack.c.h.b16 %v6559
        %v6924 = vunpack.c.l.b16 %v6560
        %v6925 = vunpack.c.h.b16 %v6560
        %v6926 = vunpack.c.l.b16 %v6561
        %v6927 = vunpack.c.h.b16 %v6561
        %v6928 = vunpack.c.l.b16 %v6562
        %v6929 = vunpack.c.h.b16 %v6562
        %v6930 = vunpack.c.l.b16 %v6563
        %v6931 = vunpack.c.h.b16 %v6563
        %v6932 = vunpack.c.l.b16 %v6564
        %v6933 = vunpack.c.h.b16 %v6564
        %v6934 = vunpack.c.l.b16 %v6565
        %v6935 = vunpack.c.h.b16 %v6565
        %v6936 = vunpack.c.l.b16 %v6566
        %v6937 = vunpack.c.h.b16 %v6566
        %v6938 = vunpack.c.l.b16 %v6567
        %v6939 = vunpack.c.h.b16 %v6567
        %v6940 = vunpack.c.l.b16 %v6568
        %v6941 = vunpack.c.h.b16 %v6568
        %v6942 = vunpack.c.l.b16 %v6569
        %v6943 = vunpack.c.h.b16 %v6569
        %v6944 = vunpack.c.l.b16 %v6570
        %v6945 = vunpack.c.h.b16 %v6570
        %v6946 = vunpack.c.l.b16 %v6571
        %v6947 = vunpack.c.h.b16 %v6571
        %v6948 = vunpack.c.l.b16 %v6572
        %v6949 = vunpack.c.h.b16 %v6572
        %v6950 = vunpack.c.l.b16 %v6573
        %v6951 = vunpack.c.h.b16 %v6573
        %v6952 = vunpack.c.l.b16 %v6574
        %v6953 = vunpack.c.h.b16 %v6574
        %v6954 = vunpack.c.l.b16 %v6575
        %v6955 = vunpack.c.h.b16 %v6575
        %v6956 = vunpack.c.l.b16 %v6576
        %v6957 = vunpack.c.h.b16 %v6576
        %v6958 = vunpack.c.l.b16 %v6577
        %v6959 = vunpack.c.h.b16 %v6577
        %v6960 = vunpack.c.l.b16 %v6578
        %v6961 = vunpack.c.h.b16 %v6578
        %v6962 = vunpack.c.l.b16 %v6579
        %v6963 = vunpack.c.h.b16 %v6579
        %v6964 = vunpack.c.l.b16 %v6580
        %v6965 = vunpack.c.h.b16 %v6580
        %v6966 = vunpack.c.l.b16 %v6581
        %v6967 = vunpack.c.h.b16 %v6581
        %v6968 = vunpack.c.l.b16 %v6582
        %v6969 = vunpack.c.h.b16 %v6582
        %v6970 = vunpack.c.l.b16 %v6583
        %v6971 = vunpack.c.h.b16 %v6583
        %v6972 = vunpack.c.l.b16 %v6584
        %v6973 = vunpack.c.h.b16 %v6584
        %v6974 = vunpack.c.l.b16 %v6585
        %v6975 = vunpack.c.h.b16 %v6585
        %v6976 = vunpack.c.l.b16 %v6586
        %v6977 = vunpack.c.h.b16 %v6586
        %v6978 = vunpack.c.l.b16 %v6587
        %v6979 = vunpack.c.h.b16 %v6587
        %v6980 = vunpack.c.l.b16 %v6588
        %v6981 = vunpack.c.h.b16 %v6588
        %v6982 = vunpack.c.l.b16 %v6589
        %v6983 = vunpack.c.h.b16 %v6589
        %v6984 = vunpack.c.l.b16 %v6590
        %v6985 = vunpack.c.h.b16 %v6590
        %v6986 = vunpack.c.l.b16 %v6591
        %v6987 = vunpack.c.h.b16 %v6591
        %v6988 = vunpack.c.l.b16 %v6592
        %v6989 = vunpack.c.h.b16 %v6592
        %v6990 = vunpack.c.l.b16 %v6593
        %v6991 = vunpack.c.h.b16 %v6593
        %v6992 = vunpack.c.l.b16 %v6594
        %v6993 = vunpack.c.h.b16 %v6594
        %v6994 = vunpack.c.l.b16 %v6595
        %v6995 = vunpack.c.h.b16 %v6595
        %v6996 = vunpack.c.l.b16 %v6596
        %v6997 = vunpack.c.h.b16 %v6596
        %v6998 = vunpack.c.l.b16 %v6597
        %v6999 = vunpack.c.h.b16 %v6597
        %v7000 = vunpack.c.l.b16 %v6598
        %v7001 = vunpack.c.h.b16 %v6598
        %v7002 = vunpack.c.l.b16 %v6599
        %v7003 = vunpack.c.h.b16 %v6599
        %v7004 = vunpack.c.l.b16 %v6600
        %v7005 = vunpack.c.h.b16 %v6600
        %v7006 = vunpack.c.l.b16 %v6601
        %v7007 = vunpack.c.h.b16 %v6601
        %v7008 = vunpack.c.l.b16 %v6602
        %v7009 = vunpack.c.h.b16 %v6602
        %v7010 = vunpack.c.l.b16 %v6603
        %v7011 = vunpack.c.h.b16 %v6603
        %v7012 = vunpack.c.l.b16 %v6604
        %v7013 = vunpack.c.h.b16 %v6604
        %v7014 = vunpack.c.l.b16 %v6605
        %v7015 = vunpack.c.h.b16 %v6605
        %v7016 = vunpack.c.l.b16 %v6606
        %v7017 = vunpack.c.h.b16 %v6606
        %v7018 = vunpack.c.l.b16 %v6607
        %v7019 = vunpack.c.h.b16 %v6607
        %v7020 = vunpack.c.l.b16 %v6608
        %v7021 = vunpack.c.h.b16 %v6608
        %v7022 = vunpack.c.l.b16 %v6609
        %v7023 = vunpack.c.h.b16 %v6609
        %v7024 = vunpack.c.l.b16 %v6610
        %v7025 = vunpack.c.h.b16 %v6610
        %v7026 = vunpack.c.l.b16 %v6611
        %v7027 = vunpack.c.h.b16 %v6611
        %v7028 = vunpack.c.l.b16 %v6612
        %v7029 = vunpack.c.h.b16 %v6612
        %v7030 = vunpack.c.l.b16 %v6613
        %v7031 = vunpack.c.h.b16 %v6613
        %v7032 = vunpack.c.l.b16 %v6614
        %v7033 = vunpack.c.h.b16 %v6614
        %v7034 = vunpack.c.l.b16 %v6615
        %v7035 = vunpack.c.h.b16 %v6615
        %v7036 = vunpack.c.l.b16 %v6616
        %v7037 = vunpack.c.h.b16 %v6616
        %v7038 = vunpack.c.l.b16 %v6617
        %v7039 = vunpack.c.h.b16 %v6617
        %v7040 = vunpack.c.l.b16 %v6618
        %v7041 = vunpack.c.h.b16 %v6618
        %v7042 = vunpack.c.l.b16 %v6619
        %v7043 = vunpack.c.h.b16 %v6619
        %v7044 = vunpack.c.l.b16 %v6620
        %v7045 = vunpack.c.h.b16 %v6620
        %v7046 = vunpack.c.l.b16 %v6621
        %v7047 = vunpack.c.h.b16 %v6621
        %v7048 = vunpack.c.l.b16 %v6622
        %v7049 = vunpack.c.h.b16 %v6622
        %v7050 = vunpack.c.l.b16 %v6623
        %v7051 = vunpack.c.h.b16 %v6623
        %v7052 = vunpack.c.l.b16 %v6624
        %v7053 = vunpack.c.h.b16 %v6624
        %v7054 = vunpack.c.l.b16 %v6625
        %v7055 = vunpack.c.h.b16 %v6625
        %v7056 = vunpack.c.l.b16 %v6626
        %v7057 = vunpack.c.h.b16 %v6626
        %v7058 = vunpack.c.l.b16 %v6627
        %v7059 = vunpack.c.h.b16 %v6627
        %v7060 = vunpack.c.l.b16 %v6628
        %v7061 = vunpack.c.h.b16 %v6628
        %v7062 = vunpack.c.l.b16 %v6629
        %v7063 = vunpack.c.h.b16 %v6629
        %v7064 = vunpack.c.l.b16 %v6630
        %v7065 = vunpack.c.h.b16 %v6630
        %v7066 = vunpack.c.l.b16 %v6631
        %v7067 = vunpack.c.h.b16 %v6631
        %v7068 = vunpack.c.l.b16 %v6632
        %v7069 = vunpack.c.h.b16 %v6632
        %v7070 = vunpack.c.l.b16 %v6633
        %v7071 = vunpack.c.h.b16 %v6633
        %v7072 = vunpack.c.l.b16 %v6634
        %v7073 = vunpack.c.h.b16 %v6634
        %v7074 = vunpack.c.l.b16 %v6635
        %v7075 = vunpack.c.h.b16 %v6635
        %v7076 = vunpack.c.l.b16 %v6636
        %v7077 = vunpack.c.h.b16 %v6636
        %v7078 = vunpack.c.l.b16 %v6637
        %v7079 = vunpack.c.h.b16 %v6637
        %v7080 = vunpack.c.l.b16 %v6638
        %v7081 = vunpack.c.h.b16 %v6638
        %v7082 = vunpack.c.l.b16 %v6639
        %v7083 = vunpack.c.h.b16 %v6639
        %v7084 = vunpack.c.l.b16 %v6640
        %v7085 = vunpack.c.h.b16 %v6640
        %v7086 = vunpack.c.l.b16 %v6641
        %v7087 = vunpack.c.h.b16 %v6641
        %v7088 = vunpack.c.l.b16 %v6642
        %v7089 = vunpack.c.h.b16 %v6642
        %v7090 = vunpack.c.l.b16 %v6643
        %v7091 = vunpack.c.h.b16 %v6643
        %v7092 = vunpack.c.l.b16 %v6644
        %v7093 = vunpack.c.h.b16 %v6644
        %v7094 = vunpack.c.l.b16 %v6645
        %v7095 = vunpack.c.h.b16 %v6645
        %v7096 = vunpack.c.l.b16 %v6646
        %v7097 = vunpack.c.h.b16 %v6646
        %v7098 = vunpack.c.l.b16 %v6647
        %v7099 = vunpack.c.h.b16 %v6647
        %v7100 = vunpack.c.l.b16 %v6648
        %v7101 = vunpack.c.h.b16 %v6648
        %v7102 = vunpack.c.l.b16 %v6649
        %v7103 = vunpack.c.h.b16 %v6649
        %v7104 = vunpack.c.l.b16 %v6650
        %v7105 = vunpack.c.h.b16 %v6650
        %v7106 = vunpack.c.l.b16 %v6651
        %v7107 = vunpack.c.h.b16 %v6651
        %v7108 = vunpack.c.l.b16 %v6652
        %v7109 = vunpack.c.h.b16 %v6652
        %v7110 = vunpack.c.l.b16 %v6653
        %v7111 = vunpack.c.h.b16 %v6653
        %v7112 = vunpack.c.l.b16 %v6654
        %v7113 = vunpack.c.h.b16 %v6654
        %v7114 = vunpack.c.l.b16 %v6655
        %v7115 = vunpack.c.h.b16 %v6655
        %v7116 = vunpack.c.l.b16 %v6656
        %v7117 = vunpack.c.h.b16 %v6656
        %v7118 = vunpack.c.l.b16 %v6657
        %v7119 = vunpack.c.h.b16 %v6657
        %v7120 = vunpack.c.l.b16 %v6658
        %v7121 = vunpack.c.h.b16 %v6658
        %v7122 = vpack.c.b16 %v6870, %v6866
        %v7123 = vpack.c.b16 %v6871, %v6867
        %v7124 = vpack.c.b16 %v6872, %v6868
        %v7125 = vpack.c.b16 %v6873, %v6869
        %v7126 = vpack.c.b16 %v6878, %v6874
        %v7127 = vpack.c.b16 %v6879, %v6875
        %v7128 = vpack.c.b16 %v6880, %v6876
        %v7129 = vpack.c.b16 %v6881, %v6877
        %v7130 = vpack.c.b16 %v6886, %v6882
        %v7131 = vpack.c.b16 %v6887, %v6883
        %v7132 = vpack.c.b16 %v6888, %v6884
        %v7133 = vpack.c.b16 %v6889, %v6885
        %v7134 = vpack.c.b16 %v6894, %v6890
        %v7135 = vpack.c.b16 %v6895, %v6891
        %v7136 = vpack.c.b16 %v6896, %v6892
        %v7137 = vpack.c.b16 %v6897, %v6893
        %v7138 = vpack.c.b16 %v6902, %v6898
        %v7139 = vpack.c.b16 %v6903, %v6899
        %v7140 = vpack.c.b16 %v6904, %v6900
        %v7141 = vpack.c.b16 %v6905, %v6901
        %v7142 = vpack.c.b16 %v6910, %v6906
        %v7143 = vpack.c.b16 %v6911, %v6907
        %v7144 = vpack.c.b16 %v6912, %v6908
        %v7145 = vpack.c.b16 %v6913, %v6909
        %v7146 = vpack.c.b16 %v6918, %v6914
        %v7147 = vpack.c.b16 %v6919, %v6915
        %v7148 = vpack.c.b16 %v6920, %v6916
        %v7149 = vpack.c.b16 %v6921, %v6917
        %v7150 = vpack.c.b16 %v6926, %v6922
        %v7151 = vpack.c.b16 %v6927, %v6923
        %v7152 = vpack.c.b16 %v6928, %v6924
        %v7153 = vpack.c.b16 %v6929, %v6925
        %v7154 = vpack.c.b16 %v6934, %v6930
        %v7155 = vpack.c.b16 %v6935, %v6931
        %v7156 = vpack.c.b16 %v6936, %v6932
        %v7157 = vpack.c.b16 %v6937, %v6933
        %v7158 = vpack.c.b16 %v6942, %v6938
        %v7159 = vpack.c.b16 %v6943, %v6939
        %v7160 = vpack.c.b16 %v6944, %v6940
        %v7161 = vpack.c.b16 %v6945, %v6941
        %v7162 = vpack.c.b16 %v6950, %v6946
        %v7163 = vpack.c.b16 %v6951, %v6947
        %v7164 = vpack.c.b16 %v6952, %v6948
        %v7165 = vpack.c.b16 %v6953, %v6949
        %v7166 = vpack.c.b16 %v6958, %v6954
        %v7167 = vpack.c.b16 %v6959, %v6955
        %v7168 = vpack.c.b16 %v6960, %v6956
        %v7169 = vpack.c.b16 %v6961, %v6957
        %v7170 = vpack.c.b16 %v6966, %v6962
        %v7171 = vpack.c.b16 %v6967, %v6963
        %v7172 = vpack.c.b16 %v6968, %v6964
        %v7173 = vpack.c.b16 %v6969, %v6965
        %v7174 = vpack.c.b16 %v6974, %v6970
        %v7175 = vpack.c.b16 %v6975, %v6971
        %v7176 = vpack.c.b16 %v6976, %v6972
        %v7177 = vpack.c.b16 %v6977, %v6973
        %v7178 = vpack.c.b16 %v6982, %v6978
        %v7179 = vpack.c.b16 %v6983, %v6979
        %v7180 = vpack.c.b16 %v6984, %v6980
        %v7181 = vpack.c.b16 %v6985, %v6981
        %v7182 = vpack.c.b16 %v6990, %v6986
        %v7183 = vpack.c.b16 %v6991, %v6987
        %v7184 = vpack.c.b16 %v6992, %v6988
        %v7185 = vpack.c.b16 %v6993, %v6989
        %v7186 = vpack.c.b16 %v6998, %v6994
        %v7187 = vpack.c.b16 %v6999, %v6995
        %v7188 = vpack.c.b16 %v7000, %v6996
        %v7189 = vpack.c.b16 %v7001, %v6997
        %v7190 = vpack.c.b16 %v7006, %v7002
        %v7191 = vpack.c.b16 %v7007, %v7003
        %v7192 = vpack.c.b16 %v7008, %v7004
        %v7193 = vpack.c.b16 %v7009, %v7005
        %v7194 = vpack.c.b16 %v7014, %v7010
        %v7195 = vpack.c.b16 %v7015, %v7011
        %v7196 = vpack.c.b16 %v7016, %v7012
        %v7197 = vpack.c.b16 %v7017, %v7013
        %v7198 = vpack.c.b16 %v7022, %v7018
        %v7199 = vpack.c.b16 %v7023, %v7019
        %v7200 = vpack.c.b16 %v7024, %v7020
        %v7201 = vpack.c.b16 %v7025, %v7021
        %v7202 = vpack.c.b16 %v7030, %v7026
        %v7203 = vpack.c.b16 %v7031, %v7027
        %v7204 = vpack.c.b16 %v7032, %v7028
        %v7205 = vpack.c.b16 %v7033, %v7029
        %v7206 = vpack.c.b16 %v7038, %v7034
        %v7207 = vpack.c.b16 %v7039, %v7035
        %v7208 = vpack.c.b16 %v7040, %v7036
        %v7209 = vpack.c.b16 %v7041, %v7037
        %v7210 = vpack.c.b16 %v7046, %v7042
        %v7211 = vpack.c.b16 %v7047, %v7043
        %v7212 = vpack.c.b16 %v7048, %v7044
        %v7213 = vpack.c.b16 %v7049, %v7045
        %v7214 = vpack.c.b16 %v7054, %v7050
        %v7215 = vpack.c.b16 %v7055, %v7051
        %v7216 = vpack.c.b16 %v7056, %v7052
        %v7217 = vpack.c.b16 %v7057, %v7053
        %v7218 = vpack.c.b16 %v7062, %v7058
        %v7219 = vpack.c.b16 %v7063, %v7059
        %v7220 = vpack.c.b16 %v7064, %v7060
        %v7221 = vpack.c.b16 %v7065, %v7061
        %v7222 = vpack.c.b16 %v7070, %v7066
        %v7223 = vpack.c.b16 %v7071, %v7067
        %v7224 = vpack.c.b16 %v7072, %v7068
        %v7225 = vpack.c.b16 %v7073, %v7069
        %v7226 = vpack.c.b16 %v7078, %v7074
        %v7227 = vpack.c.b16 %v7079, %v7075
        %v7228 = vpack.c.b16 %v7080, %v7076
        %v7229 = vpack.c.b16 %v7081, %v7077
        %v7230 = vpack.c.b16 %v7086, %v7082
        %v7231 = vpack.c.b16 %v7087, %v7083
        %v7232 = vpack.c.b16 %v7088, %v7084
        %v7233 = vpack.c.b16 %v7089, %v7085
        %v7234 = vpack.c.b16 %v7094, %v7090
        %v7235 = vpack.c.b16 %v7095, %v7091
        %v7236 = vpack.c.b16 %v7096, %v7092
        %v7237 = vpack.c.b16 %v7097, %v7093
        %v7238 = vpack.c.b16 %v7102, %v7098
        %v7239 = vpack.c.b16 %v7103, %v7099
        %v7240 = vpack.c.b16 %v7104, %v7100
        %v7241 = vpack.c.b16 %v7105, %v7101
        %v7242 = vpack.c.b16 %v7110, %v7106
        %v7243 = vpack.c.b16 %v7111, %v7107
        %v7244 = vpack.c.b16 %v7112, %v7108
        %v7245 = vpack.c.b16 %v7113, %v7109
        %v7246 = vpack.c.b16 %v7118, %v7114
        %v7247 = vpack.c.b16 %v7119, %v7115
        %v7248 = vpack.c.b16 %v7120, %v7116
        %v7249 = vpack.c.b16 %v7121, %v7117
        %7378 = vmatpush.bf16.msra.mxu0 %v7150
        %7379 = vmatpush.bf16.msra.mxu0 %v7146
        %7380 = vmatpush.bf16.msra.mxu0 %v7142
        %7381 = vmatpush.bf16.msra.mxu0 %v7138
        %7382 = vmatpush.bf16.msra.mxu0 %v7134
        %7383 = vmatpush.bf16.msra.mxu0 %v7130
        %7384 = vmatpush.bf16.msra.mxu0 %v7126
        %7385 = vmatpush.bf16.msra.mxu0 %v7122
        %7386 = vmatmul.bf16.gmra.mxu0 %v6697
        %v7387 = vpop.f32.mrf.mxu0
        %v7388 = vadd.f32 0.0, %v7387
        %v7389 = vpop.f32.mrf.mxu0
        %v7390 = vadd.f32 0.0, %v7389
        %7391 = vdwg.mxu0
        %7392 = vmatpush.bf16.msra.mxu0 %v7182
        %7393 = vmatpush.bf16.msra.mxu0 %v7178
        %7394 = vmatpush.bf16.msra.mxu0 %v7174
        %7395 = vmatpush.bf16.msra.mxu0 %v7170
        %7396 = vmatpush.bf16.msra.mxu0 %v7166
        %7397 = vmatpush.bf16.msra.mxu0 %v7162
        %7398 = vmatpush.bf16.msra.mxu0 %v7158
        %7399 = vmatpush.bf16.msra.mxu0 %v7154
        %7400 = vmatmul.bf16.gmra.mxu0 %v6709
        %v7401 = vpop.f32.mrf.mxu0
        %v7402 = vadd.f32 %v7388, %v7401
        %v7403 = vpop.f32.mrf.mxu0
        %v7404 = vadd.f32 %v7390, %v7403
        %7405 = vdwg.mxu0
        %7406 = vmatpush.bf16.msra.mxu0 %v7214
        %7407 = vmatpush.bf16.msra.mxu0 %v7210
        %7408 = vmatpush.bf16.msra.mxu0 %v7206
        %7409 = vmatpush.bf16.msra.mxu0 %v7202
        %7410 = vmatpush.bf16.msra.mxu0 %v7198
        %7411 = vmatpush.bf16.msra.mxu0 %v7194
        %7412 = vmatpush.bf16.msra.mxu0 %v7190
        %7413 = vmatpush.bf16.msra.mxu0 %v7186
        %7414 = vmatmul.bf16.gmra.mxu0 %v6721
        %v7415 = vpop.f32.mrf.mxu0
        %v7416 = vadd.f32 %v7402, %v7415
        %v7417 = vpop.f32.mrf.mxu0
        %v7418 = vadd.f32 %v7404, %v7417
        %7419 = vdwg.mxu0
        %7420 = vmatpush.bf16.msra.mxu0 %v7246
        %7421 = vmatpush.bf16.msra.mxu0 %v7242
        %7422 = vmatpush.bf16.msra.mxu0 %v7238
        %7423 = vmatpush.bf16.msra.mxu0 %v7234
        %7424 = vmatpush.bf16.msra.mxu0 %v7230
        %7425 = vmatpush.bf16.msra.mxu0 %v7226
        %7426 = vmatpush.bf16.msra.mxu0 %v7222
        %7427 = vmatpush.bf16.msra.mxu0 %v7218
        %7428 = vmatmul.bf16.gmra.mxu0 %v6733
        %v7429 = vpop.f32.mrf.mxu0
        %v7430 = vadd.f32 %v7416, %v7429
        %v7431 = vpop.f32.mrf.mxu0
        %v7432 = vadd.f32 %v7418, %v7431
        %7433 = vdwg.mxu0
        %7434 = vmatpush.bf16.msra.mxu0 %v7151
        %7435 = vmatpush.bf16.msra.mxu0 %v7147
        %7436 = vmatpush.bf16.msra.mxu0 %v7143
        %7437 = vmatpush.bf16.msra.mxu0 %v7139
        %7438 = vmatpush.bf16.msra.mxu0 %v7135
        %7439 = vmatpush.bf16.msra.mxu0 %v7131
        %7440 = vmatpush.bf16.msra.mxu0 %v7127
        %7441 = vmatpush.bf16.msra.mxu0 %v7123
        %7442 = vmatmul.bf16.gmra.mxu0 %v6697
        %v7443 = vpop.f32.mrf.mxu0
        %v7444 = vadd.f32 0.0, %v7443
        %v7445 = vpop.f32.mrf.mxu0
        %v7446 = vadd.f32 0.0, %v7445
        %7447 = vdwg.mxu0
        %7448 = vmatpush.bf16.msra.mxu0 %v7183
        %7449 = vmatpush.bf16.msra.mxu0 %v7179
        %7450 = vmatpush.bf16.msra.mxu0 %v7175
        %7451 = vmatpush.bf16.msra.mxu0 %v7171
        %7452 = vmatpush.bf16.msra.mxu0 %v7167
        %7453 = vmatpush.bf16.msra.mxu0 %v7163
        %7454 = vmatpush.bf16.msra.mxu0 %v7159
        %7455 = vmatpush.bf16.msra.mxu0 %v7155
        %7456 = vmatmul.bf16.gmra.mxu0 %v6709
        %v7457 = vpop.f32.mrf.mxu0
        %v7458 = vadd.f32 %v7444, %v7457
        %v7459 = vpop.f32.mrf.mxu0
        %v7460 = vadd.f32 %v7446, %v7459
        %7461 = vdwg.mxu0
        %7462 = vmatpush.bf16.msra.mxu0 %v7215
        %7463 = vmatpush.bf16.msra.mxu0 %v7211
        %7464 = vmatpush.bf16.msra.mxu0 %v7207
        %7465 = vmatpush.bf16.msra.mxu0 %v7203
        %7466 = vmatpush.bf16.msra.mxu0 %v7199
        %7467 = vmatpush.bf16.msra.mxu0 %v7195
        %7468 = vmatpush.bf16.msra.mxu0 %v7191
        %7469 = vmatpush.bf16.msra.mxu0 %v7187
        %7470 = vmatmul.bf16.gmra.mxu0 %v6721
        %v7471 = vpop.f32.mrf.mxu0
        %v7472 = vadd.f32 %v7458, %v7471
        %v7473 = vpop.f32.mrf.mxu0
        %v7474 = vadd.f32 %v7460, %v7473
        %7475 = vdwg.mxu0
        %7476 = vmatpush.bf16.msra.mxu0 %v7247
        %7477 = vmatpush.bf16.msra.mxu0 %v7243
        %7478 = vmatpush.bf16.msra.mxu0 %v7239
        %7479 = vmatpush.bf16.msra.mxu0 %v7235
        %7480 = vmatpush.bf16.msra.mxu0 %v7231
        %7481 = vmatpush.bf16.msra.mxu0 %v7227
        %7482 = vmatpush.bf16.msra.mxu0 %v7223
        %7483 = vmatpush.bf16.msra.mxu0 %v7219
        %7484 = vmatmul.bf16.gmra.mxu0 %v6733
        %v7485 = vpop.f32.mrf.mxu0
        %v7486 = vadd.f32 %v7472, %v7485
        %v7487 = vpop.f32.mrf.mxu0
        %v7488 = vadd.f32 %v7474, %v7487
        %7489 = vdwg.mxu0
        %7490 = vmatpush.bf16.msra.mxu0 %v7152
        %7491 = vmatpush.bf16.msra.mxu0 %v7148
        %7492 = vmatpush.bf16.msra.mxu0 %v7144
        %7493 = vmatpush.bf16.msra.mxu0 %v7140
        %7494 = vmatpush.bf16.msra.mxu0 %v7136
        %7495 = vmatpush.bf16.msra.mxu0 %v7132
        %7496 = vmatpush.bf16.msra.mxu0 %v7128
        %7497 = vmatpush.bf16.msra.mxu0 %v7124
        %7498 = vmatmul.bf16.gmra.mxu0 %v6697
        %v7499 = vpop.f32.mrf.mxu0
        %v7500 = vadd.f32 0.0, %v7499
        %v7501 = vpop.f32.mrf.mxu0
        %v7502 = vadd.f32 0.0, %v7501
        %7503 = vdwg.mxu0
        %7504 = vmatpush.bf16.msra.mxu0 %v7184
        %7505 = vmatpush.bf16.msra.mxu0 %v7180
        %7506 = vmatpush.bf16.msra.mxu0 %v7176
        %7507 = vmatpush.bf16.msra.mxu0 %v7172
        %7508 = vmatpush.bf16.msra.mxu0 %v7168
        %7509 = vmatpush.bf16.msra.mxu0 %v7164
        %7510 = vmatpush.bf16.msra.mxu0 %v7160
        %7511 = vmatpush.bf16.msra.mxu0 %v7156
        %7512 = vmatmul.bf16.gmra.mxu0 %v6709
        %v7513 = vpop.f32.mrf.mxu0
        %v7514 = vadd.f32 %v7500, %v7513
        %v7515 = vpop.f32.mrf.mxu0
        %v7516 = vadd.f32 %v7502, %v7515
        %7517 = vdwg.mxu0
        %7518 = vmatpush.bf16.msra.mxu0 %v7216
        %7519 = vmatpush.bf16.msra.mxu0 %v7212
        %7520 = vmatpush.bf16.msra.mxu0 %v7208
        %7521 = vmatpush.bf16.msra.mxu0 %v7204
        %7522 = vmatpush.bf16.msra.mxu0 %v7200
        %7523 = vmatpush.bf16.msra.mxu0 %v7196
        %7524 = vmatpush.bf16.msra.mxu0 %v7192
        %7525 = vmatpush.bf16.msra.mxu0 %v7188
        %7526 = vmatmul.bf16.gmra.mxu0 %v6721
        %v7527 = vpop.f32.mrf.mxu0
        %v7528 = vadd.f32 %v7514, %v7527
        %v7529 = vpop.f32.mrf.mxu0
        %v7530 = vadd.f32 %v7516, %v7529
        %7531 = vdwg.mxu0
        %7532 = vmatpush.bf16.msra.mxu0 %v7248
        %7533 = vmatpush.bf16.msra.mxu0 %v7244
        %7534 = vmatpush.bf16.msra.mxu0 %v7240
        %7535 = vmatpush.bf16.msra.mxu0 %v7236
        %7536 = vmatpush.bf16.msra.mxu0 %v7232
        %7537 = vmatpush.bf16.msra.mxu0 %v7228
        %7538 = vmatpush.bf16.msra.mxu0 %v7224
        %7539 = vmatpush.bf16.msra.mxu0 %v7220
        %7540 = vmatmul.bf16.gmra.mxu0 %v6733
        %v7541 = vpop.f32.mrf.mxu0
        %v7542 = vadd.f32 %v7528, %v7541
        %v7543 = vpop.f32.mrf.mxu0
        %v7544 = vadd.f32 %v7530, %v7543
        %7545 = vdwg.mxu0
        %7546 = vmatpush.bf16.msra.mxu0 %v7153
        %7547 = vmatpush.bf16.msra.mxu0 %v7149
        %7548 = vmatpush.bf16.msra.mxu0 %v7145
        %7549 = vmatpush.bf16.msra.mxu0 %v7141
        %7550 = vmatpush.bf16.msra.mxu0 %v7137
        %7551 = vmatpush.bf16.msra.mxu0 %v7133
        %7552 = vmatpush.bf16.msra.mxu0 %v7129
        %7553 = vmatpush.bf16.msra.mxu0 %v7125
        %7554 = vmatmul.bf16.gmra.mxu0 %v6697
        %v7555 = vpop.f32.mrf.mxu0
        %v7556 = vadd.f32 0.0, %v7555
        %v7557 = vpop.f32.mrf.mxu0
        %v7558 = vadd.f32 0.0, %v7557
        %7559 = vdwg.mxu0
        %7560 = vmatpush.bf16.msra.mxu0 %v7185
        %7561 = vmatpush.bf16.msra.mxu0 %v7181
        %7562 = vmatpush.bf16.msra.mxu0 %v7177
        %7563 = vmatpush.bf16.msra.mxu0 %v7173
        %7564 = vmatpush.bf16.msra.mxu0 %v7169
        %7565 = vmatpush.bf16.msra.mxu0 %v7165
        %7566 = vmatpush.bf16.msra.mxu0 %v7161
        %7567 = vmatpush.bf16.msra.mxu0 %v7157
        %7568 = vmatmul.bf16.gmra.mxu0 %v6709
        %v7569 = vpop.f32.mrf.mxu0
        %v7570 = vadd.f32 %v7556, %v7569
        %v7571 = vpop.f32.mrf.mxu0
        %v7572 = vadd.f32 %v7558, %v7571
        %7573 = vdwg.mxu0
        %7574 = vmatpush.bf16.msra.mxu0 %v7217
        %7575 = vmatpush.bf16.msra.mxu0 %v7213
        %7576 = vmatpush.bf16.msra.mxu0 %v7209
        %7577 = vmatpush.bf16.msra.mxu0 %v7205
        %7578 = vmatpush.bf16.msra.mxu0 %v7201
        %7579 = vmatpush.bf16.msra.mxu0 %v7197
        %7580 = vmatpush.bf16.msra.mxu0 %v7193
        %7581 = vmatpush.bf16.msra.mxu0 %v7189
        %7582 = vmatmul.bf16.gmra.mxu0 %v6721
        %v7583 = vpop.f32.mrf.mxu0
        %v7584 = vadd.f32 %v7570, %v7583
        %v7585 = vpop.f32.mrf.mxu0
        %v7586 = vadd.f32 %v7572, %v7585
        %7587 = vdwg.mxu0
        %7588 = vmatpush.bf16.msra.mxu0 %v7249
        %7589 = vmatpush.bf16.msra.mxu0 %v7245
        %7590 = vmatpush.bf16.msra.mxu0 %v7241
        %7591 = vmatpush.bf16.msra.mxu0 %v7237
        %7592 = vmatpush.bf16.msra.mxu0 %v7233
        %7593 = vmatpush.bf16.msra.mxu0 %v7229
        %7594 = vmatpush.bf16.msra.mxu0 %v7225
        %7595 = vmatpush.bf16.msra.mxu0 %v7221
        %7596 = vmatmul.bf16.gmra.mxu0 %v6733
        %v7597 = vpop.f32.mrf.mxu0
        %v7598 = vadd.f32 %v7584, %v7597
        %v7599 = vpop.f32.mrf.mxu0
        %v7600 = vadd.f32 %v7586, %v7599
        %7601 = vdwg.mxu0
        %v7602 = vadd.f32 %v6516, %v7430
        %v7603 = vadd.f32 %v6517, %v7486
        %v7604 = vadd.f32 %v6518, %v7542
        %v7605 = vadd.f32 %v6519, %v7598
        %v7606 = vadd.f32 %v6520, %v7432
        %v7607 = vadd.f32 %v6521, %v7488
        %v7608 = vadd.f32 %v6522, %v7544
        %v7609 = vadd.f32 %v6523, %v7600
        %v7610 = vld [vmem:[#allocation2] sm:$0xee]
        %v7611 = vld [vmem:[#allocation2 + $0x8] sm:$0xee]
        %s7612 = scalar_lea.vmem [#allocation9], 2048
        %v7613 = vld [vmem:[%s7612] sm:$0xff]
        %v7614 = vld [vmem:[%s7612 + $0x8] sm:$0xff]
        %v7615 = vld [vmem:[%s7612 + $0x10] sm:$0xff]
        %v7616 = vld [vmem:[%s7612 + $0x18] sm:$0xff]
        %v7617 = vld [vmem:[%s7612 + $0x20] sm:$0xff]
        %v7618 = vld [vmem:[%s7612 + $0x28] sm:$0xff]
        %v7619 = vld [vmem:[%s7612 + $0x30] sm:$0xff]
        %v7620 = vld [vmem:[%s7612 + $0x38] sm:$0xff]
        %v7621 = vld [vmem:[%s7612 + $0x40] sm:$0xff]
        %v7622 = vld [vmem:[%s7612 + $0x48] sm:$0xff]
        %v7623 = vld [vmem:[%s7612 + $0x50] sm:$0xff]
        %v7624 = vld [vmem:[%s7612 + $0x58] sm:$0xff]
        %v7625 = vld [vmem:[%s7612 + $0x60] sm:$0xff]
        %v7626 = vld [vmem:[%s7612 + $0x68] sm:$0xff]
        %v7627 = vld [vmem:[%s7612 + $0x70] sm:$0xff]
        %v7628 = vld [vmem:[%s7612 + $0x78] sm:$0xff]
        %v7629 = vld [vmem:[%s7612 + $0x80] sm:$0xff]
        %v7630 = vld [vmem:[%s7612 + $0x88] sm:$0xff]
        %v7631 = vld [vmem:[%s7612 + $0x90] sm:$0xff]
        %v7632 = vld [vmem:[%s7612 + $0x98] sm:$0xff]
        %v7633 = vld [vmem:[%s7612 + $0xa0] sm:$0xff]
        %v7634 = vld [vmem:[%s7612 + $0xa8] sm:$0xff]
        %v7635 = vld [vmem:[%s7612 + $0xb0] sm:$0xff]
        %v7636 = vld [vmem:[%s7612 + $0xb8] sm:$0xff]
        %v7637 = vld [vmem:[%s7612 + $0xc0] sm:$0xff]
        %v7638 = vld [vmem:[%s7612 + $0xc8] sm:$0xff]
        %v7639 = vld [vmem:[%s7612 + $0xd0] sm:$0xff]
        %v7640 = vld [vmem:[%s7612 + $0xd8] sm:$0xff]
        %v7641 = vld [vmem:[%s7612 + $0xe0] sm:$0xff]
        %v7642 = vld [vmem:[%s7612 + $0xe8] sm:$0xff]
        %v7643 = vld [vmem:[%s7612 + $0xf0] sm:$0xff]
        %v7644 = vld [vmem:[%s7612 + $0xf8] sm:$0xff]
        %v7645 = vld [vmem:[%s7612 + $0x100] sm:$0xff]
        %v7646 = vld [vmem:[%s7612 + $0x108] sm:$0xff]
        %v7647 = vld [vmem:[%s7612 + $0x110] sm:$0xff]
        %v7648 = vld [vmem:[%s7612 + $0x118] sm:$0xff]
        %v7649 = vld [vmem:[%s7612 + $0x120] sm:$0xff]
        %v7650 = vld [vmem:[%s7612 + $0x128] sm:$0xff]
        %v7651 = vld [vmem:[%s7612 + $0x130] sm:$0xff]
        %v7652 = vld [vmem:[%s7612 + $0x138] sm:$0xff]
        %v7653 = vld [vmem:[%s7612 + $0x140] sm:$0xff]
        %v7654 = vld [vmem:[%s7612 + $0x148] sm:$0xff]
        %v7655 = vld [vmem:[%s7612 + $0x150] sm:$0xff]
        %v7656 = vld [vmem:[%s7612 + $0x158] sm:$0xff]
        %v7657 = vld [vmem:[%s7612 + $0x160] sm:$0xff]
        %v7658 = vld [vmem:[%s7612 + $0x168] sm:$0xff]
        %v7659 = vld [vmem:[%s7612 + $0x170] sm:$0xff]
        %v7660 = vld [vmem:[%s7612 + $0x178] sm:$0xff]
        %v7661 = vld [vmem:[%s7612 + $0x180] sm:$0xff]
        %v7662 = vld [vmem:[%s7612 + $0x188] sm:$0xff]
        %v7663 = vld [vmem:[%s7612 + $0x190] sm:$0xff]
        %v7664 = vld [vmem:[%s7612 + $0x198] sm:$0xff]
        %v7665 = vld [vmem:[%s7612 + $0x1a0] sm:$0xff]
        %v7666 = vld [vmem:[%s7612 + $0x1a8] sm:$0xff]
        %v7667 = vld [vmem:[%s7612 + $0x1b0] sm:$0xff]
        %v7668 = vld [vmem:[%s7612 + $0x1b8] sm:$0xff]
        %v7669 = vld [vmem:[%s7612 + $0x1c0] sm:$0xff]
        %v7670 = vld [vmem:[%s7612 + $0x1c8] sm:$0xff]
        %v7671 = vld [vmem:[%s7612 + $0x1d0] sm:$0xff]
        %v7672 = vld [vmem:[%s7612 + $0x1d8] sm:$0xff]
        %v7673 = vld [vmem:[%s7612 + $0x1e0] sm:$0xff]
        %v7674 = vld [vmem:[%s7612 + $0x1e8] sm:$0xff]
        %v7675 = vld [vmem:[%s7612 + $0x1f0] sm:$0xff]
        %v7676 = vld [vmem:[%s7612 + $0x1f8] sm:$0xff]
        %v7677 = vld [vmem:[%s7612 + $0x200] sm:$0xff]
        %v7678 = vld [vmem:[%s7612 + $0x208] sm:$0xff]
        %v7679 = vld [vmem:[%s7612 + $0x210] sm:$0xff]
        %v7680 = vld [vmem:[%s7612 + $0x218] sm:$0xff]
        %v7681 = vld [vmem:[%s7612 + $0x220] sm:$0xff]
        %v7682 = vld [vmem:[%s7612 + $0x228] sm:$0xff]
        %v7683 = vld [vmem:[%s7612 + $0x230] sm:$0xff]
        %v7684 = vld [vmem:[%s7612 + $0x238] sm:$0xff]
        %v7685 = vld [vmem:[%s7612 + $0x240] sm:$0xff]
        %v7686 = vld [vmem:[%s7612 + $0x248] sm:$0xff]
        %v7687 = vld [vmem:[%s7612 + $0x250] sm:$0xff]
        %v7688 = vld [vmem:[%s7612 + $0x258] sm:$0xff]
        %v7689 = vld [vmem:[%s7612 + $0x260] sm:$0xff]
        %v7690 = vld [vmem:[%s7612 + $0x268] sm:$0xff]
        %v7691 = vld [vmem:[%s7612 + $0x270] sm:$0xff]
        %v7692 = vld [vmem:[%s7612 + $0x278] sm:$0xff]
        %v7693 = vld [vmem:[%s7612 + $0x280] sm:$0xff]
        %v7694 = vld [vmem:[%s7612 + $0x288] sm:$0xff]
        %v7695 = vld [vmem:[%s7612 + $0x290] sm:$0xff]
        %v7696 = vld [vmem:[%s7612 + $0x298] sm:$0xff]
        %v7697 = vld [vmem:[%s7612 + $0x2a0] sm:$0xff]
        %v7698 = vld [vmem:[%s7612 + $0x2a8] sm:$0xff]
        %v7699 = vld [vmem:[%s7612 + $0x2b0] sm:$0xff]
        %v7700 = vld [vmem:[%s7612 + $0x2b8] sm:$0xff]
        %v7701 = vld [vmem:[%s7612 + $0x2c0] sm:$0xff]
        %v7702 = vld [vmem:[%s7612 + $0x2c8] sm:$0xff]
        %v7703 = vld [vmem:[%s7612 + $0x2d0] sm:$0xff]
        %v7704 = vld [vmem:[%s7612 + $0x2d8] sm:$0xff]
        %v7705 = vld [vmem:[%s7612 + $0x2e0] sm:$0xff]
        %v7706 = vld [vmem:[%s7612 + $0x2e8] sm:$0xff]
        %v7707 = vld [vmem:[%s7612 + $0x2f0] sm:$0xff]
        %v7708 = vld [vmem:[%s7612 + $0x2f8] sm:$0xff]
        %v7709 = vld [vmem:[%s7612 + $0x300] sm:$0xff]
        %v7710 = vld [vmem:[%s7612 + $0x308] sm:$0xff]
        %v7711 = vld [vmem:[%s7612 + $0x310] sm:$0xff]
        %v7712 = vld [vmem:[%s7612 + $0x318] sm:$0xff]
        %v7713 = vld [vmem:[%s7612 + $0x320] sm:$0xff]
        %v7714 = vld [vmem:[%s7612 + $0x328] sm:$0xff]
        %v7715 = vld [vmem:[%s7612 + $0x330] sm:$0xff]
        %v7716 = vld [vmem:[%s7612 + $0x338] sm:$0xff]
        %v7717 = vld [vmem:[%s7612 + $0x340] sm:$0xff]
        %v7718 = vld [vmem:[%s7612 + $0x348] sm:$0xff]
        %v7719 = vld [vmem:[%s7612 + $0x350] sm:$0xff]
        %v7720 = vld [vmem:[%s7612 + $0x358] sm:$0xff]
        %v7721 = vld [vmem:[%s7612 + $0x360] sm:$0xff]
        %v7722 = vld [vmem:[%s7612 + $0x368] sm:$0xff]
        %v7723 = vld [vmem:[%s7612 + $0x370] sm:$0xff]
        %v7724 = vld [vmem:[%s7612 + $0x378] sm:$0xff]
        %v7725 = vld [vmem:[%s7612 + $0x380] sm:$0xff]
        %v7726 = vld [vmem:[%s7612 + $0x388] sm:$0xff]
        %v7727 = vld [vmem:[%s7612 + $0x390] sm:$0xff]
        %v7728 = vld [vmem:[%s7612 + $0x398] sm:$0xff]
        %v7729 = vld [vmem:[%s7612 + $0x3a0] sm:$0xff]
        %v7730 = vld [vmem:[%s7612 + $0x3a8] sm:$0xff]
        %v7731 = vld [vmem:[%s7612 + $0x3b0] sm:$0xff]
        %v7732 = vld [vmem:[%s7612 + $0x3b8] sm:$0xff]
        %v7733 = vld [vmem:[%s7612 + $0x3c0] sm:$0xff]
        %v7734 = vld [vmem:[%s7612 + $0x3c8] sm:$0xff]
        %v7735 = vld [vmem:[%s7612 + $0x3d0] sm:$0xff]
        %v7736 = vld [vmem:[%s7612 + $0x3d8] sm:$0xff]
        %v7737 = vld [vmem:[%s7612 + $0x3e0] sm:$0xff]
        %v7738 = vld [vmem:[%s7612 + $0x3e8] sm:$0xff]
        %v7739 = vld [vmem:[%s7612 + $0x3f0] sm:$0xff]
        %v7740 = vld [vmem:[%s7612 + $0x3f8] sm:$0xff]
        %v7743 = vunpack.c.l.b16 %v7610
        %v7744 = vunpack.c.h.b16 %v7610
        %v7745 = vunpack.c.l.b16 %v7611
        %v7746 = vunpack.c.h.b16 %v7611
        %v7747 = vpack.c.b16 %v6669, %v7743
        %v7748 = vpack.c.b16 %v6670, %v7744
        %v7749 = vpack.c.b16 %v6671, %v7745
        %v7750 = vpack.c.b16 %v6672, %v7746
        %vm7751 = vcmask 1046528
        %v7752 = vrot.slane %v7747, 1
        %v7753 = vrot.slane %v6681, 1
        %v7754 = vsel %vm7751, %v7752, %v7753
        %v7755 = vrot.slane %v7748, 1
        %v7756 = vrot.slane %v6682, 1
        %v7757 = vsel %vm7751, %v7755, %v7756
        %v7758 = vrot.slane %v7749, 1
        %v7759 = vrot.slane %v6683, 1
        %v7760 = vsel %vm7751, %v7758, %v7759
        %v7761 = vrot.slane %v7750, 1
        %v7762 = vrot.slane %v6684, 1
        %v7763 = vsel %vm7751, %v7761, %v7762
        %v7896 = vunpack.c.l.b16 %v7613
        %v7897 = vunpack.c.h.b16 %v7613
        %v7898 = vunpack.c.l.b16 %v7614
        %v7899 = vunpack.c.h.b16 %v7614
        %v7900 = vunpack.c.l.b16 %v7615
        %v7901 = vunpack.c.h.b16 %v7615
        %v7902 = vunpack.c.l.b16 %v7616
        %v7903 = vunpack.c.h.b16 %v7616
        %v7904 = vunpack.c.l.b16 %v7617
        %v7905 = vunpack.c.h.b16 %v7617
        %v7906 = vunpack.c.l.b16 %v7618
        %v7907 = vunpack.c.h.b16 %v7618
        %v7908 = vunpack.c.l.b16 %v7619
        %v7909 = vunpack.c.h.b16 %v7619
        %v7910 = vunpack.c.l.b16 %v7620
        %v7911 = vunpack.c.h.b16 %v7620
        %v7912 = vunpack.c.l.b16 %v7621
        %v7913 = vunpack.c.h.b16 %v7621
        %v7914 = vunpack.c.l.b16 %v7622
        %v7915 = vunpack.c.h.b16 %v7622
        %v7916 = vunpack.c.l.b16 %v7623
        %v7917 = vunpack.c.h.b16 %v7623
        %v7918 = vunpack.c.l.b16 %v7624
        %v7919 = vunpack.c.h.b16 %v7624
        %v7920 = vunpack.c.l.b16 %v7625
        %v7921 = vunpack.c.h.b16 %v7625
        %v7922 = vunpack.c.l.b16 %v7626
        %v7923 = vunpack.c.h.b16 %v7626
        %v7924 = vunpack.c.l.b16 %v7627
        %v7925 = vunpack.c.h.b16 %v7627
        %v7926 = vunpack.c.l.b16 %v7628
        %v7927 = vunpack.c.h.b16 %v7628
        %v7928 = vunpack.c.l.b16 %v7629
        %v7929 = vunpack.c.h.b16 %v7629
        %v7930 = vunpack.c.l.b16 %v7630
        %v7931 = vunpack.c.h.b16 %v7630
        %v7932 = vunpack.c.l.b16 %v7631
        %v7933 = vunpack.c.h.b16 %v7631
        %v7934 = vunpack.c.l.b16 %v7632
        %v7935 = vunpack.c.h.b16 %v7632
        %v7936 = vunpack.c.l.b16 %v7633
        %v7937 = vunpack.c.h.b16 %v7633
        %v7938 = vunpack.c.l.b16 %v7634
        %v7939 = vunpack.c.h.b16 %v7634
        %v7940 = vunpack.c.l.b16 %v7635
        %v7941 = vunpack.c.h.b16 %v7635
        %v7942 = vunpack.c.l.b16 %v7636
        %v7943 = vunpack.c.h.b16 %v7636
        %v7944 = vunpack.c.l.b16 %v7637
        %v7945 = vunpack.c.h.b16 %v7637
        %v7946 = vunpack.c.l.b16 %v7638
        %v7947 = vunpack.c.h.b16 %v7638
        %v7948 = vunpack.c.l.b16 %v7639
        %v7949 = vunpack.c.h.b16 %v7639
        %v7950 = vunpack.c.l.b16 %v7640
        %v7951 = vunpack.c.h.b16 %v7640
        %v7952 = vunpack.c.l.b16 %v7641
        %v7953 = vunpack.c.h.b16 %v7641
        %v7954 = vunpack.c.l.b16 %v7642
        %v7955 = vunpack.c.h.b16 %v7642
        %v7956 = vunpack.c.l.b16 %v7643
        %v7957 = vunpack.c.h.b16 %v7643
        %v7958 = vunpack.c.l.b16 %v7644
        %v7959 = vunpack.c.h.b16 %v7644
        %v7960 = vunpack.c.l.b16 %v7645
        %v7961 = vunpack.c.h.b16 %v7645
        %v7962 = vunpack.c.l.b16 %v7646
        %v7963 = vunpack.c.h.b16 %v7646
        %v7964 = vunpack.c.l.b16 %v7647
        %v7965 = vunpack.c.h.b16 %v7647
        %v7966 = vunpack.c.l.b16 %v7648
        %v7967 = vunpack.c.h.b16 %v7648
        %v7968 = vunpack.c.l.b16 %v7649
        %v7969 = vunpack.c.h.b16 %v7649
        %v7970 = vunpack.c.l.b16 %v7650
        %v7971 = vunpack.c.h.b16 %v7650
        %v7972 = vunpack.c.l.b16 %v7651
        %v7973 = vunpack.c.h.b16 %v7651
        %v7974 = vunpack.c.l.b16 %v7652
        %v7975 = vunpack.c.h.b16 %v7652
        %v7976 = vunpack.c.l.b16 %v7653
        %v7977 = vunpack.c.h.b16 %v7653
        %v7978 = vunpack.c.l.b16 %v7654
        %v7979 = vunpack.c.h.b16 %v7654
        %v7980 = vunpack.c.l.b16 %v7655
        %v7981 = vunpack.c.h.b16 %v7655
        %v7982 = vunpack.c.l.b16 %v7656
        %v7983 = vunpack.c.h.b16 %v7656
        %v7984 = vunpack.c.l.b16 %v7657
        %v7985 = vunpack.c.h.b16 %v7657
        %v7986 = vunpack.c.l.b16 %v7658
        %v7987 = vunpack.c.h.b16 %v7658
        %v7988 = vunpack.c.l.b16 %v7659
        %v7989 = vunpack.c.h.b16 %v7659
        %v7990 = vunpack.c.l.b16 %v7660
        %v7991 = vunpack.c.h.b16 %v7660
        %v7992 = vunpack.c.l.b16 %v7661
        %v7993 = vunpack.c.h.b16 %v7661
        %v7994 = vunpack.c.l.b16 %v7662
        %v7995 = vunpack.c.h.b16 %v7662
        %v7996 = vunpack.c.l.b16 %v7663
        %v7997 = vunpack.c.h.b16 %v7663
        %v7998 = vunpack.c.l.b16 %v7664
        %v7999 = vunpack.c.h.b16 %v7664
        %v8000 = vunpack.c.l.b16 %v7665
        %v8001 = vunpack.c.h.b16 %v7665
        %v8002 = vunpack.c.l.b16 %v7666
        %v8003 = vunpack.c.h.b16 %v7666
        %v8004 = vunpack.c.l.b16 %v7667
        %v8005 = vunpack.c.h.b16 %v7667
        %v8006 = vunpack.c.l.b16 %v7668
        %v8007 = vunpack.c.h.b16 %v7668
        %v8008 = vunpack.c.l.b16 %v7669
        %v8009 = vunpack.c.h.b16 %v7669
        %v8010 = vunpack.c.l.b16 %v7670
        %v8011 = vunpack.c.h.b16 %v7670
        %v8012 = vunpack.c.l.b16 %v7671
        %v8013 = vunpack.c.h.b16 %v7671
        %v8014 = vunpack.c.l.b16 %v7672
        %v8015 = vunpack.c.h.b16 %v7672
        %v8016 = vunpack.c.l.b16 %v7673
        %v8017 = vunpack.c.h.b16 %v7673
        %v8018 = vunpack.c.l.b16 %v7674
        %v8019 = vunpack.c.h.b16 %v7674
        %v8020 = vunpack.c.l.b16 %v7675
        %v8021 = vunpack.c.h.b16 %v7675
        %v8022 = vunpack.c.l.b16 %v7676
        %v8023 = vunpack.c.h.b16 %v7676
        %v8024 = vunpack.c.l.b16 %v7677
        %v8025 = vunpack.c.h.b16 %v7677
        %v8026 = vunpack.c.l.b16 %v7678
        %v8027 = vunpack.c.h.b16 %v7678
        %v8028 = vunpack.c.l.b16 %v7679
        %v8029 = vunpack.c.h.b16 %v7679
        %v8030 = vunpack.c.l.b16 %v7680
        %v8031 = vunpack.c.h.b16 %v7680
        %v8032 = vunpack.c.l.b16 %v7681
        %v8033 = vunpack.c.h.b16 %v7681
        %v8034 = vunpack.c.l.b16 %v7682
        %v8035 = vunpack.c.h.b16 %v7682
        %v8036 = vunpack.c.l.b16 %v7683
        %v8037 = vunpack.c.h.b16 %v7683
        %v8038 = vunpack.c.l.b16 %v7684
        %v8039 = vunpack.c.h.b16 %v7684
        %v8040 = vunpack.c.l.b16 %v7685
        %v8041 = vunpack.c.h.b16 %v7685
        %v8042 = vunpack.c.l.b16 %v7686
        %v8043 = vunpack.c.h.b16 %v7686
        %v8044 = vunpack.c.l.b16 %v7687
        %v8045 = vunpack.c.h.b16 %v7687
        %v8046 = vunpack.c.l.b16 %v7688
        %v8047 = vunpack.c.h.b16 %v7688
        %v8048 = vunpack.c.l.b16 %v7689
        %v8049 = vunpack.c.h.b16 %v7689
        %v8050 = vunpack.c.l.b16 %v7690
        %v8051 = vunpack.c.h.b16 %v7690
        %v8052 = vunpack.c.l.b16 %v7691
        %v8053 = vunpack.c.h.b16 %v7691
        %v8054 = vunpack.c.l.b16 %v7692
        %v8055 = vunpack.c.h.b16 %v7692
        %v8056 = vunpack.c.l.b16 %v7693
        %v8057 = vunpack.c.h.b16 %v7693
        %v8058 = vunpack.c.l.b16 %v7694
        %v8059 = vunpack.c.h.b16 %v7694
        %v8060 = vunpack.c.l.b16 %v7695
        %v8061 = vunpack.c.h.b16 %v7695
        %v8062 = vunpack.c.l.b16 %v7696
        %v8063 = vunpack.c.h.b16 %v7696
        %v8064 = vunpack.c.l.b16 %v7697
        %v8065 = vunpack.c.h.b16 %v7697
        %v8066 = vunpack.c.l.b16 %v7698
        %v8067 = vunpack.c.h.b16 %v7698
        %v8068 = vunpack.c.l.b16 %v7699
        %v8069 = vunpack.c.h.b16 %v7699
        %v8070 = vunpack.c.l.b16 %v7700
        %v8071 = vunpack.c.h.b16 %v7700
        %v8072 = vunpack.c.l.b16 %v7701
        %v8073 = vunpack.c.h.b16 %v7701
        %v8074 = vunpack.c.l.b16 %v7702
        %v8075 = vunpack.c.h.b16 %v7702
        %v8076 = vunpack.c.l.b16 %v7703
        %v8077 = vunpack.c.h.b16 %v7703
        %v8078 = vunpack.c.l.b16 %v7704
        %v8079 = vunpack.c.h.b16 %v7704
        %v8080 = vunpack.c.l.b16 %v7705
        %v8081 = vunpack.c.h.b16 %v7705
        %v8082 = vunpack.c.l.b16 %v7706
        %v8083 = vunpack.c.h.b16 %v7706
        %v8084 = vunpack.c.l.b16 %v7707
        %v8085 = vunpack.c.h.b16 %v7707
        %v8086 = vunpack.c.l.b16 %v7708
        %v8087 = vunpack.c.h.b16 %v7708
        %v8088 = vunpack.c.l.b16 %v7709
        %v8089 = vunpack.c.h.b16 %v7709
        %v8090 = vunpack.c.l.b16 %v7710
        %v8091 = vunpack.c.h.b16 %v7710
        %v8092 = vunpack.c.l.b16 %v7711
        %v8093 = vunpack.c.h.b16 %v7711
        %v8094 = vunpack.c.l.b16 %v7712
        %v8095 = vunpack.c.h.b16 %v7712
        %v8096 = vunpack.c.l.b16 %v7713
        %v8097 = vunpack.c.h.b16 %v7713
        %v8098 = vunpack.c.l.b16 %v7714
        %v8099 = vunpack.c.h.b16 %v7714
        %v8100 = vunpack.c.l.b16 %v7715
        %v8101 = vunpack.c.h.b16 %v7715
        %v8102 = vunpack.c.l.b16 %v7716
        %v8103 = vunpack.c.h.b16 %v7716
        %v8104 = vunpack.c.l.b16 %v7717
        %v8105 = vunpack.c.h.b16 %v7717
        %v8106 = vunpack.c.l.b16 %v7718
        %v8107 = vunpack.c.h.b16 %v7718
        %v8108 = vunpack.c.l.b16 %v7719
        %v8109 = vunpack.c.h.b16 %v7719
        %v8110 = vunpack.c.l.b16 %v7720
        %v8111 = vunpack.c.h.b16 %v7720
        %v8112 = vunpack.c.l.b16 %v7721
        %v8113 = vunpack.c.h.b16 %v7721
        %v8114 = vunpack.c.l.b16 %v7722
        %v8115 = vunpack.c.h.b16 %v7722
        %v8116 = vunpack.c.l.b16 %v7723
        %v8117 = vunpack.c.h.b16 %v7723
        %v8118 = vunpack.c.l.b16 %v7724
        %v8119 = vunpack.c.h.b16 %v7724
        %v8120 = vunpack.c.l.b16 %v7725
        %v8121 = vunpack.c.h.b16 %v7725
        %v8122 = vunpack.c.l.b16 %v7726
        %v8123 = vunpack.c.h.b16 %v7726
        %v8124 = vunpack.c.l.b16 %v7727
        %v8125 = vunpack.c.h.b16 %v7727
        %v8126 = vunpack.c.l.b16 %v7728
        %v8127 = vunpack.c.h.b16 %v7728
        %v8128 = vunpack.c.l.b16 %v7729
        %v8129 = vunpack.c.h.b16 %v7729
        %v8130 = vunpack.c.l.b16 %v7730
        %v8131 = vunpack.c.h.b16 %v7730
        %v8132 = vunpack.c.l.b16 %v7731
        %v8133 = vunpack.c.h.b16 %v7731
        %v8134 = vunpack.c.l.b16 %v7732
        %v8135 = vunpack.c.h.b16 %v7732
        %v8136 = vunpack.c.l.b16 %v7733
        %v8137 = vunpack.c.h.b16 %v7733
        %v8138 = vunpack.c.l.b16 %v7734
        %v8139 = vunpack.c.h.b16 %v7734
        %v8140 = vunpack.c.l.b16 %v7735
        %v8141 = vunpack.c.h.b16 %v7735
        %v8142 = vunpack.c.l.b16 %v7736
        %v8143 = vunpack.c.h.b16 %v7736
        %v8144 = vunpack.c.l.b16 %v7737
        %v8145 = vunpack.c.h.b16 %v7737
        %v8146 = vunpack.c.l.b16 %v7738
        %v8147 = vunpack.c.h.b16 %v7738
        %v8148 = vunpack.c.l.b16 %v7739
        %v8149 = vunpack.c.h.b16 %v7739
        %v8150 = vunpack.c.l.b16 %v7740
        %v8151 = vunpack.c.h.b16 %v7740
        %v8152 = vpack.c.b16 %v7900, %v7896
        %v8153 = vpack.c.b16 %v7901, %v7897
        %v8154 = vpack.c.b16 %v7902, %v7898
        %v8155 = vpack.c.b16 %v7903, %v7899
        %v8156 = vpack.c.b16 %v7908, %v7904
        %v8157 = vpack.c.b16 %v7909, %v7905
        %v8158 = vpack.c.b16 %v7910, %v7906
        %v8159 = vpack.c.b16 %v7911, %v7907
        %v8160 = vpack.c.b16 %v7916, %v7912
        %v8161 = vpack.c.b16 %v7917, %v7913
        %v8162 = vpack.c.b16 %v7918, %v7914
        %v8163 = vpack.c.b16 %v7919, %v7915
        %v8164 = vpack.c.b16 %v7924, %v7920
        %v8165 = vpack.c.b16 %v7925, %v7921
        %v8166 = vpack.c.b16 %v7926, %v7922
        %v8167 = vpack.c.b16 %v7927, %v7923
        %v8168 = vpack.c.b16 %v7932, %v7928
        %v8169 = vpack.c.b16 %v7933, %v7929
        %v8170 = vpack.c.b16 %v7934, %v7930
        %v8171 = vpack.c.b16 %v7935, %v7931
        %v8172 = vpack.c.b16 %v7940, %v7936
        %v8173 = vpack.c.b16 %v7941, %v7937
        %v8174 = vpack.c.b16 %v7942, %v7938
        %v8175 = vpack.c.b16 %v7943, %v7939
        %v8176 = vpack.c.b16 %v7948, %v7944
        %v8177 = vpack.c.b16 %v7949, %v7945
        %v8178 = vpack.c.b16 %v7950, %v7946
        %v8179 = vpack.c.b16 %v7951, %v7947
        %v8180 = vpack.c.b16 %v7956, %v7952
        %v8181 = vpack.c.b16 %v7957, %v7953
        %v8182 = vpack.c.b16 %v7958, %v7954
        %v8183 = vpack.c.b16 %v7959, %v7955
        %v8184 = vpack.c.b16 %v7964, %v7960
        %v8185 = vpack.c.b16 %v7965, %v7961
        %v8186 = vpack.c.b16 %v7966, %v7962
        %v8187 = vpack.c.b16 %v7967, %v7963
        %v8188 = vpack.c.b16 %v7972, %v7968
        %v8189 = vpack.c.b16 %v7973, %v7969
        %v8190 = vpack.c.b16 %v7974, %v7970
        %v8191 = vpack.c.b16 %v7975, %v7971
        %v8192 = vpack.c.b16 %v7980, %v7976
        %v8193 = vpack.c.b16 %v7981, %v7977
        %v8194 = vpack.c.b16 %v7982, %v7978
        %v8195 = vpack.c.b16 %v7983, %v7979
        %v8196 = vpack.c.b16 %v7988, %v7984
        %v8197 = vpack.c.b16 %v7989, %v7985
        %v8198 = vpack.c.b16 %v7990, %v7986
        %v8199 = vpack.c.b16 %v7991, %v7987
        %v8200 = vpack.c.b16 %v7996, %v7992
        %v8201 = vpack.c.b16 %v7997, %v7993
        %v8202 = vpack.c.b16 %v7998, %v7994
        %v8203 = vpack.c.b16 %v7999, %v7995
        %v8204 = vpack.c.b16 %v8004, %v8000
        %v8205 = vpack.c.b16 %v8005, %v8001
        %v8206 = vpack.c.b16 %v8006, %v8002
        %v8207 = vpack.c.b16 %v8007, %v8003
        %v8208 = vpack.c.b16 %v8012, %v8008
        %v8209 = vpack.c.b16 %v8013, %v8009
        %v8210 = vpack.c.b16 %v8014, %v8010
        %v8211 = vpack.c.b16 %v8015, %v8011
        %v8212 = vpack.c.b16 %v8020, %v8016
        %v8213 = vpack.c.b16 %v8021, %v8017
        %v8214 = vpack.c.b16 %v8022, %v8018
        %v8215 = vpack.c.b16 %v8023, %v8019
        %v8216 = vpack.c.b16 %v8028, %v8024
        %v8217 = vpack.c.b16 %v8029, %v8025
        %v8218 = vpack.c.b16 %v8030, %v8026
        %v8219 = vpack.c.b16 %v8031, %v8027
        %v8220 = vpack.c.b16 %v8036, %v8032
        %v8221 = vpack.c.b16 %v8037, %v8033
        %v8222 = vpack.c.b16 %v8038, %v8034
        %v8223 = vpack.c.b16 %v8039, %v8035
        %v8224 = vpack.c.b16 %v8044, %v8040
        %v8225 = vpack.c.b16 %v8045, %v8041
        %v8226 = vpack.c.b16 %v8046, %v8042
        %v8227 = vpack.c.b16 %v8047, %v8043
        %v8228 = vpack.c.b16 %v8052, %v8048
        %v8229 = vpack.c.b16 %v8053, %v8049
        %v8230 = vpack.c.b16 %v8054, %v8050
        %v8231 = vpack.c.b16 %v8055, %v8051
        %v8232 = vpack.c.b16 %v8060, %v8056
        %v8233 = vpack.c.b16 %v8061, %v8057
        %v8234 = vpack.c.b16 %v8062, %v8058
        %v8235 = vpack.c.b16 %v8063, %v8059
        %v8236 = vpack.c.b16 %v8068, %v8064
        %v8237 = vpack.c.b16 %v8069, %v8065
        %v8238 = vpack.c.b16 %v8070, %v8066
        %v8239 = vpack.c.b16 %v8071, %v8067
        %v8240 = vpack.c.b16 %v8076, %v8072
        %v8241 = vpack.c.b16 %v8077, %v8073
        %v8242 = vpack.c.b16 %v8078, %v8074
        %v8243 = vpack.c.b16 %v8079, %v8075
        %v8244 = vpack.c.b16 %v8084, %v8080
        %v8245 = vpack.c.b16 %v8085, %v8081
        %v8246 = vpack.c.b16 %v8086, %v8082
        %v8247 = vpack.c.b16 %v8087, %v8083
        %v8248 = vpack.c.b16 %v8092, %v8088
        %v8249 = vpack.c.b16 %v8093, %v8089
        %v8250 = vpack.c.b16 %v8094, %v8090
        %v8251 = vpack.c.b16 %v8095, %v8091
        %v8252 = vpack.c.b16 %v8100, %v8096
        %v8253 = vpack.c.b16 %v8101, %v8097
        %v8254 = vpack.c.b16 %v8102, %v8098
        %v8255 = vpack.c.b16 %v8103, %v8099
        %v8256 = vpack.c.b16 %v8108, %v8104
        %v8257 = vpack.c.b16 %v8109, %v8105
        %v8258 = vpack.c.b16 %v8110, %v8106
        %v8259 = vpack.c.b16 %v8111, %v8107
        %v8260 = vpack.c.b16 %v8116, %v8112
        %v8261 = vpack.c.b16 %v8117, %v8113
        %v8262 = vpack.c.b16 %v8118, %v8114
        %v8263 = vpack.c.b16 %v8119, %v8115
        %v8264 = vpack.c.b16 %v8124, %v8120
        %v8265 = vpack.c.b16 %v8125, %v8121
        %v8266 = vpack.c.b16 %v8126, %v8122
        %v8267 = vpack.c.b16 %v8127, %v8123
        %v8268 = vpack.c.b16 %v8132, %v8128
        %v8269 = vpack.c.b16 %v8133, %v8129
        %v8270 = vpack.c.b16 %v8134, %v8130
        %v8271 = vpack.c.b16 %v8135, %v8131
        %v8272 = vpack.c.b16 %v8140, %v8136
        %v8273 = vpack.c.b16 %v8141, %v8137
        %v8274 = vpack.c.b16 %v8142, %v8138
        %v8275 = vpack.c.b16 %v8143, %v8139
        %v8276 = vpack.c.b16 %v8148, %v8144
        %v8277 = vpack.c.b16 %v8149, %v8145
        %v8278 = vpack.c.b16 %v8150, %v8146
        %v8279 = vpack.c.b16 %v8151, %v8147
        %8408 = vmatpush.bf16.msra.mxu0 %v8180
        %8409 = vmatpush.bf16.msra.mxu0 %v8176
        %8410 = vmatpush.bf16.msra.mxu0 %v8172
        %8411 = vmatpush.bf16.msra.mxu0 %v8168
        %8412 = vmatpush.bf16.msra.mxu0 %v8164
        %8413 = vmatpush.bf16.msra.mxu0 %v8160
        %8414 = vmatpush.bf16.msra.mxu0 %v8156
        %8415 = vmatpush.bf16.msra.mxu0 %v8152
        %8416 = vmatmul.bf16.gmra.mxu0 %v7754
        %v8417 = vpop.f32.mrf.mxu0
        %v8418 = vadd.f32 0.0, %v8417
        %v8419 = vpop.f32.mrf.mxu0
        %v8420 = vadd.f32 0.0, %v8419
        %8421 = vdwg.mxu0
        %8422 = vmatpush.bf16.msra.mxu0 %v8212
        %8423 = vmatpush.bf16.msra.mxu0 %v8208
        %8424 = vmatpush.bf16.msra.mxu0 %v8204
        %8425 = vmatpush.bf16.msra.mxu0 %v8200
        %8426 = vmatpush.bf16.msra.mxu0 %v8196
        %8427 = vmatpush.bf16.msra.mxu0 %v8192
        %8428 = vmatpush.bf16.msra.mxu0 %v8188
        %8429 = vmatpush.bf16.msra.mxu0 %v8184
        %8430 = vmatmul.bf16.gmra.mxu0 %v7757
        %v8431 = vpop.f32.mrf.mxu0
        %v8432 = vadd.f32 %v8418, %v8431
        %v8433 = vpop.f32.mrf.mxu0
        %v8434 = vadd.f32 %v8420, %v8433
        %8435 = vdwg.mxu0
        %8436 = vmatpush.bf16.msra.mxu0 %v8244
        %8437 = vmatpush.bf16.msra.mxu0 %v8240
        %8438 = vmatpush.bf16.msra.mxu0 %v8236
        %8439 = vmatpush.bf16.msra.mxu0 %v8232
        %8440 = vmatpush.bf16.msra.mxu0 %v8228
        %8441 = vmatpush.bf16.msra.mxu0 %v8224
        %8442 = vmatpush.bf16.msra.mxu0 %v8220
        %8443 = vmatpush.bf16.msra.mxu0 %v8216
        %8444 = vmatmul.bf16.gmra.mxu0 %v7760
        %v8445 = vpop.f32.mrf.mxu0
        %v8446 = vadd.f32 %v8432, %v8445
        %v8447 = vpop.f32.mrf.mxu0
        %v8448 = vadd.f32 %v8434, %v8447
        %8449 = vdwg.mxu0
        %8450 = vmatpush.bf16.msra.mxu0 %v8276
        %8451 = vmatpush.bf16.msra.mxu0 %v8272
        %8452 = vmatpush.bf16.msra.mxu0 %v8268
        %8453 = vmatpush.bf16.msra.mxu0 %v8264
        %8454 = vmatpush.bf16.msra.mxu0 %v8260
        %8455 = vmatpush.bf16.msra.mxu0 %v8256
        %8456 = vmatpush.bf16.msra.mxu0 %v8252
        %8457 = vmatpush.bf16.msra.mxu0 %v8248
        %8458 = vmatmul.bf16.gmra.mxu0 %v7763
        %v8459 = vpop.f32.mrf.mxu0
        %v8460 = vadd.f32 %v8446, %v8459
        %v8461 = vpop.f32.mrf.mxu0
        %v8462 = vadd.f32 %v8448, %v8461
        %8463 = vdwg.mxu0
        %8464 = vmatpush.bf16.msra.mxu0 %v8181
        %8465 = vmatpush.bf16.msra.mxu0 %v8177
        %8466 = vmatpush.bf16.msra.mxu0 %v8173
        %8467 = vmatpush.bf16.msra.mxu0 %v8169
        %8468 = vmatpush.bf16.msra.mxu0 %v8165
        %8469 = vmatpush.bf16.msra.mxu0 %v8161
        %8470 = vmatpush.bf16.msra.mxu0 %v8157
        %8471 = vmatpush.bf16.msra.mxu0 %v8153
        %8472 = vmatmul.bf16.gmra.mxu0 %v7754
        %v8473 = vpop.f32.mrf.mxu0
        %v8474 = vadd.f32 0.0, %v8473
        %v8475 = vpop.f32.mrf.mxu0
        %v8476 = vadd.f32 0.0, %v8475
        %8477 = vdwg.mxu0
        %8478 = vmatpush.bf16.msra.mxu0 %v8213
        %8479 = vmatpush.bf16.msra.mxu0 %v8209
        %8480 = vmatpush.bf16.msra.mxu0 %v8205
        %8481 = vmatpush.bf16.msra.mxu0 %v8201
        %8482 = vmatpush.bf16.msra.mxu0 %v8197
        %8483 = vmatpush.bf16.msra.mxu0 %v8193
        %8484 = vmatpush.bf16.msra.mxu0 %v8189
        %8485 = vmatpush.bf16.msra.mxu0 %v8185
        %8486 = vmatmul.bf16.gmra.mxu0 %v7757
        %v8487 = vpop.f32.mrf.mxu0
        %v8488 = vadd.f32 %v8474, %v8487
        %v8489 = vpop.f32.mrf.mxu0
        %v8490 = vadd.f32 %v8476, %v8489
        %8491 = vdwg.mxu0
        %8492 = vmatpush.bf16.msra.mxu0 %v8245
        %8493 = vmatpush.bf16.msra.mxu0 %v8241
        %8494 = vmatpush.bf16.msra.mxu0 %v8237
        %8495 = vmatpush.bf16.msra.mxu0 %v8233
        %8496 = vmatpush.bf16.msra.mxu0 %v8229
        %8497 = vmatpush.bf16.msra.mxu0 %v8225
        %8498 = vmatpush.bf16.msra.mxu0 %v8221
        %8499 = vmatpush.bf16.msra.mxu0 %v8217
        %8500 = vmatmul.bf16.gmra.mxu0 %v7760
        %v8501 = vpop.f32.mrf.mxu0
        %v8502 = vadd.f32 %v8488, %v8501
        %v8503 = vpop.f32.mrf.mxu0
        %v8504 = vadd.f32 %v8490, %v8503
        %8505 = vdwg.mxu0
        %8506 = vmatpush.bf16.msra.mxu0 %v8277
        %8507 = vmatpush.bf16.msra.mxu0 %v8273
        %8508 = vmatpush.bf16.msra.mxu0 %v8269
        %8509 = vmatpush.bf16.msra.mxu0 %v8265
        %8510 = vmatpush.bf16.msra.mxu0 %v8261
        %8511 = vmatpush.bf16.msra.mxu0 %v8257
        %8512 = vmatpush.bf16.msra.mxu0 %v8253
        %8513 = vmatpush.bf16.msra.mxu0 %v8249
        %8514 = vmatmul.bf16.gmra.mxu0 %v7763
        %v8515 = vpop.f32.mrf.mxu0
        %v8516 = vadd.f32 %v8502, %v8515
        %v8517 = vpop.f32.mrf.mxu0
        %v8518 = vadd.f32 %v8504, %v8517
        %8519 = vdwg.mxu0
        %8520 = vmatpush.bf16.msra.mxu0 %v8182
        %8521 = vmatpush.bf16.msra.mxu0 %v8178
        %8522 = vmatpush.bf16.msra.mxu0 %v8174
        %8523 = vmatpush.bf16.msra.mxu0 %v8170
        %8524 = vmatpush.bf16.msra.mxu0 %v8166
        %8525 = vmatpush.bf16.msra.mxu0 %v8162
        %8526 = vmatpush.bf16.msra.mxu0 %v8158
        %8527 = vmatpush.bf16.msra.mxu0 %v8154
        %8528 = vmatmul.bf16.gmra.mxu0 %v7754
        %v8529 = vpop.f32.mrf.mxu0
        %v8530 = vadd.f32 0.0, %v8529
        %v8531 = vpop.f32.mrf.mxu0
        %v8532 = vadd.f32 0.0, %v8531
        %8533 = vdwg.mxu0
        %8534 = vmatpush.bf16.msra.mxu0 %v8214
        %8535 = vmatpush.bf16.msra.mxu0 %v8210
        %8536 = vmatpush.bf16.msra.mxu0 %v8206
        %8537 = vmatpush.bf16.msra.mxu0 %v8202
        %8538 = vmatpush.bf16.msra.mxu0 %v8198
        %8539 = vmatpush.bf16.msra.mxu0 %v8194
        %8540 = vmatpush.bf16.msra.mxu0 %v8190
        %8541 = vmatpush.bf16.msra.mxu0 %v8186
        %8542 = vmatmul.bf16.gmra.mxu0 %v7757
        %v8543 = vpop.f32.mrf.mxu0
        %v8544 = vadd.f32 %v8530, %v8543
        %v8545 = vpop.f32.mrf.mxu0
        %v8546 = vadd.f32 %v8532, %v8545
        %8547 = vdwg.mxu0
        %8548 = vmatpush.bf16.msra.mxu0 %v8246
        %8549 = vmatpush.bf16.msra.mxu0 %v8242
        %8550 = vmatpush.bf16.msra.mxu0 %v8238
        %8551 = vmatpush.bf16.msra.mxu0 %v8234
        %8552 = vmatpush.bf16.msra.mxu0 %v8230
        %8553 = vmatpush.bf16.msra.mxu0 %v8226
        %8554 = vmatpush.bf16.msra.mxu0 %v8222
        %8555 = vmatpush.bf16.msra.mxu0 %v8218
        %8556 = vmatmul.bf16.gmra.mxu0 %v7760
        %v8557 = vpop.f32.mrf.mxu0
        %v8558 = vadd.f32 %v8544, %v8557
        %v8559 = vpop.f32.mrf.mxu0
        %v8560 = vadd.f32 %v8546, %v8559
        %8561 = vdwg.mxu0
        %8562 = vmatpush.bf16.msra.mxu0 %v8278
        %8563 = vmatpush.bf16.msra.mxu0 %v8274
        %8564 = vmatpush.bf16.msra.mxu0 %v8270
        %8565 = vmatpush.bf16.msra.mxu0 %v8266
        %8566 = vmatpush.bf16.msra.mxu0 %v8262
        %8567 = vmatpush.bf16.msra.mxu0 %v8258
        %8568 = vmatpush.bf16.msra.mxu0 %v8254
        %8569 = vmatpush.bf16.msra.mxu0 %v8250
        %8570 = vmatmul.bf16.gmra.mxu0 %v7763
        %v8571 = vpop.f32.mrf.mxu0
        %v8572 = vadd.f32 %v8558, %v8571
        %v8573 = vpop.f32.mrf.mxu0
        %v8574 = vadd.f32 %v8560, %v8573
        %8575 = vdwg.mxu0
        %8576 = vmatpush.bf16.msra.mxu0 %v8183
        %8577 = vmatpush.bf16.msra.mxu0 %v8179
        %8578 = vmatpush.bf16.msra.mxu0 %v8175
        %8579 = vmatpush.bf16.msra.mxu0 %v8171
        %8580 = vmatpush.bf16.msra.mxu0 %v8167
        %8581 = vmatpush.bf16.msra.mxu0 %v8163
        %8582 = vmatpush.bf16.msra.mxu0 %v8159
        %8583 = vmatpush.bf16.msra.mxu0 %v8155
        %8584 = vmatmul.bf16.gmra.mxu0 %v7754
        %v8585 = vpop.f32.mrf.mxu0
        %v8586 = vadd.f32 0.0, %v8585
        %v8587 = vpop.f32.mrf.mxu0
        %v8588 = vadd.f32 0.0, %v8587
        %8589 = vdwg.mxu0
        %8590 = vmatpush.bf16.msra.mxu0 %v8215
        %8591 = vmatpush.bf16.msra.mxu0 %v8211
        %8592 = vmatpush.bf16.msra.mxu0 %v8207
        %8593 = vmatpush.bf16.msra.mxu0 %v8203
        %8594 = vmatpush.bf16.msra.mxu0 %v8199
        %8595 = vmatpush.bf16.msra.mxu0 %v8195
        %8596 = vmatpush.bf16.msra.mxu0 %v8191
        %8597 = vmatpush.bf16.msra.mxu0 %v8187
        %8598 = vmatmul.bf16.gmra.mxu0 %v7757
        %v8599 = vpop.f32.mrf.mxu0
        %v8600 = vadd.f32 %v8586, %v8599
        %v8601 = vpop.f32.mrf.mxu0
        %v8602 = vadd.f32 %v8588, %v8601
        %8603 = vdwg.mxu0
        %8604 = vmatpush.bf16.msra.mxu0 %v8247
        %8605 = vmatpush.bf16.msra.mxu0 %v8243
        %8606 = vmatpush.bf16.msra.mxu0 %v8239
        %8607 = vmatpush.bf16.msra.mxu0 %v8235
        %8608 = vmatpush.bf16.msra.mxu0 %v8231
        %8609 = vmatpush.bf16.msra.mxu0 %v8227
        %8610 = vmatpush.bf16.msra.mxu0 %v8223
        %8611 = vmatpush.bf16.msra.mxu0 %v8219
        %8612 = vmatmul.bf16.gmra.mxu0 %v7760
        %v8613 = vpop.f32.mrf.mxu0
        %v8614 = vadd.f32 %v8600, %v8613
        %v8615 = vpop.f32.mrf.mxu0
        %v8616 = vadd.f32 %v8602, %v8615
        %8617 = vdwg.mxu0
        %8618 = vmatpush.bf16.msra.mxu0 %v8279
        %8619 = vmatpush.bf16.msra.mxu0 %v8275
        %8620 = vmatpush.bf16.msra.mxu0 %v8271
        %8621 = vmatpush.bf16.msra.mxu0 %v8267
        %8622 = vmatpush.bf16.msra.mxu0 %v8263
        %8623 = vmatpush.bf16.msra.mxu0 %v8259
        %8624 = vmatpush.bf16.msra.mxu0 %v8255
        %8625 = vmatpush.bf16.msra.mxu0 %v8251
        %8626 = vmatmul.bf16.gmra.mxu0 %v7763
        %v8627 = vpop.f32.mrf.mxu0
        %v8628 = vadd.f32 %v8614, %v8627
        %v8629 = vpop.f32.mrf.mxu0
        %v8630 = vadd.f32 %v8616, %v8629
        %8631 = vdwg.mxu0
        %v8632 = vadd.f32 %v7602, %v8460
        %v8633 = vadd.f32 %v7603, %v8516
        %v8634 = vadd.f32 %v7604, %v8572
        %v8635 = vadd.f32 %v7605, %v8628
        %v8636 = vadd.f32 %v7606, %v8462
        %v8637 = vadd.f32 %v7607, %v8518
        %v8638 = vadd.f32 %v7608, %v8574
        %v8639 = vadd.f32 %v7609, %v8630
        %8640 = vst [vmem:[%s307] sm:$0xff] %v8632
        %8641 = vst [vmem:[%s307 + $0x8] sm:$0xff] %v8633
        %8642 = vst [vmem:[%s307 + $0x10] sm:$0xff] %v8634
        %8643 = vst [vmem:[%s307 + $0x18] sm:$0xff] %v8635
        %8644 = vst [vmem:[%s307 + $0x20] sm:$0xff] %v8636
        %8645 = vst [vmem:[%s307 + $0x28] sm:$0xff] %v8637
        %8646 = vst [vmem:[%s307 + $0x30] sm:$0xff] %v8638
        %8647 = vst [vmem:[%s307 + $0x38] sm:$0xff] %v8639
        %s8648 = sand.u32 %s142, 1
        %s8649 = scalar_lea.sflag [#allocation5], %s8648
        %s8650 = sand.u32 %s142, 1
        %s8651 = smul.addr %s8650, 64
        %s8652 = scalar_lea.vmem [#allocation12], %s8651
        // Predicated region
        $region61: #{tpu_custom_call.1} parent=39 // pred_check
          %p8653 = pneg %p152
        $region62: #{tpu_custom_call.1} parent=39 // pred_check_branch
          %8655 = sbr.rel (%p8653) target = $region64
        $region63: #{tpu_custom_call.1} parent=39 // pred_region
          %s8656 = smul.u32 2, %s24
          %8658 = vsyncadd %s8649, 0
          %s8659 = smul.addr %s8656, 4
          %s8660 = smul.addr %s8659, 8
          %s8661 = scalar_lea.hbm %s5, %s8660
          %s8662 = sshll.u32 %s8652, 4
          %s8663 = int_to_ptr.vmem [resolvable:$true] %s8662
          %s8664 = sshll.u32 %s8661, 4
          %s8665 = int_to_ptr.hbm [resolvable:$true] %s8664
          %8670 = dma.vmem_to_hbm [thread:$0]  %s8663, 1024, %s8665, %s8649, 512, 512, 32
        $region64: #{tpu_custom_call.1} parent=39 // pred_fallthru
          _
      $region40: #{tpu_custom_call.1} parent=5 // pred_fallthru
        _
      %p8671 = scmp.le.s32.totalorder 2, %s19
      // Predicated region
      $region65: #{tpu_custom_call.1} parent=5 // pred_check
        %p8672 = pneg %p8671
      $region66: #{tpu_custom_call.1} parent=5 // pred_check_branch
        %8674 = sbr.rel (%p8672) target = $region68
      $region67: #{tpu_custom_call.1} parent=5 // pred_region
        %s8675 = ssub.s32 %s19, 2
        // Predicated region
        $region69: #{tpu_custom_call.1} parent=67 // pred_check
          %p8676 = pneg %p158
        $region70: #{tpu_custom_call.1} parent=67 // pred_check_branch
          %8678 = sbr.rel (%p8676) target = $region72
        $region71: #{tpu_custom_call.1} parent=67 // pred_region
          %s8679 = sand.u32 %s143, 1
          %s8680 = scalar_lea.sflag [#allocation5], %s8679
          %s8681 = sand.u32 %s143, 1
          %s8682 = smul.addr %s8681, 64
          %s8683 = scalar_lea.vmem [#allocation12], %s8682
          %8685 = dma.done %s8680, 1024
        $region72: #{tpu_custom_call.1} parent=67 // pred_fallthru
          _
      $region68: #{tpu_custom_call.1} parent=5 // pred_fallthru
        _
    $region6: #{tpu_custom_call.1} parent=1 // loop_footer
      %s23 = sadd.s32 1, %s19
    $region7: #{tpu_custom_call.1} parent=1 // loop_footer_branch
      %18 = sbr.rel target = $region3
    $region8: #{tpu_custom_call.1} parent=1 // loop_exit
      _
    %8686 = vsyncpa [#allocation4], 1
    %s8687 = scalar_lea.sflag [#allocation4], 1
    %8688 = vsyncpa %s8687, 1
    %8689 = vsyncpa [#allocation7], 1
    %8690 = vsyncpa [#allocation10], 1
    %8691 = vsyncpa [#allocation5], 1
    %s8692 = scalar_lea.sflag [#allocation5], 1
    %8693 = vsyncpa %s8692, 1

</llo_original>
